<compile_context>
chip_gen: v7x
topology: tpu7x:2x2x1
jax: 0.10.0
libtpu: 0.0.40
codegen_flags: <defaults>
</compile_context>

<pallas_src>
import numpy as np
import jax
import jax.numpy as jnp
from jax import lax
from jax.experimental import pallas as pl
from jax.experimental.pallas import tpu as pltpu

KW = 4        # kernel size
PAD = 2       # int(np.ceil((4 - 1.0) / 2))
EPS = 1e-5    # nn.BatchNorm2d default eps
SLOPE = 0.2   # LeakyReLU negative slope
LANE = 128
TM_MAX = 512
VMEM_BUDGET = 48 * 1024 * 1024


def _round_up(x, m):
    return ((x + m - 1) // m) * m


# ------------------------------ Pallas kernels ------------------------------ #
def _make_conv_kernel(phases, shifts, add_bias, fuse_act, emit_stats, tm, single_m):
    """Implicit-GEMM 4x4 conv for one (sample, m-tile) grid cell.

    Each tap is a shifted (tm, Cin) slice of the VMEM-resident phase-decomposed
    sample, matmul'd with that tap's (Cin, Cout) weight slab, accumulated in
    f32.  Epilogue: optional bias + LeakyReLU, bf16 store, and (for BN layers)
    per-tile *centered* statistics written as direct row stores.
    """
    n_taps = len(shifts)

    def kernel(*refs):
        idx = 0
        if emit_stats:
            mask_ref = refs[idx]; idx += 1
        x_ref = refs[idx]
        w_ref = refs[idx + 1]
        idx += 2
        if add_bias:
            b_ref = refs[idx]; idx += 1
        o_ref = refs[idx]; idx += 1
        if emit_stats:
            stats_ref = refs[idx]

        if single_m:
            base = 0                                   # static slice starts
        else:
            base = pl.multiple_of(pl.program_id(1) * tm, 8)

        acc = None
        for t in range(n_taps):
            lhs = x_ref[0, phases[t], pl.ds(base + shifts[t], tm), :]
            prod = jnp.dot(lhs, w_ref[t], preferred_element_type=jnp.float32)
            acc = prod if acc is None else acc + prod

        if add_bias:
            acc = acc + b_ref[...]
        if fuse_act:
            acc = jnp.where(acc >= 0.0, acc, SLOPE * acc)
        o_ref[0] = acc.astype(o_ref.dtype)

        if emit_stats:
            mask = mask_ref[...]                                   # (tm, 1) f32
            nv = jnp.sum(mask, axis=0, keepdims=True)              # (1, 1)
            s = jnp.sum(acc * mask, axis=0, keepdims=True)         # (1, C)
            mean_t = s / jnp.maximum(nv, 1.0)
            d = (acc - mean_t) * mask
            ssc = jnp.sum(d * d, axis=0, keepdims=True)            # (1, C)
            stats_ref[0, 0, 0:1, :] = s
            stats_ref[0, 0, 1:2, :] = ssc
            stats_ref[0, 0, 2:3, :] = jnp.zeros_like(s) + nv

    return kernel


def _make_bn_act_kernel(use_act):
    """Fused per-channel scale*y + shift (folded BN) + optional LeakyReLU; bf16 in/out."""

    def kernel(y_ref, scale_ref, shift_ref, o_ref):
        z = y_ref[0].astype(jnp.float32) * scale_ref[...] + shift_ref[...]
        if use_act:
            z = jnp.where(z >= 0.0, z, SLOPE * z)
        o_ref[0] = z.astype(o_ref.dtype)

    return kernel


# ------------------------------ conv block ---------------------------------- #
def conv_block_pallas(h, w, b, gamma, beta, *, stride, use_bn, use_act):
    """Conv2d(k=4, pad=2, stride) [+ BatchNorm(batch stats)] [+ LeakyReLU(0.2)].

    h: (N, H, W, Cin) bf16.  Returns (N, Hout, Wout, Cout) bf16.
    """
    N, H, Wd, Cin = h.shape
    KH, KWw, _, Cout = w.shape
    s = stride
    Hout = (H + 2 * PAD - KH) // s + 1
    Wout = (Wd + 2 * PAD - KWw) // s + 1

    # ---- layout glue (XLA): zero-pad + stride-phase decompose + flatten. -----
    # ~1x traffic -- no im2col duplication.
    xp = jnp.pad(h, ((0, 0), (PAD, PAD), (PAD, PAD), (0, 0)))
    Hp, Wp = H + 2 * PAD, Wd + 2 * PAD
    Hq, Wq = -(-Hp // s), -(-Wp // s)
    xp = jnp.pad(xp, ((0, 0), (0, Hq * s - Hp), (0, Wq * s - Wp), (0, 0)))
    xph = xp.reshape(N, Hq, s, Wq, s, Cin).transpose(0, 2, 4, 1, 3, 5)
    PH = s * s                                         # number of stride phases

    Cin_p = _round_up(Cin, 8)
    C_pad = _round_up(Cout, LANE)
    Wph = Wq
    Mvirt = Hout * Wph                     # virtual output rows (incl. wrap cols)
    TM = min(TM_MAX, _round_up(Mvirt, 8))
    M_pad = _round_up(Mvirt, TM)
    m_tiles = M_pad // TM

    # Tap -> (phase index, flat row shift) within the phase-decomposed flat layout.
    phases, shifts = [], []
    for i in range(KH):
        for j in range(KWw):
            phases.append((i % s) * s + (j % s))
            shifts.append((i // s) * Wph + (j // s))
    max_shift = max(shifts)

    Sp = max(Hq * Wph, M_pad + max_shift)
    xflat = xph.reshape(N, PH, Hq * Wph, Cin)
    xflat = jnp.pad(xflat, ((0, 0), (0, 0), (0, Sp - Hq * Wph), (0, Cin_p - Cin)))
    wflat = jnp.pad(w.astype(jnp.bfloat16).reshape(KH * KWw, Cin, Cout),
                    ((0, 0), (0, Cin_p - Cin), (0, C_pad - Cout)))

    add_bias = not use_bn                  # bias cancels exactly under BatchNorm
    fuse_act = use_act and not use_bn

    args, in_specs = [], []
    if use_bn:
        # Validity mask over virtual rows: excludes wrap-around columns and rows
        # padding Mvirt up to M_pad, so BN stats only see real conv outputs.
        pos = np.arange(M_pad)
        mask_np = ((pos % Wph < Wout) & (pos < Mvirt)).astype(np.float32)
        args.append(jnp.asarray(mask_np.reshape(M_pad, 1)))
        in_specs.append(pl.BlockSpec((TM, 1), lambda n, m: (m, 0)))

    args += [xflat, wflat]
    in_specs += [
        # Whole sample resident in VMEM across all its m-tiles (one DMA / sample).
        pl.BlockSpec((1, PH, Sp, Cin_p), lambda n, m: (n, 0, 0, 0)),
        # Full weight slab resident for the whole kernel (one DMA total).
        pl.BlockSpec((KH * KWw, Cin_p, C_pad), lambda n, m: (0, 0, 0)),
    ]
    if add_bias:
        b2d = jnp.pad(b.astype(jnp.float32).reshape(1, Cout),
                      ((0, 0), (0, C_pad - Cout)))
        args.append(b2d)
        in_specs.append(pl.BlockSpec((1, C_pad), lambda n, m: (0, 0)))

    out_shape = [jax.ShapeDtypeStruct((N, M_pad, C_pad), jnp.bfloat16)]
    out_specs = [pl.BlockSpec((1, TM, C_pad), lambda n, m: (n, m, 0))]
    if use_bn:
        out_shape.append(jax.ShapeDtypeStruct((N, m_tiles, 3, C_pad), jnp.float32))
        out_specs.append(pl.BlockSpec((1, 1, 3, C_pad), lambda n, m: (n, m, 0, 0)))

    outs = pl.pallas_call(
        _make_conv_kernel(phases, shifts, add_bias, fuse_act, use_bn, TM,
                          m_tiles == 1),
        out_shape=tuple(out_shape),
        grid_spec=pltpu.PrefetchScalarGridSpec(
            num_scalar_prefetch=0,
            grid=(N, m_tiles),
            in_specs=in_specs,
            out_specs=out_specs,
        ),
        compiler_params=pltpu.CompilerParams(
            dimension_semantics=("parallel", "parallel"),
            vmem_limit_bytes=VMEM_BUDGET),
    )(*args)

    if use_bn:
        y_virt, stats = outs
        # Chan-style combine of per-tile centered partials (tiny, plain JAX):
        # avoids the E[y^2]-E[y]^2 cancellation flagged in review.
        s_t = stats[:, :, 0, :]                        # (N, m_tiles, C_pad)
        ssc_t = stats[:, :, 1, :]
        n_t = stats[:, :, 2, :1]                       # (N, m_tiles, 1)
        M_total = float(N * Hout * Wout)
        mean = jnp.sum(s_t, axis=(0, 1)) / M_total     # (C_pad,)
        mean_t = s_t / jnp.maximum(n_t, 1.0)
        m2 = jnp.sum(ssc_t + n_t * (mean_t - mean) ** 2, axis=(0, 1))
        var = m2 / M_total                             # biased (BN training mode)
        g_pad = jnp.pad(gamma.astype(jnp.float32), (0, C_pad - Cout))
        bt_pad = jnp.pad(beta.astype(jnp.float32), (0, C_pad - Cout))
        scale_v = g_pad * lax.rsqrt(var + EPS)
        shift_v = bt_pad - mean * scale_v

        # TODO(synk): the standalone BN-apply pass is kept (not folded into the
        # next conv) because the module contract returns every normalized
        # intermediate activation, so it must be materialized anyway.
        y_virt = pl.pallas_call(
            _make_bn_act_kernel(use_act),
            out_shape=jax.ShapeDtypeStruct((N, M_pad, C_pad), jnp.bfloat16),
            grid_spec=pltpu.PrefetchScalarGridSpec(
                num_scalar_prefetch=0,
                grid=(N, m_tiles),
                in_specs=[pl.BlockSpec((1, TM, C_pad), lambda n, m: (n, m, 0)),
                          pl.BlockSpec((1, C_pad), lambda n, m: (0, 0)),
                          pl.BlockSpec((1, C_pad), lambda n, m: (0, 0))],
                out_specs=pl.BlockSpec((1, TM, C_pad), lambda n, m: (n, m, 0)),
            ),
            compiler_params=pltpu.CompilerParams(
                dimension_semantics=("parallel", "parallel"),
                vmem_limit_bytes=VMEM_BUDGET),
        )(y_virt, scale_v.reshape(1, C_pad), shift_v.reshape(1, C_pad))
    else:
        (y_virt,) = outs

    # ---- layout glue: drop wrap columns / padding rows, restore NHWC. --------
    y = y_virt[:, :Hout * Wph, :Cout].reshape(N, Hout, Wph, Cout)[:, :, :Wout, :]
    return y


# --------------------------- module construction ---------------------------- #
def build_layer_configs(input_nc, ndf, n_layers):
    """Mirrors NLayerDiscriminator.__init__ layer topology."""
    cfgs = [dict(cin=input_nc, cout=ndf, stride=2, bn=False, act=True)]
    nf = ndf
    for _ in range(1, n_layers):
        nf_prev, nf = nf, min(nf * 2, 512)
        cfgs.append(dict(cin=nf_prev, cout=nf, stride=2, bn=True, act=True))
    nf_prev, nf = nf, min(nf * 2, 512)
    cfgs.append(dict(cin=nf_prev, cout=nf, stride=1, bn=True, act=True))
    cfgs.append(dict(cin=nf, cout=1, stride=1, bn=False, act=False))
    return cfgs


def init_params(key, cfgs):
    params = []
    for cfg in cfgs:
        key, kw_, kb_, kg_, kbt_ = jax.random.split(key, 5)
        fan_in = KW * KW * cfg["cin"]
        w = jax.random.normal(kw_, (KW, KW, cfg["cin"], cfg["cout"]),
                              jnp.float32) / np.sqrt(fan_in)
        b = 0.01 * jax.random.normal(kb_, (cfg["cout"],), jnp.float32)
        gamma = 1.0 + 0.1 * jax.random.normal(kg_, (cfg["cout"],), jnp.float32)
        beta = 0.1 * jax.random.normal(kbt_, (cfg["cout"],), jnp.float32)
        params.append(dict(w=w, b=b, gamma=gamma, beta=beta))
    return params


def nlayer_discriminator_forward(x_nchw, cfgs, params):
    """Returns (final_output, [intermediate activations]) like the module."""
    h = jnp.transpose(x_nchw, (0, 2, 3, 1)).astype(jnp.bfloat16)   # NCHW -> NHWC
    acts = []
    for cfg, p in zip(cfgs, params):
        h = conv_block_pallas(h, p["w"], p["b"], p["gamma"], p["beta"],
                              stride=cfg["stride"], use_bn=cfg["bn"],
                              use_act=cfg["act"])
        acts.append(jnp.transpose(h.astype(jnp.float32), (0, 3, 1, 2)))
    return acts[-1], acts[:-1]


# --------------------------- pure-JAX reference ----------------------------- #
def reference_forward(x_nchw, cfgs, params):
    """Same math, with the same bf16 storage / rounding points as the kernels."""
    h = jnp.transpose(x_nchw, (0, 2, 3, 1)).astype(jnp.bfloat16)
    acts = []
    for cfg, p in zip(cfgs, params):
        hf = h.astype(jnp.float32)
        wf = p["w"].astype(jnp.bfloat16).astype(jnp.float32)
        y = lax.conv_general_dilated(
            hf, wf, window_strides=(cfg["stride"], cfg["stride"]),
            padding=[(PAD, PAD), (PAD, PAD)],
            dimension_numbers=("NHWC", "HWIO", "NHWC"),
            precision=lax.Precision.HIGHEST)
        if cfg["bn"]:
            mean = jnp.mean(y, axis=(0, 1, 2))
            var = jnp.mean((y - mean) ** 2, axis=(0, 1, 2))
            scale = p["gamma"] * lax.rsqrt(var + EPS)
            shift = p["beta"] - mean * scale
            yq = y.astype(jnp.bfloat16).astype(jnp.float32)   # bf16 HBM storage
            y = yq * scale + shift
        else:
            y = y + p["b"]
        if cfg["act"]:
            y = jnp.where(y >= 0.0, y, SLOPE * y)
        h = y.astype(jnp.bfloat16)
        acts.append(jnp.transpose(h.astype(jnp.float32), (0, 3, 1, 2)))
    return acts[-1], acts[:-1]


# ---------------------------------- main ------------------------------------ #
if __name__ == "__main__":
    # NLayerDiscriminator(input_nc=4, ndf=8, n_layers=2) on x of shape (2, 4, 16, 16).
    batch, input_nc, hw = 2, 4, 16
    ndf, n_layers = 8, 2

    key = jax.random.PRNGKey(0)
    key, kx = jax.random.split(key)
    x = jax.random.normal(kx, (batch, input_nc, hw, hw), jnp.float32)

    cfgs = build_layer_configs(input_nc, ndf, n_layers)
    params = init_params(key, cfgs)

    fwd = jax.jit(lambda xx, pp: nlayer_discriminator_forward(xx, cfgs, pp))
    final_out, intermediates = fwd(x, params)
    final_out = jax.block_until_ready(final_out)
    intermediates = [jax.block_until_ready(a) for a in intermediates]

    # Correctness check against a reference that mirrors the kernel's bf16
    # storage points exactly; tolerance allows ~1 bf16 ULP of rounding slack.
    ref_final, ref_inter = reference_forward(x, cfgs, params)
    assert final_out.shape == ref_final.shape
    assert len(intermediates) == n_layers + 1   # act[:-1] of n_layers+2 convs
    np.testing.assert_allclose(np.asarray(final_out), np.asarray(ref_final),
                               rtol=2e-2, atol=2e-2)
    for a, r in zip(intermediates, ref_inter):
        assert a.shape == r.shape
        np.testing.assert_allclose(np.asarray(a), np.asarray(r),
                                   rtol=2e-2, atol=2e-2)

    print("KERNEL_OK")
</pallas_src>

<mosaic_0001>
module attributes {stable_mosaic.version = 11 : i64} {
  func.func @kernel(%arg0: i32, %arg1: i32, %arg2: memref<1x4x107x8xbf16, #tpu.memory_space<vmem>>, %arg3: memref<16x8x128xbf16, #tpu.memory_space<vmem>>, %arg4: memref<1x128xf32, #tpu.memory_space<vmem>>, %arg5: memref<1x96x128xbf16, #tpu.memory_space<vmem>>) attributes {dimension_semantics = [#tpu.dimension_semantics<parallel>, #tpu.dimension_semantics<parallel>], iteration_bounds = array<i64: 2, 1>, scalar_prefetch = 0 : i64, scratch_operands = 0 : i64, tpu.core_type = #tpu.core_type<tc>, window_params = [{transform_indices = @transform_0, window_bounds = array<i64: 1, 4, 107, 8>}, {pipeline_mode = #tpu.pipeline_mode<synchronous>, transform_indices = @transform_1, window_bounds = array<i64: 16, 8, 128>}, {pipeline_mode = #tpu.pipeline_mode<synchronous>, transform_indices = @transform_2, window_bounds = array<i64: 1, 128>}, {transform_indices = @transform_3, window_bounds = array<i64: 1, 96, 128>}]} {
    %c0 = arith.constant 0 : index
    %c0_0 = arith.constant 0 : index
    %c0_1 = arith.constant 0 : index
    %c0_2 = arith.constant 0 : index
    %0 = vector.load %arg2[%c0, %c0_0, %c0_1, %c0_2] : memref<1x4x107x8xbf16, #tpu.memory_space<vmem>>, vector<1x1x96x8xbf16>
    %1 = vector.shape_cast %0 : vector<1x1x96x8xbf16> to vector<96x8xbf16>
    %c0_3 = arith.constant 0 : index
    %c0_4 = arith.constant 0 : index
    %c0_5 = arith.constant 0 : index
    %2 = vector.load %arg3[%c0_3, %c0_4, %c0_5] : memref<16x8x128xbf16, #tpu.memory_space<vmem>>, vector<1x8x128xbf16>
    %3 = vector.shape_cast %2 : vector<1x8x128xbf16> to vector<8x128xbf16>
    %cst = arith.constant dense<0.000000e+00> : vector<96x128xf32>
    %4 = tpu.matmul %1, %3, %cst {dimension_numbers = #tpu.dot_dimension_numbers<[1], [0], [0], [1], [0, 0, 1, 1], [], []>} : vector<96x8xbf16>, vector<8x128xbf16>, vector<96x128xf32> -> vector<96x128xf32>
    %c0_6 = arith.constant 0 : index
    %c1 = arith.constant 1 : index
    %c0_7 = arith.constant 0 : index
    %c0_8 = arith.constant 0 : index
    %5 = vector.load %arg2[%c0_6, %c1, %c0_7, %c0_8] : memref<1x4x107x8xbf16, #tpu.memory_space<vmem>>, vector<1x1x96x8xbf16>
    %6 = vector.shape_cast %5 : vector<1x1x96x8xbf16> to vector<96x8xbf16>
    %c1_9 = arith.constant 1 : index
    %c0_10 = arith.constant 0 : index
    %c0_11 = arith.constant 0 : index
    %7 = vector.load %arg3[%c1_9, %c0_10, %c0_11] : memref<16x8x128xbf16, #tpu.memory_space<vmem>>, vector<1x8x128xbf16>
    %8 = vector.shape_cast %7 : vector<1x8x128xbf16> to vector<8x128xbf16>
    %cst_12 = arith.constant dense<0.000000e+00> : vector<96x128xf32>
    %9 = tpu.matmul %6, %8, %cst_12 {dimension_numbers = #tpu.dot_dimension_numbers<[1], [0], [0], [1], [0, 0, 1, 1], [], []>} : vector<96x8xbf16>, vector<8x128xbf16>, vector<96x128xf32> -> vector<96x128xf32>
    %10 = arith.addf %4, %9 : vector<96x128xf32>
    %c0_13 = arith.constant 0 : index
    %c0_14 = arith.constant 0 : index
    %c1_15 = arith.constant 1 : index
    %c0_16 = arith.constant 0 : index
    %11 = vector.load %arg2[%c0_13, %c0_14, %c1_15, %c0_16] : memref<1x4x107x8xbf16, #tpu.memory_space<vmem>>, vector<1x1x96x8xbf16>
    %12 = vector.shape_cast %11 : vector<1x1x96x8xbf16> to vector<96x8xbf16>
    %c2 = arith.constant 2 : index
    %c0_17 = arith.constant 0 : index
    %c0_18 = arith.constant 0 : index
    %13 = vector.load %arg3[%c2, %c0_17, %c0_18] : memref<16x8x128xbf16, #tpu.memory_space<vmem>>, vector<1x8x128xbf16>
    %14 = vector.shape_cast %13 : vector<1x8x128xbf16> to vector<8x128xbf16>
    %cst_19 = arith.constant dense<0.000000e+00> : vector<96x128xf32>
    %15 = tpu.matmul %12, %14, %cst_19 {dimension_numbers = #tpu.dot_dimension_numbers<[1], [0], [0], [1], [0, 0, 1, 1], [], []>} : vector<96x8xbf16>, vector<8x128xbf16>, vector<96x128xf32> -> vector<96x128xf32>
    %16 = arith.addf %10, %15 : vector<96x128xf32>
    %c0_20 = arith.constant 0 : index
    %c1_21 = arith.constant 1 : index
    %c1_22 = arith.constant 1 : index
    %c0_23 = arith.constant 0 : index
    %17 = vector.load %arg2[%c0_20, %c1_21, %c1_22, %c0_23] : memref<1x4x107x8xbf16, #tpu.memory_space<vmem>>, vector<1x1x96x8xbf16>
    %18 = vector.shape_cast %17 : vector<1x1x96x8xbf16> to vector<96x8xbf16>
    %c3 = arith.constant 3 : index
    %c0_24 = arith.constant 0 : index
    %c0_25 = arith.constant 0 : index
    %19 = vector.load %arg3[%c3, %c0_24, %c0_25] : memref<16x8x128xbf16, #tpu.memory_space<vmem>>, vector<1x8x128xbf16>
    %20 = vector.shape_cast %19 : vector<1x8x128xbf16> to vector<8x128xbf16>
    %cst_26 = arith.constant dense<0.000000e+00> : vector<96x128xf32>
    %21 = tpu.matmul %18, %20, %cst_26 {dimension_numbers = #tpu.dot_dimension_numbers<[1], [0], [0], [1], [0, 0, 1, 1], [], []>} : vector<96x8xbf16>, vector<8x128xbf16>, vector<96x128xf32> -> vector<96x128xf32>
    %22 = arith.addf %16, %21 : vector<96x128xf32>
    %c0_27 = arith.constant 0 : index
    %c2_28 = arith.constant 2 : index
    %c0_29 = arith.constant 0 : index
    %c0_30 = arith.constant 0 : index
    %23 = vector.load %arg2[%c0_27, %c2_28, %c0_29, %c0_30] : memref<1x4x107x8xbf16, #tpu.memory_space<vmem>>, vector<1x1x96x8xbf16>
    %24 = vector.shape_cast %23 : vector<1x1x96x8xbf16> to vector<96x8xbf16>
    %c4 = arith.constant 4 : index
    %c0_31 = arith.constant 0 : index
    %c0_32 = arith.constant 0 : index
    %25 = vector.load %arg3[%c4, %c0_31, %c0_32] : memref<16x8x128xbf16, #tpu.memory_space<vmem>>, vector<1x8x128xbf16>
    %26 = vector.shape_cast %25 : vector<1x8x128xbf16> to vector<8x128xbf16>
    %cst_33 = arith.constant dense<0.000000e+00> : vector<96x128xf32>
    %27 = tpu.matmul %24, %26, %cst_33 {dimension_numbers = #tpu.dot_dimension_numbers<[1], [0], [0], [1], [0, 0, 1, 1], [], []>} : vector<96x8xbf16>, vector<8x128xbf16>, vector<96x128xf32> -> vector<96x128xf32>
    %28 = arith.addf %22, %27 : vector<96x128xf32>
    %c0_34 = arith.constant 0 : index
    %c3_35 = arith.constant 3 : index
    %c0_36 = arith.constant 0 : index
    %c0_37 = arith.constant 0 : index
    %29 = vector.load %arg2[%c0_34, %c3_35, %c0_36, %c0_37] : memref<1x4x107x8xbf16, #tpu.memory_space<vmem>>, vector<1x1x96x8xbf16>
    %30 = vector.shape_cast %29 : vector<1x1x96x8xbf16> to vector<96x8xbf16>
    %c5 = arith.constant 5 : index
    %c0_38 = arith.constant 0 : index
    %c0_39 = arith.constant 0 : index
    %31 = vector.load %arg3[%c5, %c0_38, %c0_39] : memref<16x8x128xbf16, #tpu.memory_space<vmem>>, vector<1x8x128xbf16>
    %32 = vector.shape_cast %31 : vector<1x8x128xbf16> to vector<8x128xbf16>
    %cst_40 = arith.constant dense<0.000000e+00> : vector<96x128xf32>
    %33 = tpu.matmul %30, %32, %cst_40 {dimension_numbers = #tpu.dot_dimension_numbers<[1], [0], [0], [1], [0, 0, 1, 1], [], []>} : vector<96x8xbf16>, vector<8x128xbf16>, vector<96x128xf32> -> vector<96x128xf32>
    %34 = arith.addf %28, %33 : vector<96x128xf32>
    %c0_41 = arith.constant 0 : index
    %c2_42 = arith.constant 2 : index
    %c1_43 = arith.constant 1 : index
    %c0_44 = arith.constant 0 : index
    %35 = vector.load %arg2[%c0_41, %c2_42, %c1_43, %c0_44] : memref<1x4x107x8xbf16, #tpu.memory_space<vmem>>, vector<1x1x96x8xbf16>
    %36 = vector.shape_cast %35 : vector<1x1x96x8xbf16> to vector<96x8xbf16>
    %c6 = arith.constant 6 : index
    %c0_45 = arith.constant 0 : index
    %c0_46 = arith.constant 0 : index
    %37 = vector.load %arg3[%c6, %c0_45, %c0_46] : memref<16x8x128xbf16, #tpu.memory_space<vmem>>, vector<1x8x128xbf16>
    %38 = vector.shape_cast %37 : vector<1x8x128xbf16> to vector<8x128xbf16>
    %cst_47 = arith.constant dense<0.000000e+00> : vector<96x128xf32>
    %39 = tpu.matmul %36, %38, %cst_47 {dimension_numbers = #tpu.dot_dimension_numbers<[1], [0], [0], [1], [0, 0, 1, 1], [], []>} : vector<96x8xbf16>, vector<8x128xbf16>, vector<96x128xf32> -> vector<96x128xf32>
    %40 = arith.addf %34, %39 : vector<96x128xf32>
    %c0_48 = arith.constant 0 : index
    %c3_49 = arith.constant 3 : index
    %c1_50 = arith.constant 1 : index
    %c0_51 = arith.constant 0 : index
    %41 = vector.load %arg2[%c0_48, %c3_49, %c1_50, %c0_51] : memref<1x4x107x8xbf16, #tpu.memory_space<vmem>>, vector<1x1x96x8xbf16>
    %42 = vector.shape_cast %41 : vector<1x1x96x8xbf16> to vector<96x8xbf16>
    %c7 = arith.constant 7 : index
    %c0_52 = arith.constant 0 : index
    %c0_53 = arith.constant 0 : index
    %43 = vector.load %arg3[%c7, %c0_52, %c0_53] : memref<16x8x128xbf16, #tpu.memory_space<vmem>>, vector<1x8x128xbf16>
    %44 = vector.shape_cast %43 : vector<1x8x128xbf16> to vector<8x128xbf16>
    %cst_54 = arith.constant dense<0.000000e+00> : vector<96x128xf32>
    %45 = tpu.matmul %42, %44, %cst_54 {dimension_numbers = #tpu.dot_dimension_numbers<[1], [0], [0], [1], [0, 0, 1, 1], [], []>} : vector<96x8xbf16>, vector<8x128xbf16>, vector<96x128xf32> -> vector<96x128xf32>
    %46 = arith.addf %40, %45 : vector<96x128xf32>
    %c0_55 = arith.constant 0 : index
    %c0_56 = arith.constant 0 : index
    %c10 = arith.constant 10 : index
    %c0_57 = arith.constant 0 : index
    %47 = vector.load %arg2[%c0_55, %c0_56, %c10, %c0_57] : memref<1x4x107x8xbf16, #tpu.memory_space<vmem>>, vector<1x1x96x8xbf16>
    %48 = vector.shape_cast %47 : vector<1x1x96x8xbf16> to vector<96x8xbf16>
    %c8 = arith.constant 8 : index
    %c0_58 = arith.constant 0 : index
    %c0_59 = arith.constant 0 : index
    %49 = vector.load %arg3[%c8, %c0_58, %c0_59] : memref<16x8x128xbf16, #tpu.memory_space<vmem>>, vector<1x8x128xbf16>
    %50 = vector.shape_cast %49 : vector<1x8x128xbf16> to vector<8x128xbf16>
    %cst_60 = arith.constant dense<0.000000e+00> : vector<96x128xf32>
    %51 = tpu.matmul %48, %50, %cst_60 {dimension_numbers = #tpu.dot_dimension_numbers<[1], [0], [0], [1], [0, 0, 1, 1], [], []>} : vector<96x8xbf16>, vector<8x128xbf16>, vector<96x128xf32> -> vector<96x128xf32>
    %52 = arith.addf %46, %51 : vector<96x128xf32>
    %c0_61 = arith.constant 0 : index
    %c1_62 = arith.constant 1 : index
    %c10_63 = arith.constant 10 : index
    %c0_64 = arith.constant 0 : index
    %53 = vector.load %arg2[%c0_61, %c1_62, %c10_63, %c0_64] : memref<1x4x107x8xbf16, #tpu.memory_space<vmem>>, vector<1x1x96x8xbf16>
    %54 = vector.shape_cast %53 : vector<1x1x96x8xbf16> to vector<96x8xbf16>
    %c9 = arith.constant 9 : index
    %c0_65 = arith.constant 0 : index
    %c0_66 = arith.constant 0 : index
    %55 = vector.load %arg3[%c9, %c0_65, %c0_66] : memref<16x8x128xbf16, #tpu.memory_space<vmem>>, vector<1x8x128xbf16>
    %56 = vector.shape_cast %55 : vector<1x8x128xbf16> to vector<8x128xbf16>
    %cst_67 = arith.constant dense<0.000000e+00> : vector<96x128xf32>
    %57 = tpu.matmul %54, %56, %cst_67 {dimension_numbers = #tpu.dot_dimension_numbers<[1], [0], [0], [1], [0, 0, 1, 1], [], []>} : vector<96x8xbf16>, vector<8x128xbf16>, vector<96x128xf32> -> vector<96x128xf32>
    %58 = arith.addf %52, %57 : vector<96x128xf32>
    %c0_68 = arith.constant 0 : index
    %c0_69 = arith.constant 0 : index
    %c11 = arith.constant 11 : index
    %c0_70 = arith.constant 0 : index
    %59 = vector.load %arg2[%c0_68, %c0_69, %c11, %c0_70] : memref<1x4x107x8xbf16, #tpu.memory_space<vmem>>, vector<1x1x96x8xbf16>
    %60 = vector.shape_cast %59 : vector<1x1x96x8xbf16> to vector<96x8xbf16>
    %c10_71 = arith.constant 10 : index
    %c0_72 = arith.constant 0 : index
    %c0_73 = arith.constant 0 : index
    %61 = vector.load %arg3[%c10_71, %c0_72, %c0_73] : memref<16x8x128xbf16, #tpu.memory_space<vmem>>, vector<1x8x128xbf16>
    %62 = vector.shape_cast %61 : vector<1x8x128xbf16> to vector<8x128xbf16>
    %cst_74 = arith.constant dense<0.000000e+00> : vector<96x128xf32>
    %63 = tpu.matmul %60, %62, %cst_74 {dimension_numbers = #tpu.dot_dimension_numbers<[1], [0], [0], [1], [0, 0, 1, 1], [], []>} : vector<96x8xbf16>, vector<8x128xbf16>, vector<96x128xf32> -> vector<96x128xf32>
    %64 = arith.addf %58, %63 : vector<96x128xf32>
    %c0_75 = arith.constant 0 : index
    %c1_76 = arith.constant 1 : index
    %c11_77 = arith.constant 11 : index
    %c0_78 = arith.constant 0 : index
    %65 = vector.load %arg2[%c0_75, %c1_76, %c11_77, %c0_78] : memref<1x4x107x8xbf16, #tpu.memory_space<vmem>>, vector<1x1x96x8xbf16>
    %66 = vector.shape_cast %65 : vector<1x1x96x8xbf16> to vector<96x8xbf16>
    %c11_79 = arith.constant 11 : index
    %c0_80 = arith.constant 0 : index
    %c0_81 = arith.constant 0 : index
    %67 = vector.load %arg3[%c11_79, %c0_80, %c0_81] : memref<16x8x128xbf16, #tpu.memory_space<vmem>>, vector<1x8x128xbf16>
    %68 = vector.shape_cast %67 : vector<1x8x128xbf16> to vector<8x128xbf16>
    %cst_82 = arith.constant dense<0.000000e+00> : vector<96x128xf32>
    %69 = tpu.matmul %66, %68, %cst_82 {dimension_numbers = #tpu.dot_dimension_numbers<[1], [0], [0], [1], [0, 0, 1, 1], [], []>} : vector<96x8xbf16>, vector<8x128xbf16>, vector<96x128xf32> -> vector<96x128xf32>
    %70 = arith.addf %64, %69 : vector<96x128xf32>
    %c0_83 = arith.constant 0 : index
    %c2_84 = arith.constant 2 : index
    %c10_85 = arith.constant 10 : index
    %c0_86 = arith.constant 0 : index
    %71 = vector.load %arg2[%c0_83, %c2_84, %c10_85, %c0_86] : memref<1x4x107x8xbf16, #tpu.memory_space<vmem>>, vector<1x1x96x8xbf16>
    %72 = vector.shape_cast %71 : vector<1x1x96x8xbf16> to vector<96x8xbf16>
    %c12 = arith.constant 12 : index
    %c0_87 = arith.constant 0 : index
    %c0_88 = arith.constant 0 : index
    %73 = vector.load %arg3[%c12, %c0_87, %c0_88] : memref<16x8x128xbf16, #tpu.memory_space<vmem>>, vector<1x8x128xbf16>
    %74 = vector.shape_cast %73 : vector<1x8x128xbf16> to vector<8x128xbf16>
    %cst_89 = arith.constant dense<0.000000e+00> : vector<96x128xf32>
    %75 = tpu.matmul %72, %74, %cst_89 {dimension_numbers = #tpu.dot_dimension_numbers<[1], [0], [0], [1], [0, 0, 1, 1], [], []>} : vector<96x8xbf16>, vector<8x128xbf16>, vector<96x128xf32> -> vector<96x128xf32>
    %76 = arith.addf %70, %75 : vector<96x128xf32>
    %c0_90 = arith.constant 0 : index
    %c3_91 = arith.constant 3 : index
    %c10_92 = arith.constant 10 : index
    %c0_93 = arith.constant 0 : index
    %77 = vector.load %arg2[%c0_90, %c3_91, %c10_92, %c0_93] : memref<1x4x107x8xbf16, #tpu.memory_space<vmem>>, vector<1x1x96x8xbf16>
    %78 = vector.shape_cast %77 : vector<1x1x96x8xbf16> to vector<96x8xbf16>
    %c13 = arith.constant 13 : index
    %c0_94 = arith.constant 0 : index
    %c0_95 = arith.constant 0 : index
    %79 = vector.load %arg3[%c13, %c0_94, %c0_95] : memref<16x8x128xbf16, #tpu.memory_space<vmem>>, vector<1x8x128xbf16>
    %80 = vector.shape_cast %79 : vector<1x8x128xbf16> to vector<8x128xbf16>
    %cst_96 = arith.constant dense<0.000000e+00> : vector<96x128xf32>
    %81 = tpu.matmul %78, %80, %cst_96 {dimension_numbers = #tpu.dot_dimension_numbers<[1], [0], [0], [1], [0, 0, 1, 1], [], []>} : vector<96x8xbf16>, vector<8x128xbf16>, vector<96x128xf32> -> vector<96x128xf32>
    %82 = arith.addf %76, %81 : vector<96x128xf32>
    %c0_97 = arith.constant 0 : index
    %c2_98 = arith.constant 2 : index
    %c11_99 = arith.constant 11 : index
    %c0_100 = arith.constant 0 : index
    %83 = vector.load %arg2[%c0_97, %c2_98, %c11_99, %c0_100] : memref<1x4x107x8xbf16, #tpu.memory_space<vmem>>, vector<1x1x96x8xbf16>
    %84 = vector.shape_cast %83 : vector<1x1x96x8xbf16> to vector<96x8xbf16>
    %c14 = arith.constant 14 : index
    %c0_101 = arith.constant 0 : index
    %c0_102 = arith.constant 0 : index
    %85 = vector.load %arg3[%c14, %c0_101, %c0_102] : memref<16x8x128xbf16, #tpu.memory_space<vmem>>, vector<1x8x128xbf16>
    %86 = vector.shape_cast %85 : vector<1x8x128xbf16> to vector<8x128xbf16>
    %cst_103 = arith.constant dense<0.000000e+00> : vector<96x128xf32>
    %87 = tpu.matmul %84, %86, %cst_103 {dimension_numbers = #tpu.dot_dimension_numbers<[1], [0], [0], [1], [0, 0, 1, 1], [], []>} : vector<96x8xbf16>, vector<8x128xbf16>, vector<96x128xf32> -> vector<96x128xf32>
    %88 = arith.addf %82, %87 : vector<96x128xf32>
    %c0_104 = arith.constant 0 : index
    %c3_105 = arith.constant 3 : index
    %c11_106 = arith.constant 11 : index
    %c0_107 = arith.constant 0 : index
    %89 = vector.load %arg2[%c0_104, %c3_105, %c11_106, %c0_107] : memref<1x4x107x8xbf16, #tpu.memory_space<vmem>>, vector<1x1x96x8xbf16>
    %90 = vector.shape_cast %89 : vector<1x1x96x8xbf16> to vector<96x8xbf16>
    %c15 = arith.constant 15 : index
    %c0_108 = arith.constant 0 : index
    %c0_109 = arith.constant 0 : index
    %91 = vector.load %arg3[%c15, %c0_108, %c0_109] : memref<16x8x128xbf16, #tpu.memory_space<vmem>>, vector<1x8x128xbf16>
    %92 = vector.shape_cast %91 : vector<1x8x128xbf16> to vector<8x128xbf16>
    %cst_110 = arith.constant dense<0.000000e+00> : vector<96x128xf32>
    %93 = tpu.matmul %90, %92, %cst_110 {dimension_numbers = #tpu.dot_dimension_numbers<[1], [0], [0], [1], [0, 0, 1, 1], [], []>} : vector<96x8xbf16>, vector<8x128xbf16>, vector<96x128xf32> -> vector<96x128xf32>
    %94 = arith.addf %88, %93 : vector<96x128xf32>
    %c0_111 = arith.constant 0 : index
    %c0_112 = arith.constant 0 : index
    %95 = vector.load %arg4[%c0_111, %c0_112] : memref<1x128xf32, #tpu.memory_space<vmem>>, vector<1x128xf32>
    %96 = vector.broadcast %95 : vector<1x128xf32> to vector<96x128xf32>
    %97 = arith.addf %94, %96 : vector<96x128xf32>
    %cst_113 = arith.constant 0.000000e+00 : f32
    %98 = vector.broadcast %cst_113 : f32 to vector<96x128xf32>
    %99 = arith.cmpf oge, %97, %98 : vector<96x128xf32>
    %cst_114 = arith.constant 2.000000e-01 : f32
    %100 = vector.broadcast %cst_114 : f32 to vector<96x128xf32>
    %101 = arith.mulf %100, %97 : vector<96x128xf32>
    %102 = arith.select %99, %97, %101 : vector<96x128xi1>, vector<96x128xf32>
    %103 = arith.truncf %102 : vector<96x128xf32> to vector<96x128xbf16>
    %c0_115 = arith.constant 0 : index
    %c0_116 = arith.constant 0 : index
    %c0_117 = arith.constant 0 : index
    %104 = vector.load %arg5[%c0_115, %c0_116, %c0_117] : memref<1x96x128xbf16, #tpu.memory_space<vmem>>, vector<1x96x128xbf16>
    %105 = vector.shape_cast %104 : vector<1x96x128xbf16> to vector<96x128xbf16>
    %106 = vector.shape_cast %103 : vector<96x128xbf16> to vector<1x96x128xbf16>
    tpu.vector_store %arg5[%c0_115, %c0_116, %c0_117], %106 {strides = array<i32>} : memref<1x96x128xbf16, #tpu.memory_space<vmem>>, vector<1x96x128xbf16>,
    return
  }
  func.func @transform_0(%arg0: i32, %arg1: i32) -> (i32, i32, i32, i32) {
    %c0_i32 = arith.constant 0 : i32
    %c0_i32_0 = arith.constant 0 : i32
    %c0_i32_1 = arith.constant 0 : i32
    %c0_i32_2 = arith.constant 0 : i32
    return %arg0, %c0_i32, %c0_i32_0, %c0_i32_1 : i32, i32, i32, i32
  }
  func.func @transform_1(%arg0: i32, %arg1: i32) -> (i32, i32, i32) {
    %c0_i32 = arith.constant 0 : i32
    %c0_i32_0 = arith.constant 0 : i32
    %c0_i32_1 = arith.constant 0 : i32
    %c0_i32_2 = arith.constant 0 : i32
    return %c0_i32, %c0_i32_0, %c0_i32_1 : i32, i32, i32
  }
  func.func @transform_2(%arg0: i32, %arg1: i32) -> (i32, i32) {
    %c0_i32 = arith.constant 0 : i32
    %c0_i32_0 = arith.constant 0 : i32
    %c0_i32_1 = arith.constant 0 : i32
    return %c0_i32, %c0_i32_0 : i32, i32
  }
  func.func @transform_3(%arg0: i32, %arg1: i32) -> (i32, i32, i32) {
    %c0_i32 = arith.constant 0 : i32
    %c0_i32_0 = arith.constant 0 : i32
    return %arg0, %arg1, %c0_i32 : i32, i32, i32
  }
}

module attributes {stable_mosaic.version = 11 : i64} {
  func.func @kernel(%arg0: i32, %arg1: i32, %arg2: memref<40x1xf32, #tpu.memory_space<vmem>>, %arg3: memref<1x4x49x8xbf16, #tpu.memory_space<vmem>>, %arg4: memref<16x8x128xbf16, #tpu.memory_space<vmem>>, %arg5: memref<1x40x128xbf16, #tpu.memory_space<vmem>>, %arg6: memref<1x1x3x128xf32, #tpu.memory_space<vmem>>) attributes {dimension_semantics = [#tpu.dimension_semantics<parallel>, #tpu.dimension_semantics<parallel>], iteration_bounds = array<i64: 2, 1>, scalar_prefetch = 0 : i64, scratch_operands = 0 : i64, tpu.core_type = #tpu.core_type<tc>, window_params = [{transform_indices = @transform_0, window_bounds = array<i64: 40, 1>}, {transform_indices = @transform_1, window_bounds = array<i64: 1, 4, 49, 8>}, {pipeline_mode = #tpu.pipeline_mode<synchronous>, transform_indices = @transform_2, window_bounds = array<i64: 16, 8, 128>}, {transform_indices = @transform_3, window_bounds = array<i64: 1, 40, 128>}, {transform_indices = @transform_4, window_bounds = array<i64: 1, 1, 3, 128>}]} {
    %c0 = arith.constant 0 : index
    %c0_0 = arith.constant 0 : index
    %c0_1 = arith.constant 0 : index
    %c0_2 = arith.constant 0 : index
    %0 = vector.load %arg3[%c0, %c0_0, %c0_1, %c0_2] : memref<1x4x49x8xbf16, #tpu.memory_space<vmem>>, vector<1x1x40x8xbf16>
    %1 = vector.shape_cast %0 : vector<1x1x40x8xbf16> to vector<40x8xbf16>
    %c0_3 = arith.constant 0 : index
    %c0_4 = arith.constant 0 : index
    %c0_5 = arith.constant 0 : index
    %2 = vector.load %arg4[%c0_3, %c0_4, %c0_5] : memref<16x8x128xbf16, #tpu.memory_space<vmem>>, vector<1x8x128xbf16>
    %3 = vector.shape_cast %2 : vector<1x8x128xbf16> to vector<8x128xbf16>
    %cst = arith.constant dense<0.000000e+00> : vector<40x128xf32>
    %4 = tpu.matmul %1, %3, %cst {dimension_numbers = #tpu.dot_dimension_numbers<[1], [0], [0], [1], [0, 0, 1, 1], [], []>} : vector<40x8xbf16>, vector<8x128xbf16>, vector<40x128xf32> -> vector<40x128xf32>
    %c0_6 = arith.constant 0 : index
    %c1 = arith.constant 1 : index
    %c0_7 = arith.constant 0 : index
    %c0_8 = arith.constant 0 : index
    %5 = vector.load %arg3[%c0_6, %c1, %c0_7, %c0_8] : memref<1x4x49x8xbf16, #tpu.memory_space<vmem>>, vector<1x1x40x8xbf16>
    %6 = vector.shape_cast %5 : vector<1x1x40x8xbf16> to vector<40x8xbf16>
    %c1_9 = arith.constant 1 : index
    %c0_10 = arith.constant 0 : index
    %c0_11 = arith.constant 0 : index
    %7 = vector.load %arg4[%c1_9, %c0_10, %c0_11] : memref<16x8x128xbf16, #tpu.memory_space<vmem>>, vector<1x8x128xbf16>
    %8 = vector.shape_cast %7 : vector<1x8x128xbf16> to vector<8x128xbf16>
    %cst_12 = arith.constant dense<0.000000e+00> : vector<40x128xf32>
    %9 = tpu.matmul %6, %8, %cst_12 {dimension_numbers = #tpu.dot_dimension_numbers<[1], [0], [0], [1], [0, 0, 1, 1], [], []>} : vector<40x8xbf16>, vector<8x128xbf16>, vector<40x128xf32> -> vector<40x128xf32>
    %10 = arith.addf %4, %9 : vector<40x128xf32>
    %c0_13 = arith.constant 0 : index
    %c0_14 = arith.constant 0 : index
    %c1_15 = arith.constant 1 : index
    %c0_16 = arith.constant 0 : index
    %11 = vector.load %arg3[%c0_13, %c0_14, %c1_15, %c0_16] : memref<1x4x49x8xbf16, #tpu.memory_space<vmem>>, vector<1x1x40x8xbf16>
    %12 = vector.shape_cast %11 : vector<1x1x40x8xbf16> to vector<40x8xbf16>
    %c2 = arith.constant 2 : index
    %c0_17 = arith.constant 0 : index
    %c0_18 = arith.constant 0 : index
    %13 = vector.load %arg4[%c2, %c0_17, %c0_18] : memref<16x8x128xbf16, #tpu.memory_space<vmem>>, vector<1x8x128xbf16>
    %14 = vector.shape_cast %13 : vector<1x8x128xbf16> to vector<8x128xbf16>
    %cst_19 = arith.constant dense<0.000000e+00> : vector<40x128xf32>
    %15 = tpu.matmul %12, %14, %cst_19 {dimension_numbers = #tpu.dot_dimension_numbers<[1], [0], [0], [1], [0, 0, 1, 1], [], []>} : vector<40x8xbf16>, vector<8x128xbf16>, vector<40x128xf32> -> vector<40x128xf32>
    %16 = arith.addf %10, %15 : vector<40x128xf32>
    %c0_20 = arith.constant 0 : index
    %c1_21 = arith.constant 1 : index
    %c1_22 = arith.constant 1 : index
    %c0_23 = arith.constant 0 : index
    %17 = vector.load %arg3[%c0_20, %c1_21, %c1_22, %c0_23] : memref<1x4x49x8xbf16, #tpu.memory_space<vmem>>, vector<1x1x40x8xbf16>
    %18 = vector.shape_cast %17 : vector<1x1x40x8xbf16> to vector<40x8xbf16>
    %c3 = arith.constant 3 : index
    %c0_24 = arith.constant 0 : index
    %c0_25 = arith.constant 0 : index
    %19 = vector.load %arg4[%c3, %c0_24, %c0_25] : memref<16x8x128xbf16, #tpu.memory_space<vmem>>, vector<1x8x128xbf16>
    %20 = vector.shape_cast %19 : vector<1x8x128xbf16> to vector<8x128xbf16>
    %cst_26 = arith.constant dense<0.000000e+00> : vector<40x128xf32>
    %21 = tpu.matmul %18, %20, %cst_26 {dimension_numbers = #tpu.dot_dimension_numbers<[1], [0], [0], [1], [0, 0, 1, 1], [], []>} : vector<40x8xbf16>, vector<8x128xbf16>, vector<40x128xf32> -> vector<40x128xf32>
    %22 = arith.addf %16, %21 : vector<40x128xf32>
    %c0_27 = arith.constant 0 : index
    %c2_28 = arith.constant 2 : index
    %c0_29 = arith.constant 0 : index
    %c0_30 = arith.constant 0 : index
    %23 = vector.load %arg3[%c0_27, %c2_28, %c0_29, %c0_30] : memref<1x4x49x8xbf16, #tpu.memory_space<vmem>>, vector<1x1x40x8xbf16>
    %24 = vector.shape_cast %23 : vector<1x1x40x8xbf16> to vector<40x8xbf16>
    %c4 = arith.constant 4 : index
    %c0_31 = arith.constant 0 : index
    %c0_32 = arith.constant 0 : index
    %25 = vector.load %arg4[%c4, %c0_31, %c0_32] : memref<16x8x128xbf16, #tpu.memory_space<vmem>>, vector<1x8x128xbf16>
    %26 = vector.shape_cast %25 : vector<1x8x128xbf16> to vector<8x128xbf16>
    %cst_33 = arith.constant dense<0.000000e+00> : vector<40x128xf32>
    %27 = tpu.matmul %24, %26, %cst_33 {dimension_numbers = #tpu.dot_dimension_numbers<[1], [0], [0], [1], [0, 0, 1, 1], [], []>} : vector<40x8xbf16>, vector<8x128xbf16>, vector<40x128xf32> -> vector<40x128xf32>
    %28 = arith.addf %22, %27 : vector<40x128xf32>
    %c0_34 = arith.constant 0 : index
    %c3_35 = arith.constant 3 : index
    %c0_36 = arith.constant 0 : index
    %c0_37 = arith.constant 0 : index
    %29 = vector.load %arg3[%c0_34, %c3_35, %c0_36, %c0_37] : memref<1x4x49x8xbf16, #tpu.memory_space<vmem>>, vector<1x1x40x8xbf16>
    %30 = vector.shape_cast %29 : vector<1x1x40x8xbf16> to vector<40x8xbf16>
    %c5 = arith.constant 5 : index
    %c0_38 = arith.constant 0 : index
    %c0_39 = arith.constant 0 : index
    %31 = vector.load %arg4[%c5, %c0_38, %c0_39] : memref<16x8x128xbf16, #tpu.memory_space<vmem>>, vector<1x8x128xbf16>
    %32 = vector.shape_cast %31 : vector<1x8x128xbf16> to vector<8x128xbf16>
    %cst_40 = arith.constant dense<0.000000e+00> : vector<40x128xf32>
    %33 = tpu.matmul %30, %32, %cst_40 {dimension_numbers = #tpu.dot_dimension_numbers<[1], [0], [0], [1], [0, 0, 1, 1], [], []>} : vector<40x8xbf16>, vector<8x128xbf16>, vector<40x128xf32> -> vector<40x128xf32>
    %34 = arith.addf %28, %33 : vector<40x128xf32>
    %c0_41 = arith.constant 0 : index
    %c2_42 = arith.constant 2 : index
    %c1_43 = arith.constant 1 : index
    %c0_44 = arith.constant 0 : index
    %35 = vector.load %arg3[%c0_41, %c2_42, %c1_43, %c0_44] : memref<1x4x49x8xbf16, #tpu.memory_space<vmem>>, vector<1x1x40x8xbf16>
    %36 = vector.shape_cast %35 : vector<1x1x40x8xbf16> to vector<40x8xbf16>
    %c6 = arith.constant 6 : index
    %c0_45 = arith.constant 0 : index
    %c0_46 = arith.constant 0 : index
    %37 = vector.load %arg4[%c6, %c0_45, %c0_46] : memref<16x8x128xbf16, #tpu.memory_space<vmem>>, vector<1x8x128xbf16>
    %38 = vector.shape_cast %37 : vector<1x8x128xbf16> to vector<8x128xbf16>
    %cst_47 = arith.constant dense<0.000000e+00> : vector<40x128xf32>
    %39 = tpu.matmul %36, %38, %cst_47 {dimension_numbers = #tpu.dot_dimension_numbers<[1], [0], [0], [1], [0, 0, 1, 1], [], []>} : vector<40x8xbf16>, vector<8x128xbf16>, vector<40x128xf32> -> vector<40x128xf32>
    %40 = arith.addf %34, %39 : vector<40x128xf32>
    %c0_48 = arith.constant 0 : index
    %c3_49 = arith.constant 3 : index
    %c1_50 = arith.constant 1 : index
    %c0_51 = arith.constant 0 : index
    %41 = vector.load %arg3[%c0_48, %c3_49, %c1_50, %c0_51] : memref<1x4x49x8xbf16, #tpu.memory_space<vmem>>, vector<1x1x40x8xbf16>
    %42 = vector.shape_cast %41 : vector<1x1x40x8xbf16> to vector<40x8xbf16>
    %c7 = arith.constant 7 : index
    %c0_52 = arith.constant 0 : index
    %c0_53 = arith.constant 0 : index
    %43 = vector.load %arg4[%c7, %c0_52, %c0_53] : memref<16x8x128xbf16, #tpu.memory_space<vmem>>, vector<1x8x128xbf16>
    %44 = vector.shape_cast %43 : vector<1x8x128xbf16> to vector<8x128xbf16>
    %cst_54 = arith.constant dense<0.000000e+00> : vector<40x128xf32>
    %45 = tpu.matmul %42, %44, %cst_54 {dimension_numbers = #tpu.dot_dimension_numbers<[1], [0], [0], [1], [0, 0, 1, 1], [], []>} : vector<40x8xbf16>, vector<8x128xbf16>, vector<40x128xf32> -> vector<40x128xf32>
    %46 = arith.addf %40, %45 : vector<40x128xf32>
    %c0_55 = arith.constant 0 : index
    %c0_56 = arith.constant 0 : index
    %c7_57 = arith.constant 7 : index
    %c0_58 = arith.constant 0 : index
    %47 = vector.load %arg3[%c0_55, %c0_56, %c7_57, %c0_58] : memref<1x4x49x8xbf16, #tpu.memory_space<vmem>>, vector<1x1x40x8xbf16>
    %48 = vector.shape_cast %47 : vector<1x1x40x8xbf16> to vector<40x8xbf16>
    %c8 = arith.constant 8 : index
    %c0_59 = arith.constant 0 : index
    %c0_60 = arith.constant 0 : index
    %49 = vector.load %arg4[%c8, %c0_59, %c0_60] : memref<16x8x128xbf16, #tpu.memory_space<vmem>>, vector<1x8x128xbf16>
    %50 = vector.shape_cast %49 : vector<1x8x128xbf16> to vector<8x128xbf16>
    %cst_61 = arith.constant dense<0.000000e+00> : vector<40x128xf32>
    %51 = tpu.matmul %48, %50, %cst_61 {dimension_numbers = #tpu.dot_dimension_numbers<[1], [0], [0], [1], [0, 0, 1, 1], [], []>} : vector<40x8xbf16>, vector<8x128xbf16>, vector<40x128xf32> -> vector<40x128xf32>
    %52 = arith.addf %46, %51 : vector<40x128xf32>
    %c0_62 = arith.constant 0 : index
    %c1_63 = arith.constant 1 : index
    %c7_64 = arith.constant 7 : index
    %c0_65 = arith.constant 0 : index
    %53 = vector.load %arg3[%c0_62, %c1_63, %c7_64, %c0_65] : memref<1x4x49x8xbf16, #tpu.memory_space<vmem>>, vector<1x1x40x8xbf16>
    %54 = vector.shape_cast %53 : vector<1x1x40x8xbf16> to vector<40x8xbf16>
    %c9 = arith.constant 9 : index
    %c0_66 = arith.constant 0 : index
    %c0_67 = arith.constant 0 : index
    %55 = vector.load %arg4[%c9, %c0_66, %c0_67] : memref<16x8x128xbf16, #tpu.memory_space<vmem>>, vector<1x8x128xbf16>
    %56 = vector.shape_cast %55 : vector<1x8x128xbf16> to vector<8x128xbf16>
    %cst_68 = arith.constant dense<0.000000e+00> : vector<40x128xf32>
    %57 = tpu.matmul %54, %56, %cst_68 {dimension_numbers = #tpu.dot_dimension_numbers<[1], [0], [0], [1], [0, 0, 1, 1], [], []>} : vector<40x8xbf16>, vector<8x128xbf16>, vector<40x128xf32> -> vector<40x128xf32>
    %58 = arith.addf %52, %57 : vector<40x128xf32>
    %c0_69 = arith.constant 0 : index
    %c0_70 = arith.constant 0 : index
    %c8_71 = arith.constant 8 : index
    %c0_72 = arith.constant 0 : index
    %59 = vector.load %arg3[%c0_69, %c0_70, %c8_71, %c0_72] : memref<1x4x49x8xbf16, #tpu.memory_space<vmem>>, vector<1x1x40x8xbf16>
    %60 = vector.shape_cast %59 : vector<1x1x40x8xbf16> to vector<40x8xbf16>
    %c10 = arith.constant 10 : index
    %c0_73 = arith.constant 0 : index
    %c0_74 = arith.constant 0 : index
    %61 = vector.load %arg4[%c10, %c0_73, %c0_74] : memref<16x8x128xbf16, #tpu.memory_space<vmem>>, vector<1x8x128xbf16>
    %62 = vector.shape_cast %61 : vector<1x8x128xbf16> to vector<8x128xbf16>
    %cst_75 = arith.constant dense<0.000000e+00> : vector<40x128xf32>
    %63 = tpu.matmul %60, %62, %cst_75 {dimension_numbers = #tpu.dot_dimension_numbers<[1], [0], [0], [1], [0, 0, 1, 1], [], []>} : vector<40x8xbf16>, vector<8x128xbf16>, vector<40x128xf32> -> vector<40x128xf32>
    %64 = arith.addf %58, %63 : vector<40x128xf32>
    %c0_76 = arith.constant 0 : index
    %c1_77 = arith.constant 1 : index
    %c8_78 = arith.constant 8 : index
    %c0_79 = arith.constant 0 : index
    %65 = vector.load %arg3[%c0_76, %c1_77, %c8_78, %c0_79] : memref<1x4x49x8xbf16, #tpu.memory_space<vmem>>, vector<1x1x40x8xbf16>
    %66 = vector.shape_cast %65 : vector<1x1x40x8xbf16> to vector<40x8xbf16>
    %c11 = arith.constant 11 : index
    %c0_80 = arith.constant 0 : index
    %c0_81 = arith.constant 0 : index
    %67 = vector.load %arg4[%c11, %c0_80, %c0_81] : memref<16x8x128xbf16, #tpu.memory_space<vmem>>, vector<1x8x128xbf16>
    %68 = vector.shape_cast %67 : vector<1x8x128xbf16> to vector<8x128xbf16>
    %cst_82 = arith.constant dense<0.000000e+00> : vector<40x128xf32>
    %69 = tpu.matmul %66, %68, %cst_82 {dimension_numbers = #tpu.dot_dimension_numbers<[1], [0], [0], [1], [0, 0, 1, 1], [], []>} : vector<40x8xbf16>, vector<8x128xbf16>, vector<40x128xf32> -> vector<40x128xf32>
    %70 = arith.addf %64, %69 : vector<40x128xf32>
    %c0_83 = arith.constant 0 : index
    %c2_84 = arith.constant 2 : index
    %c7_85 = arith.constant 7 : index
    %c0_86 = arith.constant 0 : index
    %71 = vector.load %arg3[%c0_83, %c2_84, %c7_85, %c0_86] : memref<1x4x49x8xbf16, #tpu.memory_space<vmem>>, vector<1x1x40x8xbf16>
    %72 = vector.shape_cast %71 : vector<1x1x40x8xbf16> to vector<40x8xbf16>
    %c12 = arith.constant 12 : index
    %c0_87 = arith.constant 0 : index
    %c0_88 = arith.constant 0 : index
    %73 = vector.load %arg4[%c12, %c0_87, %c0_88] : memref<16x8x128xbf16, #tpu.memory_space<vmem>>, vector<1x8x128xbf16>
    %74 = vector.shape_cast %73 : vector<1x8x128xbf16> to vector<8x128xbf16>
    %cst_89 = arith.constant dense<0.000000e+00> : vector<40x128xf32>
    %75 = tpu.matmul %72, %74, %cst_89 {dimension_numbers = #tpu.dot_dimension_numbers<[1], [0], [0], [1], [0, 0, 1, 1], [], []>} : vector<40x8xbf16>, vector<8x128xbf16>, vector<40x128xf32> -> vector<40x128xf32>
    %76 = arith.addf %70, %75 : vector<40x128xf32>
    %c0_90 = arith.constant 0 : index
    %c3_91 = arith.constant 3 : index
    %c7_92 = arith.constant 7 : index
    %c0_93 = arith.constant 0 : index
    %77 = vector.load %arg3[%c0_90, %c3_91, %c7_92, %c0_93] : memref<1x4x49x8xbf16, #tpu.memory_space<vmem>>, vector<1x1x40x8xbf16>
    %78 = vector.shape_cast %77 : vector<1x1x40x8xbf16> to vector<40x8xbf16>
    %c13 = arith.constant 13 : index
    %c0_94 = arith.constant 0 : index
    %c0_95 = arith.constant 0 : index
    %79 = vector.load %arg4[%c13, %c0_94, %c0_95] : memref<16x8x128xbf16, #tpu.memory_space<vmem>>, vector<1x8x128xbf16>
    %80 = vector.shape_cast %79 : vector<1x8x128xbf16> to vector<8x128xbf16>
    %cst_96 = arith.constant dense<0.000000e+00> : vector<40x128xf32>
    %81 = tpu.matmul %78, %80, %cst_96 {dimension_numbers = #tpu.dot_dimension_numbers<[1], [0], [0], [1], [0, 0, 1, 1], [], []>} : vector<40x8xbf16>, vector<8x128xbf16>, vector<40x128xf32> -> vector<40x128xf32>
    %82 = arith.addf %76, %81 : vector<40x128xf32>
    %c0_97 = arith.constant 0 : index
    %c2_98 = arith.constant 2 : index
    %c8_99 = arith.constant 8 : index
    %c0_100 = arith.constant 0 : index
    %83 = vector.load %arg3[%c0_97, %c2_98, %c8_99, %c0_100] : memref<1x4x49x8xbf16, #tpu.memory_space<vmem>>, vector<1x1x40x8xbf16>
    %84 = vector.shape_cast %83 : vector<1x1x40x8xbf16> to vector<40x8xbf16>
    %c14 = arith.constant 14 : index
    %c0_101 = arith.constant 0 : index
    %c0_102 = arith.constant 0 : index
    %85 = vector.load %arg4[%c14, %c0_101, %c0_102] : memref<16x8x128xbf16, #tpu.memory_space<vmem>>, vector<1x8x128xbf16>
    %86 = vector.shape_cast %85 : vector<1x8x128xbf16> to vector<8x128xbf16>
    %cst_103 = arith.constant dense<0.000000e+00> : vector<40x128xf32>
    %87 = tpu.matmul %84, %86, %cst_103 {dimension_numbers = #tpu.dot_dimension_numbers<[1], [0], [0], [1], [0, 0, 1, 1], [], []>} : vector<40x8xbf16>, vector<8x128xbf16>, vector<40x128xf32> -> vector<40x128xf32>
    %88 = arith.addf %82, %87 : vector<40x128xf32>
    %c0_104 = arith.constant 0 : index
    %c3_105 = arith.constant 3 : index
    %c8_106 = arith.constant 8 : index
    %c0_107 = arith.constant 0 : index
    %89 = vector.load %arg3[%c0_104, %c3_105, %c8_106, %c0_107] : memref<1x4x49x8xbf16, #tpu.memory_space<vmem>>, vector<1x1x40x8xbf16>
    %90 = vector.shape_cast %89 : vector<1x1x40x8xbf16> to vector<40x8xbf16>
    %c15 = arith.constant 15 : index
    %c0_108 = arith.constant 0 : index
    %c0_109 = arith.constant 0 : index
    %91 = vector.load %arg4[%c15, %c0_108, %c0_109] : memref<16x8x128xbf16, #tpu.memory_space<vmem>>, vector<1x8x128xbf16>
    %92 = vector.shape_cast %91 : vector<1x8x128xbf16> to vector<8x128xbf16>
    %cst_110 = arith.constant dense<0.000000e+00> : vector<40x128xf32>
    %93 = tpu.matmul %90, %92, %cst_110 {dimension_numbers = #tpu.dot_dimension_numbers<[1], [0], [0], [1], [0, 0, 1, 1], [], []>} : vector<40x8xbf16>, vector<8x128xbf16>, vector<40x128xf32> -> vector<40x128xf32>
    %94 = arith.addf %88, %93 : vector<40x128xf32>
    %95 = arith.truncf %94 : vector<40x128xf32> to vector<40x128xbf16>
    %c0_111 = arith.constant 0 : index
    %c0_112 = arith.constant 0 : index
    %c0_113 = arith.constant 0 : index
    %96 = vector.load %arg5[%c0_111, %c0_112, %c0_113] : memref<1x40x128xbf16, #tpu.memory_space<vmem>>, vector<1x40x128xbf16>
    %97 = vector.shape_cast %96 : vector<1x40x128xbf16> to vector<40x128xbf16>
    %98 = vector.shape_cast %95 : vector<40x128xbf16> to vector<1x40x128xbf16>
    tpu.vector_store %arg5[%c0_111, %c0_112, %c0_113], %98 {strides = array<i32>} : memref<1x40x128xbf16, #tpu.memory_space<vmem>>, vector<1x40x128xbf16>,
    %c0_114 = arith.constant 0 : index
    %c0_115 = arith.constant 0 : index
    %99 = vector.load %arg2[%c0_114, %c0_115] : memref<40x1xf32, #tpu.memory_space<vmem>>, vector<40x1xf32>
    %cst_116 = arith.constant dense<0.000000e+00> : vector<1xf32>
    %100 = vector.multi_reduction <add>, %99, %cst_116 [0] : vector<40x1xf32> to vector<1xf32>
    %101 = vector.shape_cast %100 : vector<1xf32> to vector<1x1xf32>
    %102 = vector.broadcast %99 : vector<40x1xf32> to vector<40x128xf32>
    %103 = arith.mulf %94, %102 : vector<40x128xf32>
    %cst_117 = arith.constant dense<0.000000e+00> : vector<128xf32>
    %104 = vector.multi_reduction <add>, %103, %cst_117 [0] : vector<40x128xf32> to vector<128xf32>
    %105 = vector.shape_cast %104 : vector<128xf32> to vector<1x128xf32>
    %cst_118 = arith.constant 1.000000e+00 : f32
    %106 = vector.broadcast %cst_118 : f32 to vector<1x1xf32>
    %107 = arith.maximumf %101, %106 : vector<1x1xf32>
    %108 = vector.broadcast %107 : vector<1x1xf32> to vector<1x128xf32>
    %109 = arith.divf %105, %108 : vector<1x128xf32>
    %110 = vector.broadcast %109 : vector<1x128xf32> to vector<40x128xf32>
    %111 = arith.subf %94, %110 : vector<40x128xf32>
    %112 = vector.broadcast %99 : vector<40x1xf32> to vector<40x128xf32>
    %113 = arith.mulf %111, %112 : vector<40x128xf32>
    %114 = arith.mulf %113, %113 : vector<40x128xf32>
    %cst_119 = arith.constant dense<0.000000e+00> : vector<128xf32>
    %115 = vector.multi_reduction <add>, %114, %cst_119 [0] : vector<40x128xf32> to vector<128xf32>
    %116 = vector.shape_cast %115 : vector<128xf32> to vector<1x128xf32>
    %c0_120 = arith.constant 0 : index
    %c0_121 = arith.constant 0 : index
    %c0_122 = arith.constant 0 : index
    %c0_123 = arith.constant 0 : index
    %117 = vector.load %arg6[%c0_120, %c0_121, %c0_122, %c0_123] : memref<1x1x3x128xf32, #tpu.memory_space<vmem>>, vector<1x1x1x128xf32>
    %118 = vector.shape_cast %117 : vector<1x1x1x128xf32> to vector<1x128xf32>
    %119 = vector.shape_cast %105 : vector<1x128xf32> to vector<1x1x1x128xf32>
    tpu.vector_store %arg6[%c0_120, %c0_121, %c0_122, %c0_123], %119 {strides = array<i32>} : memref<1x1x3x128xf32, #tpu.memory_space<vmem>>, vector<1x1x1x128xf32>,
    %c0_124 = arith.constant 0 : index
    %c0_125 = arith.constant 0 : index
    %c1_126 = arith.constant 1 : index
    %c0_127 = arith.constant 0 : index
    %120 = vector.load %arg6[%c0_124, %c0_125, %c1_126, %c0_127] : memref<1x1x3x128xf32, #tpu.memory_space<vmem>>, vector<1x1x1x128xf32>
    %121 = vector.shape_cast %120 : vector<1x1x1x128xf32> to vector<1x128xf32>
    %122 = vector.shape_cast %116 : vector<1x128xf32> to vector<1x1x1x128xf32>
    tpu.vector_store %arg6[%c0_124, %c0_125, %c1_126, %c0_127], %122 {strides = array<i32>} : memref<1x1x3x128xf32, #tpu.memory_space<vmem>>, vector<1x1x1x128xf32>,
    %cst_128 = arith.constant 0.000000e+00 : f32
    %123 = vector.broadcast %cst_128 : f32 to vector<1x128xf32>
    %124 = vector.broadcast %101 : vector<1x1xf32> to vector<1x128xf32>
    %125 = arith.addf %123, %124 : vector<1x128xf32>
    %c0_129 = arith.constant 0 : index
    %c0_130 = arith.constant 0 : index
    %c2_131 = arith.constant 2 : index
    %c0_132 = arith.constant 0 : index
    %126 = vector.load %arg6[%c0_129, %c0_130, %c2_131, %c0_132] : memref<1x1x3x128xf32, #tpu.memory_space<vmem>>, vector<1x1x1x128xf32>
    %127 = vector.shape_cast %126 : vector<1x1x1x128xf32> to vector<1x128xf32>
    %128 = vector.shape_cast %125 : vector<1x128xf32> to vector<1x1x1x128xf32>
    tpu.vector_store %arg6[%c0_129, %c0_130, %c2_131, %c0_132], %128 {strides = array<i32>} : memref<1x1x3x128xf32, #tpu.memory_space<vmem>>, vector<1x1x1x128xf32>,
    return
  }
  func.func @transform_0(%arg0: i32, %arg1: i32) -> (i32, i32) {
    %c0_i32 = arith.constant 0 : i32
    %c0_i32_0 = arith.constant 0 : i32
    return %arg1, %c0_i32 : i32, i32
  }
  func.func @transform_1(%arg0: i32, %arg1: i32) -> (i32, i32, i32, i32) {
    %c0_i32 = arith.constant 0 : i32
    %c0_i32_0 = arith.constant 0 : i32
    %c0_i32_1 = arith.constant 0 : i32
    %c0_i32_2 = arith.constant 0 : i32
    return %arg0, %c0_i32, %c0_i32_0, %c0_i32_1 : i32, i32, i32, i32
  }
  func.func @transform_2(%arg0: i32, %arg1: i32) -> (i32, i32, i32) {
    %c0_i32 = arith.constant 0 : i32
    %c0_i32_0 = arith.constant 0 : i32
    %c0_i32_1 = arith.constant 0 : i32
    %c0_i32_2 = arith.constant 0 : i32
    return %c0_i32, %c0_i32_0, %c0_i32_1 : i32, i32, i32
  }
  func.func @transform_3(%arg0: i32, %arg1: i32) -> (i32, i32, i32) {
    %c0_i32 = arith.constant 0 : i32
    %c0_i32_0 = arith.constant 0 : i32
    return %arg0, %arg1, %c0_i32 : i32, i32, i32
  }
  func.func @transform_4(%arg0: i32, %arg1: i32) -> (i32, i32, i32, i32) {
    %c0_i32 = arith.constant 0 : i32
    %c0_i32_0 = arith.constant 0 : i32
    %c0_i32_1 = arith.constant 0 : i32
    return %arg0, %arg1, %c0_i32, %c0_i32_0 : i32, i32, i32, i32
  }
}

module attributes {stable_mosaic.version = 11 : i64} {
  func.func @kernel(%arg0: i32, %arg1: i32, %arg2: memref<1x40x128xbf16, #tpu.memory_space<vmem>>, %arg3: memref<1x128xf32, #tpu.memory_space<vmem>>, %arg4: memref<1x128xf32, #tpu.memory_space<vmem>>, %arg5: memref<1x40x128xbf16, #tpu.memory_space<vmem>>) attributes {dimension_semantics = [#tpu.dimension_semantics<parallel>, #tpu.dimension_semantics<parallel>], iteration_bounds = array<i64: 2, 1>, scalar_prefetch = 0 : i64, scratch_operands = 0 : i64, tpu.core_type = #tpu.core_type<tc>, window_params = [{transform_indices = @transform_0, window_bounds = array<i64: 1, 40, 128>}, {pipeline_mode = #tpu.pipeline_mode<synchronous>, transform_indices = @transform_1, window_bounds = array<i64: 1, 128>}, {pipeline_mode = #tpu.pipeline_mode<synchronous>, transform_indices = @transform_2, window_bounds = array<i64: 1, 128>}, {transform_indices = @transform_3, window_bounds = array<i64: 1, 40, 128>}]} {
    %c0 = arith.constant 0 : index
    %c0_0 = arith.constant 0 : index
    %c0_1 = arith.constant 0 : index
    %0 = vector.load %arg2[%c0, %c0_0, %c0_1] : memref<1x40x128xbf16, #tpu.memory_space<vmem>>, vector<1x40x128xbf16>
    %1 = vector.shape_cast %0 : vector<1x40x128xbf16> to vector<40x128xbf16>
    %2 = arith.extf %1 : vector<40x128xbf16> to vector<40x128xf32>
    %c0_2 = arith.constant 0 : index
    %c0_3 = arith.constant 0 : index
    %3 = vector.load %arg3[%c0_2, %c0_3] : memref<1x128xf32, #tpu.memory_space<vmem>>, vector<1x128xf32>
    %4 = vector.broadcast %3 : vector<1x128xf32> to vector<40x128xf32>
    %5 = arith.mulf %2, %4 : vector<40x128xf32>
    %c0_4 = arith.constant 0 : index
    %c0_5 = arith.constant 0 : index
    %6 = vector.load %arg4[%c0_4, %c0_5] : memref<1x128xf32, #tpu.memory_space<vmem>>, vector<1x128xf32>
    %7 = vector.broadcast %6 : vector<1x128xf32> to vector<40x128xf32>
    %8 = arith.addf %5, %7 : vector<40x128xf32>
    %cst = arith.constant 0.000000e+00 : f32
    %9 = vector.broadcast %cst : f32 to vector<40x128xf32>
    %10 = arith.cmpf oge, %8, %9 : vector<40x128xf32>
    %cst_6 = arith.constant 2.000000e-01 : f32
    %11 = vector.broadcast %cst_6 : f32 to vector<40x128xf32>
    %12 = arith.mulf %11, %8 : vector<40x128xf32>
    %13 = arith.select %10, %8, %12 : vector<40x128xi1>, vector<40x128xf32>
    %14 = arith.truncf %13 : vector<40x128xf32> to vector<40x128xbf16>
    %c0_7 = arith.constant 0 : index
    %c0_8 = arith.constant 0 : index
    %c0_9 = arith.constant 0 : index
    %15 = vector.load %arg5[%c0_7, %c0_8, %c0_9] : memref<1x40x128xbf16, #tpu.memory_space<vmem>>, vector<1x40x128xbf16>
    %16 = vector.shape_cast %15 : vector<1x40x128xbf16> to vector<40x128xbf16>
    %17 = vector.shape_cast %14 : vector<40x128xbf16> to vector<1x40x128xbf16>
    tpu.vector_store %arg5[%c0_7, %c0_8, %c0_9], %17 {strides = array<i32>} : memref<1x40x128xbf16, #tpu.memory_space<vmem>>, vector<1x40x128xbf16>,
    return
  }
  func.func @transform_0(%arg0: i32, %arg1: i32) -> (i32, i32, i32) {
    %c0_i32 = arith.constant 0 : i32
    %c0_i32_0 = arith.constant 0 : i32
    return %arg0, %arg1, %c0_i32 : i32, i32, i32
  }
  func.func @transform_1(%arg0: i32, %arg1: i32) -> (i32, i32) {
    %c0_i32 = arith.constant 0 : i32
    %c0_i32_0 = arith.constant 0 : i32
    %c0_i32_1 = arith.constant 0 : i32
    return %c0_i32, %c0_i32_0 : i32, i32
  }
  func.func @transform_2(%arg0: i32, %arg1: i32) -> (i32, i32) {
    %c0_i32 = arith.constant 0 : i32
    %c0_i32_0 = arith.constant 0 : i32
    %c0_i32_1 = arith.constant 0 : i32
    return %c0_i32, %c0_i32_0 : i32, i32
  }
  func.func @transform_3(%arg0: i32, %arg1: i32) -> (i32, i32, i32) {
    %c0_i32 = arith.constant 0 : i32
    %c0_i32_0 = arith.constant 0 : i32
    return %arg0, %arg1, %c0_i32 : i32, i32, i32
  }
}

module attributes {stable_mosaic.version = 11 : i64} {
  func.func @kernel(%arg0: i32, %arg1: i32, %arg2: memref<1x56x128xbf16, #tpu.memory_space<vmem>>, %arg3: memref<1x128xf32, #tpu.memory_space<vmem>>, %arg4: memref<1x128xf32, #tpu.memory_space<vmem>>, %arg5: memref<1x56x128xbf16, #tpu.memory_space<vmem>>) attributes {dimension_semantics = [#tpu.dimension_semantics<parallel>, #tpu.dimension_semantics<parallel>], iteration_bounds = array<i64: 2, 1>, scalar_prefetch = 0 : i64, scratch_operands = 0 : i64, tpu.core_type = #tpu.core_type<tc>, window_params = [{transform_indices = @transform_0, window_bounds = array<i64: 1, 56, 128>}, {pipeline_mode = #tpu.pipeline_mode<synchronous>, transform_indices = @transform_1, window_bounds = array<i64: 1, 128>}, {pipeline_mode = #tpu.pipeline_mode<synchronous>, transform_indices = @transform_2, window_bounds = array<i64: 1, 128>}, {transform_indices = @transform_3, window_bounds = array<i64: 1, 56, 128>}]} {
    %c0 = arith.constant 0 : index
    %c0_0 = arith.constant 0 : index
    %c0_1 = arith.constant 0 : index
    %0 = vector.load %arg2[%c0, %c0_0, %c0_1] : memref<1x56x128xbf16, #tpu.memory_space<vmem>>, vector<1x56x128xbf16>
    %1 = vector.shape_cast %0 : vector<1x56x128xbf16> to vector<56x128xbf16>
    %2 = arith.extf %1 : vector<56x128xbf16> to vector<56x128xf32>
    %c0_2 = arith.constant 0 : index
    %c0_3 = arith.constant 0 : index
    %3 = vector.load %arg3[%c0_2, %c0_3] : memref<1x128xf32, #tpu.memory_space<vmem>>, vector<1x128xf32>
    %4 = vector.broadcast %3 : vector<1x128xf32> to vector<56x128xf32>
    %5 = arith.mulf %2, %4 : vector<56x128xf32>
    %c0_4 = arith.constant 0 : index
    %c0_5 = arith.constant 0 : index
    %6 = vector.load %arg4[%c0_4, %c0_5] : memref<1x128xf32, #tpu.memory_space<vmem>>, vector<1x128xf32>
    %7 = vector.broadcast %6 : vector<1x128xf32> to vector<56x128xf32>
    %8 = arith.addf %5, %7 : vector<56x128xf32>
    %cst = arith.constant 0.000000e+00 : f32
    %9 = vector.broadcast %cst : f32 to vector<56x128xf32>
    %10 = arith.cmpf oge, %8, %9 : vector<56x128xf32>
    %cst_6 = arith.constant 2.000000e-01 : f32
    %11 = vector.broadcast %cst_6 : f32 to vector<56x128xf32>
    %12 = arith.mulf %11, %8 : vector<56x128xf32>
    %13 = arith.select %10, %8, %12 : vector<56x128xi1>, vector<56x128xf32>
    %14 = arith.truncf %13 : vector<56x128xf32> to vector<56x128xbf16>
    %c0_7 = arith.constant 0 : index
    %c0_8 = arith.constant 0 : index
    %c0_9 = arith.constant 0 : index
    %15 = vector.load %arg5[%c0_7, %c0_8, %c0_9] : memref<1x56x128xbf16, #tpu.memory_space<vmem>>, vector<1x56x128xbf16>
    %16 = vector.shape_cast %15 : vector<1x56x128xbf16> to vector<56x128xbf16>
    %17 = vector.shape_cast %14 : vector<56x128xbf16> to vector<1x56x128xbf16>
    tpu.vector_store %arg5[%c0_7, %c0_8, %c0_9], %17 {strides = array<i32>} : memref<1x56x128xbf16, #tpu.memory_space<vmem>>, vector<1x56x128xbf16>,
    return
  }
  func.func @transform_0(%arg0: i32, %arg1: i32) -> (i32, i32, i32) {
    %c0_i32 = arith.constant 0 : i32
    %c0_i32_0 = arith.constant 0 : i32
    return %arg0, %arg1, %c0_i32 : i32, i32, i32
  }
  func.func @transform_1(%arg0: i32, %arg1: i32) -> (i32, i32) {
    %c0_i32 = arith.constant 0 : i32
    %c0_i32_0 = arith.constant 0 : i32
    %c0_i32_1 = arith.constant 0 : i32
    return %c0_i32, %c0_i32_0 : i32, i32
  }
  func.func @transform_2(%arg0: i32, %arg1: i32) -> (i32, i32) {
    %c0_i32 = arith.constant 0 : i32
    %c0_i32_0 = arith.constant 0 : i32
    %c0_i32_1 = arith.constant 0 : i32
    return %c0_i32, %c0_i32_0 : i32, i32
  }
  func.func @transform_3(%arg0: i32, %arg1: i32) -> (i32, i32, i32) {
    %c0_i32 = arith.constant 0 : i32
    %c0_i32_0 = arith.constant 0 : i32
    return %arg0, %arg1, %c0_i32 : i32, i32, i32
  }
}

module attributes {stable_mosaic.version = 11 : i64} {
  func.func @kernel(%arg0: i32, %arg1: i32, %arg2: memref<56x1xf32, #tpu.memory_space<vmem>>, %arg3: memref<1x1x86x16xbf16, #tpu.memory_space<vmem>>, %arg4: memref<16x16x128xbf16, #tpu.memory_space<vmem>>, %arg5: memref<1x56x128xbf16, #tpu.memory_space<vmem>>, %arg6: memref<1x1x3x128xf32, #tpu.memory_space<vmem>>) attributes {dimension_semantics = [#tpu.dimension_semantics<parallel>, #tpu.dimension_semantics<parallel>], iteration_bounds = array<i64: 2, 1>, scalar_prefetch = 0 : i64, scratch_operands = 0 : i64, tpu.core_type = #tpu.core_type<tc>, window_params = [{transform_indices = @transform_0, window_bounds = array<i64: 56, 1>}, {transform_indices = @transform_1, window_bounds = array<i64: 1, 1, 86, 16>}, {pipeline_mode = #tpu.pipeline_mode<synchronous>, transform_indices = @transform_2, window_bounds = array<i64: 16, 16, 128>}, {transform_indices = @transform_3, window_bounds = array<i64: 1, 56, 128>}, {transform_indices = @transform_4, window_bounds = array<i64: 1, 1, 3, 128>}]} {
    %c0 = arith.constant 0 : index
    %c0_0 = arith.constant 0 : index
    %c0_1 = arith.constant 0 : index
    %c0_2 = arith.constant 0 : index
    %0 = vector.load %arg3[%c0, %c0_0, %c0_1, %c0_2] : memref<1x1x86x16xbf16, #tpu.memory_space<vmem>>, vector<1x1x56x16xbf16>
    %1 = vector.shape_cast %0 : vector<1x1x56x16xbf16> to vector<56x16xbf16>
    %c0_3 = arith.constant 0 : index
    %c0_4 = arith.constant 0 : index
    %c0_5 = arith.constant 0 : index
    %2 = vector.load %arg4[%c0_3, %c0_4, %c0_5] : memref<16x16x128xbf16, #tpu.memory_space<vmem>>, vector<1x16x128xbf16>
    %3 = vector.shape_cast %2 : vector<1x16x128xbf16> to vector<16x128xbf16>
    %cst = arith.constant dense<0.000000e+00> : vector<56x128xf32>
    %4 = tpu.matmul %1, %3, %cst {dimension_numbers = #tpu.dot_dimension_numbers<[1], [0], [0], [1], [0, 0, 1, 1], [], []>} : vector<56x16xbf16>, vector<16x128xbf16>, vector<56x128xf32> -> vector<56x128xf32>
    %c0_6 = arith.constant 0 : index
    %c0_7 = arith.constant 0 : index
    %c1 = arith.constant 1 : index
    %c0_8 = arith.constant 0 : index
    %5 = vector.load %arg3[%c0_6, %c0_7, %c1, %c0_8] : memref<1x1x86x16xbf16, #tpu.memory_space<vmem>>, vector<1x1x56x16xbf16>
    %6 = vector.shape_cast %5 : vector<1x1x56x16xbf16> to vector<56x16xbf16>
    %c1_9 = arith.constant 1 : index
    %c0_10 = arith.constant 0 : index
    %c0_11 = arith.constant 0 : index
    %7 = vector.load %arg4[%c1_9, %c0_10, %c0_11] : memref<16x16x128xbf16, #tpu.memory_space<vmem>>, vector<1x16x128xbf16>
    %8 = vector.shape_cast %7 : vector<1x16x128xbf16> to vector<16x128xbf16>
    %cst_12 = arith.constant dense<0.000000e+00> : vector<56x128xf32>
    %9 = tpu.matmul %6, %8, %cst_12 {dimension_numbers = #tpu.dot_dimension_numbers<[1], [0], [0], [1], [0, 0, 1, 1], [], []>} : vector<56x16xbf16>, vector<16x128xbf16>, vector<56x128xf32> -> vector<56x128xf32>
    %10 = arith.addf %4, %9 : vector<56x128xf32>
    %c0_13 = arith.constant 0 : index
    %c0_14 = arith.constant 0 : index
    %c2 = arith.constant 2 : index
    %c0_15 = arith.constant 0 : index
    %11 = vector.load %arg3[%c0_13, %c0_14, %c2, %c0_15] : memref<1x1x86x16xbf16, #tpu.memory_space<vmem>>, vector<1x1x56x16xbf16>
    %12 = vector.shape_cast %11 : vector<1x1x56x16xbf16> to vector<56x16xbf16>
    %c2_16 = arith.constant 2 : index
    %c0_17 = arith.constant 0 : index
    %c0_18 = arith.constant 0 : index
    %13 = vector.load %arg4[%c2_16, %c0_17, %c0_18] : memref<16x16x128xbf16, #tpu.memory_space<vmem>>, vector<1x16x128xbf16>
    %14 = vector.shape_cast %13 : vector<1x16x128xbf16> to vector<16x128xbf16>
    %cst_19 = arith.constant dense<0.000000e+00> : vector<56x128xf32>
    %15 = tpu.matmul %12, %14, %cst_19 {dimension_numbers = #tpu.dot_dimension_numbers<[1], [0], [0], [1], [0, 0, 1, 1], [], []>} : vector<56x16xbf16>, vector<16x128xbf16>, vector<56x128xf32> -> vector<56x128xf32>
    %16 = arith.addf %10, %15 : vector<56x128xf32>
    %c0_20 = arith.constant 0 : index
    %c0_21 = arith.constant 0 : index
    %c3 = arith.constant 3 : index
    %c0_22 = arith.constant 0 : index
    %17 = vector.load %arg3[%c0_20, %c0_21, %c3, %c0_22] : memref<1x1x86x16xbf16, #tpu.memory_space<vmem>>, vector<1x1x56x16xbf16>
    %18 = vector.shape_cast %17 : vector<1x1x56x16xbf16> to vector<56x16xbf16>
    %c3_23 = arith.constant 3 : index
    %c0_24 = arith.constant 0 : index
    %c0_25 = arith.constant 0 : index
    %19 = vector.load %arg4[%c3_23, %c0_24, %c0_25] : memref<16x16x128xbf16, #tpu.memory_space<vmem>>, vector<1x16x128xbf16>
    %20 = vector.shape_cast %19 : vector<1x16x128xbf16> to vector<16x128xbf16>
    %cst_26 = arith.constant dense<0.000000e+00> : vector<56x128xf32>
    %21 = tpu.matmul %18, %20, %cst_26 {dimension_numbers = #tpu.dot_dimension_numbers<[1], [0], [0], [1], [0, 0, 1, 1], [], []>} : vector<56x16xbf16>, vector<16x128xbf16>, vector<56x128xf32> -> vector<56x128xf32>
    %22 = arith.addf %16, %21 : vector<56x128xf32>
    %c0_27 = arith.constant 0 : index
    %c0_28 = arith.constant 0 : index
    %c9 = arith.constant 9 : index
    %c0_29 = arith.constant 0 : index
    %23 = vector.load %arg3[%c0_27, %c0_28, %c9, %c0_29] : memref<1x1x86x16xbf16, #tpu.memory_space<vmem>>, vector<1x1x56x16xbf16>
    %24 = vector.shape_cast %23 : vector<1x1x56x16xbf16> to vector<56x16xbf16>
    %c4 = arith.constant 4 : index
    %c0_30 = arith.constant 0 : index
    %c0_31 = arith.constant 0 : index
    %25 = vector.load %arg4[%c4, %c0_30, %c0_31] : memref<16x16x128xbf16, #tpu.memory_space<vmem>>, vector<1x16x128xbf16>
    %26 = vector.shape_cast %25 : vector<1x16x128xbf16> to vector<16x128xbf16>
    %cst_32 = arith.constant dense<0.000000e+00> : vector<56x128xf32>
    %27 = tpu.matmul %24, %26, %cst_32 {dimension_numbers = #tpu.dot_dimension_numbers<[1], [0], [0], [1], [0, 0, 1, 1], [], []>} : vector<56x16xbf16>, vector<16x128xbf16>, vector<56x128xf32> -> vector<56x128xf32>
    %28 = arith.addf %22, %27 : vector<56x128xf32>
    %c0_33 = arith.constant 0 : index
    %c0_34 = arith.constant 0 : index
    %c10 = arith.constant 10 : index
    %c0_35 = arith.constant 0 : index
    %29 = vector.load %arg3[%c0_33, %c0_34, %c10, %c0_35] : memref<1x1x86x16xbf16, #tpu.memory_space<vmem>>, vector<1x1x56x16xbf16>
    %30 = vector.shape_cast %29 : vector<1x1x56x16xbf16> to vector<56x16xbf16>
    %c5 = arith.constant 5 : index
    %c0_36 = arith.constant 0 : index
    %c0_37 = arith.constant 0 : index
    %31 = vector.load %arg4[%c5, %c0_36, %c0_37] : memref<16x16x128xbf16, #tpu.memory_space<vmem>>, vector<1x16x128xbf16>
    %32 = vector.shape_cast %31 : vector<1x16x128xbf16> to vector<16x128xbf16>
    %cst_38 = arith.constant dense<0.000000e+00> : vector<56x128xf32>
    %33 = tpu.matmul %30, %32, %cst_38 {dimension_numbers = #tpu.dot_dimension_numbers<[1], [0], [0], [1], [0, 0, 1, 1], [], []>} : vector<56x16xbf16>, vector<16x128xbf16>, vector<56x128xf32> -> vector<56x128xf32>
    %34 = arith.addf %28, %33 : vector<56x128xf32>
    %c0_39 = arith.constant 0 : index
    %c0_40 = arith.constant 0 : index
    %c11 = arith.constant 11 : index
    %c0_41 = arith.constant 0 : index
    %35 = vector.load %arg3[%c0_39, %c0_40, %c11, %c0_41] : memref<1x1x86x16xbf16, #tpu.memory_space<vmem>>, vector<1x1x56x16xbf16>
    %36 = vector.shape_cast %35 : vector<1x1x56x16xbf16> to vector<56x16xbf16>
    %c6 = arith.constant 6 : index
    %c0_42 = arith.constant 0 : index
    %c0_43 = arith.constant 0 : index
    %37 = vector.load %arg4[%c6, %c0_42, %c0_43] : memref<16x16x128xbf16, #tpu.memory_space<vmem>>, vector<1x16x128xbf16>
    %38 = vector.shape_cast %37 : vector<1x16x128xbf16> to vector<16x128xbf16>
    %cst_44 = arith.constant dense<0.000000e+00> : vector<56x128xf32>
    %39 = tpu.matmul %36, %38, %cst_44 {dimension_numbers = #tpu.dot_dimension_numbers<[1], [0], [0], [1], [0, 0, 1, 1], [], []>} : vector<56x16xbf16>, vector<16x128xbf16>, vector<56x128xf32> -> vector<56x128xf32>
    %40 = arith.addf %34, %39 : vector<56x128xf32>
    %c0_45 = arith.constant 0 : index
    %c0_46 = arith.constant 0 : index
    %c12 = arith.constant 12 : index
    %c0_47 = arith.constant 0 : index
    %41 = vector.load %arg3[%c0_45, %c0_46, %c12, %c0_47] : memref<1x1x86x16xbf16, #tpu.memory_space<vmem>>, vector<1x1x56x16xbf16>
    %42 = vector.shape_cast %41 : vector<1x1x56x16xbf16> to vector<56x16xbf16>
    %c7 = arith.constant 7 : index
    %c0_48 = arith.constant 0 : index
    %c0_49 = arith.constant 0 : index
    %43 = vector.load %arg4[%c7, %c0_48, %c0_49] : memref<16x16x128xbf16, #tpu.memory_space<vmem>>, vector<1x16x128xbf16>
    %44 = vector.shape_cast %43 : vector<1x16x128xbf16> to vector<16x128xbf16>
    %cst_50 = arith.constant dense<0.000000e+00> : vector<56x128xf32>
    %45 = tpu.matmul %42, %44, %cst_50 {dimension_numbers = #tpu.dot_dimension_numbers<[1], [0], [0], [1], [0, 0, 1, 1], [], []>} : vector<56x16xbf16>, vector<16x128xbf16>, vector<56x128xf32> -> vector<56x128xf32>
    %46 = arith.addf %40, %45 : vector<56x128xf32>
    %c0_51 = arith.constant 0 : index
    %c0_52 = arith.constant 0 : index
    %c18 = arith.constant 18 : index
    %c0_53 = arith.constant 0 : index
    %47 = vector.load %arg3[%c0_51, %c0_52, %c18, %c0_53] : memref<1x1x86x16xbf16, #tpu.memory_space<vmem>>, vector<1x1x56x16xbf16>
    %48 = vector.shape_cast %47 : vector<1x1x56x16xbf16> to vector<56x16xbf16>
    %c8 = arith.constant 8 : index
    %c0_54 = arith.constant 0 : index
    %c0_55 = arith.constant 0 : index
    %49 = vector.load %arg4[%c8, %c0_54, %c0_55] : memref<16x16x128xbf16, #tpu.memory_space<vmem>>, vector<1x16x128xbf16>
    %50 = vector.shape_cast %49 : vector<1x16x128xbf16> to vector<16x128xbf16>
    %cst_56 = arith.constant dense<0.000000e+00> : vector<56x128xf32>
    %51 = tpu.matmul %48, %50, %cst_56 {dimension_numbers = #tpu.dot_dimension_numbers<[1], [0], [0], [1], [0, 0, 1, 1], [], []>} : vector<56x16xbf16>, vector<16x128xbf16>, vector<56x128xf32> -> vector<56x128xf32>
    %52 = arith.addf %46, %51 : vector<56x128xf32>
    %c0_57 = arith.constant 0 : index
    %c0_58 = arith.constant 0 : index
    %c19 = arith.constant 19 : index
    %c0_59 = arith.constant 0 : index
    %53 = vector.load %arg3[%c0_57, %c0_58, %c19, %c0_59] : memref<1x1x86x16xbf16, #tpu.memory_space<vmem>>, vector<1x1x56x16xbf16>
    %54 = vector.shape_cast %53 : vector<1x1x56x16xbf16> to vector<56x16xbf16>
    %c9_60 = arith.constant 9 : index
    %c0_61 = arith.constant 0 : index
    %c0_62 = arith.constant 0 : index
    %55 = vector.load %arg4[%c9_60, %c0_61, %c0_62] : memref<16x16x128xbf16, #tpu.memory_space<vmem>>, vector<1x16x128xbf16>
    %56 = vector.shape_cast %55 : vector<1x16x128xbf16> to vector<16x128xbf16>
    %cst_63 = arith.constant dense<0.000000e+00> : vector<56x128xf32>
    %57 = tpu.matmul %54, %56, %cst_63 {dimension_numbers = #tpu.dot_dimension_numbers<[1], [0], [0], [1], [0, 0, 1, 1], [], []>} : vector<56x16xbf16>, vector<16x128xbf16>, vector<56x128xf32> -> vector<56x128xf32>
    %58 = arith.addf %52, %57 : vector<56x128xf32>
    %c0_64 = arith.constant 0 : index
    %c0_65 = arith.constant 0 : index
    %c20 = arith.constant 20 : index
    %c0_66 = arith.constant 0 : index
    %59 = vector.load %arg3[%c0_64, %c0_65, %c20, %c0_66] : memref<1x1x86x16xbf16, #tpu.memory_space<vmem>>, vector<1x1x56x16xbf16>
    %60 = vector.shape_cast %59 : vector<1x1x56x16xbf16> to vector<56x16xbf16>
    %c10_67 = arith.constant 10 : index
    %c0_68 = arith.constant 0 : index
    %c0_69 = arith.constant 0 : index
    %61 = vector.load %arg4[%c10_67, %c0_68, %c0_69] : memref<16x16x128xbf16, #tpu.memory_space<vmem>>, vector<1x16x128xbf16>
    %62 = vector.shape_cast %61 : vector<1x16x128xbf16> to vector<16x128xbf16>
    %cst_70 = arith.constant dense<0.000000e+00> : vector<56x128xf32>
    %63 = tpu.matmul %60, %62, %cst_70 {dimension_numbers = #tpu.dot_dimension_numbers<[1], [0], [0], [1], [0, 0, 1, 1], [], []>} : vector<56x16xbf16>, vector<16x128xbf16>, vector<56x128xf32> -> vector<56x128xf32>
    %64 = arith.addf %58, %63 : vector<56x128xf32>
    %c0_71 = arith.constant 0 : index
    %c0_72 = arith.constant 0 : index
    %c21 = arith.constant 21 : index
    %c0_73 = arith.constant 0 : index
    %65 = vector.load %arg3[%c0_71, %c0_72, %c21, %c0_73] : memref<1x1x86x16xbf16, #tpu.memory_space<vmem>>, vector<1x1x56x16xbf16>
    %66 = vector.shape_cast %65 : vector<1x1x56x16xbf16> to vector<56x16xbf16>
    %c11_74 = arith.constant 11 : index
    %c0_75 = arith.constant 0 : index
    %c0_76 = arith.constant 0 : index
    %67 = vector.load %arg4[%c11_74, %c0_75, %c0_76] : memref<16x16x128xbf16, #tpu.memory_space<vmem>>, vector<1x16x128xbf16>
    %68 = vector.shape_cast %67 : vector<1x16x128xbf16> to vector<16x128xbf16>
    %cst_77 = arith.constant dense<0.000000e+00> : vector<56x128xf32>
    %69 = tpu.matmul %66, %68, %cst_77 {dimension_numbers = #tpu.dot_dimension_numbers<[1], [0], [0], [1], [0, 0, 1, 1], [], []>} : vector<56x16xbf16>, vector<16x128xbf16>, vector<56x128xf32> -> vector<56x128xf32>
    %70 = arith.addf %64, %69 : vector<56x128xf32>
    %c0_78 = arith.constant 0 : index
    %c0_79 = arith.constant 0 : index
    %c27 = arith.constant 27 : index
    %c0_80 = arith.constant 0 : index
    %71 = vector.load %arg3[%c0_78, %c0_79, %c27, %c0_80] : memref<1x1x86x16xbf16, #tpu.memory_space<vmem>>, vector<1x1x56x16xbf16>
    %72 = vector.shape_cast %71 : vector<1x1x56x16xbf16> to vector<56x16xbf16>
    %c12_81 = arith.constant 12 : index
    %c0_82 = arith.constant 0 : index
    %c0_83 = arith.constant 0 : index
    %73 = vector.load %arg4[%c12_81, %c0_82, %c0_83] : memref<16x16x128xbf16, #tpu.memory_space<vmem>>, vector<1x16x128xbf16>
    %74 = vector.shape_cast %73 : vector<1x16x128xbf16> to vector<16x128xbf16>
    %cst_84 = arith.constant dense<0.000000e+00> : vector<56x128xf32>
    %75 = tpu.matmul %72, %74, %cst_84 {dimension_numbers = #tpu.dot_dimension_numbers<[1], [0], [0], [1], [0, 0, 1, 1], [], []>} : vector<56x16xbf16>, vector<16x128xbf16>, vector<56x128xf32> -> vector<56x128xf32>
    %76 = arith.addf %70, %75 : vector<56x128xf32>
    %c0_85 = arith.constant 0 : index
    %c0_86 = arith.constant 0 : index
    %c28 = arith.constant 28 : index
    %c0_87 = arith.constant 0 : index
    %77 = vector.load %arg3[%c0_85, %c0_86, %c28, %c0_87] : memref<1x1x86x16xbf16, #tpu.memory_space<vmem>>, vector<1x1x56x16xbf16>
    %78 = vector.shape_cast %77 : vector<1x1x56x16xbf16> to vector<56x16xbf16>
    %c13 = arith.constant 13 : index
    %c0_88 = arith.constant 0 : index
    %c0_89 = arith.constant 0 : index
    %79 = vector.load %arg4[%c13, %c0_88, %c0_89] : memref<16x16x128xbf16, #tpu.memory_space<vmem>>, vector<1x16x128xbf16>
    %80 = vector.shape_cast %79 : vector<1x16x128xbf16> to vector<16x128xbf16>
    %cst_90 = arith.constant dense<0.000000e+00> : vector<56x128xf32>
    %81 = tpu.matmul %78, %80, %cst_90 {dimension_numbers = #tpu.dot_dimension_numbers<[1], [0], [0], [1], [0, 0, 1, 1], [], []>} : vector<56x16xbf16>, vector<16x128xbf16>, vector<56x128xf32> -> vector<56x128xf32>
    %82 = arith.addf %76, %81 : vector<56x128xf32>
    %c0_91 = arith.constant 0 : index
    %c0_92 = arith.constant 0 : index
    %c29 = arith.constant 29 : index
    %c0_93 = arith.constant 0 : index
    %83 = vector.load %arg3[%c0_91, %c0_92, %c29, %c0_93] : memref<1x1x86x16xbf16, #tpu.memory_space<vmem>>, vector<1x1x56x16xbf16>
    %84 = vector.shape_cast %83 : vector<1x1x56x16xbf16> to vector<56x16xbf16>
    %c14 = arith.constant 14 : index
    %c0_94 = arith.constant 0 : index
    %c0_95 = arith.constant 0 : index
    %85 = vector.load %arg4[%c14, %c0_94, %c0_95] : memref<16x16x128xbf16, #tpu.memory_space<vmem>>, vector<1x16x128xbf16>
    %86 = vector.shape_cast %85 : vector<1x16x128xbf16> to vector<16x128xbf16>
    %cst_96 = arith.constant dense<0.000000e+00> : vector<56x128xf32>
    %87 = tpu.matmul %84, %86, %cst_96 {dimension_numbers = #tpu.dot_dimension_numbers<[1], [0], [0], [1], [0, 0, 1, 1], [], []>} : vector<56x16xbf16>, vector<16x128xbf16>, vector<56x128xf32> -> vector<56x128xf32>
    %88 = arith.addf %82, %87 : vector<56x128xf32>
    %c0_97 = arith.constant 0 : index
    %c0_98 = arith.constant 0 : index
    %c30 = arith.constant 30 : index
    %c0_99 = arith.constant 0 : index
    %89 = vector.load %arg3[%c0_97, %c0_98, %c30, %c0_99] : memref<1x1x86x16xbf16, #tpu.memory_space<vmem>>, vector<1x1x56x16xbf16>
    %90 = vector.shape_cast %89 : vector<1x1x56x16xbf16> to vector<56x16xbf16>
    %c15 = arith.constant 15 : index
    %c0_100 = arith.constant 0 : index
    %c0_101 = arith.constant 0 : index
    %91 = vector.load %arg4[%c15, %c0_100, %c0_101] : memref<16x16x128xbf16, #tpu.memory_space<vmem>>, vector<1x16x128xbf16>
    %92 = vector.shape_cast %91 : vector<1x16x128xbf16> to vector<16x128xbf16>
    %cst_102 = arith.constant dense<0.000000e+00> : vector<56x128xf32>
    %93 = tpu.matmul %90, %92, %cst_102 {dimension_numbers = #tpu.dot_dimension_numbers<[1], [0], [0], [1], [0, 0, 1, 1], [], []>} : vector<56x16xbf16>, vector<16x128xbf16>, vector<56x128xf32> -> vector<56x128xf32>
    %94 = arith.addf %88, %93 : vector<56x128xf32>
    %95 = arith.truncf %94 : vector<56x128xf32> to vector<56x128xbf16>
    %c0_103 = arith.constant 0 : index
    %c0_104 = arith.constant 0 : index
    %c0_105 = arith.constant 0 : index
    %96 = vector.load %arg5[%c0_103, %c0_104, %c0_105] : memref<1x56x128xbf16, #tpu.memory_space<vmem>>, vector<1x56x128xbf16>
    %97 = vector.shape_cast %96 : vector<1x56x128xbf16> to vector<56x128xbf16>
    %98 = vector.shape_cast %95 : vector<56x128xbf16> to vector<1x56x128xbf16>
    tpu.vector_store %arg5[%c0_103, %c0_104, %c0_105], %98 {strides = array<i32>} : memref<1x56x128xbf16, #tpu.memory_space<vmem>>, vector<1x56x128xbf16>,
    %c0_106 = arith.constant 0 : index
    %c0_107 = arith.constant 0 : index
    %99 = vector.load %arg2[%c0_106, %c0_107] : memref<56x1xf32, #tpu.memory_space<vmem>>, vector<56x1xf32>
    %cst_108 = arith.constant dense<0.000000e+00> : vector<1xf32>
    %100 = vector.multi_reduction <add>, %99, %cst_108 [0] : vector<56x1xf32> to vector<1xf32>
    %101 = vector.shape_cast %100 : vector<1xf32> to vector<1x1xf32>
    %102 = vector.broadcast %99 : vector<56x1xf32> to vector<56x128xf32>
    %103 = arith.mulf %94, %102 : vector<56x128xf32>
    %cst_109 = arith.constant dense<0.000000e+00> : vector<128xf32>
    %104 = vector.multi_reduction <add>, %103, %cst_109 [0] : vector<56x128xf32> to vector<128xf32>
    %105 = vector.shape_cast %104 : vector<128xf32> to vector<1x128xf32>
    %cst_110 = arith.constant 1.000000e+00 : f32
    %106 = vector.broadcast %cst_110 : f32 to vector<1x1xf32>
    %107 = arith.maximumf %101, %106 : vector<1x1xf32>
    %108 = vector.broadcast %107 : vector<1x1xf32> to vector<1x128xf32>
    %109 = arith.divf %105, %108 : vector<1x128xf32>
    %110 = vector.broadcast %109 : vector<1x128xf32> to vector<56x128xf32>
    %111 = arith.subf %94, %110 : vector<56x128xf32>
    %112 = vector.broadcast %99 : vector<56x1xf32> to vector<56x128xf32>
    %113 = arith.mulf %111, %112 : vector<56x128xf32>
    %114 = arith.mulf %113, %113 : vector<56x128xf32>
    %cst_111 = arith.constant dense<0.000000e+00> : vector<128xf32>
    %115 = vector.multi_reduction <add>, %114, %cst_111 [0] : vector<56x128xf32> to vector<128xf32>
    %116 = vector.shape_cast %115 : vector<128xf32> to vector<1x128xf32>
    %c0_112 = arith.constant 0 : index
    %c0_113 = arith.constant 0 : index
    %c0_114 = arith.constant 0 : index
    %c0_115 = arith.constant 0 : index
    %117 = vector.load %arg6[%c0_112, %c0_113, %c0_114, %c0_115] : memref<1x1x3x128xf32, #tpu.memory_space<vmem>>, vector<1x1x1x128xf32>
    %118 = vector.shape_cast %117 : vector<1x1x1x128xf32> to vector<1x128xf32>
    %119 = vector.shape_cast %105 : vector<1x128xf32> to vector<1x1x1x128xf32>
    tpu.vector_store %arg6[%c0_112, %c0_113, %c0_114, %c0_115], %119 {strides = array<i32>} : memref<1x1x3x128xf32, #tpu.memory_space<vmem>>, vector<1x1x1x128xf32>,
    %c0_116 = arith.constant 0 : index
    %c0_117 = arith.constant 0 : index
    %c1_118 = arith.constant 1 : index
    %c0_119 = arith.constant 0 : index
    %120 = vector.load %arg6[%c0_116, %c0_117, %c1_118, %c0_119] : memref<1x1x3x128xf32, #tpu.memory_space<vmem>>, vector<1x1x1x128xf32>
    %121 = vector.shape_cast %120 : vector<1x1x1x128xf32> to vector<1x128xf32>
    %122 = vector.shape_cast %116 : vector<1x128xf32> to vector<1x1x1x128xf32>
    tpu.vector_store %arg6[%c0_116, %c0_117, %c1_118, %c0_119], %122 {strides = array<i32>} : memref<1x1x3x128xf32, #tpu.memory_space<vmem>>, vector<1x1x1x128xf32>,
    %cst_120 = arith.constant 0.000000e+00 : f32
    %123 = vector.broadcast %cst_120 : f32 to vector<1x128xf32>
    %124 = vector.broadcast %101 : vector<1x1xf32> to vector<1x128xf32>
    %125 = arith.addf %123, %124 : vector<1x128xf32>
    %c0_121 = arith.constant 0 : index
    %c0_122 = arith.constant 0 : index
    %c2_123 = arith.constant 2 : index
    %c0_124 = arith.constant 0 : index
    %126 = vector.load %arg6[%c0_121, %c0_122, %c2_123, %c0_124] : memref<1x1x3x128xf32, #tpu.memory_space<vmem>>, vector<1x1x1x128xf32>
    %127 = vector.shape_cast %126 : vector<1x1x1x128xf32> to vector<1x128xf32>
    %128 = vector.shape_cast %125 : vector<1x128xf32> to vector<1x1x1x128xf32>
    tpu.vector_store %arg6[%c0_121, %c0_122, %c2_123, %c0_124], %128 {strides = array<i32>} : memref<1x1x3x128xf32, #tpu.memory_space<vmem>>, vector<1x1x1x128xf32>,
    return
  }
  func.func @transform_0(%arg0: i32, %arg1: i32) -> (i32, i32) {
    %c0_i32 = arith.constant 0 : i32
    %c0_i32_0 = arith.constant 0 : i32
    return %arg1, %c0_i32 : i32, i32
  }
  func.func @transform_1(%arg0: i32, %arg1: i32) -> (i32, i32, i32, i32) {
    %c0_i32 = arith.constant 0 : i32
    %c0_i32_0 = arith.constant 0 : i32
    %c0_i32_1 = arith.constant 0 : i32
    %c0_i32_2 = arith.constant 0 : i32
    return %arg0, %c0_i32, %c0_i32_0, %c0_i32_1 : i32, i32, i32, i32
  }
  func.func @transform_2(%arg0: i32, %arg1: i32) -> (i32, i32, i32) {
    %c0_i32 = arith.constant 0 : i32
    %c0_i32_0 = arith.constant 0 : i32
    %c0_i32_1 = arith.constant 0 : i32
    %c0_i32_2 = arith.constant 0 : i32
    return %c0_i32, %c0_i32_0, %c0_i32_1 : i32, i32, i32
  }
  func.func @transform_3(%arg0: i32, %arg1: i32) -> (i32, i32, i32) {
    %c0_i32 = arith.constant 0 : i32
    %c0_i32_0 = arith.constant 0 : i32
    return %arg0, %arg1, %c0_i32 : i32, i32, i32
  }
  func.func @transform_4(%arg0: i32, %arg1: i32) -> (i32, i32, i32, i32) {
    %c0_i32 = arith.constant 0 : i32
    %c0_i32_0 = arith.constant 0 : i32
    %c0_i32_1 = arith.constant 0 : i32
    return %arg0, %arg1, %c0_i32, %c0_i32_0 : i32, i32, i32, i32
  }
}

module attributes {stable_mosaic.version = 11 : i64} {
  func.func @kernel(%arg0: i32, %arg1: i32, %arg2: memref<1x1x105x32xbf16, #tpu.memory_space<vmem>>, %arg3: memref<16x32x128xbf16, #tpu.memory_space<vmem>>, %arg4: memref<1x128xf32, #tpu.memory_space<vmem>>, %arg5: memref<1x72x128xbf16, #tpu.memory_space<vmem>>) attributes {dimension_semantics = [#tpu.dimension_semantics<parallel>, #tpu.dimension_semantics<parallel>], iteration_bounds = array<i64: 2, 1>, scalar_prefetch = 0 : i64, scratch_operands = 0 : i64, tpu.core_type = #tpu.core_type<tc>, window_params = [{transform_indices = @transform_0, window_bounds = array<i64: 1, 1, 105, 32>}, {pipeline_mode = #tpu.pipeline_mode<synchronous>, transform_indices = @transform_1, window_bounds = array<i64: 16, 32, 128>}, {pipeline_mode = #tpu.pipeline_mode<synchronous>, transform_indices = @transform_2, window_bounds = array<i64: 1, 128>}, {transform_indices = @transform_3, window_bounds = array<i64: 1, 72, 128>}]} {
    %c0 = arith.constant 0 : index
    %c0_0 = arith.constant 0 : index
    %c0_1 = arith.constant 0 : index
    %c0_2 = arith.constant 0 : index
    %0 = vector.load %arg2[%c0, %c0_0, %c0_1, %c0_2] : memref<1x1x105x32xbf16, #tpu.memory_space<vmem>>, vector<1x1x72x32xbf16>
    %1 = vector.shape_cast %0 : vector<1x1x72x32xbf16> to vector<72x32xbf16>
    %c0_3 = arith.constant 0 : index
    %c0_4 = arith.constant 0 : index
    %c0_5 = arith.constant 0 : index
    %2 = vector.load %arg3[%c0_3, %c0_4, %c0_5] : memref<16x32x128xbf16, #tpu.memory_space<vmem>>, vector<1x32x128xbf16>
    %3 = vector.shape_cast %2 : vector<1x32x128xbf16> to vector<32x128xbf16>
    %cst = arith.constant dense<0.000000e+00> : vector<72x128xf32>
    %4 = tpu.matmul %1, %3, %cst {dimension_numbers = #tpu.dot_dimension_numbers<[1], [0], [0], [1], [0, 0, 1, 1], [], []>} : vector<72x32xbf16>, vector<32x128xbf16>, vector<72x128xf32> -> vector<72x128xf32>
    %c0_6 = arith.constant 0 : index
    %c0_7 = arith.constant 0 : index
    %c1 = arith.constant 1 : index
    %c0_8 = arith.constant 0 : index
    %5 = vector.load %arg2[%c0_6, %c0_7, %c1, %c0_8] : memref<1x1x105x32xbf16, #tpu.memory_space<vmem>>, vector<1x1x72x32xbf16>
    %6 = vector.shape_cast %5 : vector<1x1x72x32xbf16> to vector<72x32xbf16>
    %c1_9 = arith.constant 1 : index
    %c0_10 = arith.constant 0 : index
    %c0_11 = arith.constant 0 : index
    %7 = vector.load %arg3[%c1_9, %c0_10, %c0_11] : memref<16x32x128xbf16, #tpu.memory_space<vmem>>, vector<1x32x128xbf16>
    %8 = vector.shape_cast %7 : vector<1x32x128xbf16> to vector<32x128xbf16>
    %cst_12 = arith.constant dense<0.000000e+00> : vector<72x128xf32>
    %9 = tpu.matmul %6, %8, %cst_12 {dimension_numbers = #tpu.dot_dimension_numbers<[1], [0], [0], [1], [0, 0, 1, 1], [], []>} : vector<72x32xbf16>, vector<32x128xbf16>, vector<72x128xf32> -> vector<72x128xf32>
    %10 = arith.addf %4, %9 : vector<72x128xf32>
    %c0_13 = arith.constant 0 : index
    %c0_14 = arith.constant 0 : index
    %c2 = arith.constant 2 : index
    %c0_15 = arith.constant 0 : index
    %11 = vector.load %arg2[%c0_13, %c0_14, %c2, %c0_15] : memref<1x1x105x32xbf16, #tpu.memory_space<vmem>>, vector<1x1x72x32xbf16>
    %12 = vector.shape_cast %11 : vector<1x1x72x32xbf16> to vector<72x32xbf16>
    %c2_16 = arith.constant 2 : index
    %c0_17 = arith.constant 0 : index
    %c0_18 = arith.constant 0 : index
    %13 = vector.load %arg3[%c2_16, %c0_17, %c0_18] : memref<16x32x128xbf16, #tpu.memory_space<vmem>>, vector<1x32x128xbf16>
    %14 = vector.shape_cast %13 : vector<1x32x128xbf16> to vector<32x128xbf16>
    %cst_19 = arith.constant dense<0.000000e+00> : vector<72x128xf32>
    %15 = tpu.matmul %12, %14, %cst_19 {dimension_numbers = #tpu.dot_dimension_numbers<[1], [0], [0], [1], [0, 0, 1, 1], [], []>} : vector<72x32xbf16>, vector<32x128xbf16>, vector<72x128xf32> -> vector<72x128xf32>
    %16 = arith.addf %10, %15 : vector<72x128xf32>
    %c0_20 = arith.constant 0 : index
    %c0_21 = arith.constant 0 : index
    %c3 = arith.constant 3 : index
    %c0_22 = arith.constant 0 : index
    %17 = vector.load %arg2[%c0_20, %c0_21, %c3, %c0_22] : memref<1x1x105x32xbf16, #tpu.memory_space<vmem>>, vector<1x1x72x32xbf16>
    %18 = vector.shape_cast %17 : vector<1x1x72x32xbf16> to vector<72x32xbf16>
    %c3_23 = arith.constant 3 : index
    %c0_24 = arith.constant 0 : index
    %c0_25 = arith.constant 0 : index
    %19 = vector.load %arg3[%c3_23, %c0_24, %c0_25] : memref<16x32x128xbf16, #tpu.memory_space<vmem>>, vector<1x32x128xbf16>
    %20 = vector.shape_cast %19 : vector<1x32x128xbf16> to vector<32x128xbf16>
    %cst_26 = arith.constant dense<0.000000e+00> : vector<72x128xf32>
    %21 = tpu.matmul %18, %20, %cst_26 {dimension_numbers = #tpu.dot_dimension_numbers<[1], [0], [0], [1], [0, 0, 1, 1], [], []>} : vector<72x32xbf16>, vector<32x128xbf16>, vector<72x128xf32> -> vector<72x128xf32>
    %22 = arith.addf %16, %21 : vector<72x128xf32>
    %c0_27 = arith.constant 0 : index
    %c0_28 = arith.constant 0 : index
    %c10 = arith.constant 10 : index
    %c0_29 = arith.constant 0 : index
    %23 = vector.load %arg2[%c0_27, %c0_28, %c10, %c0_29] : memref<1x1x105x32xbf16, #tpu.memory_space<vmem>>, vector<1x1x72x32xbf16>
    %24 = vector.shape_cast %23 : vector<1x1x72x32xbf16> to vector<72x32xbf16>
    %c4 = arith.constant 4 : index
    %c0_30 = arith.constant 0 : index
    %c0_31 = arith.constant 0 : index
    %25 = vector.load %arg3[%c4, %c0_30, %c0_31] : memref<16x32x128xbf16, #tpu.memory_space<vmem>>, vector<1x32x128xbf16>
    %26 = vector.shape_cast %25 : vector<1x32x128xbf16> to vector<32x128xbf16>
    %cst_32 = arith.constant dense<0.000000e+00> : vector<72x128xf32>
    %27 = tpu.matmul %24, %26, %cst_32 {dimension_numbers = #tpu.dot_dimension_numbers<[1], [0], [0], [1], [0, 0, 1, 1], [], []>} : vector<72x32xbf16>, vector<32x128xbf16>, vector<72x128xf32> -> vector<72x128xf32>
    %28 = arith.addf %22, %27 : vector<72x128xf32>
    %c0_33 = arith.constant 0 : index
    %c0_34 = arith.constant 0 : index
    %c11 = arith.constant 11 : index
    %c0_35 = arith.constant 0 : index
    %29 = vector.load %arg2[%c0_33, %c0_34, %c11, %c0_35] : memref<1x1x105x32xbf16, #tpu.memory_space<vmem>>, vector<1x1x72x32xbf16>
    %30 = vector.shape_cast %29 : vector<1x1x72x32xbf16> to vector<72x32xbf16>
    %c5 = arith.constant 5 : index
    %c0_36 = arith.constant 0 : index
    %c0_37 = arith.constant 0 : index
    %31 = vector.load %arg3[%c5, %c0_36, %c0_37] : memref<16x32x128xbf16, #tpu.memory_space<vmem>>, vector<1x32x128xbf16>
    %32 = vector.shape_cast %31 : vector<1x32x128xbf16> to vector<32x128xbf16>
    %cst_38 = arith.constant dense<0.000000e+00> : vector<72x128xf32>
    %33 = tpu.matmul %30, %32, %cst_38 {dimension_numbers = #tpu.dot_dimension_numbers<[1], [0], [0], [1], [0, 0, 1, 1], [], []>} : vector<72x32xbf16>, vector<32x128xbf16>, vector<72x128xf32> -> vector<72x128xf32>
    %34 = arith.addf %28, %33 : vector<72x128xf32>
    %c0_39 = arith.constant 0 : index
    %c0_40 = arith.constant 0 : index
    %c12 = arith.constant 12 : index
    %c0_41 = arith.constant 0 : index
    %35 = vector.load %arg2[%c0_39, %c0_40, %c12, %c0_41] : memref<1x1x105x32xbf16, #tpu.memory_space<vmem>>, vector<1x1x72x32xbf16>
    %36 = vector.shape_cast %35 : vector<1x1x72x32xbf16> to vector<72x32xbf16>
    %c6 = arith.constant 6 : index
    %c0_42 = arith.constant 0 : index
    %c0_43 = arith.constant 0 : index
    %37 = vector.load %arg3[%c6, %c0_42, %c0_43] : memref<16x32x128xbf16, #tpu.memory_space<vmem>>, vector<1x32x128xbf16>
    %38 = vector.shape_cast %37 : vector<1x32x128xbf16> to vector<32x128xbf16>
    %cst_44 = arith.constant dense<0.000000e+00> : vector<72x128xf32>
    %39 = tpu.matmul %36, %38, %cst_44 {dimension_numbers = #tpu.dot_dimension_numbers<[1], [0], [0], [1], [0, 0, 1, 1], [], []>} : vector<72x32xbf16>, vector<32x128xbf16>, vector<72x128xf32> -> vector<72x128xf32>
    %40 = arith.addf %34, %39 : vector<72x128xf32>
    %c0_45 = arith.constant 0 : index
    %c0_46 = arith.constant 0 : index
    %c13 = arith.constant 13 : index
    %c0_47 = arith.constant 0 : index
    %41 = vector.load %arg2[%c0_45, %c0_46, %c13, %c0_47] : memref<1x1x105x32xbf16, #tpu.memory_space<vmem>>, vector<1x1x72x32xbf16>
    %42 = vector.shape_cast %41 : vector<1x1x72x32xbf16> to vector<72x32xbf16>
    %c7 = arith.constant 7 : index
    %c0_48 = arith.constant 0 : index
    %c0_49 = arith.constant 0 : index
    %43 = vector.load %arg3[%c7, %c0_48, %c0_49] : memref<16x32x128xbf16, #tpu.memory_space<vmem>>, vector<1x32x128xbf16>
    %44 = vector.shape_cast %43 : vector<1x32x128xbf16> to vector<32x128xbf16>
    %cst_50 = arith.constant dense<0.000000e+00> : vector<72x128xf32>
    %45 = tpu.matmul %42, %44, %cst_50 {dimension_numbers = #tpu.dot_dimension_numbers<[1], [0], [0], [1], [0, 0, 1, 1], [], []>} : vector<72x32xbf16>, vector<32x128xbf16>, vector<72x128xf32> -> vector<72x128xf32>
    %46 = arith.addf %40, %45 : vector<72x128xf32>
    %c0_51 = arith.constant 0 : index
    %c0_52 = arith.constant 0 : index
    %c20 = arith.constant 20 : index
    %c0_53 = arith.constant 0 : index
    %47 = vector.load %arg2[%c0_51, %c0_52, %c20, %c0_53] : memref<1x1x105x32xbf16, #tpu.memory_space<vmem>>, vector<1x1x72x32xbf16>
    %48 = vector.shape_cast %47 : vector<1x1x72x32xbf16> to vector<72x32xbf16>
    %c8 = arith.constant 8 : index
    %c0_54 = arith.constant 0 : index
    %c0_55 = arith.constant 0 : index
    %49 = vector.load %arg3[%c8, %c0_54, %c0_55] : memref<16x32x128xbf16, #tpu.memory_space<vmem>>, vector<1x32x128xbf16>
    %50 = vector.shape_cast %49 : vector<1x32x128xbf16> to vector<32x128xbf16>
    %cst_56 = arith.constant dense<0.000000e+00> : vector<72x128xf32>
    %51 = tpu.matmul %48, %50, %cst_56 {dimension_numbers = #tpu.dot_dimension_numbers<[1], [0], [0], [1], [0, 0, 1, 1], [], []>} : vector<72x32xbf16>, vector<32x128xbf16>, vector<72x128xf32> -> vector<72x128xf32>
    %52 = arith.addf %46, %51 : vector<72x128xf32>
    %c0_57 = arith.constant 0 : index
    %c0_58 = arith.constant 0 : index
    %c21 = arith.constant 21 : index
    %c0_59 = arith.constant 0 : index
    %53 = vector.load %arg2[%c0_57, %c0_58, %c21, %c0_59] : memref<1x1x105x32xbf16, #tpu.memory_space<vmem>>, vector<1x1x72x32xbf16>
    %54 = vector.shape_cast %53 : vector<1x1x72x32xbf16> to vector<72x32xbf16>
    %c9 = arith.constant 9 : index
    %c0_60 = arith.constant 0 : index
    %c0_61 = arith.constant 0 : index
    %55 = vector.load %arg3[%c9, %c0_60, %c0_61] : memref<16x32x128xbf16, #tpu.memory_space<vmem>>, vector<1x32x128xbf16>
    %56 = vector.shape_cast %55 : vector<1x32x128xbf16> to vector<32x128xbf16>
    %cst_62 = arith.constant dense<0.000000e+00> : vector<72x128xf32>
    %57 = tpu.matmul %54, %56, %cst_62 {dimension_numbers = #tpu.dot_dimension_numbers<[1], [0], [0], [1], [0, 0, 1, 1], [], []>} : vector<72x32xbf16>, vector<32x128xbf16>, vector<72x128xf32> -> vector<72x128xf32>
    %58 = arith.addf %52, %57 : vector<72x128xf32>
    %c0_63 = arith.constant 0 : index
    %c0_64 = arith.constant 0 : index
    %c22 = arith.constant 22 : index
    %c0_65 = arith.constant 0 : index
    %59 = vector.load %arg2[%c0_63, %c0_64, %c22, %c0_65] : memref<1x1x105x32xbf16, #tpu.memory_space<vmem>>, vector<1x1x72x32xbf16>
    %60 = vector.shape_cast %59 : vector<1x1x72x32xbf16> to vector<72x32xbf16>
    %c10_66 = arith.constant 10 : index
    %c0_67 = arith.constant 0 : index
    %c0_68 = arith.constant 0 : index
    %61 = vector.load %arg3[%c10_66, %c0_67, %c0_68] : memref<16x32x128xbf16, #tpu.memory_space<vmem>>, vector<1x32x128xbf16>
    %62 = vector.shape_cast %61 : vector<1x32x128xbf16> to vector<32x128xbf16>
    %cst_69 = arith.constant dense<0.000000e+00> : vector<72x128xf32>
    %63 = tpu.matmul %60, %62, %cst_69 {dimension_numbers = #tpu.dot_dimension_numbers<[1], [0], [0], [1], [0, 0, 1, 1], [], []>} : vector<72x32xbf16>, vector<32x128xbf16>, vector<72x128xf32> -> vector<72x128xf32>
    %64 = arith.addf %58, %63 : vector<72x128xf32>
    %c0_70 = arith.constant 0 : index
    %c0_71 = arith.constant 0 : index
    %c23 = arith.constant 23 : index
    %c0_72 = arith.constant 0 : index
    %65 = vector.load %arg2[%c0_70, %c0_71, %c23, %c0_72] : memref<1x1x105x32xbf16, #tpu.memory_space<vmem>>, vector<1x1x72x32xbf16>
    %66 = vector.shape_cast %65 : vector<1x1x72x32xbf16> to vector<72x32xbf16>
    %c11_73 = arith.constant 11 : index
    %c0_74 = arith.constant 0 : index
    %c0_75 = arith.constant 0 : index
    %67 = vector.load %arg3[%c11_73, %c0_74, %c0_75] : memref<16x32x128xbf16, #tpu.memory_space<vmem>>, vector<1x32x128xbf16>
    %68 = vector.shape_cast %67 : vector<1x32x128xbf16> to vector<32x128xbf16>
    %cst_76 = arith.constant dense<0.000000e+00> : vector<72x128xf32>
    %69 = tpu.matmul %66, %68, %cst_76 {dimension_numbers = #tpu.dot_dimension_numbers<[1], [0], [0], [1], [0, 0, 1, 1], [], []>} : vector<72x32xbf16>, vector<32x128xbf16>, vector<72x128xf32> -> vector<72x128xf32>
    %70 = arith.addf %64, %69 : vector<72x128xf32>
    %c0_77 = arith.constant 0 : index
    %c0_78 = arith.constant 0 : index
    %c30 = arith.constant 30 : index
    %c0_79 = arith.constant 0 : index
    %71 = vector.load %arg2[%c0_77, %c0_78, %c30, %c0_79] : memref<1x1x105x32xbf16, #tpu.memory_space<vmem>>, vector<1x1x72x32xbf16>
    %72 = vector.shape_cast %71 : vector<1x1x72x32xbf16> to vector<72x32xbf16>
    %c12_80 = arith.constant 12 : index
    %c0_81 = arith.constant 0 : index
    %c0_82 = arith.constant 0 : index
    %73 = vector.load %arg3[%c12_80, %c0_81, %c0_82] : memref<16x32x128xbf16, #tpu.memory_space<vmem>>, vector<1x32x128xbf16>
    %74 = vector.shape_cast %73 : vector<1x32x128xbf16> to vector<32x128xbf16>
    %cst_83 = arith.constant dense<0.000000e+00> : vector<72x128xf32>
    %75 = tpu.matmul %72, %74, %cst_83 {dimension_numbers = #tpu.dot_dimension_numbers<[1], [0], [0], [1], [0, 0, 1, 1], [], []>} : vector<72x32xbf16>, vector<32x128xbf16>, vector<72x128xf32> -> vector<72x128xf32>
    %76 = arith.addf %70, %75 : vector<72x128xf32>
    %c0_84 = arith.constant 0 : index
    %c0_85 = arith.constant 0 : index
    %c31 = arith.constant 31 : index
    %c0_86 = arith.constant 0 : index
    %77 = vector.load %arg2[%c0_84, %c0_85, %c31, %c0_86] : memref<1x1x105x32xbf16, #tpu.memory_space<vmem>>, vector<1x1x72x32xbf16>
    %78 = vector.shape_cast %77 : vector<1x1x72x32xbf16> to vector<72x32xbf16>
    %c13_87 = arith.constant 13 : index
    %c0_88 = arith.constant 0 : index
    %c0_89 = arith.constant 0 : index
    %79 = vector.load %arg3[%c13_87, %c0_88, %c0_89] : memref<16x32x128xbf16, #tpu.memory_space<vmem>>, vector<1x32x128xbf16>
    %80 = vector.shape_cast %79 : vector<1x32x128xbf16> to vector<32x128xbf16>
    %cst_90 = arith.constant dense<0.000000e+00> : vector<72x128xf32>
    %81 = tpu.matmul %78, %80, %cst_90 {dimension_numbers = #tpu.dot_dimension_numbers<[1], [0], [0], [1], [0, 0, 1, 1], [], []>} : vector<72x32xbf16>, vector<32x128xbf16>, vector<72x128xf32> -> vector<72x128xf32>
    %82 = arith.addf %76, %81 : vector<72x128xf32>
    %c0_91 = arith.constant 0 : index
    %c0_92 = arith.constant 0 : index
    %c32 = arith.constant 32 : index
    %c0_93 = arith.constant 0 : index
    %83 = vector.load %arg2[%c0_91, %c0_92, %c32, %c0_93] : memref<1x1x105x32xbf16, #tpu.memory_space<vmem>>, vector<1x1x72x32xbf16>
    %84 = vector.shape_cast %83 : vector<1x1x72x32xbf16> to vector<72x32xbf16>
    %c14 = arith.constant 14 : index
    %c0_94 = arith.constant 0 : index
    %c0_95 = arith.constant 0 : index
    %85 = vector.load %arg3[%c14, %c0_94, %c0_95] : memref<16x32x128xbf16, #tpu.memory_space<vmem>>, vector<1x32x128xbf16>
    %86 = vector.shape_cast %85 : vector<1x32x128xbf16> to vector<32x128xbf16>
    %cst_96 = arith.constant dense<0.000000e+00> : vector<72x128xf32>
    %87 = tpu.matmul %84, %86, %cst_96 {dimension_numbers = #tpu.dot_dimension_numbers<[1], [0], [0], [1], [0, 0, 1, 1], [], []>} : vector<72x32xbf16>, vector<32x128xbf16>, vector<72x128xf32> -> vector<72x128xf32>
    %88 = arith.addf %82, %87 : vector<72x128xf32>
    %c0_97 = arith.constant 0 : index
    %c0_98 = arith.constant 0 : index
    %c33 = arith.constant 33 : index
    %c0_99 = arith.constant 0 : index
    %89 = vector.load %arg2[%c0_97, %c0_98, %c33, %c0_99] : memref<1x1x105x32xbf16, #tpu.memory_space<vmem>>, vector<1x1x72x32xbf16>
    %90 = vector.shape_cast %89 : vector<1x1x72x32xbf16> to vector<72x32xbf16>
    %c15 = arith.constant 15 : index
    %c0_100 = arith.constant 0 : index
    %c0_101 = arith.constant 0 : index
    %91 = vector.load %arg3[%c15, %c0_100, %c0_101] : memref<16x32x128xbf16, #tpu.memory_space<vmem>>, vector<1x32x128xbf16>
    %92 = vector.shape_cast %91 : vector<1x32x128xbf16> to vector<32x128xbf16>
    %cst_102 = arith.constant dense<0.000000e+00> : vector<72x128xf32>
    %93 = tpu.matmul %90, %92, %cst_102 {dimension_numbers = #tpu.dot_dimension_numbers<[1], [0], [0], [1], [0, 0, 1, 1], [], []>} : vector<72x32xbf16>, vector<32x128xbf16>, vector<72x128xf32> -> vector<72x128xf32>
    %94 = arith.addf %88, %93 : vector<72x128xf32>
    %c0_103 = arith.constant 0 : index
    %c0_104 = arith.constant 0 : index
    %95 = vector.load %arg4[%c0_103, %c0_104] : memref<1x128xf32, #tpu.memory_space<vmem>>, vector<1x128xf32>
    %96 = vector.broadcast %95 : vector<1x128xf32> to vector<72x128xf32>
    %97 = arith.addf %94, %96 : vector<72x128xf32>
    %98 = arith.truncf %97 : vector<72x128xf32> to vector<72x128xbf16>
    %c0_105 = arith.constant 0 : index
    %c0_106 = arith.constant 0 : index
    %c0_107 = arith.constant 0 : index
    %99 = vector.load %arg5[%c0_105, %c0_106, %c0_107] : memref<1x72x128xbf16, #tpu.memory_space<vmem>>, vector<1x72x128xbf16>
    %100 = vector.shape_cast %99 : vector<1x72x128xbf16> to vector<72x128xbf16>
    %101 = vector.shape_cast %98 : vector<72x128xbf16> to vector<1x72x128xbf16>
    tpu.vector_store %arg5[%c0_105, %c0_106, %c0_107], %101 {strides = array<i32>} : memref<1x72x128xbf16, #tpu.memory_space<vmem>>, vector<1x72x128xbf16>,
    return
  }
  func.func @transform_0(%arg0: i32, %arg1: i32) -> (i32, i32, i32, i32) {
    %c0_i32 = arith.constant 0 : i32
    %c0_i32_0 = arith.constant 0 : i32
    %c0_i32_1 = arith.constant 0 : i32
    %c0_i32_2 = arith.constant 0 : i32
    return %arg0, %c0_i32, %c0_i32_0, %c0_i32_1 : i32, i32, i32, i32
  }
  func.func @transform_1(%arg0: i32, %arg1: i32) -> (i32, i32, i32) {
    %c0_i32 = arith.constant 0 : i32
    %c0_i32_0 = arith.constant 0 : i32
    %c0_i32_1 = arith.constant 0 : i32
    %c0_i32_2 = arith.constant 0 : i32
    return %c0_i32, %c0_i32_0, %c0_i32_1 : i32, i32, i32
  }
  func.func @transform_2(%arg0: i32, %arg1: i32) -> (i32, i32) {
    %c0_i32 = arith.constant 0 : i32
    %c0_i32_0 = arith.constant 0 : i32
    %c0_i32_1 = arith.constant 0 : i32
    return %c0_i32, %c0_i32_0 : i32, i32
  }
  func.func @transform_3(%arg0: i32, %arg1: i32) -> (i32, i32, i32) {
    %c0_i32 = arith.constant 0 : i32
    %c0_i32_0 = arith.constant 0 : i32
    return %arg0, %arg1, %c0_i32 : i32, i32, i32
  }
}

</mosaic_0001>

<llo_original>
// kernel: _lambda_.8
$region0: #{_lambda_.8}
  #allocation0 [shape = 'u32[]', space=smem, size = 0x4, offset = 0x4, fixed_abs, tag = 'smem constant byte address 0x4 - core index']
  #allocation1 [shape = 'u32[144,128]{1,0:T(1,128)}', space=vmem, size = 0x12000, scoped, tag = 'internal scratch']
  %s0 = inlined_call_operand.vmem [shape: bf16[2,40,128], index: 0, kind: input, shape index: {}]
  %s1 = inlined_call_operand.vmem [shape: f32[1,128], index: 1, kind: input, shape index: {}]
  %s2 = inlined_call_operand.vmem [shape: f32[1,128], index: 2, kind: input, shape index: {}]
  %s3 = inlined_call_operand.vmem [shape: bf16[2,40,128], index: 3, kind: output, shape index: {}]
  %s4 = sld [smem:[#allocation0]]
  $region45: #{_lambda_.8} parent=0
    _
  %s6 = ssub.s32 1, %s4
  %s7 = scalar_select 0, %s6, %s4
  loop: start=0, step=1, limit=4
  $region2: #{_lambda_.8} parent=0 // loop_pre_header
    _
  $region3: #{_lambda_.8} parent=0 // loop_header
    %s9 = sphi 0, %s13
    %p10 = scmp.ge.s32.totalorder %s9, 4
    %s16 = sphi 0, %s28
    %s17 = sphi 0, %s24
    %s18 = sphi 0, %s16
    %s19 = sphi 0, %s17
    %s20 = sphi 0, %s18
    %s21 = sphi 0, %s19
    %s33 = sphi 0, %s35
    %s36 = sphi 0, %s33
    %s37 = sphi 0, %s36
    %s53 = sphi 0, %s37
    %s57 = sphi 0, %s57
    %s59 = sphi 0, %s57
    %s60 = sphi 0, %s59
    %s74 = sphi 0, %s60
    %s78 = sphi 0, %s78
    %s80 = sphi 0, %s78
    %s81 = sphi 0, %s80
    %s95 = sphi 0, %s81
    %s103 = sphi 0, %s105
    %s106 = sphi 0, %s103
    %s107 = sphi 0, %s106
    %s123 = sphi 0, %s107
  $region4: #{_lambda_.8} parent=0 // loop_header_branch
    %12 = sbr.rel (%p10) target = $region8
  $region5: #{_lambda_.8} parent=0 // loop_body
    %s14 = ssub.s32 %s9, 1
    %s15 = ssub.s32 %s9, 2
    %s22 = sadd.s32 1, %s17
    %p23 = scmp.ge.s32.totalorder %s22, 1
    %s24 = scalar_select %p23, 0, %s22
    %s25 = sadd.s32 1, %s16
    %s26 = scalar_select %p23, %s25, %s16
    %p27 = scmp.ge.s32.totalorder %s26, 2
    %s28 = scalar_select %p27, 0, %s26
    %s29 = ssub.s32 %s16, %s28
    %s30 = ssub.s32 %s17, %s24
    %s31 = sor.u32 %s29, %s30
    %p32 = scmp.eq.s32.totalorder %s31, 0
    %s34 = sadd.s32 %s33, 1
    %s35 = scalar_select %p32, %s33, %s34
    %p38 = pneg %p32
    %p39 = scmp.eq.s32.totalorder %s9, 1
    %p40 = por %p38, %p39
    %p41 = scmp.ne.s32.totalorder %s33, %s36
    %p42 = scmp.eq.s32.totalorder %s9, 0
    %p43 = por %p41, %p42
    %p44 = scmp.ne.s32.totalorder %s33, %s36
    %p45 = scmp.eq.s32.totalorder %s14, 1
    %p46 = por %p44, %p45
    %p47 = scmp.ne.s32.totalorder %s36, %s37
    %p48 = scmp.eq.s32.totalorder %s14, 0
    %p49 = por %p47, %p48
    %p50 = scmp.ne.s32.totalorder %s36, %s37
    %p51 = scmp.eq.s32.totalorder %s15, 1
    %p52 = por %p50, %p51
    %p54 = scmp.ne.s32.totalorder %s37, %s53
    %p55 = scmp.eq.s32.totalorder %s15, 0
    %p56 = por %p54, %p55
    %s58 = sadd.s32 %s57, 1
    %p61 = scmp.eq.s32.totalorder %s9, 1
    %p62 = scmp.ne.s32.totalorder %s57, %s59
    %p63 = scmp.eq.s32.totalorder %s9, 0
    %p64 = por %p62, %p63
    %p65 = scmp.ne.s32.totalorder %s57, %s59
    %p66 = scmp.eq.s32.totalorder %s14, 1
    %p67 = por %p65, %p66
    %p68 = scmp.ne.s32.totalorder %s59, %s60
    %p69 = scmp.eq.s32.totalorder %s14, 0
    %p70 = por %p68, %p69
    %p71 = scmp.ne.s32.totalorder %s59, %s60
    %p72 = scmp.eq.s32.totalorder %s15, 1
    %p73 = por %p71, %p72
    %p75 = scmp.ne.s32.totalorder %s60, %s74
    %p76 = scmp.eq.s32.totalorder %s15, 0
    %p77 = por %p75, %p76
    %s79 = sadd.s32 %s78, 1
    %p82 = scmp.eq.s32.totalorder %s9, 1
    %p83 = scmp.ne.s32.totalorder %s78, %s80
    %p84 = scmp.eq.s32.totalorder %s9, 0
    %p85 = por %p83, %p84
    %p86 = scmp.ne.s32.totalorder %s78, %s80
    %p87 = scmp.eq.s32.totalorder %s14, 1
    %p88 = por %p86, %p87
    %p89 = scmp.ne.s32.totalorder %s80, %s81
    %p90 = scmp.eq.s32.totalorder %s14, 0
    %p91 = por %p89, %p90
    %p92 = scmp.ne.s32.totalorder %s80, %s81
    %p93 = scmp.eq.s32.totalorder %s15, 1
    %p94 = por %p92, %p93
    %p96 = scmp.ne.s32.totalorder %s81, %s95
    %p97 = scmp.eq.s32.totalorder %s15, 0
    %p98 = por %p96, %p97
    %s99 = ssub.s32 %s16, %s28
    %s100 = ssub.s32 %s17, %s24
    %s101 = sor.u32 %s99, %s100
    %p102 = scmp.eq.s32.totalorder %s101, 0
    %s104 = sadd.s32 %s103, 1
    %s105 = scalar_select %p102, %s103, %s104
    %p108 = pneg %p102
    %p109 = scmp.eq.s32.totalorder %s9, 1
    %p110 = por %p108, %p109
    %p111 = scmp.ne.s32.totalorder %s103, %s106
    %p112 = scmp.eq.s32.totalorder %s9, 0
    %p113 = por %p111, %p112
    %p114 = scmp.ne.s32.totalorder %s103, %s106
    %p115 = scmp.eq.s32.totalorder %s14, 1
    %p116 = por %p114, %p115
    %p117 = scmp.ne.s32.totalorder %s106, %s107
    %p118 = scmp.eq.s32.totalorder %s14, 0
    %p119 = por %p117, %p118
    %p120 = scmp.ne.s32.totalorder %s106, %s107
    %p121 = scmp.eq.s32.totalorder %s15, 1
    %p122 = por %p120, %p121
    %p124 = scmp.ne.s32.totalorder %s107, %s123
    %p125 = scmp.eq.s32.totalorder %s15, 0
    %p126 = por %p124, %p125
    %p127 = scmp.le.s32.totalorder 1, %s9
    %p128 = scmp.lt.s32.totalorder %s9, 3
    %p129 = pnand %p127, %p128
    %p130 = pneg %p129
    // Predicated region
    $region9: #{_lambda_.8} parent=5 // pred_check
      _
    $region10: #{_lambda_.8} parent=5 // pred_check_branch
      %132 = sbr.rel (%p129) target = $region12
    $region11: #{_lambda_.8} parent=5 // pred_region
      %s133 = ssub.s32 %s9, 1
      // Predicated region
      $region13: #{_lambda_.8} parent=11 // pred_check
        %p134 = pneg %p70
      $region14: #{_lambda_.8} parent=11 // pred_check_branch
        %136 = sbr.rel (%p134) target = $region16
      $region15: #{_lambda_.8} parent=11 // pred_region
        _
      $region16: #{_lambda_.8} parent=11 // pred_fallthru
        _
      // Predicated region
      $region17: #{_lambda_.8} parent=11 // pred_check
        %p137 = pneg %p91
      $region18: #{_lambda_.8} parent=11 // pred_check_branch
        %139 = sbr.rel (%p137) target = $region20
      $region19: #{_lambda_.8} parent=11 // pred_region
        _
      $region20: #{_lambda_.8} parent=11 // pred_fallthru
        _
    $region12: #{_lambda_.8} parent=5 // pred_fallthru
      _
    %p140 = scmp.lt.s32.totalorder %s9, 2
    // Predicated region
    $region21: #{_lambda_.8} parent=5 // pred_check
      %p141 = pneg %p140
    $region22: #{_lambda_.8} parent=5 // pred_check_branch
      %143 = sbr.rel (%p141) target = $region24
    $region23: #{_lambda_.8} parent=5 // pred_region
      // Predicated region
      $region25: #{_lambda_.8} parent=23 // pred_check
        %p144 = pneg %p43
      $region26: #{_lambda_.8} parent=23 // pred_check_branch
        %146 = sbr.rel (%p144) target = $region28
      $region27: #{_lambda_.8} parent=23 // pred_region
        %s147 = smul.u32 5, %s17
        %p148 = scmp.lt.s32.totalorder %s16, 1
        %s149 = scalar_select %p148, %s16, 1
        %p150 = scmp.lt.s32.totalorder %s147, 4
        %s151 = scalar_select %p150, %s147, 4
        %s152 = smul.addr %s149, 5
        %s153 = sadd.s32 %s151, %s152
        %s154 = smul.addr %s153, 4
        %s155 = scalar_lea.vmem %s0, %s154
        %s156 = smul.u32 5, %s17
      $region28: #{_lambda_.8} parent=23 // pred_fallthru
        _
    $region24: #{_lambda_.8} parent=5 // pred_fallthru
      _
    %p157 = scmp.le.s32.totalorder 1, %s9
    %p158 = scmp.lt.s32.totalorder %s9, 3
    %p159 = pnand %p157, %p158
    %p160 = pneg %p159
    // Predicated region
    $region29: #{_lambda_.8} parent=5 // pred_check
      _
    $region30: #{_lambda_.8} parent=5 // pred_check_branch
      %162 = sbr.rel (%p159) target = $region32
    $region31: #{_lambda_.8} parent=5 // pred_region
      %s163 = ssub.s32 %s9, 1
      %s164 = smul.u32 5, %s19
      %p165 = scmp.lt.s32.totalorder %s18, 1
      %s166 = scalar_select %p165, %s18, 1
      %p167 = scmp.lt.s32.totalorder %s164, 4
      %s168 = scalar_select %p167, %s164, 4
      %s169 = smul.addr %s166, 5
      %s170 = sadd.s32 %s168, %s169
      %s171 = smul.addr %s170, 4
      %s172 = scalar_lea.vmem %s0, %s171
      %p173 = pneg %p49
      %p174 = pneg %p46
      %p175 = pneg %p70
      %p176 = pneg %p67
      %p177 = pneg %p91
      %p178 = pneg %p88
      %p179 = pneg %p119
      %p180 = pneg %p116
      %s181 = smul.u32 5, %s19
      %p182 = scmp.lt.s32.totalorder %s18, 1
      %s183 = scalar_select %p182, %s18, 1
      %p184 = scmp.lt.s32.totalorder %s181, 4
      %s185 = scalar_select %p184, %s181, 4
      %s186 = smul.addr %s183, 5
      %s187 = sadd.s32 %s185, %s186
      %s188 = smul.addr %s187, 4
      %s189 = scalar_lea.vmem %s3, %s188
      %s190 = smul.u32 5, %s19
      %p191 = scmp.lt.s32.totalorder %s18, 1
      %s192 = scalar_select %p191, %s18, 1
      %p193 = scmp.lt.s32.totalorder %s190, 4
      %s194 = scalar_select %p193, %s190, 4
      %s195 = smul.addr %s192, 5
      %s196 = sadd.s32 %s194, %s195
      %s197 = smul.addr %s196, 4
      %s198 = scalar_lea.vmem %s0, %s197
      %s199 = smul.u32 5, %s19
      %s200 = smul.u32 5, %s19
      %p201 = scmp.lt.s32.totalorder %s18, 1
      %s202 = scalar_select %p201, %s18, 1
      %p203 = scmp.lt.s32.totalorder %s200, 4
      %s204 = scalar_select %p203, %s200, 4
      %s205 = smul.addr %s202, 5
      %s206 = sadd.s32 %s204, %s205
      %s207 = smul.addr %s206, 4
      %s208 = scalar_lea.vmem %s3, %s207
      %s209 = smul.u32 5, %s19
      %v210 = vld [vmem:[%s198] sm:$0xf]
      %v211 = vld [vmem:[%s198 + $0x4] sm:$0xf]
      %v212 = vld [vmem:[%s198 + $0x8] sm:$0xf]
      %v213 = vld [vmem:[%s198 + $0xc] sm:$0xf]
      %v214 = vld [vmem:[%s198 + $0x10] sm:$0xf]
      %v215 = vunpack.c.l.bf16 %v210
      %v216 = vunpack.c.l.bf16 %v211
      %v217 = vunpack.c.l.bf16 %v212
      %v218 = vunpack.c.l.bf16 %v213
      %v219 = vunpack.c.l.bf16 %v214
      %v220 = vld [vmem:[%s1] sm:$0x1]
      %v222 = vlaneseq
      %v223 = vshrl.u32 %v222, 7
      %v224 = vsub.s32 0, %v223
      %v225 = vrot.slane %v220, %v224
      %v227 = vmul.f32 %v215, %v225
      %v228 = vmul.f32 %v216, %v225
      %v229 = vmul.f32 %v217, %v225
      %v230 = vmul.f32 %v218, %v225
      %v231 = vmul.f32 %v219, %v225
      %v232 = vld [vmem:[%s2] sm:$0x1]
      %v234 = vlaneseq
      %v235 = vshrl.u32 %v234, 7
      %v236 = vsub.s32 0, %v235
      %v237 = vrot.slane %v232, %v236
      %v239 = vadd.f32 %v227, %v237
      %v240 = vadd.f32 %v228, %v237
      %v241 = vadd.f32 %v229, %v237
      %v242 = vadd.f32 %v230, %v237
      %v243 = vadd.f32 %v231, %v237
      %vm244 = vcmp.ge.f32.partialorder %v239, 0.0
      %vm245 = vcmp.ge.f32.partialorder %v240, 0.0
      %vm246 = vcmp.ge.f32.partialorder %v241, 0.0
      %vm247 = vcmp.ge.f32.partialorder %v242, 0.0
      %vm248 = vcmp.ge.f32.partialorder %v243, 0.0
      %v249 = vmul.f32 %v239, 0.2
      %v250 = vmul.f32 %v240, 0.2
      %v251 = vmul.f32 %v241, 0.2
      %v252 = vmul.f32 %v242, 0.2
      %v253 = vmul.f32 %v243, 0.2
      %v254 = vsel %vm244, %v239, %v249
      %v255 = vsel %vm245, %v240, %v250
      %v256 = vsel %vm246, %v241, %v251
      %v257 = vsel %vm247, %v242, %v252
      %v258 = vsel %vm248, %v243, %v253
      %v259 = vpack.c.bf16 %v255, %v254
      %v260 = vpack.c.bf16 %v257, %v256
      %v261 = vpack.c.bf16 %v258, %v258
      %v265 = vunpack.c.l.b16 %v259
      %v266 = vunpack.c.h.b16 %v259
      %v267 = vunpack.c.l.b16 %v260
      %v268 = vunpack.c.h.b16 %v260
      %v269 = vunpack.c.l.b16 %v261
      %v270 = vpack.c.b16 %v265, %v265
      %v271 = vpack.c.b16 %v266, %v266
      %v272 = vpack.c.b16 %v267, %v267
      %v273 = vpack.c.b16 %v268, %v268
      %v274 = vpack.c.b16 %v269, %v269
      %280 = vst [vmem:[%s208] sm:$0xf] %v270
      %281 = vst [vmem:[%s208 + $0x4] sm:$0xf] %v271
      %282 = vst [vmem:[%s208 + $0x8] sm:$0xf] %v272
      %283 = vst [vmem:[%s208 + $0xc] sm:$0xf] %v273
      %284 = vst [vmem:[%s208 + $0x10] sm:$0xf] %v274
      %s285 = smul.u32 5, %s19
      %p286 = scmp.lt.s32.totalorder %s18, 1
      %s287 = scalar_select %p286, %s18, 1
      %p288 = scmp.lt.s32.totalorder %s285, 4
      %s289 = scalar_select %p288, %s285, 4
      %s290 = smul.addr %s287, 5
      %s291 = sadd.s32 %s289, %s290
      %s292 = smul.addr %s291, 4
      %s293 = scalar_lea.vmem %s3, %s292
      // Predicated region
      $region33: #{_lambda_.8} parent=31 // pred_check
        %p294 = pneg %p116
      $region34: #{_lambda_.8} parent=31 // pred_check_branch
        %296 = sbr.rel (%p294) target = $region36
      $region35: #{_lambda_.8} parent=31 // pred_region
        %s297 = smul.u32 5, %s19
      $region36: #{_lambda_.8} parent=31 // pred_fallthru
        _
    $region32: #{_lambda_.8} parent=5 // pred_fallthru
      _
    %p298 = scmp.le.s32.totalorder 2, %s9
    // Predicated region
    $region37: #{_lambda_.8} parent=5 // pred_check
      %p299 = pneg %p298
    $region38: #{_lambda_.8} parent=5 // pred_check_branch
      %301 = sbr.rel (%p299) target = $region40
    $region39: #{_lambda_.8} parent=5 // pred_region
      %s302 = ssub.s32 %s9, 2
      // Predicated region
      $region41: #{_lambda_.8} parent=39 // pred_check
        %p303 = pneg %p122
      $region42: #{_lambda_.8} parent=39 // pred_check_branch
        %305 = sbr.rel (%p303) target = $region44
      $region43: #{_lambda_.8} parent=39 // pred_region
        %s306 = smul.u32 5, %s21
        %p307 = scmp.lt.s32.totalorder %s20, 1
        %s308 = scalar_select %p307, %s20, 1
        %p309 = scmp.lt.s32.totalorder %s306, 4
        %s310 = scalar_select %p309, %s306, 4
        %s311 = smul.addr %s308, 5
        %s312 = sadd.s32 %s310, %s311
        %s313 = smul.addr %s312, 4
        %s314 = scalar_lea.vmem %s3, %s313
      $region44: #{_lambda_.8} parent=39 // pred_fallthru
        _
    $region40: #{_lambda_.8} parent=5 // pred_fallthru
      _
  $region6: #{_lambda_.8} parent=0 // loop_footer
    %s13 = sadd.s32 1, %s9
  $region7: #{_lambda_.8} parent=0 // loop_footer_branch
    %8 = sbr.rel target = $region3
  $region8: #{_lambda_.8} parent=0 // loop_exit
    _

// kernel: _lambda_.6
$region0: #{_lambda_.6}
  #allocation0 [shape = 'u32[]', space=smem, size = 0x4, offset = 0x4, fixed_abs, tag = 'smem constant byte address 0x4 - core index']
  #allocation1 [shape = 'u32[144,128]{1,0:T(1,128)}', space=vmem, size = 0x12000, scoped, tag = 'internal scratch']
  %s0 = inlined_call_operand.vmem [shape: bf16[2,4,107,8], index: 0, kind: input, shape index: {}]
  %s1 = inlined_call_operand.vmem [shape: bf16[16,8,128], index: 1, kind: input, shape index: {}]
  %s2 = inlined_call_operand.vmem [shape: f32[1,128], index: 2, kind: input, shape index: {}]
  %s3 = inlined_call_operand.vmem [shape: bf16[2,96,128], index: 3, kind: output, shape index: {}]
  %s4 = sld [smem:[#allocation0]]
  $region45: #{_lambda_.6} parent=0
    _
  %s6 = ssub.s32 1, %s4
  %s7 = scalar_select 0, %s6, %s4
  loop: start=0, step=1, limit=4
  $region2: #{_lambda_.6} parent=0 // loop_pre_header
    _
  $region3: #{_lambda_.6} parent=0 // loop_header
    %s9 = sphi 0, %s13
    %p10 = scmp.ge.s32.totalorder %s9, 4
    %s16 = sphi 0, %s28
    %s17 = sphi 0, %s24
    %s18 = sphi 0, %s16
    %s19 = sphi 0, %s17
    %s20 = sphi 0, %s18
    %s21 = sphi 0, %s19
    %s31 = sphi 0, %s33
    %s34 = sphi 0, %s31
    %s35 = sphi 0, %s34
    %s51 = sphi 0, %s35
    %s55 = sphi 0, %s55
    %s57 = sphi 0, %s55
    %s58 = sphi 0, %s57
    %s72 = sphi 0, %s58
    %s76 = sphi 0, %s76
    %s78 = sphi 0, %s76
    %s79 = sphi 0, %s78
    %s93 = sphi 0, %s79
    %s101 = sphi 0, %s103
    %s104 = sphi 0, %s101
    %s105 = sphi 0, %s104
    %s121 = sphi 0, %s105
  $region4: #{_lambda_.6} parent=0 // loop_header_branch
    %12 = sbr.rel (%p10) target = $region8
  $region5: #{_lambda_.6} parent=0 // loop_body
    %s14 = ssub.s32 %s9, 1
    %s15 = ssub.s32 %s9, 2
    %s22 = sadd.s32 1, %s17
    %p23 = scmp.ge.s32.totalorder %s22, 1
    %s24 = scalar_select %p23, 0, %s22
    %s25 = sadd.s32 1, %s16
    %s26 = scalar_select %p23, %s25, %s16
    %p27 = scmp.ge.s32.totalorder %s26, 2
    %s28 = scalar_select %p27, 0, %s26
    %s29 = ssub.s32 %s16, %s28
    %p30 = scmp.eq.s32.totalorder %s29, 0
    %s32 = sadd.s32 %s31, 1
    %s33 = scalar_select %p30, %s31, %s32
    %p36 = pneg %p30
    %p37 = scmp.eq.s32.totalorder %s9, 1
    %p38 = por %p36, %p37
    %p39 = scmp.ne.s32.totalorder %s31, %s34
    %p40 = scmp.eq.s32.totalorder %s9, 0
    %p41 = por %p39, %p40
    %p42 = scmp.ne.s32.totalorder %s31, %s34
    %p43 = scmp.eq.s32.totalorder %s14, 1
    %p44 = por %p42, %p43
    %p45 = scmp.ne.s32.totalorder %s34, %s35
    %p46 = scmp.eq.s32.totalorder %s14, 0
    %p47 = por %p45, %p46
    %p48 = scmp.ne.s32.totalorder %s34, %s35
    %p49 = scmp.eq.s32.totalorder %s15, 1
    %p50 = por %p48, %p49
    %p52 = scmp.ne.s32.totalorder %s35, %s51
    %p53 = scmp.eq.s32.totalorder %s15, 0
    %p54 = por %p52, %p53
    %s56 = sadd.s32 %s55, 1
    %p59 = scmp.eq.s32.totalorder %s9, 1
    %p60 = scmp.ne.s32.totalorder %s55, %s57
    %p61 = scmp.eq.s32.totalorder %s9, 0
    %p62 = por %p60, %p61
    %p63 = scmp.ne.s32.totalorder %s55, %s57
    %p64 = scmp.eq.s32.totalorder %s14, 1
    %p65 = por %p63, %p64
    %p66 = scmp.ne.s32.totalorder %s57, %s58
    %p67 = scmp.eq.s32.totalorder %s14, 0
    %p68 = por %p66, %p67
    %p69 = scmp.ne.s32.totalorder %s57, %s58
    %p70 = scmp.eq.s32.totalorder %s15, 1
    %p71 = por %p69, %p70
    %p73 = scmp.ne.s32.totalorder %s58, %s72
    %p74 = scmp.eq.s32.totalorder %s15, 0
    %p75 = por %p73, %p74
    %s77 = sadd.s32 %s76, 1
    %p80 = scmp.eq.s32.totalorder %s9, 1
    %p81 = scmp.ne.s32.totalorder %s76, %s78
    %p82 = scmp.eq.s32.totalorder %s9, 0
    %p83 = por %p81, %p82
    %p84 = scmp.ne.s32.totalorder %s76, %s78
    %p85 = scmp.eq.s32.totalorder %s14, 1
    %p86 = por %p84, %p85
    %p87 = scmp.ne.s32.totalorder %s78, %s79
    %p88 = scmp.eq.s32.totalorder %s14, 0
    %p89 = por %p87, %p88
    %p90 = scmp.ne.s32.totalorder %s78, %s79
    %p91 = scmp.eq.s32.totalorder %s15, 1
    %p92 = por %p90, %p91
    %p94 = scmp.ne.s32.totalorder %s79, %s93
    %p95 = scmp.eq.s32.totalorder %s15, 0
    %p96 = por %p94, %p95
    %s97 = ssub.s32 %s16, %s28
    %s98 = ssub.s32 %s17, %s24
    %s99 = sor.u32 %s97, %s98
    %p100 = scmp.eq.s32.totalorder %s99, 0
    %s102 = sadd.s32 %s101, 1
    %s103 = scalar_select %p100, %s101, %s102
    %p106 = pneg %p100
    %p107 = scmp.eq.s32.totalorder %s9, 1
    %p108 = por %p106, %p107
    %p109 = scmp.ne.s32.totalorder %s101, %s104
    %p110 = scmp.eq.s32.totalorder %s9, 0
    %p111 = por %p109, %p110
    %p112 = scmp.ne.s32.totalorder %s101, %s104
    %p113 = scmp.eq.s32.totalorder %s14, 1
    %p114 = por %p112, %p113
    %p115 = scmp.ne.s32.totalorder %s104, %s105
    %p116 = scmp.eq.s32.totalorder %s14, 0
    %p117 = por %p115, %p116
    %p118 = scmp.ne.s32.totalorder %s104, %s105
    %p119 = scmp.eq.s32.totalorder %s15, 1
    %p120 = por %p118, %p119
    %p122 = scmp.ne.s32.totalorder %s105, %s121
    %p123 = scmp.eq.s32.totalorder %s15, 0
    %p124 = por %p122, %p123
    %p125 = scmp.le.s32.totalorder 1, %s9
    %p126 = scmp.lt.s32.totalorder %s9, 3
    %p127 = pnand %p125, %p126
    %p128 = pneg %p127
    // Predicated region
    $region9: #{_lambda_.6} parent=5 // pred_check
      _
    $region10: #{_lambda_.6} parent=5 // pred_check_branch
      %130 = sbr.rel (%p127) target = $region12
    $region11: #{_lambda_.6} parent=5 // pred_region
      %s131 = ssub.s32 %s9, 1
      // Predicated region
      $region13: #{_lambda_.6} parent=11 // pred_check
        %p132 = pneg %p68
      $region14: #{_lambda_.6} parent=11 // pred_check_branch
        %134 = sbr.rel (%p132) target = $region16
      $region15: #{_lambda_.6} parent=11 // pred_region
        _
      $region16: #{_lambda_.6} parent=11 // pred_fallthru
        _
      // Predicated region
      $region17: #{_lambda_.6} parent=11 // pred_check
        %p135 = pneg %p89
      $region18: #{_lambda_.6} parent=11 // pred_check_branch
        %137 = sbr.rel (%p135) target = $region20
      $region19: #{_lambda_.6} parent=11 // pred_region
        _
      $region20: #{_lambda_.6} parent=11 // pred_fallthru
        _
    $region12: #{_lambda_.6} parent=5 // pred_fallthru
      _
    %p138 = scmp.lt.s32.totalorder %s9, 2
    // Predicated region
    $region21: #{_lambda_.6} parent=5 // pred_check
      %p139 = pneg %p138
    $region22: #{_lambda_.6} parent=5 // pred_check_branch
      %141 = sbr.rel (%p139) target = $region24
    $region23: #{_lambda_.6} parent=5 // pred_region
      // Predicated region
      $region25: #{_lambda_.6} parent=23 // pred_check
        %p142 = pneg %p41
      $region26: #{_lambda_.6} parent=23 // pred_check_branch
        %144 = sbr.rel (%p142) target = $region28
      $region27: #{_lambda_.6} parent=23 // pred_region
        %p145 = scmp.lt.s32.totalorder %s16, 1
        %s146 = scalar_select %p145, %s16, 1
        %s147 = smul.addr %s146, 56
        %s148 = smul.addr %s147, 4
        %s149 = scalar_lea.vmem %s0, %s148
      $region28: #{_lambda_.6} parent=23 // pred_fallthru
        _
    $region24: #{_lambda_.6} parent=5 // pred_fallthru
      _
    %p150 = scmp.le.s32.totalorder 1, %s9
    %p151 = scmp.lt.s32.totalorder %s9, 3
    %p152 = pnand %p150, %p151
    %p153 = pneg %p152
    // Predicated region
    $region29: #{_lambda_.6} parent=5 // pred_check
      _
    $region30: #{_lambda_.6} parent=5 // pred_check_branch
      %155 = sbr.rel (%p152) target = $region32
    $region31: #{_lambda_.6} parent=5 // pred_region
      %s156 = ssub.s32 %s9, 1
      %p157 = scmp.lt.s32.totalorder %s18, 1
      %s158 = scalar_select %p157, %s18, 1
      %s159 = smul.addr %s158, 56
      %s160 = smul.addr %s159, 4
      %s161 = scalar_lea.vmem %s0, %s160
      %p162 = pneg %p47
      %p163 = pneg %p44
      %p164 = pneg %p68
      %p165 = pneg %p65
      %p166 = pneg %p89
      %p167 = pneg %p86
      %p168 = pneg %p117
      %p169 = pneg %p114
      %s170 = smul.u32 12, %s19
      %p171 = scmp.lt.s32.totalorder %s18, 1
      %s172 = scalar_select %p171, %s18, 1
      %p173 = scmp.lt.s32.totalorder %s170, 11
      %s174 = scalar_select %p173, %s170, 11
      %s175 = smul.addr %s172, 12
      %s176 = sadd.s32 %s174, %s175
      %s177 = smul.addr %s176, 4
      %s178 = scalar_lea.vmem %s3, %s177
      %p179 = scmp.lt.s32.totalorder %s18, 1
      %s180 = scalar_select %p179, %s18, 1
      %s181 = smul.addr %s180, 56
      %s182 = smul.addr %s181, 4
      %s183 = scalar_lea.vmem %s0, %s182
      %s184 = smul.u32 12, %s19
      %p185 = scmp.lt.s32.totalorder %s18, 1
      %s186 = scalar_select %p185, %s18, 1
      %p187 = scmp.lt.s32.totalorder %s184, 11
      %s188 = scalar_select %p187, %s184, 11
      %s189 = smul.addr %s186, 12
      %s190 = sadd.s32 %s188, %s189
      %s191 = smul.addr %s190, 4
      %s192 = scalar_lea.vmem %s3, %s191
      %s193 = smul.u32 12, %s19
      %v195 = vld [vmem:[%s183] sm:$0xf]
      %v196 = vld [vmem:[%s183 + $0x4] sm:$0xf]
      %v197 = vld [vmem:[%s183 + $0x8] sm:$0xf]
      %v198 = vld [vmem:[%s183 + $0xc] sm:$0xf]
      %v199 = vld [vmem:[%s183 + $0x10] sm:$0xf]
      %v200 = vld [vmem:[%s183 + $0x14] sm:$0xf]
      %v201 = vld [vmem:[%s183 + $0x18] sm:$0xf]
      %v202 = vld [vmem:[%s183 + $0x1c] sm:$0xf]
      %v203 = vld [vmem:[%s183 + $0x20] sm:$0xf]
      %v204 = vld [vmem:[%s183 + $0x24] sm:$0xf]
      %v205 = vld [vmem:[%s183 + $0x28] sm:$0xf]
      %v206 = vld [vmem:[%s183 + $0x2c] sm:$0xf]
      %v207 = vld [vmem:[%s1] sm:$0xf]
      %s208 = scalar_lea.vmem %s183, 56
      %v209 = vld [vmem:[%s208] sm:$0xf]
      %v210 = vld [vmem:[%s208 + $0x4] sm:$0xf]
      %v211 = vld [vmem:[%s208 + $0x8] sm:$0xf]
      %v212 = vld [vmem:[%s208 + $0xc] sm:$0xf]
      %v213 = vld [vmem:[%s208 + $0x10] sm:$0xf]
      %v214 = vld [vmem:[%s208 + $0x14] sm:$0xf]
      %v215 = vld [vmem:[%s208 + $0x18] sm:$0xf]
      %v216 = vld [vmem:[%s208 + $0x1c] sm:$0xf]
      %v217 = vld [vmem:[%s208 + $0x20] sm:$0xf]
      %v218 = vld [vmem:[%s208 + $0x24] sm:$0xf]
      %v219 = vld [vmem:[%s208 + $0x28] sm:$0xf]
      %v220 = vld [vmem:[%s208 + $0x2c] sm:$0xf]
      %s221 = scalar_lea.vmem %s1, 4
      %v222 = vld [vmem:[%s221] sm:$0xf]
      %v235 = vunpack.c.l.b16 %v209
      %v236 = vunpack.c.l.b16 %v210
      %v237 = vunpack.c.l.b16 %v211
      %v238 = vunpack.c.l.b16 %v212
      %v239 = vunpack.c.l.b16 %v213
      %v240 = vunpack.c.l.b16 %v214
      %v241 = vunpack.c.l.b16 %v215
      %v242 = vunpack.c.l.b16 %v216
      %v243 = vunpack.c.l.b16 %v217
      %v244 = vunpack.c.l.b16 %v218
      %v245 = vunpack.c.l.b16 %v219
      %v246 = vunpack.c.l.b16 %v220
      %v247 = vpack.c.b16 %v236, %v235
      %v248 = vpack.c.b16 %v238, %v237
      %v249 = vpack.c.b16 %v240, %v239
      %v250 = vpack.c.b16 %v242, %v241
      %v251 = vpack.c.b16 %v244, %v243
      %v252 = vpack.c.b16 %v246, %v245
      %vm253 = vcmask 64512
      %v255 = vsel %vm253, %v247, 0
      %v258 = vsel %vm253, %v248, 0
      %v261 = vsel %vm253, %v249, 0
      %v264 = vsel %vm253, %v250, 0
      %v267 = vsel %vm253, %v251, 0
      %v270 = vsel %vm253, %v252, 0
      %vm272 = vcmask 1043456
      %v274 = vsel %vm272, %v222, 0
      %276 = vmatprep.subr.bf16.mxu0 0
      %277 = vmatpush1.bf16.msra.mxu0 %v274
      %278 = vmatprep.subr.bf16.mxu0 0
      %279 = vmatpush1.bf16.msra.mxu0 0
      %280 = vmatprep.subr.bf16.mxu0 0
      %281 = vmatpush1.bf16.msra.mxu0 0
      %282 = vmatprep.subr.bf16.mxu0 0
      %283 = vmatpush1.bf16.msra.mxu0 0
      %284 = vmatprep.subr.bf16.mxu0 0
      %285 = vmatpush1.bf16.msra.mxu0 0
      %286 = vmatprep.subr.bf16.mxu0 0
      %287 = vmatpush1.bf16.msra.mxu0 0
      %288 = vmatprep.subr.bf16.mxu0 0
      %289 = vmatpush1.bf16.msra.mxu0 0
      %290 = vmatprep.subr.bf16.mxu0 0
      %291 = vmatpush1.bf16.msra.mxu0 0
      %292 = vmatprep.subr.bf16.mxu0 0
      %293 = vmatpush1.bf16.msra.mxu0 0
      %294 = vmatprep.subr.bf16.mxu0 0
      %295 = vmatpush1.bf16.msra.mxu0 0
      %296 = vmatprep.subr.bf16.mxu0 0
      %297 = vmatpush1.bf16.msra.mxu0 0
      %298 = vmatprep.subr.bf16.mxu0 0
      %299 = vmatpush1.bf16.msra.mxu0 0
      %300 = vmatprep.subr.bf16.mxu0 0
      %301 = vmatpush1.bf16.msra.mxu0 0
      %302 = vmatprep.subr.bf16.mxu0 0
      %303 = vmatpush1.bf16.msra.mxu0 0
      %304 = vmatprep.subr.bf16.mxu0 0
      %305 = vmatpush1.bf16.msra.mxu0 0
      %306 = vmatprep.subr.bf16.mxu0 0
      %307 = vmatpush1.bf16.msra.mxu0 0
      %308 = vmatprep.mubr.bf16.mxu0 0
      %309 = vmatmul.mubr.bf16.gmra.mrb[0].mxu0 %v255
      %v310 = vpop.f32.mrb[0].mxu0
      %v311 = vadd.f32 0.0, %v310
      %v312 = vpop.f32.mrb[0].mxu0
      %v313 = vpop.f32.mrb[0].mxu0
      %v314 = vadd.f32 0.0, %v313
      %v315 = vpop.f32.mrb[0].mxu0
      %316 = vmatprep.mubr.bf16.mxu0 0
      %317 = vmatmul.mubr.bf16.gmra.mrb[0].mxu0 %v258
      %v318 = vpop.f32.mrb[0].mxu0
      %v319 = vadd.f32 0.0, %v318
      %v320 = vpop.f32.mrb[0].mxu0
      %v321 = vpop.f32.mrb[0].mxu0
      %v322 = vadd.f32 0.0, %v321
      %v323 = vpop.f32.mrb[0].mxu0
      %324 = vmatprep.mubr.bf16.mxu0 0
      %325 = vmatmul.mubr.bf16.gmra.mrb[0].mxu0 %v261
      %v326 = vpop.f32.mrb[0].mxu0
      %v327 = vadd.f32 0.0, %v326
      %v328 = vpop.f32.mrb[0].mxu0
      %v329 = vpop.f32.mrb[0].mxu0
      %v330 = vadd.f32 0.0, %v329
      %v331 = vpop.f32.mrb[0].mxu0
      %332 = vmatprep.mubr.bf16.mxu0 0
      %333 = vmatmul.mubr.bf16.gmra.mrb[0].mxu0 %v264
      %v334 = vpop.f32.mrb[0].mxu0
      %v335 = vadd.f32 0.0, %v334
      %v336 = vpop.f32.mrb[0].mxu0
      %v337 = vpop.f32.mrb[0].mxu0
      %v338 = vadd.f32 0.0, %v337
      %v339 = vpop.f32.mrb[0].mxu0
      %340 = vmatprep.mubr.bf16.mxu0 0
      %341 = vmatmul.mubr.bf16.gmra.mrb[0].mxu0 %v267
      %v342 = vpop.f32.mrb[0].mxu0
      %v343 = vadd.f32 0.0, %v342
      %v344 = vpop.f32.mrb[0].mxu0
      %v345 = vpop.f32.mrb[0].mxu0
      %v346 = vadd.f32 0.0, %v345
      %v347 = vpop.f32.mrb[0].mxu0
      %348 = vmatprep.mubr.bf16.mxu0 0
      %349 = vmatmul.mubr.bf16.gmra.mrb[0].mxu0 %v270
      %v350 = vpop.f32.mrb[0].mxu0
      %v351 = vadd.f32 0.0, %v350
      %v352 = vpop.f32.mrb[0].mxu0
      %v353 = vpop.f32.mrb[0].mxu0
      %v354 = vadd.f32 0.0, %v353
      %v355 = vpop.f32.mrb[0].mxu0
      %356 = vdwg.mxu0
      %v369 = vunpack.c.l.b16 %v195
      %v370 = vunpack.c.l.b16 %v196
      %v371 = vunpack.c.l.b16 %v197
      %v372 = vunpack.c.l.b16 %v198
      %v373 = vunpack.c.l.b16 %v199
      %v374 = vunpack.c.l.b16 %v200
      %v375 = vunpack.c.l.b16 %v201
      %v376 = vunpack.c.l.b16 %v202
      %v377 = vunpack.c.l.b16 %v203
      %v378 = vunpack.c.l.b16 %v204
      %v379 = vunpack.c.l.b16 %v205
      %v380 = vunpack.c.l.b16 %v206
      %v381 = vpack.c.b16 %v370, %v369
      %v382 = vpack.c.b16 %v372, %v371
      %v383 = vpack.c.b16 %v374, %v373
      %v384 = vpack.c.b16 %v376, %v375
      %v385 = vpack.c.b16 %v378, %v377
      %v386 = vpack.c.b16 %v380, %v379
      %v388 = vsel %vm253, %v381, 0
      %v391 = vsel %vm253, %v382, 0
      %v394 = vsel %vm253, %v383, 0
      %v397 = vsel %vm253, %v384, 0
      %v400 = vsel %vm253, %v385, 0
      %v403 = vsel %vm253, %v386, 0
      %v406 = vsel %vm272, %v207, 0
      %408 = vmatprep.subr.bf16.mxu0 0
      %409 = vmatpush1.bf16.msra.mxu0 %v406
      %410 = vmatprep.subr.bf16.mxu0 0
      %411 = vmatpush1.bf16.msra.mxu0 0
      %412 = vmatprep.subr.bf16.mxu0 0
      %413 = vmatpush1.bf16.msra.mxu0 0
      %414 = vmatprep.subr.bf16.mxu0 0
      %415 = vmatpush1.bf16.msra.mxu0 0
      %416 = vmatprep.subr.bf16.mxu0 0
      %417 = vmatpush1.bf16.msra.mxu0 0
      %418 = vmatprep.subr.bf16.mxu0 0
      %419 = vmatpush1.bf16.msra.mxu0 0
      %420 = vmatprep.subr.bf16.mxu0 0
      %421 = vmatpush1.bf16.msra.mxu0 0
      %422 = vmatprep.subr.bf16.mxu0 0
      %423 = vmatpush1.bf16.msra.mxu0 0
      %424 = vmatprep.subr.bf16.mxu0 0
      %425 = vmatpush1.bf16.msra.mxu0 0
      %426 = vmatprep.subr.bf16.mxu0 0
      %427 = vmatpush1.bf16.msra.mxu0 0
      %428 = vmatprep.subr.bf16.mxu0 0
      %429 = vmatpush1.bf16.msra.mxu0 0
      %430 = vmatprep.subr.bf16.mxu0 0
      %431 = vmatpush1.bf16.msra.mxu0 0
      %432 = vmatprep.subr.bf16.mxu0 0
      %433 = vmatpush1.bf16.msra.mxu0 0
      %434 = vmatprep.subr.bf16.mxu0 0
      %435 = vmatpush1.bf16.msra.mxu0 0
      %436 = vmatprep.subr.bf16.mxu0 0
      %437 = vmatpush1.bf16.msra.mxu0 0
      %438 = vmatprep.subr.bf16.mxu0 0
      %439 = vmatpush1.bf16.msra.mxu0 0
      %440 = vmatprep.mubr.bf16.mxu0 0
      %441 = vmatmul.mubr.bf16.gmra.mrb[0].mxu0 %v388
      %v442 = vpop.f32.mrb[0].mxu0
      %v443 = vadd.f32 %v311, %v442
      %v444 = vpop.f32.mrb[0].mxu0
      %v445 = vpop.f32.mrb[0].mxu0
      %v446 = vadd.f32 %v314, %v445
      %v447 = vpop.f32.mrb[0].mxu0
      %448 = vmatprep.mubr.bf16.mxu0 0
      %449 = vmatmul.mubr.bf16.gmra.mrb[0].mxu0 %v391
      %v450 = vpop.f32.mrb[0].mxu0
      %v451 = vadd.f32 %v319, %v450
      %v452 = vpop.f32.mrb[0].mxu0
      %v453 = vpop.f32.mrb[0].mxu0
      %v454 = vadd.f32 %v322, %v453
      %v455 = vpop.f32.mrb[0].mxu0
      %456 = vmatprep.mubr.bf16.mxu0 0
      %457 = vmatmul.mubr.bf16.gmra.mrb[0].mxu0 %v394
      %v458 = vpop.f32.mrb[0].mxu0
      %v459 = vadd.f32 %v327, %v458
      %v460 = vpop.f32.mrb[0].mxu0
      %v461 = vpop.f32.mrb[0].mxu0
      %v462 = vadd.f32 %v330, %v461
      %v463 = vpop.f32.mrb[0].mxu0
      %464 = vmatprep.mubr.bf16.mxu0 0
      %465 = vmatmul.mubr.bf16.gmra.mrb[0].mxu0 %v397
      %v466 = vpop.f32.mrb[0].mxu0
      %v467 = vadd.f32 %v335, %v466
      %v468 = vpop.f32.mrb[0].mxu0
      %v469 = vpop.f32.mrb[0].mxu0
      %v470 = vadd.f32 %v338, %v469
      %v471 = vpop.f32.mrb[0].mxu0
      %472 = vmatprep.mubr.bf16.mxu0 0
      %473 = vmatmul.mubr.bf16.gmra.mrb[0].mxu0 %v400
      %v474 = vpop.f32.mrb[0].mxu0
      %v475 = vadd.f32 %v343, %v474
      %v476 = vpop.f32.mrb[0].mxu0
      %v477 = vpop.f32.mrb[0].mxu0
      %v478 = vadd.f32 %v346, %v477
      %v479 = vpop.f32.mrb[0].mxu0
      %480 = vmatprep.mubr.bf16.mxu0 0
      %481 = vmatmul.mubr.bf16.gmra.mrb[0].mxu0 %v403
      %v482 = vpop.f32.mrb[0].mxu0
      %v483 = vadd.f32 %v351, %v482
      %v484 = vpop.f32.mrb[0].mxu0
      %v485 = vpop.f32.mrb[0].mxu0
      %v486 = vadd.f32 %v354, %v485
      %v487 = vpop.f32.mrb[0].mxu0
      %488 = vdwg.mxu0
      %v489 = vld [vmem:[%s183] sm:$0xf]
      %v490 = vld [vmem:[%s183 + $0x4] sm:$0xf]
      %v491 = vld [vmem:[%s183 + $0x8] sm:$0xf]
      %v492 = vld [vmem:[%s183 + $0xc] sm:$0xf]
      %v493 = vld [vmem:[%s183 + $0x10] sm:$0xf]
      %v494 = vld [vmem:[%s183 + $0x14] sm:$0xf]
      %v495 = vld [vmem:[%s183 + $0x18] sm:$0xf]
      %v496 = vld [vmem:[%s183 + $0x1c] sm:$0xf]
      %v497 = vld [vmem:[%s183 + $0x20] sm:$0xf]
      %v498 = vld [vmem:[%s183 + $0x24] sm:$0xf]
      %v499 = vld [vmem:[%s183 + $0x28] sm:$0xf]
      %v500 = vld [vmem:[%s183 + $0x2c] sm:$0xf]
      %v501 = vld [vmem:[%s183 + $0x30] sm:$0x1]
      %s502 = scalar_lea.vmem %s1, 8
      %v503 = vld [vmem:[%s502] sm:$0xf]
      %v517 = vunpack.c.l.b16 %v489
      %v518 = vunpack.c.l.b16 %v490
      %v519 = vunpack.c.l.b16 %v491
      %v520 = vunpack.c.l.b16 %v492
      %v521 = vunpack.c.l.b16 %v493
      %v522 = vunpack.c.l.b16 %v494
      %v523 = vunpack.c.l.b16 %v495
      %v524 = vunpack.c.l.b16 %v496
      %v525 = vunpack.c.l.b16 %v497
      %v526 = vunpack.c.l.b16 %v498
      %v527 = vunpack.c.l.b16 %v499
      %v528 = vunpack.c.l.b16 %v500
      %v529 = vunpack.c.l.b16 %v501
      %v530 = vpack.c.b16 %v518, %v517
      %v531 = vpack.c.b16 %v520, %v519
      %v532 = vpack.c.b16 %v522, %v521
      %v533 = vpack.c.b16 %v524, %v523
      %v534 = vpack.c.b16 %v526, %v525
      %v535 = vpack.c.b16 %v528, %v527
      %v536 = vpack.c.b16 %v529, %v529
      %vm537 = vsmask.f32 7424
      %v539 = vshrl.u32 %v530, 16
      %v541 = vshll.u32 %v530, 16
      %v543 = vrot.slane %v541, 1
      %v544 = vor.u32 %v539, %v543
      %v546 = vshll.u32 %v531, 16
      %v548 = vrot.slane %v546, 1
      %v549 = vsel %vm537, %v544, %v548
      %v550 = vshrl.u32 %v531, 16
      %v552 = vor.u32 %v550, %v548
      %v554 = vshll.u32 %v532, 16
      %v556 = vrot.slane %v554, 1
      %v557 = vsel %vm537, %v552, %v556
      %v558 = vshrl.u32 %v532, 16
      %v560 = vor.u32 %v558, %v556
      %v562 = vshll.u32 %v533, 16
      %v564 = vrot.slane %v562, 1
      %v565 = vsel %vm537, %v560, %v564
      %v566 = vshrl.u32 %v533, 16
      %v568 = vor.u32 %v566, %v564
      %v570 = vshll.u32 %v534, 16
      %v572 = vrot.slane %v570, 1
      %v573 = vsel %vm537, %v568, %v572
      %v574 = vshrl.u32 %v534, 16
      %v576 = vor.u32 %v574, %v572
      %v578 = vshll.u32 %v535, 16
      %v580 = vrot.slane %v578, 1
      %v581 = vsel %vm537, %v576, %v580
      %v582 = vshrl.u32 %v535, 16
      %v584 = vor.u32 %v582, %v580
      %v586 = vshll.u32 %v536, 16
      %v588 = vrot.slane %v586, 1
      %v589 = vsel %vm537, %v584, %v588
      %v591 = vsel %vm253, %v549, 0
      %v594 = vsel %vm253, %v557, 0
      %v597 = vsel %vm253, %v565, 0
      %v600 = vsel %vm253, %v573, 0
      %v603 = vsel %vm253, %v581, 0
      %v606 = vsel %vm253, %v589, 0
      %v609 = vsel %vm272, %v503, 0
      %611 = vmatprep.subr.bf16.mxu0 0
      %612 = vmatpush1.bf16.msra.mxu0 %v609
      %613 = vmatprep.subr.bf16.mxu0 0
      %614 = vmatpush1.bf16.msra.mxu0 0
      %615 = vmatprep.subr.bf16.mxu0 0
      %616 = vmatpush1.bf16.msra.mxu0 0
      %617 = vmatprep.subr.bf16.mxu0 0
      %618 = vmatpush1.bf16.msra.mxu0 0
      %619 = vmatprep.subr.bf16.mxu0 0
      %620 = vmatpush1.bf16.msra.mxu0 0
      %621 = vmatprep.subr.bf16.mxu0 0
      %622 = vmatpush1.bf16.msra.mxu0 0
      %623 = vmatprep.subr.bf16.mxu0 0
      %624 = vmatpush1.bf16.msra.mxu0 0
      %625 = vmatprep.subr.bf16.mxu0 0
      %626 = vmatpush1.bf16.msra.mxu0 0
      %627 = vmatprep.subr.bf16.mxu0 0
      %628 = vmatpush1.bf16.msra.mxu0 0
      %629 = vmatprep.subr.bf16.mxu0 0
      %630 = vmatpush1.bf16.msra.mxu0 0
      %631 = vmatprep.subr.bf16.mxu0 0
      %632 = vmatpush1.bf16.msra.mxu0 0
      %633 = vmatprep.subr.bf16.mxu0 0
      %634 = vmatpush1.bf16.msra.mxu0 0
      %635 = vmatprep.subr.bf16.mxu0 0
      %636 = vmatpush1.bf16.msra.mxu0 0
      %637 = vmatprep.subr.bf16.mxu0 0
      %638 = vmatpush1.bf16.msra.mxu0 0
      %639 = vmatprep.subr.bf16.mxu0 0
      %640 = vmatpush1.bf16.msra.mxu0 0
      %641 = vmatprep.subr.bf16.mxu0 0
      %642 = vmatpush1.bf16.msra.mxu0 0
      %643 = vmatprep.mubr.bf16.mxu0 0
      %644 = vmatmul.mubr.bf16.gmra.mrb[0].mxu0 %v591
      %v645 = vpop.f32.mrb[0].mxu0
      %v646 = vadd.f32 0.0, %v645
      %v647 = vpop.f32.mrb[0].mxu0
      %v648 = vpop.f32.mrb[0].mxu0
      %v649 = vadd.f32 0.0, %v648
      %v650 = vpop.f32.mrb[0].mxu0
      %651 = vmatprep.mubr.bf16.mxu0 0
      %652 = vmatmul.mubr.bf16.gmra.mrb[0].mxu0 %v594
      %v653 = vpop.f32.mrb[0].mxu0
      %v654 = vadd.f32 0.0, %v653
      %v655 = vpop.f32.mrb[0].mxu0
      %v656 = vpop.f32.mrb[0].mxu0
      %v657 = vadd.f32 0.0, %v656
      %v658 = vpop.f32.mrb[0].mxu0
      %659 = vmatprep.mubr.bf16.mxu0 0
      %660 = vmatmul.mubr.bf16.gmra.mrb[0].mxu0 %v597
      %v661 = vpop.f32.mrb[0].mxu0
      %v662 = vadd.f32 0.0, %v661
      %v663 = vpop.f32.mrb[0].mxu0
      %v664 = vpop.f32.mrb[0].mxu0
      %v665 = vadd.f32 0.0, %v664
      %v666 = vpop.f32.mrb[0].mxu0
      %667 = vmatprep.mubr.bf16.mxu0 0
      %668 = vmatmul.mubr.bf16.gmra.mrb[0].mxu0 %v600
      %v669 = vpop.f32.mrb[0].mxu0
      %v670 = vadd.f32 0.0, %v669
      %v671 = vpop.f32.mrb[0].mxu0
      %v672 = vpop.f32.mrb[0].mxu0
      %v673 = vadd.f32 0.0, %v672
      %v674 = vpop.f32.mrb[0].mxu0
      %675 = vmatprep.mubr.bf16.mxu0 0
      %676 = vmatmul.mubr.bf16.gmra.mrb[0].mxu0 %v603
      %v677 = vpop.f32.mrb[0].mxu0
      %v678 = vadd.f32 0.0, %v677
      %v679 = vpop.f32.mrb[0].mxu0
      %v680 = vpop.f32.mrb[0].mxu0
      %v681 = vadd.f32 0.0, %v680
      %v682 = vpop.f32.mrb[0].mxu0
      %683 = vmatprep.mubr.bf16.mxu0 0
      %684 = vmatmul.mubr.bf16.gmra.mrb[0].mxu0 %v606
      %v685 = vpop.f32.mrb[0].mxu0
      %v686 = vadd.f32 0.0, %v685
      %v687 = vpop.f32.mrb[0].mxu0
      %v688 = vpop.f32.mrb[0].mxu0
      %v689 = vadd.f32 0.0, %v688
      %v690 = vpop.f32.mrb[0].mxu0
      %691 = vdwg.mxu0
      %v692 = vadd.f32 %v443, %v646
      %v693 = vadd.f32 %v446, %v649
      %v694 = vadd.f32 %v451, %v654
      %v695 = vadd.f32 %v454, %v657
      %v696 = vadd.f32 %v459, %v662
      %v697 = vadd.f32 %v462, %v665
      %v698 = vadd.f32 %v467, %v670
      %v699 = vadd.f32 %v470, %v673
      %v700 = vadd.f32 %v475, %v678
      %v701 = vadd.f32 %v478, %v681
      %v702 = vadd.f32 %v483, %v686
      %v703 = vadd.f32 %v486, %v689
      %v704 = vld [vmem:[%s208] sm:$0xf]
      %v705 = vld [vmem:[%s208 + $0x4] sm:$0xf]
      %v706 = vld [vmem:[%s208 + $0x8] sm:$0xf]
      %v707 = vld [vmem:[%s208 + $0xc] sm:$0xf]
      %v708 = vld [vmem:[%s208 + $0x10] sm:$0xf]
      %v709 = vld [vmem:[%s208 + $0x14] sm:$0xf]
      %v710 = vld [vmem:[%s208 + $0x18] sm:$0xf]
      %v711 = vld [vmem:[%s208 + $0x1c] sm:$0xf]
      %v712 = vld [vmem:[%s208 + $0x20] sm:$0xf]
      %v713 = vld [vmem:[%s208 + $0x24] sm:$0xf]
      %v714 = vld [vmem:[%s208 + $0x28] sm:$0xf]
      %v715 = vld [vmem:[%s208 + $0x2c] sm:$0xf]
      %v716 = vld [vmem:[%s208 + $0x30] sm:$0x1]
      %s717 = scalar_lea.vmem %s1, 12
      %v718 = vld [vmem:[%s717] sm:$0xf]
      %v732 = vunpack.c.l.b16 %v704
      %v733 = vunpack.c.l.b16 %v705
      %v734 = vunpack.c.l.b16 %v706
      %v735 = vunpack.c.l.b16 %v707
      %v736 = vunpack.c.l.b16 %v708
      %v737 = vunpack.c.l.b16 %v709
      %v738 = vunpack.c.l.b16 %v710
      %v739 = vunpack.c.l.b16 %v711
      %v740 = vunpack.c.l.b16 %v712
      %v741 = vunpack.c.l.b16 %v713
      %v742 = vunpack.c.l.b16 %v714
      %v743 = vunpack.c.l.b16 %v715
      %v744 = vunpack.c.l.b16 %v716
      %v745 = vpack.c.b16 %v733, %v732
      %v746 = vpack.c.b16 %v735, %v734
      %v747 = vpack.c.b16 %v737, %v736
      %v748 = vpack.c.b16 %v739, %v738
      %v749 = vpack.c.b16 %v741, %v740
      %v750 = vpack.c.b16 %v743, %v742
      %v751 = vpack.c.b16 %v744, %v744
      %v753 = vshrl.u32 %v745, 16
      %v755 = vshll.u32 %v745, 16
      %v757 = vrot.slane %v755, 1
      %v758 = vor.u32 %v753, %v757
      %v760 = vshll.u32 %v746, 16
      %v762 = vrot.slane %v760, 1
      %v763 = vsel %vm537, %v758, %v762
      %v764 = vshrl.u32 %v746, 16
      %v766 = vor.u32 %v764, %v762
      %v768 = vshll.u32 %v747, 16
      %v770 = vrot.slane %v768, 1
      %v771 = vsel %vm537, %v766, %v770
      %v772 = vshrl.u32 %v747, 16
      %v774 = vor.u32 %v772, %v770
      %v776 = vshll.u32 %v748, 16
      %v778 = vrot.slane %v776, 1
      %v779 = vsel %vm537, %v774, %v778
      %v780 = vshrl.u32 %v748, 16
      %v782 = vor.u32 %v780, %v778
      %v784 = vshll.u32 %v749, 16
      %v786 = vrot.slane %v784, 1
      %v787 = vsel %vm537, %v782, %v786
      %v788 = vshrl.u32 %v749, 16
      %v790 = vor.u32 %v788, %v786
      %v792 = vshll.u32 %v750, 16
      %v794 = vrot.slane %v792, 1
      %v795 = vsel %vm537, %v790, %v794
      %v796 = vshrl.u32 %v750, 16
      %v798 = vor.u32 %v796, %v794
      %v800 = vshll.u32 %v751, 16
      %v802 = vrot.slane %v800, 1
      %v803 = vsel %vm537, %v798, %v802
      %v805 = vsel %vm253, %v763, 0
      %v808 = vsel %vm253, %v771, 0
      %v811 = vsel %vm253, %v779, 0
      %v814 = vsel %vm253, %v787, 0
      %v817 = vsel %vm253, %v795, 0
      %v820 = vsel %vm253, %v803, 0
      %v823 = vsel %vm272, %v718, 0
      %825 = vmatprep.subr.bf16.mxu0 0
      %826 = vmatpush1.bf16.msra.mxu0 %v823
      %827 = vmatprep.subr.bf16.mxu0 0
      %828 = vmatpush1.bf16.msra.mxu0 0
      %829 = vmatprep.subr.bf16.mxu0 0
      %830 = vmatpush1.bf16.msra.mxu0 0
      %831 = vmatprep.subr.bf16.mxu0 0
      %832 = vmatpush1.bf16.msra.mxu0 0
      %833 = vmatprep.subr.bf16.mxu0 0
      %834 = vmatpush1.bf16.msra.mxu0 0
      %835 = vmatprep.subr.bf16.mxu0 0
      %836 = vmatpush1.bf16.msra.mxu0 0
      %837 = vmatprep.subr.bf16.mxu0 0
      %838 = vmatpush1.bf16.msra.mxu0 0
      %839 = vmatprep.subr.bf16.mxu0 0
      %840 = vmatpush1.bf16.msra.mxu0 0
      %841 = vmatprep.subr.bf16.mxu0 0
      %842 = vmatpush1.bf16.msra.mxu0 0
      %843 = vmatprep.subr.bf16.mxu0 0
      %844 = vmatpush1.bf16.msra.mxu0 0
      %845 = vmatprep.subr.bf16.mxu0 0
      %846 = vmatpush1.bf16.msra.mxu0 0
      %847 = vmatprep.subr.bf16.mxu0 0
      %848 = vmatpush1.bf16.msra.mxu0 0
      %849 = vmatprep.subr.bf16.mxu0 0
      %850 = vmatpush1.bf16.msra.mxu0 0
      %851 = vmatprep.subr.bf16.mxu0 0
      %852 = vmatpush1.bf16.msra.mxu0 0
      %853 = vmatprep.subr.bf16.mxu0 0
      %854 = vmatpush1.bf16.msra.mxu0 0
      %855 = vmatprep.subr.bf16.mxu0 0
      %856 = vmatpush1.bf16.msra.mxu0 0
      %857 = vmatprep.mubr.bf16.mxu0 0
      %858 = vmatmul.mubr.bf16.gmra.mrb[0].mxu0 %v805
      %v859 = vpop.f32.mrb[0].mxu0
      %v860 = vadd.f32 0.0, %v859
      %v861 = vpop.f32.mrb[0].mxu0
      %v862 = vpop.f32.mrb[0].mxu0
      %v863 = vadd.f32 0.0, %v862
      %v864 = vpop.f32.mrb[0].mxu0
      %865 = vmatprep.mubr.bf16.mxu0 0
      %866 = vmatmul.mubr.bf16.gmra.mrb[0].mxu0 %v808
      %v867 = vpop.f32.mrb[0].mxu0
      %v868 = vadd.f32 0.0, %v867
      %v869 = vpop.f32.mrb[0].mxu0
      %v870 = vpop.f32.mrb[0].mxu0
      %v871 = vadd.f32 0.0, %v870
      %v872 = vpop.f32.mrb[0].mxu0
      %873 = vmatprep.mubr.bf16.mxu0 0
      %874 = vmatmul.mubr.bf16.gmra.mrb[0].mxu0 %v811
      %v875 = vpop.f32.mrb[0].mxu0
      %v876 = vadd.f32 0.0, %v875
      %v877 = vpop.f32.mrb[0].mxu0
      %v878 = vpop.f32.mrb[0].mxu0
      %v879 = vadd.f32 0.0, %v878
      %v880 = vpop.f32.mrb[0].mxu0
      %881 = vmatprep.mubr.bf16.mxu0 0
      %882 = vmatmul.mubr.bf16.gmra.mrb[0].mxu0 %v814
      %v883 = vpop.f32.mrb[0].mxu0
      %v884 = vadd.f32 0.0, %v883
      %v885 = vpop.f32.mrb[0].mxu0
      %v886 = vpop.f32.mrb[0].mxu0
      %v887 = vadd.f32 0.0, %v886
      %v888 = vpop.f32.mrb[0].mxu0
      %889 = vmatprep.mubr.bf16.mxu0 0
      %890 = vmatmul.mubr.bf16.gmra.mrb[0].mxu0 %v817
      %v891 = vpop.f32.mrb[0].mxu0
      %v892 = vadd.f32 0.0, %v891
      %v893 = vpop.f32.mrb[0].mxu0
      %v894 = vpop.f32.mrb[0].mxu0
      %v895 = vadd.f32 0.0, %v894
      %v896 = vpop.f32.mrb[0].mxu0
      %897 = vmatprep.mubr.bf16.mxu0 0
      %898 = vmatmul.mubr.bf16.gmra.mrb[0].mxu0 %v820
      %v899 = vpop.f32.mrb[0].mxu0
      %v900 = vadd.f32 0.0, %v899
      %v901 = vpop.f32.mrb[0].mxu0
      %v902 = vpop.f32.mrb[0].mxu0
      %v903 = vadd.f32 0.0, %v902
      %v904 = vpop.f32.mrb[0].mxu0
      %905 = vdwg.mxu0
      %v906 = vadd.f32 %v692, %v860
      %v907 = vadd.f32 %v693, %v863
      %v908 = vadd.f32 %v694, %v868
      %v909 = vadd.f32 %v695, %v871
      %v910 = vadd.f32 %v696, %v876
      %v911 = vadd.f32 %v697, %v879
      %v912 = vadd.f32 %v698, %v884
      %v913 = vadd.f32 %v699, %v887
      %v914 = vadd.f32 %v700, %v892
      %v915 = vadd.f32 %v701, %v895
      %v916 = vadd.f32 %v702, %v900
      %v917 = vadd.f32 %v703, %v903
      %s918 = scalar_lea.vmem %s183, 112
      %v919 = vld [vmem:[%s918] sm:$0xf]
      %v920 = vld [vmem:[%s918 + $0x4] sm:$0xf]
      %v921 = vld [vmem:[%s918 + $0x8] sm:$0xf]
      %v922 = vld [vmem:[%s918 + $0xc] sm:$0xf]
      %v923 = vld [vmem:[%s918 + $0x10] sm:$0xf]
      %v924 = vld [vmem:[%s918 + $0x14] sm:$0xf]
      %v925 = vld [vmem:[%s918 + $0x18] sm:$0xf]
      %v926 = vld [vmem:[%s918 + $0x1c] sm:$0xf]
      %v927 = vld [vmem:[%s918 + $0x20] sm:$0xf]
      %v928 = vld [vmem:[%s918 + $0x24] sm:$0xf]
      %v929 = vld [vmem:[%s918 + $0x28] sm:$0xf]
      %v930 = vld [vmem:[%s918 + $0x2c] sm:$0xf]
      %s931 = scalar_lea.vmem %s1, 16
      %v932 = vld [vmem:[%s931] sm:$0xf]
      %v945 = vunpack.c.l.b16 %v919
      %v946 = vunpack.c.l.b16 %v920
      %v947 = vunpack.c.l.b16 %v921
      %v948 = vunpack.c.l.b16 %v922
      %v949 = vunpack.c.l.b16 %v923
      %v950 = vunpack.c.l.b16 %v924
      %v951 = vunpack.c.l.b16 %v925
      %v952 = vunpack.c.l.b16 %v926
      %v953 = vunpack.c.l.b16 %v927
      %v954 = vunpack.c.l.b16 %v928
      %v955 = vunpack.c.l.b16 %v929
      %v956 = vunpack.c.l.b16 %v930
      %v957 = vpack.c.b16 %v946, %v945
      %v958 = vpack.c.b16 %v948, %v947
      %v959 = vpack.c.b16 %v950, %v949
      %v960 = vpack.c.b16 %v952, %v951
      %v961 = vpack.c.b16 %v954, %v953
      %v962 = vpack.c.b16 %v956, %v955
      %v964 = vsel %vm253, %v957, 0
      %v967 = vsel %vm253, %v958, 0
      %v970 = vsel %vm253, %v959, 0
      %v973 = vsel %vm253, %v960, 0
      %v976 = vsel %vm253, %v961, 0
      %v979 = vsel %vm253, %v962, 0
      %v982 = vsel %vm272, %v932, 0
      %984 = vmatprep.subr.bf16.mxu0 0
      %985 = vmatpush1.bf16.msra.mxu0 %v982
      %986 = vmatprep.subr.bf16.mxu0 0
      %987 = vmatpush1.bf16.msra.mxu0 0
      %988 = vmatprep.subr.bf16.mxu0 0
      %989 = vmatpush1.bf16.msra.mxu0 0
      %990 = vmatprep.subr.bf16.mxu0 0
      %991 = vmatpush1.bf16.msra.mxu0 0
      %992 = vmatprep.subr.bf16.mxu0 0
      %993 = vmatpush1.bf16.msra.mxu0 0
      %994 = vmatprep.subr.bf16.mxu0 0
      %995 = vmatpush1.bf16.msra.mxu0 0
      %996 = vmatprep.subr.bf16.mxu0 0
      %997 = vmatpush1.bf16.msra.mxu0 0
      %998 = vmatprep.subr.bf16.mxu0 0
      %999 = vmatpush1.bf16.msra.mxu0 0
      %1000 = vmatprep.subr.bf16.mxu0 0
      %1001 = vmatpush1.bf16.msra.mxu0 0
      %1002 = vmatprep.subr.bf16.mxu0 0
      %1003 = vmatpush1.bf16.msra.mxu0 0
      %1004 = vmatprep.subr.bf16.mxu0 0
      %1005 = vmatpush1.bf16.msra.mxu0 0
      %1006 = vmatprep.subr.bf16.mxu0 0
      %1007 = vmatpush1.bf16.msra.mxu0 0
      %1008 = vmatprep.subr.bf16.mxu0 0
      %1009 = vmatpush1.bf16.msra.mxu0 0
      %1010 = vmatprep.subr.bf16.mxu0 0
      %1011 = vmatpush1.bf16.msra.mxu0 0
      %1012 = vmatprep.subr.bf16.mxu0 0
      %1013 = vmatpush1.bf16.msra.mxu0 0
      %1014 = vmatprep.subr.bf16.mxu0 0
      %1015 = vmatpush1.bf16.msra.mxu0 0
      %1016 = vmatprep.mubr.bf16.mxu0 0
      %1017 = vmatmul.mubr.bf16.gmra.mrb[0].mxu0 %v964
      %v1018 = vpop.f32.mrb[0].mxu0
      %v1019 = vadd.f32 0.0, %v1018
      %v1020 = vpop.f32.mrb[0].mxu0
      %v1021 = vpop.f32.mrb[0].mxu0
      %v1022 = vadd.f32 0.0, %v1021
      %v1023 = vpop.f32.mrb[0].mxu0
      %1024 = vmatprep.mubr.bf16.mxu0 0
      %1025 = vmatmul.mubr.bf16.gmra.mrb[0].mxu0 %v967
      %v1026 = vpop.f32.mrb[0].mxu0
      %v1027 = vadd.f32 0.0, %v1026
      %v1028 = vpop.f32.mrb[0].mxu0
      %v1029 = vpop.f32.mrb[0].mxu0
      %v1030 = vadd.f32 0.0, %v1029
      %v1031 = vpop.f32.mrb[0].mxu0
      %1032 = vmatprep.mubr.bf16.mxu0 0
      %1033 = vmatmul.mubr.bf16.gmra.mrb[0].mxu0 %v970
      %v1034 = vpop.f32.mrb[0].mxu0
      %v1035 = vadd.f32 0.0, %v1034
      %v1036 = vpop.f32.mrb[0].mxu0
      %v1037 = vpop.f32.mrb[0].mxu0
      %v1038 = vadd.f32 0.0, %v1037
      %v1039 = vpop.f32.mrb[0].mxu0
      %1040 = vmatprep.mubr.bf16.mxu0 0
      %1041 = vmatmul.mubr.bf16.gmra.mrb[0].mxu0 %v973
      %v1042 = vpop.f32.mrb[0].mxu0
      %v1043 = vadd.f32 0.0, %v1042
      %v1044 = vpop.f32.mrb[0].mxu0
      %v1045 = vpop.f32.mrb[0].mxu0
      %v1046 = vadd.f32 0.0, %v1045
      %v1047 = vpop.f32.mrb[0].mxu0
      %1048 = vmatprep.mubr.bf16.mxu0 0
      %1049 = vmatmul.mubr.bf16.gmra.mrb[0].mxu0 %v976
      %v1050 = vpop.f32.mrb[0].mxu0
      %v1051 = vadd.f32 0.0, %v1050
      %v1052 = vpop.f32.mrb[0].mxu0
      %v1053 = vpop.f32.mrb[0].mxu0
      %v1054 = vadd.f32 0.0, %v1053
      %v1055 = vpop.f32.mrb[0].mxu0
      %1056 = vmatprep.mubr.bf16.mxu0 0
      %1057 = vmatmul.mubr.bf16.gmra.mrb[0].mxu0 %v979
      %v1058 = vpop.f32.mrb[0].mxu0
      %v1059 = vadd.f32 0.0, %v1058
      %v1060 = vpop.f32.mrb[0].mxu0
      %v1061 = vpop.f32.mrb[0].mxu0
      %v1062 = vadd.f32 0.0, %v1061
      %v1063 = vpop.f32.mrb[0].mxu0
      %1064 = vdwg.mxu0
      %v1065 = vadd.f32 %v906, %v1019
      %v1066 = vadd.f32 %v907, %v1022
      %v1067 = vadd.f32 %v908, %v1027
      %v1068 = vadd.f32 %v909, %v1030
      %v1069 = vadd.f32 %v910, %v1035
      %v1070 = vadd.f32 %v911, %v1038
      %v1071 = vadd.f32 %v912, %v1043
      %v1072 = vadd.f32 %v913, %v1046
      %v1073 = vadd.f32 %v914, %v1051
      %v1074 = vadd.f32 %v915, %v1054
      %v1075 = vadd.f32 %v916, %v1059
      %v1076 = vadd.f32 %v917, %v1062
      %s1077 = scalar_lea.vmem %s183, 168
      %v1078 = vld [vmem:[%s1077] sm:$0xf]
      %v1079 = vld [vmem:[%s1077 + $0x4] sm:$0xf]
      %v1080 = vld [vmem:[%s1077 + $0x8] sm:$0xf]
      %v1081 = vld [vmem:[%s1077 + $0xc] sm:$0xf]
      %v1082 = vld [vmem:[%s1077 + $0x10] sm:$0xf]
      %v1083 = vld [vmem:[%s1077 + $0x14] sm:$0xf]
      %v1084 = vld [vmem:[%s1077 + $0x18] sm:$0xf]
      %v1085 = vld [vmem:[%s1077 + $0x1c] sm:$0xf]
      %v1086 = vld [vmem:[%s1077 + $0x20] sm:$0xf]
      %v1087 = vld [vmem:[%s1077 + $0x24] sm:$0xf]
      %v1088 = vld [vmem:[%s1077 + $0x28] sm:$0xf]
      %v1089 = vld [vmem:[%s1077 + $0x2c] sm:$0xf]
      %s1090 = scalar_lea.vmem %s1, 20
      %v1091 = vld [vmem:[%s1090] sm:$0xf]
      %v1104 = vunpack.c.l.b16 %v1078
      %v1105 = vunpack.c.l.b16 %v1079
      %v1106 = vunpack.c.l.b16 %v1080
      %v1107 = vunpack.c.l.b16 %v1081
      %v1108 = vunpack.c.l.b16 %v1082
      %v1109 = vunpack.c.l.b16 %v1083
      %v1110 = vunpack.c.l.b16 %v1084
      %v1111 = vunpack.c.l.b16 %v1085
      %v1112 = vunpack.c.l.b16 %v1086
      %v1113 = vunpack.c.l.b16 %v1087
      %v1114 = vunpack.c.l.b16 %v1088
      %v1115 = vunpack.c.l.b16 %v1089
      %v1116 = vpack.c.b16 %v1105, %v1104
      %v1117 = vpack.c.b16 %v1107, %v1106
      %v1118 = vpack.c.b16 %v1109, %v1108
      %v1119 = vpack.c.b16 %v1111, %v1110
      %v1120 = vpack.c.b16 %v1113, %v1112
      %v1121 = vpack.c.b16 %v1115, %v1114
      %v1123 = vsel %vm253, %v1116, 0
      %v1126 = vsel %vm253, %v1117, 0
      %v1129 = vsel %vm253, %v1118, 0
      %v1132 = vsel %vm253, %v1119, 0
      %v1135 = vsel %vm253, %v1120, 0
      %v1138 = vsel %vm253, %v1121, 0
      %v1141 = vsel %vm272, %v1091, 0
      %1143 = vmatprep.subr.bf16.mxu0 0
      %1144 = vmatpush1.bf16.msra.mxu0 %v1141
      %1145 = vmatprep.subr.bf16.mxu0 0
      %1146 = vmatpush1.bf16.msra.mxu0 0
      %1147 = vmatprep.subr.bf16.mxu0 0
      %1148 = vmatpush1.bf16.msra.mxu0 0
      %1149 = vmatprep.subr.bf16.mxu0 0
      %1150 = vmatpush1.bf16.msra.mxu0 0
      %1151 = vmatprep.subr.bf16.mxu0 0
      %1152 = vmatpush1.bf16.msra.mxu0 0
      %1153 = vmatprep.subr.bf16.mxu0 0
      %1154 = vmatpush1.bf16.msra.mxu0 0
      %1155 = vmatprep.subr.bf16.mxu0 0
      %1156 = vmatpush1.bf16.msra.mxu0 0
      %1157 = vmatprep.subr.bf16.mxu0 0
      %1158 = vmatpush1.bf16.msra.mxu0 0
      %1159 = vmatprep.subr.bf16.mxu0 0
      %1160 = vmatpush1.bf16.msra.mxu0 0
      %1161 = vmatprep.subr.bf16.mxu0 0
      %1162 = vmatpush1.bf16.msra.mxu0 0
      %1163 = vmatprep.subr.bf16.mxu0 0
      %1164 = vmatpush1.bf16.msra.mxu0 0
      %1165 = vmatprep.subr.bf16.mxu0 0
      %1166 = vmatpush1.bf16.msra.mxu0 0
      %1167 = vmatprep.subr.bf16.mxu0 0
      %1168 = vmatpush1.bf16.msra.mxu0 0
      %1169 = vmatprep.subr.bf16.mxu0 0
      %1170 = vmatpush1.bf16.msra.mxu0 0
      %1171 = vmatprep.subr.bf16.mxu0 0
      %1172 = vmatpush1.bf16.msra.mxu0 0
      %1173 = vmatprep.subr.bf16.mxu0 0
      %1174 = vmatpush1.bf16.msra.mxu0 0
      %1175 = vmatprep.mubr.bf16.mxu0 0
      %1176 = vmatmul.mubr.bf16.gmra.mrb[0].mxu0 %v1123
      %v1177 = vpop.f32.mrb[0].mxu0
      %v1178 = vadd.f32 0.0, %v1177
      %v1179 = vpop.f32.mrb[0].mxu0
      %v1180 = vpop.f32.mrb[0].mxu0
      %v1181 = vadd.f32 0.0, %v1180
      %v1182 = vpop.f32.mrb[0].mxu0
      %1183 = vmatprep.mubr.bf16.mxu0 0
      %1184 = vmatmul.mubr.bf16.gmra.mrb[0].mxu0 %v1126
      %v1185 = vpop.f32.mrb[0].mxu0
      %v1186 = vadd.f32 0.0, %v1185
      %v1187 = vpop.f32.mrb[0].mxu0
      %v1188 = vpop.f32.mrb[0].mxu0
      %v1189 = vadd.f32 0.0, %v1188
      %v1190 = vpop.f32.mrb[0].mxu0
      %1191 = vmatprep.mubr.bf16.mxu0 0
      %1192 = vmatmul.mubr.bf16.gmra.mrb[0].mxu0 %v1129
      %v1193 = vpop.f32.mrb[0].mxu0
      %v1194 = vadd.f32 0.0, %v1193
      %v1195 = vpop.f32.mrb[0].mxu0
      %v1196 = vpop.f32.mrb[0].mxu0
      %v1197 = vadd.f32 0.0, %v1196
      %v1198 = vpop.f32.mrb[0].mxu0
      %1199 = vmatprep.mubr.bf16.mxu0 0
      %1200 = vmatmul.mubr.bf16.gmra.mrb[0].mxu0 %v1132
      %v1201 = vpop.f32.mrb[0].mxu0
      %v1202 = vadd.f32 0.0, %v1201
      %v1203 = vpop.f32.mrb[0].mxu0
      %v1204 = vpop.f32.mrb[0].mxu0
      %v1205 = vadd.f32 0.0, %v1204
      %v1206 = vpop.f32.mrb[0].mxu0
      %1207 = vmatprep.mubr.bf16.mxu0 0
      %1208 = vmatmul.mubr.bf16.gmra.mrb[0].mxu0 %v1135
      %v1209 = vpop.f32.mrb[0].mxu0
      %v1210 = vadd.f32 0.0, %v1209
      %v1211 = vpop.f32.mrb[0].mxu0
      %v1212 = vpop.f32.mrb[0].mxu0
      %v1213 = vadd.f32 0.0, %v1212
      %v1214 = vpop.f32.mrb[0].mxu0
      %1215 = vmatprep.mubr.bf16.mxu0 0
      %1216 = vmatmul.mubr.bf16.gmra.mrb[0].mxu0 %v1138
      %v1217 = vpop.f32.mrb[0].mxu0
      %v1218 = vadd.f32 0.0, %v1217
      %v1219 = vpop.f32.mrb[0].mxu0
      %v1220 = vpop.f32.mrb[0].mxu0
      %v1221 = vadd.f32 0.0, %v1220
      %v1222 = vpop.f32.mrb[0].mxu0
      %1223 = vdwg.mxu0
      %v1224 = vadd.f32 %v1065, %v1178
      %v1225 = vadd.f32 %v1066, %v1181
      %v1226 = vadd.f32 %v1067, %v1186
      %v1227 = vadd.f32 %v1068, %v1189
      %v1228 = vadd.f32 %v1069, %v1194
      %v1229 = vadd.f32 %v1070, %v1197
      %v1230 = vadd.f32 %v1071, %v1202
      %v1231 = vadd.f32 %v1072, %v1205
      %v1232 = vadd.f32 %v1073, %v1210
      %v1233 = vadd.f32 %v1074, %v1213
      %v1234 = vadd.f32 %v1075, %v1218
      %v1235 = vadd.f32 %v1076, %v1221
      %v1236 = vld [vmem:[%s918] sm:$0xf]
      %v1237 = vld [vmem:[%s918 + $0x4] sm:$0xf]
      %v1238 = vld [vmem:[%s918 + $0x8] sm:$0xf]
      %v1239 = vld [vmem:[%s918 + $0xc] sm:$0xf]
      %v1240 = vld [vmem:[%s918 + $0x10] sm:$0xf]
      %v1241 = vld [vmem:[%s918 + $0x14] sm:$0xf]
      %v1242 = vld [vmem:[%s918 + $0x18] sm:$0xf]
      %v1243 = vld [vmem:[%s918 + $0x1c] sm:$0xf]
      %v1244 = vld [vmem:[%s918 + $0x20] sm:$0xf]
      %v1245 = vld [vmem:[%s918 + $0x24] sm:$0xf]
      %v1246 = vld [vmem:[%s918 + $0x28] sm:$0xf]
      %v1247 = vld [vmem:[%s918 + $0x2c] sm:$0xf]
      %v1248 = vld [vmem:[%s918 + $0x30] sm:$0x1]
      %s1249 = scalar_lea.vmem %s1, 24
      %v1250 = vld [vmem:[%s1249] sm:$0xf]
      %v1264 = vunpack.c.l.b16 %v1236
      %v1265 = vunpack.c.l.b16 %v1237
      %v1266 = vunpack.c.l.b16 %v1238
      %v1267 = vunpack.c.l.b16 %v1239
      %v1268 = vunpack.c.l.b16 %v1240
      %v1269 = vunpack.c.l.b16 %v1241
      %v1270 = vunpack.c.l.b16 %v1242
      %v1271 = vunpack.c.l.b16 %v1243
      %v1272 = vunpack.c.l.b16 %v1244
      %v1273 = vunpack.c.l.b16 %v1245
      %v1274 = vunpack.c.l.b16 %v1246
      %v1275 = vunpack.c.l.b16 %v1247
      %v1276 = vunpack.c.l.b16 %v1248
      %v1277 = vpack.c.b16 %v1265, %v1264
      %v1278 = vpack.c.b16 %v1267, %v1266
      %v1279 = vpack.c.b16 %v1269, %v1268
      %v1280 = vpack.c.b16 %v1271, %v1270
      %v1281 = vpack.c.b16 %v1273, %v1272
      %v1282 = vpack.c.b16 %v1275, %v1274
      %v1283 = vpack.c.b16 %v1276, %v1276
      %v1285 = vshrl.u32 %v1277, 16
      %v1287 = vshll.u32 %v1277, 16
      %v1289 = vrot.slane %v1287, 1
      %v1290 = vor.u32 %v1285, %v1289
      %v1292 = vshll.u32 %v1278, 16
      %v1294 = vrot.slane %v1292, 1
      %v1295 = vsel %vm537, %v1290, %v1294
      %v1296 = vshrl.u32 %v1278, 16
      %v1298 = vor.u32 %v1296, %v1294
      %v1300 = vshll.u32 %v1279, 16
      %v1302 = vrot.slane %v1300, 1
      %v1303 = vsel %vm537, %v1298, %v1302
      %v1304 = vshrl.u32 %v1279, 16
      %v1306 = vor.u32 %v1304, %v1302
      %v1308 = vshll.u32 %v1280, 16
      %v1310 = vrot.slane %v1308, 1
      %v1311 = vsel %vm537, %v1306, %v1310
      %v1312 = vshrl.u32 %v1280, 16
      %v1314 = vor.u32 %v1312, %v1310
      %v1316 = vshll.u32 %v1281, 16
      %v1318 = vrot.slane %v1316, 1
      %v1319 = vsel %vm537, %v1314, %v1318
      %v1320 = vshrl.u32 %v1281, 16
      %v1322 = vor.u32 %v1320, %v1318
      %v1324 = vshll.u32 %v1282, 16
      %v1326 = vrot.slane %v1324, 1
      %v1327 = vsel %vm537, %v1322, %v1326
      %v1328 = vshrl.u32 %v1282, 16
      %v1330 = vor.u32 %v1328, %v1326
      %v1332 = vshll.u32 %v1283, 16
      %v1334 = vrot.slane %v1332, 1
      %v1335 = vsel %vm537, %v1330, %v1334
      %v1337 = vsel %vm253, %v1295, 0
      %v1340 = vsel %vm253, %v1303, 0
      %v1343 = vsel %vm253, %v1311, 0
      %v1346 = vsel %vm253, %v1319, 0
      %v1349 = vsel %vm253, %v1327, 0
      %v1352 = vsel %vm253, %v1335, 0
      %v1355 = vsel %vm272, %v1250, 0
      %1357 = vmatprep.subr.bf16.mxu0 0
      %1358 = vmatpush1.bf16.msra.mxu0 %v1355
      %1359 = vmatprep.subr.bf16.mxu0 0
      %1360 = vmatpush1.bf16.msra.mxu0 0
      %1361 = vmatprep.subr.bf16.mxu0 0
      %1362 = vmatpush1.bf16.msra.mxu0 0
      %1363 = vmatprep.subr.bf16.mxu0 0
      %1364 = vmatpush1.bf16.msra.mxu0 0
      %1365 = vmatprep.subr.bf16.mxu0 0
      %1366 = vmatpush1.bf16.msra.mxu0 0
      %1367 = vmatprep.subr.bf16.mxu0 0
      %1368 = vmatpush1.bf16.msra.mxu0 0
      %1369 = vmatprep.subr.bf16.mxu0 0
      %1370 = vmatpush1.bf16.msra.mxu0 0
      %1371 = vmatprep.subr.bf16.mxu0 0
      %1372 = vmatpush1.bf16.msra.mxu0 0
      %1373 = vmatprep.subr.bf16.mxu0 0
      %1374 = vmatpush1.bf16.msra.mxu0 0
      %1375 = vmatprep.subr.bf16.mxu0 0
      %1376 = vmatpush1.bf16.msra.mxu0 0
      %1377 = vmatprep.subr.bf16.mxu0 0
      %1378 = vmatpush1.bf16.msra.mxu0 0
      %1379 = vmatprep.subr.bf16.mxu0 0
      %1380 = vmatpush1.bf16.msra.mxu0 0
      %1381 = vmatprep.subr.bf16.mxu0 0
      %1382 = vmatpush1.bf16.msra.mxu0 0
      %1383 = vmatprep.subr.bf16.mxu0 0
      %1384 = vmatpush1.bf16.msra.mxu0 0
      %1385 = vmatprep.subr.bf16.mxu0 0
      %1386 = vmatpush1.bf16.msra.mxu0 0
      %1387 = vmatprep.subr.bf16.mxu0 0
      %1388 = vmatpush1.bf16.msra.mxu0 0
      %1389 = vmatprep.mubr.bf16.mxu0 0
      %1390 = vmatmul.mubr.bf16.gmra.mrb[0].mxu0 %v1337
      %v1391 = vpop.f32.mrb[0].mxu0
      %v1392 = vadd.f32 0.0, %v1391
      %v1393 = vpop.f32.mrb[0].mxu0
      %v1394 = vpop.f32.mrb[0].mxu0
      %v1395 = vadd.f32 0.0, %v1394
      %v1396 = vpop.f32.mrb[0].mxu0
      %1397 = vmatprep.mubr.bf16.mxu0 0
      %1398 = vmatmul.mubr.bf16.gmra.mrb[0].mxu0 %v1340
      %v1399 = vpop.f32.mrb[0].mxu0
      %v1400 = vadd.f32 0.0, %v1399
      %v1401 = vpop.f32.mrb[0].mxu0
      %v1402 = vpop.f32.mrb[0].mxu0
      %v1403 = vadd.f32 0.0, %v1402
      %v1404 = vpop.f32.mrb[0].mxu0
      %1405 = vmatprep.mubr.bf16.mxu0 0
      %1406 = vmatmul.mubr.bf16.gmra.mrb[0].mxu0 %v1343
      %v1407 = vpop.f32.mrb[0].mxu0
      %v1408 = vadd.f32 0.0, %v1407
      %v1409 = vpop.f32.mrb[0].mxu0
      %v1410 = vpop.f32.mrb[0].mxu0
      %v1411 = vadd.f32 0.0, %v1410
      %v1412 = vpop.f32.mrb[0].mxu0
      %1413 = vmatprep.mubr.bf16.mxu0 0
      %1414 = vmatmul.mubr.bf16.gmra.mrb[0].mxu0 %v1346
      %v1415 = vpop.f32.mrb[0].mxu0
      %v1416 = vadd.f32 0.0, %v1415
      %v1417 = vpop.f32.mrb[0].mxu0
      %v1418 = vpop.f32.mrb[0].mxu0
      %v1419 = vadd.f32 0.0, %v1418
      %v1420 = vpop.f32.mrb[0].mxu0
      %1421 = vmatprep.mubr.bf16.mxu0 0
      %1422 = vmatmul.mubr.bf16.gmra.mrb[0].mxu0 %v1349
      %v1423 = vpop.f32.mrb[0].mxu0
      %v1424 = vadd.f32 0.0, %v1423
      %v1425 = vpop.f32.mrb[0].mxu0
      %v1426 = vpop.f32.mrb[0].mxu0
      %v1427 = vadd.f32 0.0, %v1426
      %v1428 = vpop.f32.mrb[0].mxu0
      %1429 = vmatprep.mubr.bf16.mxu0 0
      %1430 = vmatmul.mubr.bf16.gmra.mrb[0].mxu0 %v1352
      %v1431 = vpop.f32.mrb[0].mxu0
      %v1432 = vadd.f32 0.0, %v1431
      %v1433 = vpop.f32.mrb[0].mxu0
      %v1434 = vpop.f32.mrb[0].mxu0
      %v1435 = vadd.f32 0.0, %v1434
      %v1436 = vpop.f32.mrb[0].mxu0
      %1437 = vdwg.mxu0
      %v1438 = vadd.f32 %v1224, %v1392
      %v1439 = vadd.f32 %v1225, %v1395
      %v1440 = vadd.f32 %v1226, %v1400
      %v1441 = vadd.f32 %v1227, %v1403
      %v1442 = vadd.f32 %v1228, %v1408
      %v1443 = vadd.f32 %v1229, %v1411
      %v1444 = vadd.f32 %v1230, %v1416
      %v1445 = vadd.f32 %v1231, %v1419
      %v1446 = vadd.f32 %v1232, %v1424
      %v1447 = vadd.f32 %v1233, %v1427
      %v1448 = vadd.f32 %v1234, %v1432
      %v1449 = vadd.f32 %v1235, %v1435
      %v1450 = vld [vmem:[%s1077] sm:$0xf]
      %v1451 = vld [vmem:[%s1077 + $0x4] sm:$0xf]
      %v1452 = vld [vmem:[%s1077 + $0x8] sm:$0xf]
      %v1453 = vld [vmem:[%s1077 + $0xc] sm:$0xf]
      %v1454 = vld [vmem:[%s1077 + $0x10] sm:$0xf]
      %v1455 = vld [vmem:[%s1077 + $0x14] sm:$0xf]
      %v1456 = vld [vmem:[%s1077 + $0x18] sm:$0xf]
      %v1457 = vld [vmem:[%s1077 + $0x1c] sm:$0xf]
      %v1458 = vld [vmem:[%s1077 + $0x20] sm:$0xf]
      %v1459 = vld [vmem:[%s1077 + $0x24] sm:$0xf]
      %v1460 = vld [vmem:[%s1077 + $0x28] sm:$0xf]
      %v1461 = vld [vmem:[%s1077 + $0x2c] sm:$0xf]
      %v1462 = vld [vmem:[%s1077 + $0x30] sm:$0x1]
      %s1463 = scalar_lea.vmem %s1, 28
      %v1464 = vld [vmem:[%s1463] sm:$0xf]
      %v1478 = vunpack.c.l.b16 %v1450
      %v1479 = vunpack.c.l.b16 %v1451
      %v1480 = vunpack.c.l.b16 %v1452
      %v1481 = vunpack.c.l.b16 %v1453
      %v1482 = vunpack.c.l.b16 %v1454
      %v1483 = vunpack.c.l.b16 %v1455
      %v1484 = vunpack.c.l.b16 %v1456
      %v1485 = vunpack.c.l.b16 %v1457
      %v1486 = vunpack.c.l.b16 %v1458
      %v1487 = vunpack.c.l.b16 %v1459
      %v1488 = vunpack.c.l.b16 %v1460
      %v1489 = vunpack.c.l.b16 %v1461
      %v1490 = vunpack.c.l.b16 %v1462
      %v1491 = vpack.c.b16 %v1479, %v1478
      %v1492 = vpack.c.b16 %v1481, %v1480
      %v1493 = vpack.c.b16 %v1483, %v1482
      %v1494 = vpack.c.b16 %v1485, %v1484
      %v1495 = vpack.c.b16 %v1487, %v1486
      %v1496 = vpack.c.b16 %v1489, %v1488
      %v1497 = vpack.c.b16 %v1490, %v1490
      %v1499 = vshrl.u32 %v1491, 16
      %v1501 = vshll.u32 %v1491, 16
      %v1503 = vrot.slane %v1501, 1
      %v1504 = vor.u32 %v1499, %v1503
      %v1506 = vshll.u32 %v1492, 16
      %v1508 = vrot.slane %v1506, 1
      %v1509 = vsel %vm537, %v1504, %v1508
      %v1510 = vshrl.u32 %v1492, 16
      %v1512 = vor.u32 %v1510, %v1508
      %v1514 = vshll.u32 %v1493, 16
      %v1516 = vrot.slane %v1514, 1
      %v1517 = vsel %vm537, %v1512, %v1516
      %v1518 = vshrl.u32 %v1493, 16
      %v1520 = vor.u32 %v1518, %v1516
      %v1522 = vshll.u32 %v1494, 16
      %v1524 = vrot.slane %v1522, 1
      %v1525 = vsel %vm537, %v1520, %v1524
      %v1526 = vshrl.u32 %v1494, 16
      %v1528 = vor.u32 %v1526, %v1524
      %v1530 = vshll.u32 %v1495, 16
      %v1532 = vrot.slane %v1530, 1
      %v1533 = vsel %vm537, %v1528, %v1532
      %v1534 = vshrl.u32 %v1495, 16
      %v1536 = vor.u32 %v1534, %v1532
      %v1538 = vshll.u32 %v1496, 16
      %v1540 = vrot.slane %v1538, 1
      %v1541 = vsel %vm537, %v1536, %v1540
      %v1542 = vshrl.u32 %v1496, 16
      %v1544 = vor.u32 %v1542, %v1540
      %v1546 = vshll.u32 %v1497, 16
      %v1548 = vrot.slane %v1546, 1
      %v1549 = vsel %vm537, %v1544, %v1548
      %v1551 = vsel %vm253, %v1509, 0
      %v1554 = vsel %vm253, %v1517, 0
      %v1557 = vsel %vm253, %v1525, 0
      %v1560 = vsel %vm253, %v1533, 0
      %v1563 = vsel %vm253, %v1541, 0
      %v1566 = vsel %vm253, %v1549, 0
      %v1569 = vsel %vm272, %v1464, 0
      %1571 = vmatprep.subr.bf16.mxu0 0
      %1572 = vmatpush1.bf16.msra.mxu0 %v1569
      %1573 = vmatprep.subr.bf16.mxu0 0
      %1574 = vmatpush1.bf16.msra.mxu0 0
      %1575 = vmatprep.subr.bf16.mxu0 0
      %1576 = vmatpush1.bf16.msra.mxu0 0
      %1577 = vmatprep.subr.bf16.mxu0 0
      %1578 = vmatpush1.bf16.msra.mxu0 0
      %1579 = vmatprep.subr.bf16.mxu0 0
      %1580 = vmatpush1.bf16.msra.mxu0 0
      %1581 = vmatprep.subr.bf16.mxu0 0
      %1582 = vmatpush1.bf16.msra.mxu0 0
      %1583 = vmatprep.subr.bf16.mxu0 0
      %1584 = vmatpush1.bf16.msra.mxu0 0
      %1585 = vmatprep.subr.bf16.mxu0 0
      %1586 = vmatpush1.bf16.msra.mxu0 0
      %1587 = vmatprep.subr.bf16.mxu0 0
      %1588 = vmatpush1.bf16.msra.mxu0 0
      %1589 = vmatprep.subr.bf16.mxu0 0
      %1590 = vmatpush1.bf16.msra.mxu0 0
      %1591 = vmatprep.subr.bf16.mxu0 0
      %1592 = vmatpush1.bf16.msra.mxu0 0
      %1593 = vmatprep.subr.bf16.mxu0 0
      %1594 = vmatpush1.bf16.msra.mxu0 0
      %1595 = vmatprep.subr.bf16.mxu0 0
      %1596 = vmatpush1.bf16.msra.mxu0 0
      %1597 = vmatprep.subr.bf16.mxu0 0
      %1598 = vmatpush1.bf16.msra.mxu0 0
      %1599 = vmatprep.subr.bf16.mxu0 0
      %1600 = vmatpush1.bf16.msra.mxu0 0
      %1601 = vmatprep.subr.bf16.mxu0 0
      %1602 = vmatpush1.bf16.msra.mxu0 0
      %1603 = vmatprep.mubr.bf16.mxu0 0
      %1604 = vmatmul.mubr.bf16.gmra.mrb[0].mxu0 %v1551
      %v1605 = vpop.f32.mrb[0].mxu0
      %v1606 = vadd.f32 0.0, %v1605
      %v1607 = vpop.f32.mrb[0].mxu0
      %v1608 = vpop.f32.mrb[0].mxu0
      %v1609 = vadd.f32 0.0, %v1608
      %v1610 = vpop.f32.mrb[0].mxu0
      %1611 = vmatprep.mubr.bf16.mxu0 0
      %1612 = vmatmul.mubr.bf16.gmra.mrb[0].mxu0 %v1554
      %v1613 = vpop.f32.mrb[0].mxu0
      %v1614 = vadd.f32 0.0, %v1613
      %v1615 = vpop.f32.mrb[0].mxu0
      %v1616 = vpop.f32.mrb[0].mxu0
      %v1617 = vadd.f32 0.0, %v1616
      %v1618 = vpop.f32.mrb[0].mxu0
      %1619 = vmatprep.mubr.bf16.mxu0 0
      %1620 = vmatmul.mubr.bf16.gmra.mrb[0].mxu0 %v1557
      %v1621 = vpop.f32.mrb[0].mxu0
      %v1622 = vadd.f32 0.0, %v1621
      %v1623 = vpop.f32.mrb[0].mxu0
      %v1624 = vpop.f32.mrb[0].mxu0
      %v1625 = vadd.f32 0.0, %v1624
      %v1626 = vpop.f32.mrb[0].mxu0
      %1627 = vmatprep.mubr.bf16.mxu0 0
      %1628 = vmatmul.mubr.bf16.gmra.mrb[0].mxu0 %v1560
      %v1629 = vpop.f32.mrb[0].mxu0
      %v1630 = vadd.f32 0.0, %v1629
      %v1631 = vpop.f32.mrb[0].mxu0
      %v1632 = vpop.f32.mrb[0].mxu0
      %v1633 = vadd.f32 0.0, %v1632
      %v1634 = vpop.f32.mrb[0].mxu0
      %1635 = vmatprep.mubr.bf16.mxu0 0
      %1636 = vmatmul.mubr.bf16.gmra.mrb[0].mxu0 %v1563
      %v1637 = vpop.f32.mrb[0].mxu0
      %v1638 = vadd.f32 0.0, %v1637
      %v1639 = vpop.f32.mrb[0].mxu0
      %v1640 = vpop.f32.mrb[0].mxu0
      %v1641 = vadd.f32 0.0, %v1640
      %v1642 = vpop.f32.mrb[0].mxu0
      %1643 = vmatprep.mubr.bf16.mxu0 0
      %1644 = vmatmul.mubr.bf16.gmra.mrb[0].mxu0 %v1566
      %v1645 = vpop.f32.mrb[0].mxu0
      %v1646 = vadd.f32 0.0, %v1645
      %v1647 = vpop.f32.mrb[0].mxu0
      %v1648 = vpop.f32.mrb[0].mxu0
      %v1649 = vadd.f32 0.0, %v1648
      %v1650 = vpop.f32.mrb[0].mxu0
      %1651 = vdwg.mxu0
      %v1652 = vadd.f32 %v1438, %v1606
      %v1653 = vadd.f32 %v1439, %v1609
      %v1654 = vadd.f32 %v1440, %v1614
      %v1655 = vadd.f32 %v1441, %v1617
      %v1656 = vadd.f32 %v1442, %v1622
      %v1657 = vadd.f32 %v1443, %v1625
      %v1658 = vadd.f32 %v1444, %v1630
      %v1659 = vadd.f32 %v1445, %v1633
      %v1660 = vadd.f32 %v1446, %v1638
      %v1661 = vadd.f32 %v1447, %v1641
      %v1662 = vadd.f32 %v1448, %v1646
      %v1663 = vadd.f32 %v1449, %v1649
      %v1664 = vld [vmem:[%s183 + $0x4] sm:$0xe]
      %v1665 = vld [vmem:[%s183 + $0x8] sm:$0xf]
      %v1666 = vld [vmem:[%s183 + $0xc] sm:$0xf]
      %v1667 = vld [vmem:[%s183 + $0x10] sm:$0xf]
      %v1668 = vld [vmem:[%s183 + $0x14] sm:$0xf]
      %v1669 = vld [vmem:[%s183 + $0x18] sm:$0xf]
      %v1670 = vld [vmem:[%s183 + $0x1c] sm:$0xf]
      %v1671 = vld [vmem:[%s183 + $0x20] sm:$0xf]
      %v1672 = vld [vmem:[%s183 + $0x24] sm:$0xf]
      %v1673 = vld [vmem:[%s183 + $0x28] sm:$0xf]
      %v1674 = vld [vmem:[%s183 + $0x2c] sm:$0xf]
      %v1675 = vld [vmem:[%s183 + $0x30] sm:$0xf]
      %v1676 = vld [vmem:[%s183 + $0x34] sm:$0x1]
      %s1677 = scalar_lea.vmem %s1, 32
      %v1678 = vld [vmem:[%s1677] sm:$0xf]
      %v1692 = vunpack.c.l.b16 %v1664
      %v1693 = vunpack.c.l.b16 %v1665
      %v1694 = vunpack.c.l.b16 %v1666
      %v1695 = vunpack.c.l.b16 %v1667
      %v1696 = vunpack.c.l.b16 %v1668
      %v1697 = vunpack.c.l.b16 %v1669
      %v1698 = vunpack.c.l.b16 %v1670
      %v1699 = vunpack.c.l.b16 %v1671
      %v1700 = vunpack.c.l.b16 %v1672
      %v1701 = vunpack.c.l.b16 %v1673
      %v1702 = vunpack.c.l.b16 %v1674
      %v1703 = vunpack.c.l.b16 %v1675
      %v1704 = vunpack.c.l.b16 %v1676
      %v1705 = vpack.c.b16 %v1693, %v1692
      %v1706 = vpack.c.b16 %v1695, %v1694
      %v1707 = vpack.c.b16 %v1697, %v1696
      %v1708 = vpack.c.b16 %v1699, %v1698
      %v1709 = vpack.c.b16 %v1701, %v1700
      %v1710 = vpack.c.b16 %v1703, %v1702
      %v1711 = vpack.c.b16 %v1704, %v1704
      %vm1712 = vcmask 1046528
      %v1713 = vrot.slane %v1705, 1
      %v1714 = vrot.slane %v1706, 1
      %v1715 = vsel %vm1712, %v1713, %v1714
      %v1716 = vrot.slane %v1707, 1
      %v1717 = vsel %vm1712, %v1714, %v1716
      %v1718 = vrot.slane %v1708, 1
      %v1719 = vsel %vm1712, %v1716, %v1718
      %v1720 = vrot.slane %v1709, 1
      %v1721 = vsel %vm1712, %v1718, %v1720
      %v1722 = vrot.slane %v1710, 1
      %v1723 = vsel %vm1712, %v1720, %v1722
      %v1724 = vrot.slane %v1711, 1
      %v1725 = vsel %vm1712, %v1722, %v1724
      %v1727 = vsel %vm253, %v1715, 0
      %v1730 = vsel %vm253, %v1717, 0
      %v1733 = vsel %vm253, %v1719, 0
      %v1736 = vsel %vm253, %v1721, 0
      %v1739 = vsel %vm253, %v1723, 0
      %v1742 = vsel %vm253, %v1725, 0
      %v1745 = vsel %vm272, %v1678, 0
      %1747 = vmatprep.subr.bf16.mxu0 0
      %1748 = vmatpush1.bf16.msra.mxu0 %v1745
      %1749 = vmatprep.subr.bf16.mxu0 0
      %1750 = vmatpush1.bf16.msra.mxu0 0
      %1751 = vmatprep.subr.bf16.mxu0 0
      %1752 = vmatpush1.bf16.msra.mxu0 0
      %1753 = vmatprep.subr.bf16.mxu0 0
      %1754 = vmatpush1.bf16.msra.mxu0 0
      %1755 = vmatprep.subr.bf16.mxu0 0
      %1756 = vmatpush1.bf16.msra.mxu0 0
      %1757 = vmatprep.subr.bf16.mxu0 0
      %1758 = vmatpush1.bf16.msra.mxu0 0
      %1759 = vmatprep.subr.bf16.mxu0 0
      %1760 = vmatpush1.bf16.msra.mxu0 0
      %1761 = vmatprep.subr.bf16.mxu0 0
      %1762 = vmatpush1.bf16.msra.mxu0 0
      %1763 = vmatprep.subr.bf16.mxu0 0
      %1764 = vmatpush1.bf16.msra.mxu0 0
      %1765 = vmatprep.subr.bf16.mxu0 0
      %1766 = vmatpush1.bf16.msra.mxu0 0
      %1767 = vmatprep.subr.bf16.mxu0 0
      %1768 = vmatpush1.bf16.msra.mxu0 0
      %1769 = vmatprep.subr.bf16.mxu0 0
      %1770 = vmatpush1.bf16.msra.mxu0 0
      %1771 = vmatprep.subr.bf16.mxu0 0
      %1772 = vmatpush1.bf16.msra.mxu0 0
      %1773 = vmatprep.subr.bf16.mxu0 0
      %1774 = vmatpush1.bf16.msra.mxu0 0
      %1775 = vmatprep.subr.bf16.mxu0 0
      %1776 = vmatpush1.bf16.msra.mxu0 0
      %1777 = vmatprep.subr.bf16.mxu0 0
      %1778 = vmatpush1.bf16.msra.mxu0 0
      %1779 = vmatprep.mubr.bf16.mxu0 0
      %1780 = vmatmul.mubr.bf16.gmra.mrb[0].mxu0 %v1727
      %v1781 = vpop.f32.mrb[0].mxu0
      %v1782 = vadd.f32 0.0, %v1781
      %v1783 = vpop.f32.mrb[0].mxu0
      %v1784 = vpop.f32.mrb[0].mxu0
      %v1785 = vadd.f32 0.0, %v1784
      %v1786 = vpop.f32.mrb[0].mxu0
      %1787 = vmatprep.mubr.bf16.mxu0 0
      %1788 = vmatmul.mubr.bf16.gmra.mrb[0].mxu0 %v1730
      %v1789 = vpop.f32.mrb[0].mxu0
      %v1790 = vadd.f32 0.0, %v1789
      %v1791 = vpop.f32.mrb[0].mxu0
      %v1792 = vpop.f32.mrb[0].mxu0
      %v1793 = vadd.f32 0.0, %v1792
      %v1794 = vpop.f32.mrb[0].mxu0
      %1795 = vmatprep.mubr.bf16.mxu0 0
      %1796 = vmatmul.mubr.bf16.gmra.mrb[0].mxu0 %v1733
      %v1797 = vpop.f32.mrb[0].mxu0
      %v1798 = vadd.f32 0.0, %v1797
      %v1799 = vpop.f32.mrb[0].mxu0
      %v1800 = vpop.f32.mrb[0].mxu0
      %v1801 = vadd.f32 0.0, %v1800
      %v1802 = vpop.f32.mrb[0].mxu0
      %1803 = vmatprep.mubr.bf16.mxu0 0
      %1804 = vmatmul.mubr.bf16.gmra.mrb[0].mxu0 %v1736
      %v1805 = vpop.f32.mrb[0].mxu0
      %v1806 = vadd.f32 0.0, %v1805
      %v1807 = vpop.f32.mrb[0].mxu0
      %v1808 = vpop.f32.mrb[0].mxu0
      %v1809 = vadd.f32 0.0, %v1808
      %v1810 = vpop.f32.mrb[0].mxu0
      %1811 = vmatprep.mubr.bf16.mxu0 0
      %1812 = vmatmul.mubr.bf16.gmra.mrb[0].mxu0 %v1739
      %v1813 = vpop.f32.mrb[0].mxu0
      %v1814 = vadd.f32 0.0, %v1813
      %v1815 = vpop.f32.mrb[0].mxu0
      %v1816 = vpop.f32.mrb[0].mxu0
      %v1817 = vadd.f32 0.0, %v1816
      %v1818 = vpop.f32.mrb[0].mxu0
      %1819 = vmatprep.mubr.bf16.mxu0 0
      %1820 = vmatmul.mubr.bf16.gmra.mrb[0].mxu0 %v1742
      %v1821 = vpop.f32.mrb[0].mxu0
      %v1822 = vadd.f32 0.0, %v1821
      %v1823 = vpop.f32.mrb[0].mxu0
      %v1824 = vpop.f32.mrb[0].mxu0
      %v1825 = vadd.f32 0.0, %v1824
      %v1826 = vpop.f32.mrb[0].mxu0
      %1827 = vdwg.mxu0
      %v1828 = vadd.f32 %v1652, %v1782
      %v1829 = vadd.f32 %v1653, %v1785
      %v1830 = vadd.f32 %v1654, %v1790
      %v1831 = vadd.f32 %v1655, %v1793
      %v1832 = vadd.f32 %v1656, %v1798
      %v1833 = vadd.f32 %v1657, %v1801
      %v1834 = vadd.f32 %v1658, %v1806
      %v1835 = vadd.f32 %v1659, %v1809
      %v1836 = vadd.f32 %v1660, %v1814
      %v1837 = vadd.f32 %v1661, %v1817
      %v1838 = vadd.f32 %v1662, %v1822
      %v1839 = vadd.f32 %v1663, %v1825
      %v1840 = vld [vmem:[%s208 + $0x4] sm:$0xe]
      %v1841 = vld [vmem:[%s208 + $0x8] sm:$0xf]
      %v1842 = vld [vmem:[%s208 + $0xc] sm:$0xf]
      %v1843 = vld [vmem:[%s208 + $0x10] sm:$0xf]
      %v1844 = vld [vmem:[%s208 + $0x14] sm:$0xf]
      %v1845 = vld [vmem:[%s208 + $0x18] sm:$0xf]
      %v1846 = vld [vmem:[%s208 + $0x1c] sm:$0xf]
      %v1847 = vld [vmem:[%s208 + $0x20] sm:$0xf]
      %v1848 = vld [vmem:[%s208 + $0x24] sm:$0xf]
      %v1849 = vld [vmem:[%s208 + $0x28] sm:$0xf]
      %v1850 = vld [vmem:[%s208 + $0x2c] sm:$0xf]
      %v1851 = vld [vmem:[%s208 + $0x30] sm:$0xf]
      %v1852 = vld [vmem:[%s208 + $0x34] sm:$0x1]
      %s1853 = scalar_lea.vmem %s1, 36
      %v1854 = vld [vmem:[%s1853] sm:$0xf]
      %v1868 = vunpack.c.l.b16 %v1840
      %v1869 = vunpack.c.l.b16 %v1841
      %v1870 = vunpack.c.l.b16 %v1842
      %v1871 = vunpack.c.l.b16 %v1843
      %v1872 = vunpack.c.l.b16 %v1844
      %v1873 = vunpack.c.l.b16 %v1845
      %v1874 = vunpack.c.l.b16 %v1846
      %v1875 = vunpack.c.l.b16 %v1847
      %v1876 = vunpack.c.l.b16 %v1848
      %v1877 = vunpack.c.l.b16 %v1849
      %v1878 = vunpack.c.l.b16 %v1850
      %v1879 = vunpack.c.l.b16 %v1851
      %v1880 = vunpack.c.l.b16 %v1852
      %v1881 = vpack.c.b16 %v1869, %v1868
      %v1882 = vpack.c.b16 %v1871, %v1870
      %v1883 = vpack.c.b16 %v1873, %v1872
      %v1884 = vpack.c.b16 %v1875, %v1874
      %v1885 = vpack.c.b16 %v1877, %v1876
      %v1886 = vpack.c.b16 %v1879, %v1878
      %v1887 = vpack.c.b16 %v1880, %v1880
      %v1888 = vrot.slane %v1881, 1
      %v1889 = vrot.slane %v1882, 1
      %v1890 = vsel %vm1712, %v1888, %v1889
      %v1891 = vrot.slane %v1883, 1
      %v1892 = vsel %vm1712, %v1889, %v1891
      %v1893 = vrot.slane %v1884, 1
      %v1894 = vsel %vm1712, %v1891, %v1893
      %v1895 = vrot.slane %v1885, 1
      %v1896 = vsel %vm1712, %v1893, %v1895
      %v1897 = vrot.slane %v1886, 1
      %v1898 = vsel %vm1712, %v1895, %v1897
      %v1899 = vrot.slane %v1887, 1
      %v1900 = vsel %vm1712, %v1897, %v1899
      %v1902 = vsel %vm253, %v1890, 0
      %v1905 = vsel %vm253, %v1892, 0
      %v1908 = vsel %vm253, %v1894, 0
      %v1911 = vsel %vm253, %v1896, 0
      %v1914 = vsel %vm253, %v1898, 0
      %v1917 = vsel %vm253, %v1900, 0
      %v1920 = vsel %vm272, %v1854, 0
      %1922 = vmatprep.subr.bf16.mxu0 0
      %1923 = vmatpush1.bf16.msra.mxu0 %v1920
      %1924 = vmatprep.subr.bf16.mxu0 0
      %1925 = vmatpush1.bf16.msra.mxu0 0
      %1926 = vmatprep.subr.bf16.mxu0 0
      %1927 = vmatpush1.bf16.msra.mxu0 0
      %1928 = vmatprep.subr.bf16.mxu0 0
      %1929 = vmatpush1.bf16.msra.mxu0 0
      %1930 = vmatprep.subr.bf16.mxu0 0
      %1931 = vmatpush1.bf16.msra.mxu0 0
      %1932 = vmatprep.subr.bf16.mxu0 0
      %1933 = vmatpush1.bf16.msra.mxu0 0
      %1934 = vmatprep.subr.bf16.mxu0 0
      %1935 = vmatpush1.bf16.msra.mxu0 0
      %1936 = vmatprep.subr.bf16.mxu0 0
      %1937 = vmatpush1.bf16.msra.mxu0 0
      %1938 = vmatprep.subr.bf16.mxu0 0
      %1939 = vmatpush1.bf16.msra.mxu0 0
      %1940 = vmatprep.subr.bf16.mxu0 0
      %1941 = vmatpush1.bf16.msra.mxu0 0
      %1942 = vmatprep.subr.bf16.mxu0 0
      %1943 = vmatpush1.bf16.msra.mxu0 0
      %1944 = vmatprep.subr.bf16.mxu0 0
      %1945 = vmatpush1.bf16.msra.mxu0 0
      %1946 = vmatprep.subr.bf16.mxu0 0
      %1947 = vmatpush1.bf16.msra.mxu0 0
      %1948 = vmatprep.subr.bf16.mxu0 0
      %1949 = vmatpush1.bf16.msra.mxu0 0
      %1950 = vmatprep.subr.bf16.mxu0 0
      %1951 = vmatpush1.bf16.msra.mxu0 0
      %1952 = vmatprep.subr.bf16.mxu0 0
      %1953 = vmatpush1.bf16.msra.mxu0 0
      %1954 = vmatprep.mubr.bf16.mxu0 0
      %1955 = vmatmul.mubr.bf16.gmra.mrb[0].mxu0 %v1902
      %v1956 = vpop.f32.mrb[0].mxu0
      %v1957 = vadd.f32 0.0, %v1956
      %v1958 = vpop.f32.mrb[0].mxu0
      %v1959 = vpop.f32.mrb[0].mxu0
      %v1960 = vadd.f32 0.0, %v1959
      %v1961 = vpop.f32.mrb[0].mxu0
      %1962 = vmatprep.mubr.bf16.mxu0 0
      %1963 = vmatmul.mubr.bf16.gmra.mrb[0].mxu0 %v1905
      %v1964 = vpop.f32.mrb[0].mxu0
      %v1965 = vadd.f32 0.0, %v1964
      %v1966 = vpop.f32.mrb[0].mxu0
      %v1967 = vpop.f32.mrb[0].mxu0
      %v1968 = vadd.f32 0.0, %v1967
      %v1969 = vpop.f32.mrb[0].mxu0
      %1970 = vmatprep.mubr.bf16.mxu0 0
      %1971 = vmatmul.mubr.bf16.gmra.mrb[0].mxu0 %v1908
      %v1972 = vpop.f32.mrb[0].mxu0
      %v1973 = vadd.f32 0.0, %v1972
      %v1974 = vpop.f32.mrb[0].mxu0
      %v1975 = vpop.f32.mrb[0].mxu0
      %v1976 = vadd.f32 0.0, %v1975
      %v1977 = vpop.f32.mrb[0].mxu0
      %1978 = vmatprep.mubr.bf16.mxu0 0
      %1979 = vmatmul.mubr.bf16.gmra.mrb[0].mxu0 %v1911
      %v1980 = vpop.f32.mrb[0].mxu0
      %v1981 = vadd.f32 0.0, %v1980
      %v1982 = vpop.f32.mrb[0].mxu0
      %v1983 = vpop.f32.mrb[0].mxu0
      %v1984 = vadd.f32 0.0, %v1983
      %v1985 = vpop.f32.mrb[0].mxu0
      %1986 = vmatprep.mubr.bf16.mxu0 0
      %1987 = vmatmul.mubr.bf16.gmra.mrb[0].mxu0 %v1914
      %v1988 = vpop.f32.mrb[0].mxu0
      %v1989 = vadd.f32 0.0, %v1988
      %v1990 = vpop.f32.mrb[0].mxu0
      %v1991 = vpop.f32.mrb[0].mxu0
      %v1992 = vadd.f32 0.0, %v1991
      %v1993 = vpop.f32.mrb[0].mxu0
      %1994 = vmatprep.mubr.bf16.mxu0 0
      %1995 = vmatmul.mubr.bf16.gmra.mrb[0].mxu0 %v1917
      %v1996 = vpop.f32.mrb[0].mxu0
      %v1997 = vadd.f32 0.0, %v1996
      %v1998 = vpop.f32.mrb[0].mxu0
      %v1999 = vpop.f32.mrb[0].mxu0
      %v2000 = vadd.f32 0.0, %v1999
      %v2001 = vpop.f32.mrb[0].mxu0
      %2002 = vdwg.mxu0
      %v2003 = vadd.f32 %v1828, %v1957
      %v2004 = vadd.f32 %v1829, %v1960
      %v2005 = vadd.f32 %v1830, %v1965
      %v2006 = vadd.f32 %v1831, %v1968
      %v2007 = vadd.f32 %v1832, %v1973
      %v2008 = vadd.f32 %v1833, %v1976
      %v2009 = vadd.f32 %v1834, %v1981
      %v2010 = vadd.f32 %v1835, %v1984
      %v2011 = vadd.f32 %v1836, %v1989
      %v2012 = vadd.f32 %v1837, %v1992
      %v2013 = vadd.f32 %v1838, %v1997
      %v2014 = vadd.f32 %v1839, %v2000
      %v2015 = vld [vmem:[%s183 + $0x34] sm:$0x3]
      %s2016 = scalar_lea.vmem %s1, 40
      %v2017 = vld [vmem:[%s2016] sm:$0xf]
      %v2019 = vunpack.c.l.b16 %v2015
      %v2020 = vpack.c.b16 %v2019, %v2019
      %vm2021 = vsmask.f32 6400
      %v2023 = vshrl.u32 %v1705, 16
      %v2025 = vrot.slane %v2023, 1
      %v2026 = vshll.u32 %v1705, 16
      %v2028 = vrot.slane %v2026, 2
      %v2029 = vor.u32 %v2025, %v2028
      %v2031 = vshrl.u32 %v1706, 16
      %v2033 = vrot.slane %v2031, 1
      %v2034 = vshll.u32 %v1706, 16
      %v2036 = vrot.slane %v2034, 2
      %v2037 = vor.u32 %v2033, %v2036
      %v2038 = vsel %vm2021, %v2029, %v2037
      %v2040 = vshrl.u32 %v1707, 16
      %v2042 = vrot.slane %v2040, 1
      %v2043 = vshll.u32 %v1707, 16
      %v2045 = vrot.slane %v2043, 2
      %v2046 = vor.u32 %v2042, %v2045
      %v2047 = vsel %vm2021, %v2037, %v2046
      %v2049 = vshrl.u32 %v1708, 16
      %v2051 = vrot.slane %v2049, 1
      %v2052 = vshll.u32 %v1708, 16
      %v2054 = vrot.slane %v2052, 2
      %v2055 = vor.u32 %v2051, %v2054
      %v2056 = vsel %vm2021, %v2046, %v2055
      %v2058 = vshrl.u32 %v1709, 16
      %v2060 = vrot.slane %v2058, 1
      %v2061 = vshll.u32 %v1709, 16
      %v2063 = vrot.slane %v2061, 2
      %v2064 = vor.u32 %v2060, %v2063
      %v2065 = vsel %vm2021, %v2055, %v2064
      %v2067 = vshrl.u32 %v1710, 16
      %v2069 = vrot.slane %v2067, 1
      %v2070 = vshll.u32 %v1710, 16
      %v2072 = vrot.slane %v2070, 2
      %v2073 = vor.u32 %v2069, %v2072
      %v2074 = vsel %vm2021, %v2064, %v2073
      %v2076 = vshrl.u32 %v2020, 16
      %v2078 = vrot.slane %v2076, 1
      %v2079 = vshll.u32 %v2020, 16
      %v2081 = vrot.slane %v2079, 2
      %v2082 = vor.u32 %v2078, %v2081
      %v2083 = vsel %vm2021, %v2073, %v2082
      %v2085 = vsel %vm253, %v2038, 0
      %v2088 = vsel %vm253, %v2047, 0
      %v2091 = vsel %vm253, %v2056, 0
      %v2094 = vsel %vm253, %v2065, 0
      %v2097 = vsel %vm253, %v2074, 0
      %v2100 = vsel %vm253, %v2083, 0
      %v2103 = vsel %vm272, %v2017, 0
      %2105 = vmatprep.subr.bf16.mxu0 0
      %2106 = vmatpush1.bf16.msra.mxu0 %v2103
      %2107 = vmatprep.subr.bf16.mxu0 0
      %2108 = vmatpush1.bf16.msra.mxu0 0
      %2109 = vmatprep.subr.bf16.mxu0 0
      %2110 = vmatpush1.bf16.msra.mxu0 0
      %2111 = vmatprep.subr.bf16.mxu0 0
      %2112 = vmatpush1.bf16.msra.mxu0 0
      %2113 = vmatprep.subr.bf16.mxu0 0
      %2114 = vmatpush1.bf16.msra.mxu0 0
      %2115 = vmatprep.subr.bf16.mxu0 0
      %2116 = vmatpush1.bf16.msra.mxu0 0
      %2117 = vmatprep.subr.bf16.mxu0 0
      %2118 = vmatpush1.bf16.msra.mxu0 0
      %2119 = vmatprep.subr.bf16.mxu0 0
      %2120 = vmatpush1.bf16.msra.mxu0 0
      %2121 = vmatprep.subr.bf16.mxu0 0
      %2122 = vmatpush1.bf16.msra.mxu0 0
      %2123 = vmatprep.subr.bf16.mxu0 0
      %2124 = vmatpush1.bf16.msra.mxu0 0
      %2125 = vmatprep.subr.bf16.mxu0 0
      %2126 = vmatpush1.bf16.msra.mxu0 0
      %2127 = vmatprep.subr.bf16.mxu0 0
      %2128 = vmatpush1.bf16.msra.mxu0 0
      %2129 = vmatprep.subr.bf16.mxu0 0
      %2130 = vmatpush1.bf16.msra.mxu0 0
      %2131 = vmatprep.subr.bf16.mxu0 0
      %2132 = vmatpush1.bf16.msra.mxu0 0
      %2133 = vmatprep.subr.bf16.mxu0 0
      %2134 = vmatpush1.bf16.msra.mxu0 0
      %2135 = vmatprep.subr.bf16.mxu0 0
      %2136 = vmatpush1.bf16.msra.mxu0 0
      %2137 = vmatprep.mubr.bf16.mxu0 0
      %2138 = vmatmul.mubr.bf16.gmra.mrb[0].mxu0 %v2085
      %v2139 = vpop.f32.mrb[0].mxu0
      %v2140 = vadd.f32 0.0, %v2139
      %v2141 = vpop.f32.mrb[0].mxu0
      %v2142 = vpop.f32.mrb[0].mxu0
      %v2143 = vadd.f32 0.0, %v2142
      %v2144 = vpop.f32.mrb[0].mxu0
      %2145 = vmatprep.mubr.bf16.mxu0 0
      %2146 = vmatmul.mubr.bf16.gmra.mrb[0].mxu0 %v2088
      %v2147 = vpop.f32.mrb[0].mxu0
      %v2148 = vadd.f32 0.0, %v2147
      %v2149 = vpop.f32.mrb[0].mxu0
      %v2150 = vpop.f32.mrb[0].mxu0
      %v2151 = vadd.f32 0.0, %v2150
      %v2152 = vpop.f32.mrb[0].mxu0
      %2153 = vmatprep.mubr.bf16.mxu0 0
      %2154 = vmatmul.mubr.bf16.gmra.mrb[0].mxu0 %v2091
      %v2155 = vpop.f32.mrb[0].mxu0
      %v2156 = vadd.f32 0.0, %v2155
      %v2157 = vpop.f32.mrb[0].mxu0
      %v2158 = vpop.f32.mrb[0].mxu0
      %v2159 = vadd.f32 0.0, %v2158
      %v2160 = vpop.f32.mrb[0].mxu0
      %2161 = vmatprep.mubr.bf16.mxu0 0
      %2162 = vmatmul.mubr.bf16.gmra.mrb[0].mxu0 %v2094
      %v2163 = vpop.f32.mrb[0].mxu0
      %v2164 = vadd.f32 0.0, %v2163
      %v2165 = vpop.f32.mrb[0].mxu0
      %v2166 = vpop.f32.mrb[0].mxu0
      %v2167 = vadd.f32 0.0, %v2166
      %v2168 = vpop.f32.mrb[0].mxu0
      %2169 = vmatprep.mubr.bf16.mxu0 0
      %2170 = vmatmul.mubr.bf16.gmra.mrb[0].mxu0 %v2097
      %v2171 = vpop.f32.mrb[0].mxu0
      %v2172 = vadd.f32 0.0, %v2171
      %v2173 = vpop.f32.mrb[0].mxu0
      %v2174 = vpop.f32.mrb[0].mxu0
      %v2175 = vadd.f32 0.0, %v2174
      %v2176 = vpop.f32.mrb[0].mxu0
      %2177 = vmatprep.mubr.bf16.mxu0 0
      %2178 = vmatmul.mubr.bf16.gmra.mrb[0].mxu0 %v2100
      %v2179 = vpop.f32.mrb[0].mxu0
      %v2180 = vadd.f32 0.0, %v2179
      %v2181 = vpop.f32.mrb[0].mxu0
      %v2182 = vpop.f32.mrb[0].mxu0
      %v2183 = vadd.f32 0.0, %v2182
      %v2184 = vpop.f32.mrb[0].mxu0
      %2185 = vdwg.mxu0
      %v2186 = vadd.f32 %v2003, %v2140
      %v2187 = vadd.f32 %v2004, %v2143
      %v2188 = vadd.f32 %v2005, %v2148
      %v2189 = vadd.f32 %v2006, %v2151
      %v2190 = vadd.f32 %v2007, %v2156
      %v2191 = vadd.f32 %v2008, %v2159
      %v2192 = vadd.f32 %v2009, %v2164
      %v2193 = vadd.f32 %v2010, %v2167
      %v2194 = vadd.f32 %v2011, %v2172
      %v2195 = vadd.f32 %v2012, %v2175
      %v2196 = vadd.f32 %v2013, %v2180
      %v2197 = vadd.f32 %v2014, %v2183
      %v2198 = vld [vmem:[%s208 + $0x34] sm:$0x3]
      %s2199 = scalar_lea.vmem %s1, 44
      %v2200 = vld [vmem:[%s2199] sm:$0xf]
      %v2202 = vunpack.c.l.b16 %v2198
      %v2203 = vpack.c.b16 %v2202, %v2202
      %v2205 = vshrl.u32 %v1881, 16
      %v2207 = vrot.slane %v2205, 1
      %v2208 = vshll.u32 %v1881, 16
      %v2210 = vrot.slane %v2208, 2
      %v2211 = vor.u32 %v2207, %v2210
      %v2213 = vshrl.u32 %v1882, 16
      %v2215 = vrot.slane %v2213, 1
      %v2216 = vshll.u32 %v1882, 16
      %v2218 = vrot.slane %v2216, 2
      %v2219 = vor.u32 %v2215, %v2218
      %v2220 = vsel %vm2021, %v2211, %v2219
      %v2222 = vshrl.u32 %v1883, 16
      %v2224 = vrot.slane %v2222, 1
      %v2225 = vshll.u32 %v1883, 16
      %v2227 = vrot.slane %v2225, 2
      %v2228 = vor.u32 %v2224, %v2227
      %v2229 = vsel %vm2021, %v2219, %v2228
      %v2231 = vshrl.u32 %v1884, 16
      %v2233 = vrot.slane %v2231, 1
      %v2234 = vshll.u32 %v1884, 16
      %v2236 = vrot.slane %v2234, 2
      %v2237 = vor.u32 %v2233, %v2236
      %v2238 = vsel %vm2021, %v2228, %v2237
      %v2240 = vshrl.u32 %v1885, 16
      %v2242 = vrot.slane %v2240, 1
      %v2243 = vshll.u32 %v1885, 16
      %v2245 = vrot.slane %v2243, 2
      %v2246 = vor.u32 %v2242, %v2245
      %v2247 = vsel %vm2021, %v2237, %v2246
      %v2249 = vshrl.u32 %v1886, 16
      %v2251 = vrot.slane %v2249, 1
      %v2252 = vshll.u32 %v1886, 16
      %v2254 = vrot.slane %v2252, 2
      %v2255 = vor.u32 %v2251, %v2254
      %v2256 = vsel %vm2021, %v2246, %v2255
      %v2258 = vshrl.u32 %v2203, 16
      %v2260 = vrot.slane %v2258, 1
      %v2261 = vshll.u32 %v2203, 16
      %v2263 = vrot.slane %v2261, 2
      %v2264 = vor.u32 %v2260, %v2263
      %v2265 = vsel %vm2021, %v2255, %v2264
      %v2267 = vsel %vm253, %v2220, 0
      %v2270 = vsel %vm253, %v2229, 0
      %v2273 = vsel %vm253, %v2238, 0
      %v2276 = vsel %vm253, %v2247, 0
      %v2279 = vsel %vm253, %v2256, 0
      %v2282 = vsel %vm253, %v2265, 0
      %v2285 = vsel %vm272, %v2200, 0
      %2287 = vmatprep.subr.bf16.mxu0 0
      %2288 = vmatpush1.bf16.msra.mxu0 %v2285
      %2289 = vmatprep.subr.bf16.mxu0 0
      %2290 = vmatpush1.bf16.msra.mxu0 0
      %2291 = vmatprep.subr.bf16.mxu0 0
      %2292 = vmatpush1.bf16.msra.mxu0 0
      %2293 = vmatprep.subr.bf16.mxu0 0
      %2294 = vmatpush1.bf16.msra.mxu0 0
      %2295 = vmatprep.subr.bf16.mxu0 0
      %2296 = vmatpush1.bf16.msra.mxu0 0
      %2297 = vmatprep.subr.bf16.mxu0 0
      %2298 = vmatpush1.bf16.msra.mxu0 0
      %2299 = vmatprep.subr.bf16.mxu0 0
      %2300 = vmatpush1.bf16.msra.mxu0 0
      %2301 = vmatprep.subr.bf16.mxu0 0
      %2302 = vmatpush1.bf16.msra.mxu0 0
      %2303 = vmatprep.subr.bf16.mxu0 0
      %2304 = vmatpush1.bf16.msra.mxu0 0
      %2305 = vmatprep.subr.bf16.mxu0 0
      %2306 = vmatpush1.bf16.msra.mxu0 0
      %2307 = vmatprep.subr.bf16.mxu0 0
      %2308 = vmatpush1.bf16.msra.mxu0 0
      %2309 = vmatprep.subr.bf16.mxu0 0
      %2310 = vmatpush1.bf16.msra.mxu0 0
      %2311 = vmatprep.subr.bf16.mxu0 0
      %2312 = vmatpush1.bf16.msra.mxu0 0
      %2313 = vmatprep.subr.bf16.mxu0 0
      %2314 = vmatpush1.bf16.msra.mxu0 0
      %2315 = vmatprep.subr.bf16.mxu0 0
      %2316 = vmatpush1.bf16.msra.mxu0 0
      %2317 = vmatprep.subr.bf16.mxu0 0
      %2318 = vmatpush1.bf16.msra.mxu0 0
      %2319 = vmatprep.mubr.bf16.mxu0 0
      %2320 = vmatmul.mubr.bf16.gmra.mrb[0].mxu0 %v2267
      %v2321 = vpop.f32.mrb[0].mxu0
      %v2322 = vadd.f32 0.0, %v2321
      %v2323 = vpop.f32.mrb[0].mxu0
      %v2324 = vpop.f32.mrb[0].mxu0
      %v2325 = vadd.f32 0.0, %v2324
      %v2326 = vpop.f32.mrb[0].mxu0
      %2327 = vmatprep.mubr.bf16.mxu0 0
      %2328 = vmatmul.mubr.bf16.gmra.mrb[0].mxu0 %v2270
      %v2329 = vpop.f32.mrb[0].mxu0
      %v2330 = vadd.f32 0.0, %v2329
      %v2331 = vpop.f32.mrb[0].mxu0
      %v2332 = vpop.f32.mrb[0].mxu0
      %v2333 = vadd.f32 0.0, %v2332
      %v2334 = vpop.f32.mrb[0].mxu0
      %2335 = vmatprep.mubr.bf16.mxu0 0
      %2336 = vmatmul.mubr.bf16.gmra.mrb[0].mxu0 %v2273
      %v2337 = vpop.f32.mrb[0].mxu0
      %v2338 = vadd.f32 0.0, %v2337
      %v2339 = vpop.f32.mrb[0].mxu0
      %v2340 = vpop.f32.mrb[0].mxu0
      %v2341 = vadd.f32 0.0, %v2340
      %v2342 = vpop.f32.mrb[0].mxu0
      %2343 = vmatprep.mubr.bf16.mxu0 0
      %2344 = vmatmul.mubr.bf16.gmra.mrb[0].mxu0 %v2276
      %v2345 = vpop.f32.mrb[0].mxu0
      %v2346 = vadd.f32 0.0, %v2345
      %v2347 = vpop.f32.mrb[0].mxu0
      %v2348 = vpop.f32.mrb[0].mxu0
      %v2349 = vadd.f32 0.0, %v2348
      %v2350 = vpop.f32.mrb[0].mxu0
      %2351 = vmatprep.mubr.bf16.mxu0 0
      %2352 = vmatmul.mubr.bf16.gmra.mrb[0].mxu0 %v2279
      %v2353 = vpop.f32.mrb[0].mxu0
      %v2354 = vadd.f32 0.0, %v2353
      %v2355 = vpop.f32.mrb[0].mxu0
      %v2356 = vpop.f32.mrb[0].mxu0
      %v2357 = vadd.f32 0.0, %v2356
      %v2358 = vpop.f32.mrb[0].mxu0
      %2359 = vmatprep.mubr.bf16.mxu0 0
      %2360 = vmatmul.mubr.bf16.gmra.mrb[0].mxu0 %v2282
      %v2361 = vpop.f32.mrb[0].mxu0
      %v2362 = vadd.f32 0.0, %v2361
      %v2363 = vpop.f32.mrb[0].mxu0
      %v2364 = vpop.f32.mrb[0].mxu0
      %v2365 = vadd.f32 0.0, %v2364
      %v2366 = vpop.f32.mrb[0].mxu0
      %2367 = vdwg.mxu0
      %v2368 = vadd.f32 %v2186, %v2322
      %v2369 = vadd.f32 %v2187, %v2325
      %v2370 = vadd.f32 %v2188, %v2330
      %v2371 = vadd.f32 %v2189, %v2333
      %v2372 = vadd.f32 %v2190, %v2338
      %v2373 = vadd.f32 %v2191, %v2341
      %v2374 = vadd.f32 %v2192, %v2346
      %v2375 = vadd.f32 %v2193, %v2349
      %v2376 = vadd.f32 %v2194, %v2354
      %v2377 = vadd.f32 %v2195, %v2357
      %v2378 = vadd.f32 %v2196, %v2362
      %v2379 = vadd.f32 %v2197, %v2365
      %v2380 = vld [vmem:[%s918 + $0x4] sm:$0xe]
      %v2381 = vld [vmem:[%s918 + $0x8] sm:$0xf]
      %v2382 = vld [vmem:[%s918 + $0xc] sm:$0xf]
      %v2383 = vld [vmem:[%s918 + $0x10] sm:$0xf]
      %v2384 = vld [vmem:[%s918 + $0x14] sm:$0xf]
      %v2385 = vld [vmem:[%s918 + $0x18] sm:$0xf]
      %v2386 = vld [vmem:[%s918 + $0x1c] sm:$0xf]
      %v2387 = vld [vmem:[%s918 + $0x20] sm:$0xf]
      %v2388 = vld [vmem:[%s918 + $0x24] sm:$0xf]
      %v2389 = vld [vmem:[%s918 + $0x28] sm:$0xf]
      %v2390 = vld [vmem:[%s918 + $0x2c] sm:$0xf]
      %v2391 = vld [vmem:[%s918 + $0x30] sm:$0xf]
      %v2392 = vld [vmem:[%s918 + $0x34] sm:$0x1]
      %s2393 = scalar_lea.vmem %s1, 48
      %v2394 = vld [vmem:[%s2393] sm:$0xf]
      %v2408 = vunpack.c.l.b16 %v2380
      %v2409 = vunpack.c.l.b16 %v2381
      %v2410 = vunpack.c.l.b16 %v2382
      %v2411 = vunpack.c.l.b16 %v2383
      %v2412 = vunpack.c.l.b16 %v2384
      %v2413 = vunpack.c.l.b16 %v2385
      %v2414 = vunpack.c.l.b16 %v2386
      %v2415 = vunpack.c.l.b16 %v2387
      %v2416 = vunpack.c.l.b16 %v2388
      %v2417 = vunpack.c.l.b16 %v2389
      %v2418 = vunpack.c.l.b16 %v2390
      %v2419 = vunpack.c.l.b16 %v2391
      %v2420 = vunpack.c.l.b16 %v2392
      %v2421 = vpack.c.b16 %v2409, %v2408
      %v2422 = vpack.c.b16 %v2411, %v2410
      %v2423 = vpack.c.b16 %v2413, %v2412
      %v2424 = vpack.c.b16 %v2415, %v2414
      %v2425 = vpack.c.b16 %v2417, %v2416
      %v2426 = vpack.c.b16 %v2419, %v2418
      %v2427 = vpack.c.b16 %v2420, %v2420
      %v2428 = vrot.slane %v2421, 1
      %v2429 = vrot.slane %v2422, 1
      %v2430 = vsel %vm1712, %v2428, %v2429
      %v2431 = vrot.slane %v2423, 1
      %v2432 = vsel %vm1712, %v2429, %v2431
      %v2433 = vrot.slane %v2424, 1
      %v2434 = vsel %vm1712, %v2431, %v2433
      %v2435 = vrot.slane %v2425, 1
      %v2436 = vsel %vm1712, %v2433, %v2435
      %v2437 = vrot.slane %v2426, 1
      %v2438 = vsel %vm1712, %v2435, %v2437
      %v2439 = vrot.slane %v2427, 1
      %v2440 = vsel %vm1712, %v2437, %v2439
      %v2442 = vsel %vm253, %v2430, 0
      %v2445 = vsel %vm253, %v2432, 0
      %v2448 = vsel %vm253, %v2434, 0
      %v2451 = vsel %vm253, %v2436, 0
      %v2454 = vsel %vm253, %v2438, 0
      %v2457 = vsel %vm253, %v2440, 0
      %v2460 = vsel %vm272, %v2394, 0
      %2462 = vmatprep.subr.bf16.mxu0 0
      %2463 = vmatpush1.bf16.msra.mxu0 %v2460
      %2464 = vmatprep.subr.bf16.mxu0 0
      %2465 = vmatpush1.bf16.msra.mxu0 0
      %2466 = vmatprep.subr.bf16.mxu0 0
      %2467 = vmatpush1.bf16.msra.mxu0 0
      %2468 = vmatprep.subr.bf16.mxu0 0
      %2469 = vmatpush1.bf16.msra.mxu0 0
      %2470 = vmatprep.subr.bf16.mxu0 0
      %2471 = vmatpush1.bf16.msra.mxu0 0
      %2472 = vmatprep.subr.bf16.mxu0 0
      %2473 = vmatpush1.bf16.msra.mxu0 0
      %2474 = vmatprep.subr.bf16.mxu0 0
      %2475 = vmatpush1.bf16.msra.mxu0 0
      %2476 = vmatprep.subr.bf16.mxu0 0
      %2477 = vmatpush1.bf16.msra.mxu0 0
      %2478 = vmatprep.subr.bf16.mxu0 0
      %2479 = vmatpush1.bf16.msra.mxu0 0
      %2480 = vmatprep.subr.bf16.mxu0 0
      %2481 = vmatpush1.bf16.msra.mxu0 0
      %2482 = vmatprep.subr.bf16.mxu0 0
      %2483 = vmatpush1.bf16.msra.mxu0 0
      %2484 = vmatprep.subr.bf16.mxu0 0
      %2485 = vmatpush1.bf16.msra.mxu0 0
      %2486 = vmatprep.subr.bf16.mxu0 0
      %2487 = vmatpush1.bf16.msra.mxu0 0
      %2488 = vmatprep.subr.bf16.mxu0 0
      %2489 = vmatpush1.bf16.msra.mxu0 0
      %2490 = vmatprep.subr.bf16.mxu0 0
      %2491 = vmatpush1.bf16.msra.mxu0 0
      %2492 = vmatprep.subr.bf16.mxu0 0
      %2493 = vmatpush1.bf16.msra.mxu0 0
      %2494 = vmatprep.mubr.bf16.mxu0 0
      %2495 = vmatmul.mubr.bf16.gmra.mrb[0].mxu0 %v2442
      %v2496 = vpop.f32.mrb[0].mxu0
      %v2497 = vadd.f32 0.0, %v2496
      %v2498 = vpop.f32.mrb[0].mxu0
      %v2499 = vpop.f32.mrb[0].mxu0
      %v2500 = vadd.f32 0.0, %v2499
      %v2501 = vpop.f32.mrb[0].mxu0
      %2502 = vmatprep.mubr.bf16.mxu0 0
      %2503 = vmatmul.mubr.bf16.gmra.mrb[0].mxu0 %v2445
      %v2504 = vpop.f32.mrb[0].mxu0
      %v2505 = vadd.f32 0.0, %v2504
      %v2506 = vpop.f32.mrb[0].mxu0
      %v2507 = vpop.f32.mrb[0].mxu0
      %v2508 = vadd.f32 0.0, %v2507
      %v2509 = vpop.f32.mrb[0].mxu0
      %2510 = vmatprep.mubr.bf16.mxu0 0
      %2511 = vmatmul.mubr.bf16.gmra.mrb[0].mxu0 %v2448
      %v2512 = vpop.f32.mrb[0].mxu0
      %v2513 = vadd.f32 0.0, %v2512
      %v2514 = vpop.f32.mrb[0].mxu0
      %v2515 = vpop.f32.mrb[0].mxu0
      %v2516 = vadd.f32 0.0, %v2515
      %v2517 = vpop.f32.mrb[0].mxu0
      %2518 = vmatprep.mubr.bf16.mxu0 0
      %2519 = vmatmul.mubr.bf16.gmra.mrb[0].mxu0 %v2451
      %v2520 = vpop.f32.mrb[0].mxu0
      %v2521 = vadd.f32 0.0, %v2520
      %v2522 = vpop.f32.mrb[0].mxu0
      %v2523 = vpop.f32.mrb[0].mxu0
      %v2524 = vadd.f32 0.0, %v2523
      %v2525 = vpop.f32.mrb[0].mxu0
      %2526 = vmatprep.mubr.bf16.mxu0 0
      %2527 = vmatmul.mubr.bf16.gmra.mrb[0].mxu0 %v2454
      %v2528 = vpop.f32.mrb[0].mxu0
      %v2529 = vadd.f32 0.0, %v2528
      %v2530 = vpop.f32.mrb[0].mxu0
      %v2531 = vpop.f32.mrb[0].mxu0
      %v2532 = vadd.f32 0.0, %v2531
      %v2533 = vpop.f32.mrb[0].mxu0
      %2534 = vmatprep.mubr.bf16.mxu0 0
      %2535 = vmatmul.mubr.bf16.gmra.mrb[0].mxu0 %v2457
      %v2536 = vpop.f32.mrb[0].mxu0
      %v2537 = vadd.f32 0.0, %v2536
      %v2538 = vpop.f32.mrb[0].mxu0
      %v2539 = vpop.f32.mrb[0].mxu0
      %v2540 = vadd.f32 0.0, %v2539
      %v2541 = vpop.f32.mrb[0].mxu0
      %2542 = vdwg.mxu0
      %v2543 = vadd.f32 %v2368, %v2497
      %v2544 = vadd.f32 %v2369, %v2500
      %v2545 = vadd.f32 %v2370, %v2505
      %v2546 = vadd.f32 %v2371, %v2508
      %v2547 = vadd.f32 %v2372, %v2513
      %v2548 = vadd.f32 %v2373, %v2516
      %v2549 = vadd.f32 %v2374, %v2521
      %v2550 = vadd.f32 %v2375, %v2524
      %v2551 = vadd.f32 %v2376, %v2529
      %v2552 = vadd.f32 %v2377, %v2532
      %v2553 = vadd.f32 %v2378, %v2537
      %v2554 = vadd.f32 %v2379, %v2540
      %v2555 = vld [vmem:[%s1077 + $0x4] sm:$0xe]
      %v2556 = vld [vmem:[%s1077 + $0x8] sm:$0xf]
      %v2557 = vld [vmem:[%s1077 + $0xc] sm:$0xf]
      %v2558 = vld [vmem:[%s1077 + $0x10] sm:$0xf]
      %v2559 = vld [vmem:[%s1077 + $0x14] sm:$0xf]
      %v2560 = vld [vmem:[%s1077 + $0x18] sm:$0xf]
      %v2561 = vld [vmem:[%s1077 + $0x1c] sm:$0xf]
      %v2562 = vld [vmem:[%s1077 + $0x20] sm:$0xf]
      %v2563 = vld [vmem:[%s1077 + $0x24] sm:$0xf]
      %v2564 = vld [vmem:[%s1077 + $0x28] sm:$0xf]
      %v2565 = vld [vmem:[%s1077 + $0x2c] sm:$0xf]
      %v2566 = vld [vmem:[%s1077 + $0x30] sm:$0xf]
      %v2567 = vld [vmem:[%s1077 + $0x34] sm:$0x1]
      %s2568 = scalar_lea.vmem %s1, 52
      %v2569 = vld [vmem:[%s2568] sm:$0xf]
      %v2583 = vunpack.c.l.b16 %v2555
      %v2584 = vunpack.c.l.b16 %v2556
      %v2585 = vunpack.c.l.b16 %v2557
      %v2586 = vunpack.c.l.b16 %v2558
      %v2587 = vunpack.c.l.b16 %v2559
      %v2588 = vunpack.c.l.b16 %v2560
      %v2589 = vunpack.c.l.b16 %v2561
      %v2590 = vunpack.c.l.b16 %v2562
      %v2591 = vunpack.c.l.b16 %v2563
      %v2592 = vunpack.c.l.b16 %v2564
      %v2593 = vunpack.c.l.b16 %v2565
      %v2594 = vunpack.c.l.b16 %v2566
      %v2595 = vunpack.c.l.b16 %v2567
      %v2596 = vpack.c.b16 %v2584, %v2583
      %v2597 = vpack.c.b16 %v2586, %v2585
      %v2598 = vpack.c.b16 %v2588, %v2587
      %v2599 = vpack.c.b16 %v2590, %v2589
      %v2600 = vpack.c.b16 %v2592, %v2591
      %v2601 = vpack.c.b16 %v2594, %v2593
      %v2602 = vpack.c.b16 %v2595, %v2595
      %v2603 = vrot.slane %v2596, 1
      %v2604 = vrot.slane %v2597, 1
      %v2605 = vsel %vm1712, %v2603, %v2604
      %v2606 = vrot.slane %v2598, 1
      %v2607 = vsel %vm1712, %v2604, %v2606
      %v2608 = vrot.slane %v2599, 1
      %v2609 = vsel %vm1712, %v2606, %v2608
      %v2610 = vrot.slane %v2600, 1
      %v2611 = vsel %vm1712, %v2608, %v2610
      %v2612 = vrot.slane %v2601, 1
      %v2613 = vsel %vm1712, %v2610, %v2612
      %v2614 = vrot.slane %v2602, 1
      %v2615 = vsel %vm1712, %v2612, %v2614
      %v2617 = vsel %vm253, %v2605, 0
      %v2620 = vsel %vm253, %v2607, 0
      %v2623 = vsel %vm253, %v2609, 0
      %v2626 = vsel %vm253, %v2611, 0
      %v2629 = vsel %vm253, %v2613, 0
      %v2632 = vsel %vm253, %v2615, 0
      %v2635 = vsel %vm272, %v2569, 0
      %2637 = vmatprep.subr.bf16.mxu0 0
      %2638 = vmatpush1.bf16.msra.mxu0 %v2635
      %2639 = vmatprep.subr.bf16.mxu0 0
      %2640 = vmatpush1.bf16.msra.mxu0 0
      %2641 = vmatprep.subr.bf16.mxu0 0
      %2642 = vmatpush1.bf16.msra.mxu0 0
      %2643 = vmatprep.subr.bf16.mxu0 0
      %2644 = vmatpush1.bf16.msra.mxu0 0
      %2645 = vmatprep.subr.bf16.mxu0 0
      %2646 = vmatpush1.bf16.msra.mxu0 0
      %2647 = vmatprep.subr.bf16.mxu0 0
      %2648 = vmatpush1.bf16.msra.mxu0 0
      %2649 = vmatprep.subr.bf16.mxu0 0
      %2650 = vmatpush1.bf16.msra.mxu0 0
      %2651 = vmatprep.subr.bf16.mxu0 0
      %2652 = vmatpush1.bf16.msra.mxu0 0
      %2653 = vmatprep.subr.bf16.mxu0 0
      %2654 = vmatpush1.bf16.msra.mxu0 0
      %2655 = vmatprep.subr.bf16.mxu0 0
      %2656 = vmatpush1.bf16.msra.mxu0 0
      %2657 = vmatprep.subr.bf16.mxu0 0
      %2658 = vmatpush1.bf16.msra.mxu0 0
      %2659 = vmatprep.subr.bf16.mxu0 0
      %2660 = vmatpush1.bf16.msra.mxu0 0
      %2661 = vmatprep.subr.bf16.mxu0 0
      %2662 = vmatpush1.bf16.msra.mxu0 0
      %2663 = vmatprep.subr.bf16.mxu0 0
      %2664 = vmatpush1.bf16.msra.mxu0 0
      %2665 = vmatprep.subr.bf16.mxu0 0
      %2666 = vmatpush1.bf16.msra.mxu0 0
      %2667 = vmatprep.subr.bf16.mxu0 0
      %2668 = vmatpush1.bf16.msra.mxu0 0
      %2669 = vmatprep.mubr.bf16.mxu0 0
      %2670 = vmatmul.mubr.bf16.gmra.mrb[0].mxu0 %v2617
      %v2671 = vpop.f32.mrb[0].mxu0
      %v2672 = vadd.f32 0.0, %v2671
      %v2673 = vpop.f32.mrb[0].mxu0
      %v2674 = vpop.f32.mrb[0].mxu0
      %v2675 = vadd.f32 0.0, %v2674
      %v2676 = vpop.f32.mrb[0].mxu0
      %2677 = vmatprep.mubr.bf16.mxu0 0
      %2678 = vmatmul.mubr.bf16.gmra.mrb[0].mxu0 %v2620
      %v2679 = vpop.f32.mrb[0].mxu0
      %v2680 = vadd.f32 0.0, %v2679
      %v2681 = vpop.f32.mrb[0].mxu0
      %v2682 = vpop.f32.mrb[0].mxu0
      %v2683 = vadd.f32 0.0, %v2682
      %v2684 = vpop.f32.mrb[0].mxu0
      %2685 = vmatprep.mubr.bf16.mxu0 0
      %2686 = vmatmul.mubr.bf16.gmra.mrb[0].mxu0 %v2623
      %v2687 = vpop.f32.mrb[0].mxu0
      %v2688 = vadd.f32 0.0, %v2687
      %v2689 = vpop.f32.mrb[0].mxu0
      %v2690 = vpop.f32.mrb[0].mxu0
      %v2691 = vadd.f32 0.0, %v2690
      %v2692 = vpop.f32.mrb[0].mxu0
      %2693 = vmatprep.mubr.bf16.mxu0 0
      %2694 = vmatmul.mubr.bf16.gmra.mrb[0].mxu0 %v2626
      %v2695 = vpop.f32.mrb[0].mxu0
      %v2696 = vadd.f32 0.0, %v2695
      %v2697 = vpop.f32.mrb[0].mxu0
      %v2698 = vpop.f32.mrb[0].mxu0
      %v2699 = vadd.f32 0.0, %v2698
      %v2700 = vpop.f32.mrb[0].mxu0
      %2701 = vmatprep.mubr.bf16.mxu0 0
      %2702 = vmatmul.mubr.bf16.gmra.mrb[0].mxu0 %v2629
      %v2703 = vpop.f32.mrb[0].mxu0
      %v2704 = vadd.f32 0.0, %v2703
      %v2705 = vpop.f32.mrb[0].mxu0
      %v2706 = vpop.f32.mrb[0].mxu0
      %v2707 = vadd.f32 0.0, %v2706
      %v2708 = vpop.f32.mrb[0].mxu0
      %2709 = vmatprep.mubr.bf16.mxu0 0
      %2710 = vmatmul.mubr.bf16.gmra.mrb[0].mxu0 %v2632
      %v2711 = vpop.f32.mrb[0].mxu0
      %v2712 = vadd.f32 0.0, %v2711
      %v2713 = vpop.f32.mrb[0].mxu0
      %v2714 = vpop.f32.mrb[0].mxu0
      %v2715 = vadd.f32 0.0, %v2714
      %v2716 = vpop.f32.mrb[0].mxu0
      %2717 = vdwg.mxu0
      %v2718 = vadd.f32 %v2543, %v2672
      %v2719 = vadd.f32 %v2544, %v2675
      %v2720 = vadd.f32 %v2545, %v2680
      %v2721 = vadd.f32 %v2546, %v2683
      %v2722 = vadd.f32 %v2547, %v2688
      %v2723 = vadd.f32 %v2548, %v2691
      %v2724 = vadd.f32 %v2549, %v2696
      %v2725 = vadd.f32 %v2550, %v2699
      %v2726 = vadd.f32 %v2551, %v2704
      %v2727 = vadd.f32 %v2552, %v2707
      %v2728 = vadd.f32 %v2553, %v2712
      %v2729 = vadd.f32 %v2554, %v2715
      %v2730 = vld [vmem:[%s918 + $0x34] sm:$0x3]
      %s2731 = scalar_lea.vmem %s1, 56
      %v2732 = vld [vmem:[%s2731] sm:$0xf]
      %v2734 = vunpack.c.l.b16 %v2730
      %v2735 = vpack.c.b16 %v2734, %v2734
      %v2737 = vshrl.u32 %v2421, 16
      %v2739 = vrot.slane %v2737, 1
      %v2740 = vshll.u32 %v2421, 16
      %v2742 = vrot.slane %v2740, 2
      %v2743 = vor.u32 %v2739, %v2742
      %v2745 = vshrl.u32 %v2422, 16
      %v2747 = vrot.slane %v2745, 1
      %v2748 = vshll.u32 %v2422, 16
      %v2750 = vrot.slane %v2748, 2
      %v2751 = vor.u32 %v2747, %v2750
      %v2752 = vsel %vm2021, %v2743, %v2751
      %v2754 = vshrl.u32 %v2423, 16
      %v2756 = vrot.slane %v2754, 1
      %v2757 = vshll.u32 %v2423, 16
      %v2759 = vrot.slane %v2757, 2
      %v2760 = vor.u32 %v2756, %v2759
      %v2761 = vsel %vm2021, %v2751, %v2760
      %v2763 = vshrl.u32 %v2424, 16
      %v2765 = vrot.slane %v2763, 1
      %v2766 = vshll.u32 %v2424, 16
      %v2768 = vrot.slane %v2766, 2
      %v2769 = vor.u32 %v2765, %v2768
      %v2770 = vsel %vm2021, %v2760, %v2769
      %v2772 = vshrl.u32 %v2425, 16
      %v2774 = vrot.slane %v2772, 1
      %v2775 = vshll.u32 %v2425, 16
      %v2777 = vrot.slane %v2775, 2
      %v2778 = vor.u32 %v2774, %v2777
      %v2779 = vsel %vm2021, %v2769, %v2778
      %v2781 = vshrl.u32 %v2426, 16
      %v2783 = vrot.slane %v2781, 1
      %v2784 = vshll.u32 %v2426, 16
      %v2786 = vrot.slane %v2784, 2
      %v2787 = vor.u32 %v2783, %v2786
      %v2788 = vsel %vm2021, %v2778, %v2787
      %v2790 = vshrl.u32 %v2735, 16
      %v2792 = vrot.slane %v2790, 1
      %v2793 = vshll.u32 %v2735, 16
      %v2795 = vrot.slane %v2793, 2
      %v2796 = vor.u32 %v2792, %v2795
      %v2797 = vsel %vm2021, %v2787, %v2796
      %v2799 = vsel %vm253, %v2752, 0
      %v2802 = vsel %vm253, %v2761, 0
      %v2805 = vsel %vm253, %v2770, 0
      %v2808 = vsel %vm253, %v2779, 0
      %v2811 = vsel %vm253, %v2788, 0
      %v2814 = vsel %vm253, %v2797, 0
      %v2817 = vsel %vm272, %v2732, 0
      %2819 = vmatprep.subr.bf16.mxu0 0
      %2820 = vmatpush1.bf16.msra.mxu0 %v2817
      %2821 = vmatprep.subr.bf16.mxu0 0
      %2822 = vmatpush1.bf16.msra.mxu0 0
      %2823 = vmatprep.subr.bf16.mxu0 0
      %2824 = vmatpush1.bf16.msra.mxu0 0
      %2825 = vmatprep.subr.bf16.mxu0 0
      %2826 = vmatpush1.bf16.msra.mxu0 0
      %2827 = vmatprep.subr.bf16.mxu0 0
      %2828 = vmatpush1.bf16.msra.mxu0 0
      %2829 = vmatprep.subr.bf16.mxu0 0
      %2830 = vmatpush1.bf16.msra.mxu0 0
      %2831 = vmatprep.subr.bf16.mxu0 0
      %2832 = vmatpush1.bf16.msra.mxu0 0
      %2833 = vmatprep.subr.bf16.mxu0 0
      %2834 = vmatpush1.bf16.msra.mxu0 0
      %2835 = vmatprep.subr.bf16.mxu0 0
      %2836 = vmatpush1.bf16.msra.mxu0 0
      %2837 = vmatprep.subr.bf16.mxu0 0
      %2838 = vmatpush1.bf16.msra.mxu0 0
      %2839 = vmatprep.subr.bf16.mxu0 0
      %2840 = vmatpush1.bf16.msra.mxu0 0
      %2841 = vmatprep.subr.bf16.mxu0 0
      %2842 = vmatpush1.bf16.msra.mxu0 0
      %2843 = vmatprep.subr.bf16.mxu0 0
      %2844 = vmatpush1.bf16.msra.mxu0 0
      %2845 = vmatprep.subr.bf16.mxu0 0
      %2846 = vmatpush1.bf16.msra.mxu0 0
      %2847 = vmatprep.subr.bf16.mxu0 0
      %2848 = vmatpush1.bf16.msra.mxu0 0
      %2849 = vmatprep.subr.bf16.mxu0 0
      %2850 = vmatpush1.bf16.msra.mxu0 0
      %2851 = vmatprep.mubr.bf16.mxu0 0
      %2852 = vmatmul.mubr.bf16.gmra.mrb[0].mxu0 %v2799
      %v2853 = vpop.f32.mrb[0].mxu0
      %v2854 = vadd.f32 0.0, %v2853
      %v2855 = vpop.f32.mrb[0].mxu0
      %v2856 = vpop.f32.mrb[0].mxu0
      %v2857 = vadd.f32 0.0, %v2856
      %v2858 = vpop.f32.mrb[0].mxu0
      %2859 = vmatprep.mubr.bf16.mxu0 0
      %2860 = vmatmul.mubr.bf16.gmra.mrb[0].mxu0 %v2802
      %v2861 = vpop.f32.mrb[0].mxu0
      %v2862 = vadd.f32 0.0, %v2861
      %v2863 = vpop.f32.mrb[0].mxu0
      %v2864 = vpop.f32.mrb[0].mxu0
      %v2865 = vadd.f32 0.0, %v2864
      %v2866 = vpop.f32.mrb[0].mxu0
      %2867 = vmatprep.mubr.bf16.mxu0 0
      %2868 = vmatmul.mubr.bf16.gmra.mrb[0].mxu0 %v2805
      %v2869 = vpop.f32.mrb[0].mxu0
      %v2870 = vadd.f32 0.0, %v2869
      %v2871 = vpop.f32.mrb[0].mxu0
      %v2872 = vpop.f32.mrb[0].mxu0
      %v2873 = vadd.f32 0.0, %v2872
      %v2874 = vpop.f32.mrb[0].mxu0
      %2875 = vmatprep.mubr.bf16.mxu0 0
      %2876 = vmatmul.mubr.bf16.gmra.mrb[0].mxu0 %v2808
      %v2877 = vpop.f32.mrb[0].mxu0
      %v2878 = vadd.f32 0.0, %v2877
      %v2879 = vpop.f32.mrb[0].mxu0
      %v2880 = vpop.f32.mrb[0].mxu0
      %v2881 = vadd.f32 0.0, %v2880
      %v2882 = vpop.f32.mrb[0].mxu0
      %2883 = vmatprep.mubr.bf16.mxu0 0
      %2884 = vmatmul.mubr.bf16.gmra.mrb[0].mxu0 %v2811
      %v2885 = vpop.f32.mrb[0].mxu0
      %v2886 = vadd.f32 0.0, %v2885
      %v2887 = vpop.f32.mrb[0].mxu0
      %v2888 = vpop.f32.mrb[0].mxu0
      %v2889 = vadd.f32 0.0, %v2888
      %v2890 = vpop.f32.mrb[0].mxu0
      %2891 = vmatprep.mubr.bf16.mxu0 0
      %2892 = vmatmul.mubr.bf16.gmra.mrb[0].mxu0 %v2814
      %v2893 = vpop.f32.mrb[0].mxu0
      %v2894 = vadd.f32 0.0, %v2893
      %v2895 = vpop.f32.mrb[0].mxu0
      %v2896 = vpop.f32.mrb[0].mxu0
      %v2897 = vadd.f32 0.0, %v2896
      %v2898 = vpop.f32.mrb[0].mxu0
      %2899 = vdwg.mxu0
      %v2900 = vadd.f32 %v2718, %v2854
      %v2901 = vadd.f32 %v2719, %v2857
      %v2902 = vadd.f32 %v2720, %v2862
      %v2903 = vadd.f32 %v2721, %v2865
      %v2904 = vadd.f32 %v2722, %v2870
      %v2905 = vadd.f32 %v2723, %v2873
      %v2906 = vadd.f32 %v2724, %v2878
      %v2907 = vadd.f32 %v2725, %v2881
      %v2908 = vadd.f32 %v2726, %v2886
      %v2909 = vadd.f32 %v2727, %v2889
      %v2910 = vadd.f32 %v2728, %v2894
      %v2911 = vadd.f32 %v2729, %v2897
      %v2912 = vld [vmem:[%s1077 + $0x34] sm:$0x3]
      %s2913 = scalar_lea.vmem %s1, 60
      %v2914 = vld [vmem:[%s2913] sm:$0xf]
      %v2916 = vunpack.c.l.b16 %v2912
      %v2917 = vpack.c.b16 %v2916, %v2916
      %v2919 = vshrl.u32 %v2596, 16
      %v2921 = vrot.slane %v2919, 1
      %v2922 = vshll.u32 %v2596, 16
      %v2924 = vrot.slane %v2922, 2
      %v2925 = vor.u32 %v2921, %v2924
      %v2927 = vshrl.u32 %v2597, 16
      %v2929 = vrot.slane %v2927, 1
      %v2930 = vshll.u32 %v2597, 16
      %v2932 = vrot.slane %v2930, 2
      %v2933 = vor.u32 %v2929, %v2932
      %v2934 = vsel %vm2021, %v2925, %v2933
      %v2936 = vshrl.u32 %v2598, 16
      %v2938 = vrot.slane %v2936, 1
      %v2939 = vshll.u32 %v2598, 16
      %v2941 = vrot.slane %v2939, 2
      %v2942 = vor.u32 %v2938, %v2941
      %v2943 = vsel %vm2021, %v2933, %v2942
      %v2945 = vshrl.u32 %v2599, 16
      %v2947 = vrot.slane %v2945, 1
      %v2948 = vshll.u32 %v2599, 16
      %v2950 = vrot.slane %v2948, 2
      %v2951 = vor.u32 %v2947, %v2950
      %v2952 = vsel %vm2021, %v2942, %v2951
      %v2954 = vshrl.u32 %v2600, 16
      %v2956 = vrot.slane %v2954, 1
      %v2957 = vshll.u32 %v2600, 16
      %v2959 = vrot.slane %v2957, 2
      %v2960 = vor.u32 %v2956, %v2959
      %v2961 = vsel %vm2021, %v2951, %v2960
      %v2963 = vshrl.u32 %v2601, 16
      %v2965 = vrot.slane %v2963, 1
      %v2966 = vshll.u32 %v2601, 16
      %v2968 = vrot.slane %v2966, 2
      %v2969 = vor.u32 %v2965, %v2968
      %v2970 = vsel %vm2021, %v2960, %v2969
      %v2972 = vshrl.u32 %v2917, 16
      %v2974 = vrot.slane %v2972, 1
      %v2975 = vshll.u32 %v2917, 16
      %v2977 = vrot.slane %v2975, 2
      %v2978 = vor.u32 %v2974, %v2977
      %v2979 = vsel %vm2021, %v2969, %v2978
      %v2981 = vsel %vm253, %v2934, 0
      %v2984 = vsel %vm253, %v2943, 0
      %v2987 = vsel %vm253, %v2952, 0
      %v2990 = vsel %vm253, %v2961, 0
      %v2993 = vsel %vm253, %v2970, 0
      %v2996 = vsel %vm253, %v2979, 0
      %v2999 = vsel %vm272, %v2914, 0
      %3001 = vmatprep.subr.bf16.mxu0 0
      %3002 = vmatpush1.bf16.msra.mxu0 %v2999
      %3003 = vmatprep.subr.bf16.mxu0 0
      %3004 = vmatpush1.bf16.msra.mxu0 0
      %3005 = vmatprep.subr.bf16.mxu0 0
      %3006 = vmatpush1.bf16.msra.mxu0 0
      %3007 = vmatprep.subr.bf16.mxu0 0
      %3008 = vmatpush1.bf16.msra.mxu0 0
      %3009 = vmatprep.subr.bf16.mxu0 0
      %3010 = vmatpush1.bf16.msra.mxu0 0
      %3011 = vmatprep.subr.bf16.mxu0 0
      %3012 = vmatpush1.bf16.msra.mxu0 0
      %3013 = vmatprep.subr.bf16.mxu0 0
      %3014 = vmatpush1.bf16.msra.mxu0 0
      %3015 = vmatprep.subr.bf16.mxu0 0
      %3016 = vmatpush1.bf16.msra.mxu0 0
      %3017 = vmatprep.subr.bf16.mxu0 0
      %3018 = vmatpush1.bf16.msra.mxu0 0
      %3019 = vmatprep.subr.bf16.mxu0 0
      %3020 = vmatpush1.bf16.msra.mxu0 0
      %3021 = vmatprep.subr.bf16.mxu0 0
      %3022 = vmatpush1.bf16.msra.mxu0 0
      %3023 = vmatprep.subr.bf16.mxu0 0
      %3024 = vmatpush1.bf16.msra.mxu0 0
      %3025 = vmatprep.subr.bf16.mxu0 0
      %3026 = vmatpush1.bf16.msra.mxu0 0
      %3027 = vmatprep.subr.bf16.mxu0 0
      %3028 = vmatpush1.bf16.msra.mxu0 0
      %3029 = vmatprep.subr.bf16.mxu0 0
      %3030 = vmatpush1.bf16.msra.mxu0 0
      %3031 = vmatprep.subr.bf16.mxu0 0
      %3032 = vmatpush1.bf16.msra.mxu0 0
      %3033 = vmatprep.mubr.bf16.mxu0 0
      %3034 = vmatmul.mubr.bf16.gmra.mrb[0].mxu0 %v2981
      %v3035 = vpop.f32.mrb[0].mxu0
      %v3036 = vadd.f32 0.0, %v3035
      %v3037 = vpop.f32.mrb[0].mxu0
      %v3038 = vpop.f32.mrb[0].mxu0
      %v3039 = vadd.f32 0.0, %v3038
      %v3040 = vpop.f32.mrb[0].mxu0
      %3041 = vmatprep.mubr.bf16.mxu0 0
      %3042 = vmatmul.mubr.bf16.gmra.mrb[0].mxu0 %v2984
      %v3043 = vpop.f32.mrb[0].mxu0
      %v3044 = vadd.f32 0.0, %v3043
      %v3045 = vpop.f32.mrb[0].mxu0
      %v3046 = vpop.f32.mrb[0].mxu0
      %v3047 = vadd.f32 0.0, %v3046
      %v3048 = vpop.f32.mrb[0].mxu0
      %3049 = vmatprep.mubr.bf16.mxu0 0
      %3050 = vmatmul.mubr.bf16.gmra.mrb[0].mxu0 %v2987
      %v3051 = vpop.f32.mrb[0].mxu0
      %v3052 = vadd.f32 0.0, %v3051
      %v3053 = vpop.f32.mrb[0].mxu0
      %v3054 = vpop.f32.mrb[0].mxu0
      %v3055 = vadd.f32 0.0, %v3054
      %v3056 = vpop.f32.mrb[0].mxu0
      %3057 = vmatprep.mubr.bf16.mxu0 0
      %3058 = vmatmul.mubr.bf16.gmra.mrb[0].mxu0 %v2990
      %v3059 = vpop.f32.mrb[0].mxu0
      %v3060 = vadd.f32 0.0, %v3059
      %v3061 = vpop.f32.mrb[0].mxu0
      %v3062 = vpop.f32.mrb[0].mxu0
      %v3063 = vadd.f32 0.0, %v3062
      %v3064 = vpop.f32.mrb[0].mxu0
      %3065 = vmatprep.mubr.bf16.mxu0 0
      %3066 = vmatmul.mubr.bf16.gmra.mrb[0].mxu0 %v2993
      %v3067 = vpop.f32.mrb[0].mxu0
      %v3068 = vadd.f32 0.0, %v3067
      %v3069 = vpop.f32.mrb[0].mxu0
      %v3070 = vpop.f32.mrb[0].mxu0
      %v3071 = vadd.f32 0.0, %v3070
      %v3072 = vpop.f32.mrb[0].mxu0
      %3073 = vmatprep.mubr.bf16.mxu0 0
      %3074 = vmatmul.mubr.bf16.gmra.mrb[0].mxu0 %v2996
      %v3075 = vpop.f32.mrb[0].mxu0
      %v3076 = vadd.f32 0.0, %v3075
      %v3077 = vpop.f32.mrb[0].mxu0
      %v3078 = vpop.f32.mrb[0].mxu0
      %v3079 = vadd.f32 0.0, %v3078
      %v3080 = vpop.f32.mrb[0].mxu0
      %3081 = vdwg.mxu0
      %v3082 = vadd.f32 %v2900, %v3036
      %v3083 = vadd.f32 %v2901, %v3039
      %v3084 = vadd.f32 %v2902, %v3044
      %v3085 = vadd.f32 %v2903, %v3047
      %v3086 = vadd.f32 %v2904, %v3052
      %v3087 = vadd.f32 %v2905, %v3055
      %v3088 = vadd.f32 %v2906, %v3060
      %v3089 = vadd.f32 %v2907, %v3063
      %v3090 = vadd.f32 %v2908, %v3068
      %v3091 = vadd.f32 %v2909, %v3071
      %v3092 = vadd.f32 %v2910, %v3076
      %v3093 = vadd.f32 %v2911, %v3079
      %v3094 = vld [vmem:[%s2] sm:$0x1]
      %v3096 = vlaneseq
      %v3097 = vshrl.u32 %v3096, 7
      %v3098 = vsub.s32 0, %v3097
      %v3099 = vrot.slane %v3094, %v3098
      %v3101 = vadd.f32 %v3082, %v3099
      %v3102 = vadd.f32 %v3083, %v3099
      %v3103 = vadd.f32 %v3084, %v3099
      %v3104 = vadd.f32 %v3085, %v3099
      %v3105 = vadd.f32 %v3086, %v3099
      %v3106 = vadd.f32 %v3087, %v3099
      %v3107 = vadd.f32 %v3088, %v3099
      %v3108 = vadd.f32 %v3089, %v3099
      %v3109 = vadd.f32 %v3090, %v3099
      %v3110 = vadd.f32 %v3091, %v3099
      %v3111 = vadd.f32 %v3092, %v3099
      %v3112 = vadd.f32 %v3093, %v3099
      %vm3113 = vcmp.ge.f32.partialorder %v3101, 0.0
      %vm3114 = vcmp.ge.f32.partialorder %v3102, 0.0
      %vm3115 = vcmp.ge.f32.partialorder %v3103, 0.0
      %vm3116 = vcmp.ge.f32.partialorder %v3104, 0.0
      %vm3117 = vcmp.ge.f32.partialorder %v3105, 0.0
      %vm3118 = vcmp.ge.f32.partialorder %v3106, 0.0
      %vm3119 = vcmp.ge.f32.partialorder %v3107, 0.0
      %vm3120 = vcmp.ge.f32.partialorder %v3108, 0.0
      %vm3121 = vcmp.ge.f32.partialorder %v3109, 0.0
      %vm3122 = vcmp.ge.f32.partialorder %v3110, 0.0
      %vm3123 = vcmp.ge.f32.partialorder %v3111, 0.0
      %vm3124 = vcmp.ge.f32.partialorder %v3112, 0.0
      %v3125 = vmul.f32 %v3101, 0.2
      %v3126 = vmul.f32 %v3102, 0.2
      %v3127 = vmul.f32 %v3103, 0.2
      %v3128 = vmul.f32 %v3104, 0.2
      %v3129 = vmul.f32 %v3105, 0.2
      %v3130 = vmul.f32 %v3106, 0.2
      %v3131 = vmul.f32 %v3107, 0.2
      %v3132 = vmul.f32 %v3108, 0.2
      %v3133 = vmul.f32 %v3109, 0.2
      %v3134 = vmul.f32 %v3110, 0.2
      %v3135 = vmul.f32 %v3111, 0.2
      %v3136 = vmul.f32 %v3112, 0.2
      %v3137 = vsel %vm3113, %v3101, %v3125
      %v3138 = vsel %vm3114, %v3102, %v3126
      %v3139 = vsel %vm3115, %v3103, %v3127
      %v3140 = vsel %vm3116, %v3104, %v3128
      %v3141 = vsel %vm3117, %v3105, %v3129
      %v3142 = vsel %vm3118, %v3106, %v3130
      %v3143 = vsel %vm3119, %v3107, %v3131
      %v3144 = vsel %vm3120, %v3108, %v3132
      %v3145 = vsel %vm3121, %v3109, %v3133
      %v3146 = vsel %vm3122, %v3110, %v3134
      %v3147 = vsel %vm3123, %v3111, %v3135
      %v3148 = vsel %vm3124, %v3112, %v3136
      %v3149 = vpack.c.bf16 %v3138, %v3137
      %v3150 = vpack.c.bf16 %v3140, %v3139
      %v3151 = vpack.c.bf16 %v3142, %v3141
      %v3152 = vpack.c.bf16 %v3144, %v3143
      %v3153 = vpack.c.bf16 %v3146, %v3145
      %v3154 = vpack.c.bf16 %v3148, %v3147
      %v3161 = vunpack.c.l.b16 %v3149
      %v3162 = vunpack.c.h.b16 %v3149
      %v3163 = vunpack.c.l.b16 %v3150
      %v3164 = vunpack.c.h.b16 %v3150
      %v3165 = vunpack.c.l.b16 %v3151
      %v3166 = vunpack.c.h.b16 %v3151
      %v3167 = vunpack.c.l.b16 %v3152
      %v3168 = vunpack.c.h.b16 %v3152
      %v3169 = vunpack.c.l.b16 %v3153
      %v3170 = vunpack.c.h.b16 %v3153
      %v3171 = vunpack.c.l.b16 %v3154
      %v3172 = vunpack.c.h.b16 %v3154
      %v3173 = vpack.c.b16 %v3161, %v3161
      %v3174 = vpack.c.b16 %v3162, %v3162
      %v3175 = vpack.c.b16 %v3163, %v3163
      %v3176 = vpack.c.b16 %v3164, %v3164
      %v3177 = vpack.c.b16 %v3165, %v3165
      %v3178 = vpack.c.b16 %v3166, %v3166
      %v3179 = vpack.c.b16 %v3167, %v3167
      %v3180 = vpack.c.b16 %v3168, %v3168
      %v3181 = vpack.c.b16 %v3169, %v3169
      %v3182 = vpack.c.b16 %v3170, %v3170
      %v3183 = vpack.c.b16 %v3171, %v3171
      %v3184 = vpack.c.b16 %v3172, %v3172
      %3197 = vst [vmem:[%s192] sm:$0xf] %v3173
      %3198 = vst [vmem:[%s192 + $0x4] sm:$0xf] %v3174
      %3199 = vst [vmem:[%s192 + $0x8] sm:$0xf] %v3175
      %3200 = vst [vmem:[%s192 + $0xc] sm:$0xf] %v3176
      %3201 = vst [vmem:[%s192 + $0x10] sm:$0xf] %v3177
      %3202 = vst [vmem:[%s192 + $0x14] sm:$0xf] %v3178
      %3203 = vst [vmem:[%s192 + $0x18] sm:$0xf] %v3179
      %3204 = vst [vmem:[%s192 + $0x1c] sm:$0xf] %v3180
      %3205 = vst [vmem:[%s192 + $0x20] sm:$0xf] %v3181
      %3206 = vst [vmem:[%s192 + $0x24] sm:$0xf] %v3182
      %3207 = vst [vmem:[%s192 + $0x28] sm:$0xf] %v3183
      %3208 = vst [vmem:[%s192 + $0x2c] sm:$0xf] %v3184
      %s3209 = smul.u32 12, %s19
      %p3210 = scmp.lt.s32.totalorder %s18, 1
      %s3211 = scalar_select %p3210, %s18, 1
      %p3212 = scmp.lt.s32.totalorder %s3209, 11
      %s3213 = scalar_select %p3212, %s3209, 11
      %s3214 = smul.addr %s3211, 12
      %s3215 = sadd.s32 %s3213, %s3214
      %s3216 = smul.addr %s3215, 4
      %s3217 = scalar_lea.vmem %s3, %s3216
      // Predicated region
      $region33: #{_lambda_.6} parent=31 // pred_check
        %p3218 = pneg %p114
      $region34: #{_lambda_.6} parent=31 // pred_check_branch
        %3220 = sbr.rel (%p3218) target = $region36
      $region35: #{_lambda_.6} parent=31 // pred_region
        %s3221 = smul.u32 12, %s19
      $region36: #{_lambda_.6} parent=31 // pred_fallthru
        _
    $region32: #{_lambda_.6} parent=5 // pred_fallthru
      _
    %p3222 = scmp.le.s32.totalorder 2, %s9
    // Predicated region
    $region37: #{_lambda_.6} parent=5 // pred_check
      %p3223 = pneg %p3222
    $region38: #{_lambda_.6} parent=5 // pred_check_branch
      %3225 = sbr.rel (%p3223) target = $region40
    $region39: #{_lambda_.6} parent=5 // pred_region
      %s3226 = ssub.s32 %s9, 2
      // Predicated region
      $region41: #{_lambda_.6} parent=39 // pred_check
        %p3227 = pneg %p120
      $region42: #{_lambda_.6} parent=39 // pred_check_branch
        %3229 = sbr.rel (%p3227) target = $region44
      $region43: #{_lambda_.6} parent=39 // pred_region
        %s3230 = smul.u32 12, %s21
        %p3231 = scmp.lt.s32.totalorder %s20, 1
        %s3232 = scalar_select %p3231, %s20, 1
        %p3233 = scmp.lt.s32.totalorder %s3230, 11
        %s3234 = scalar_select %p3233, %s3230, 11
        %s3235 = smul.addr %s3232, 12
        %s3236 = sadd.s32 %s3234, %s3235
        %s3237 = smul.addr %s3236, 4
        %s3238 = scalar_lea.vmem %s3, %s3237
      $region44: #{_lambda_.6} parent=39 // pred_fallthru
        _
    $region40: #{_lambda_.6} parent=5 // pred_fallthru
      _
  $region6: #{_lambda_.6} parent=0 // loop_footer
    %s13 = sadd.s32 1, %s9
  $region7: #{_lambda_.6} parent=0 // loop_footer_branch
    %8 = sbr.rel target = $region3
  $region8: #{_lambda_.6} parent=0 // loop_exit
    _

// kernel: _lambda_.7
$region0: #{_lambda_.7}
  #allocation0 [shape = 'u32[]', space=smem, size = 0x4, offset = 0x4, fixed_abs, tag = 'smem constant byte address 0x4 - core index']
  #allocation1 [shape = 'u32[144,128]{1,0:T(1,128)}', space=vmem, size = 0x12000, scoped, tag = 'internal scratch']
  %s0 = inlined_call_operand.vmem [shape: f32[40,1], index: 0, kind: input, shape index: {}]
  %s1 = inlined_call_operand.vmem [shape: bf16[2,4,49,8], index: 1, kind: input, shape index: {}]
  %s2 = inlined_call_operand.vmem [shape: bf16[16,8,128], index: 2, kind: input, shape index: {}]
  %s3 = inlined_call_operand.vmem [shape: bf16[2,40,128], index: 3, kind: output, shape index: {0}]
  %s4 = inlined_call_operand.vmem [shape: f32[2,1,3,128], index: 4, kind: output, shape index: {1}]
  %5 = xla_tuple %s3, %s4
  %s6 = sld [smem:[#allocation0]]
  $region53: #{_lambda_.7} parent=0
    _
  %s8 = ssub.s32 1, %s6
  %s9 = scalar_select 0, %s8, %s6
  loop: start=0, step=1, limit=4
  $region2: #{_lambda_.7} parent=0 // loop_pre_header
    _
  $region3: #{_lambda_.7} parent=0 // loop_header
    %s11 = sphi 0, %s15
    %p12 = scmp.ge.s32.totalorder %s11, 4
    %s18 = sphi 0, %s30
    %s19 = sphi 0, %s26
    %s20 = sphi 0, %s18
    %s21 = sphi 0, %s19
    %s22 = sphi 0, %s20
    %s23 = sphi 0, %s21
    %s33 = sphi 0, %s35
    %s36 = sphi 0, %s33
    %s37 = sphi 0, %s36
    %s53 = sphi 0, %s37
    %s59 = sphi 0, %s61
    %s62 = sphi 0, %s59
    %s63 = sphi 0, %s62
    %s79 = sphi 0, %s63
    %s83 = sphi 0, %s83
    %s85 = sphi 0, %s83
    %s86 = sphi 0, %s85
    %s100 = sphi 0, %s86
    %s108 = sphi 0, %s110
    %s111 = sphi 0, %s108
    %s112 = sphi 0, %s111
    %s128 = sphi 0, %s112
    %s136 = sphi 0, %s138
    %s139 = sphi 0, %s136
    %s140 = sphi 0, %s139
    %s156 = sphi 0, %s140
  $region4: #{_lambda_.7} parent=0 // loop_header_branch
    %14 = sbr.rel (%p12) target = $region8
  $region5: #{_lambda_.7} parent=0 // loop_body
    %s16 = ssub.s32 %s11, 1
    %s17 = ssub.s32 %s11, 2
    %s24 = sadd.s32 1, %s19
    %p25 = scmp.ge.s32.totalorder %s24, 1
    %s26 = scalar_select %p25, 0, %s24
    %s27 = sadd.s32 1, %s18
    %s28 = scalar_select %p25, %s27, %s18
    %p29 = scmp.ge.s32.totalorder %s28, 2
    %s30 = scalar_select %p29, 0, %s28
    %s31 = ssub.s32 %s19, %s26
    %p32 = scmp.eq.s32.totalorder %s31, 0
    %s34 = sadd.s32 %s33, 1
    %s35 = scalar_select %p32, %s33, %s34
    %p38 = pneg %p32
    %p39 = scmp.eq.s32.totalorder %s11, 1
    %p40 = por %p38, %p39
    %p41 = scmp.ne.s32.totalorder %s33, %s36
    %p42 = scmp.eq.s32.totalorder %s11, 0
    %p43 = por %p41, %p42
    %p44 = scmp.ne.s32.totalorder %s33, %s36
    %p45 = scmp.eq.s32.totalorder %s16, 1
    %p46 = por %p44, %p45
    %p47 = scmp.ne.s32.totalorder %s36, %s37
    %p48 = scmp.eq.s32.totalorder %s16, 0
    %p49 = por %p47, %p48
    %p50 = scmp.ne.s32.totalorder %s36, %s37
    %p51 = scmp.eq.s32.totalorder %s17, 1
    %p52 = por %p50, %p51
    %p54 = scmp.ne.s32.totalorder %s37, %s53
    %p55 = scmp.eq.s32.totalorder %s17, 0
    %p56 = por %p54, %p55
    %s57 = ssub.s32 %s18, %s30
    %p58 = scmp.eq.s32.totalorder %s57, 0
    %s60 = sadd.s32 %s59, 1
    %s61 = scalar_select %p58, %s59, %s60
    %p64 = pneg %p58
    %p65 = scmp.eq.s32.totalorder %s11, 1
    %p66 = por %p64, %p65
    %p67 = scmp.ne.s32.totalorder %s59, %s62
    %p68 = scmp.eq.s32.totalorder %s11, 0
    %p69 = por %p67, %p68
    %p70 = scmp.ne.s32.totalorder %s59, %s62
    %p71 = scmp.eq.s32.totalorder %s16, 1
    %p72 = por %p70, %p71
    %p73 = scmp.ne.s32.totalorder %s62, %s63
    %p74 = scmp.eq.s32.totalorder %s16, 0
    %p75 = por %p73, %p74
    %p76 = scmp.ne.s32.totalorder %s62, %s63
    %p77 = scmp.eq.s32.totalorder %s17, 1
    %p78 = por %p76, %p77
    %p80 = scmp.ne.s32.totalorder %s63, %s79
    %p81 = scmp.eq.s32.totalorder %s17, 0
    %p82 = por %p80, %p81
    %s84 = sadd.s32 %s83, 1
    %p87 = scmp.eq.s32.totalorder %s11, 1
    %p88 = scmp.ne.s32.totalorder %s83, %s85
    %p89 = scmp.eq.s32.totalorder %s11, 0
    %p90 = por %p88, %p89
    %p91 = scmp.ne.s32.totalorder %s83, %s85
    %p92 = scmp.eq.s32.totalorder %s16, 1
    %p93 = por %p91, %p92
    %p94 = scmp.ne.s32.totalorder %s85, %s86
    %p95 = scmp.eq.s32.totalorder %s16, 0
    %p96 = por %p94, %p95
    %p97 = scmp.ne.s32.totalorder %s85, %s86
    %p98 = scmp.eq.s32.totalorder %s17, 1
    %p99 = por %p97, %p98
    %p101 = scmp.ne.s32.totalorder %s86, %s100
    %p102 = scmp.eq.s32.totalorder %s17, 0
    %p103 = por %p101, %p102
    %s104 = ssub.s32 %s18, %s30
    %s105 = ssub.s32 %s19, %s26
    %s106 = sor.u32 %s104, %s105
    %p107 = scmp.eq.s32.totalorder %s106, 0
    %s109 = sadd.s32 %s108, 1
    %s110 = scalar_select %p107, %s108, %s109
    %p113 = pneg %p107
    %p114 = scmp.eq.s32.totalorder %s11, 1
    %p115 = por %p113, %p114
    %p116 = scmp.ne.s32.totalorder %s108, %s111
    %p117 = scmp.eq.s32.totalorder %s11, 0
    %p118 = por %p116, %p117
    %p119 = scmp.ne.s32.totalorder %s108, %s111
    %p120 = scmp.eq.s32.totalorder %s16, 1
    %p121 = por %p119, %p120
    %p122 = scmp.ne.s32.totalorder %s111, %s112
    %p123 = scmp.eq.s32.totalorder %s16, 0
    %p124 = por %p122, %p123
    %p125 = scmp.ne.s32.totalorder %s111, %s112
    %p126 = scmp.eq.s32.totalorder %s17, 1
    %p127 = por %p125, %p126
    %p129 = scmp.ne.s32.totalorder %s112, %s128
    %p130 = scmp.eq.s32.totalorder %s17, 0
    %p131 = por %p129, %p130
    %s132 = ssub.s32 %s18, %s30
    %s133 = ssub.s32 %s19, %s26
    %s134 = sor.u32 %s132, %s133
    %p135 = scmp.eq.s32.totalorder %s134, 0
    %s137 = sadd.s32 %s136, 1
    %s138 = scalar_select %p135, %s136, %s137
    %p141 = pneg %p135
    %p142 = scmp.eq.s32.totalorder %s11, 1
    %p143 = por %p141, %p142
    %p144 = scmp.ne.s32.totalorder %s136, %s139
    %p145 = scmp.eq.s32.totalorder %s11, 0
    %p146 = por %p144, %p145
    %p147 = scmp.ne.s32.totalorder %s136, %s139
    %p148 = scmp.eq.s32.totalorder %s16, 1
    %p149 = por %p147, %p148
    %p150 = scmp.ne.s32.totalorder %s139, %s140
    %p151 = scmp.eq.s32.totalorder %s16, 0
    %p152 = por %p150, %p151
    %p153 = scmp.ne.s32.totalorder %s139, %s140
    %p154 = scmp.eq.s32.totalorder %s17, 1
    %p155 = por %p153, %p154
    %p157 = scmp.ne.s32.totalorder %s140, %s156
    %p158 = scmp.eq.s32.totalorder %s17, 0
    %p159 = por %p157, %p158
    %p160 = scmp.le.s32.totalorder 1, %s11
    %p161 = scmp.lt.s32.totalorder %s11, 3
    %p162 = pnand %p160, %p161
    %p163 = pneg %p162
    // Predicated region
    $region9: #{_lambda_.7} parent=5 // pred_check
      _
    $region10: #{_lambda_.7} parent=5 // pred_check_branch
      %165 = sbr.rel (%p162) target = $region12
    $region11: #{_lambda_.7} parent=5 // pred_region
      %s166 = ssub.s32 %s11, 1
      // Predicated region
      $region13: #{_lambda_.7} parent=11 // pred_check
        %p167 = pneg %p49
      $region14: #{_lambda_.7} parent=11 // pred_check_branch
        %169 = sbr.rel (%p167) target = $region16
      $region15: #{_lambda_.7} parent=11 // pred_region
        %s170 = smul.u32 5, %s21
        %p171 = scmp.lt.s32.totalorder %s170, 4
        %s172 = scalar_select %p171, %s170, 4
        %s173 = smul.addr %s172, 8
        %s174 = scalar_lea.vmem %s0, %s173
        %s175 = smul.u32 5, %s21
      $region16: #{_lambda_.7} parent=11 // pred_fallthru
        _
      // Predicated region
      $region17: #{_lambda_.7} parent=11 // pred_check
        %p176 = pneg %p96
      $region18: #{_lambda_.7} parent=11 // pred_check_branch
        %178 = sbr.rel (%p176) target = $region20
      $region19: #{_lambda_.7} parent=11 // pred_region
        _
      $region20: #{_lambda_.7} parent=11 // pred_fallthru
        _
    $region12: #{_lambda_.7} parent=5 // pred_fallthru
      _
    %p179 = scmp.lt.s32.totalorder %s11, 2
    // Predicated region
    $region21: #{_lambda_.7} parent=5 // pred_check
      %p180 = pneg %p179
    $region22: #{_lambda_.7} parent=5 // pred_check_branch
      %182 = sbr.rel (%p180) target = $region24
    $region23: #{_lambda_.7} parent=5 // pred_region
      // Predicated region
      $region25: #{_lambda_.7} parent=23 // pred_check
        %p183 = pneg %p69
      $region26: #{_lambda_.7} parent=23 // pred_check_branch
        %185 = sbr.rel (%p183) target = $region28
      $region27: #{_lambda_.7} parent=23 // pred_region
        %p186 = scmp.lt.s32.totalorder %s18, 1
        %s187 = scalar_select %p186, %s18, 1
        %s188 = smul.addr %s187, 28
        %s189 = smul.addr %s188, 4
        %s190 = scalar_lea.vmem %s1, %s189
      $region28: #{_lambda_.7} parent=23 // pred_fallthru
        _
    $region24: #{_lambda_.7} parent=5 // pred_fallthru
      _
    %p191 = scmp.le.s32.totalorder 1, %s11
    %p192 = scmp.lt.s32.totalorder %s11, 3
    %p193 = pnand %p191, %p192
    %p194 = pneg %p193
    // Predicated region
    $region29: #{_lambda_.7} parent=5 // pred_check
      _
    $region30: #{_lambda_.7} parent=5 // pred_check_branch
      %196 = sbr.rel (%p193) target = $region32
    $region31: #{_lambda_.7} parent=5 // pred_region
      %s197 = ssub.s32 %s11, 1
      %s198 = smul.u32 5, %s21
      %p199 = scmp.lt.s32.totalorder %s198, 4
      %s200 = scalar_select %p199, %s198, 4
      %s201 = smul.addr %s200, 8
      %s202 = scalar_lea.vmem %s0, %s201
      %p203 = pneg %p49
      %p204 = pneg %p46
      %p205 = scmp.lt.s32.totalorder %s20, 1
      %s206 = scalar_select %p205, %s20, 1
      %s207 = smul.addr %s206, 28
      %s208 = smul.addr %s207, 4
      %s209 = scalar_lea.vmem %s1, %s208
      %p210 = pneg %p75
      %p211 = pneg %p72
      %p212 = pneg %p96
      %p213 = pneg %p93
      %p214 = pneg %p124
      %p215 = pneg %p121
      %s216 = smul.u32 5, %s21
      %p217 = scmp.lt.s32.totalorder %s20, 1
      %s218 = scalar_select %p217, %s20, 1
      %p219 = scmp.lt.s32.totalorder %s216, 4
      %s220 = scalar_select %p219, %s216, 4
      %s221 = smul.addr %s218, 5
      %s222 = sadd.s32 %s220, %s221
      %s223 = smul.addr %s222, 4
      %s224 = scalar_lea.vmem %s3, %s223
      %p225 = pneg %p152
      %p226 = pneg %p149
      %p227 = scmp.lt.s32.totalorder %s20, 1
      %s228 = scalar_select %p227, %s20, 1
      %p229 = scmp.lt.s32.totalorder %s21, 0
      %s230 = scalar_select %p229, %s21, 0
      %s231 = sadd.s32 %s230, %s228
      %s232 = smul.addr %s231, 4
      %s233 = scalar_lea.vmem %s4, %s232
      %s234 = smul.u32 5, %s21
      %p235 = scmp.lt.s32.totalorder %s234, 4
      %s236 = scalar_select %p235, %s234, 4
      %s237 = smul.addr %s236, 8
      %s238 = scalar_lea.vmem %s0, %s237
      %s239 = smul.u32 5, %s21
      %p240 = scmp.lt.s32.totalorder %s20, 1
      %s241 = scalar_select %p240, %s20, 1
      %s242 = smul.addr %s241, 28
      %s243 = smul.addr %s242, 4
      %s244 = scalar_lea.vmem %s1, %s243
      %s245 = smul.u32 5, %s21
      %p246 = scmp.lt.s32.totalorder %s20, 1
      %s247 = scalar_select %p246, %s20, 1
      %p248 = scmp.lt.s32.totalorder %s245, 4
      %s249 = scalar_select %p248, %s245, 4
      %s250 = smul.addr %s247, 5
      %s251 = sadd.s32 %s249, %s250
      %s252 = smul.addr %s251, 4
      %s253 = scalar_lea.vmem %s3, %s252
      %s254 = smul.u32 5, %s21
      %p255 = scmp.lt.s32.totalorder %s20, 1
      %s256 = scalar_select %p255, %s20, 1
      %p257 = scmp.lt.s32.totalorder %s21, 0
      %s258 = scalar_select %p257, %s21, 0
      %s259 = sadd.s32 %s258, %s256
      %s260 = smul.addr %s259, 4
      %s261 = scalar_lea.vmem %s4, %s260
      %v263 = vld [vmem:[%s244] sm:$0xf]
      %v264 = vld [vmem:[%s244 + $0x4] sm:$0xf]
      %v265 = vld [vmem:[%s244 + $0x8] sm:$0xf]
      %v266 = vld [vmem:[%s244 + $0xc] sm:$0xf]
      %v267 = vld [vmem:[%s244 + $0x10] sm:$0xf]
      %v268 = vld [vmem:[%s2] sm:$0xf]
      %s269 = scalar_lea.vmem %s244, 28
      %v270 = vld [vmem:[%s269] sm:$0xf]
      %v271 = vld [vmem:[%s269 + $0x4] sm:$0xf]
      %v272 = vld [vmem:[%s269 + $0x8] sm:$0xf]
      %v273 = vld [vmem:[%s269 + $0xc] sm:$0xf]
      %v274 = vld [vmem:[%s269 + $0x10] sm:$0xf]
      %s275 = scalar_lea.vmem %s2, 4
      %v276 = vld [vmem:[%s275] sm:$0xf]
      %v282 = vunpack.c.l.b16 %v270
      %v283 = vunpack.c.l.b16 %v271
      %v284 = vunpack.c.l.b16 %v272
      %v285 = vunpack.c.l.b16 %v273
      %v286 = vunpack.c.l.b16 %v274
      %v287 = vpack.c.b16 %v283, %v282
      %v288 = vpack.c.b16 %v285, %v284
      %v289 = vpack.c.b16 %v286, %v286
      %vm290 = vcmask 64512
      %v292 = vsel %vm290, %v287, 0
      %v295 = vsel %vm290, %v288, 0
      %v298 = vsel %vm290, %v289, 0
      %vm300 = vcmask 1043456
      %v302 = vsel %vm300, %v276, 0
      %304 = vmatprep.subr.bf16.mxu0 0
      %305 = vmatpush1.bf16.msra.mxu0 %v302
      %306 = vmatprep.subr.bf16.mxu0 0
      %307 = vmatpush1.bf16.msra.mxu0 0
      %308 = vmatprep.subr.bf16.mxu0 0
      %309 = vmatpush1.bf16.msra.mxu0 0
      %310 = vmatprep.subr.bf16.mxu0 0
      %311 = vmatpush1.bf16.msra.mxu0 0
      %312 = vmatprep.subr.bf16.mxu0 0
      %313 = vmatpush1.bf16.msra.mxu0 0
      %314 = vmatprep.subr.bf16.mxu0 0
      %315 = vmatpush1.bf16.msra.mxu0 0
      %316 = vmatprep.subr.bf16.mxu0 0
      %317 = vmatpush1.bf16.msra.mxu0 0
      %318 = vmatprep.subr.bf16.mxu0 0
      %319 = vmatpush1.bf16.msra.mxu0 0
      %320 = vmatprep.subr.bf16.mxu0 0
      %321 = vmatpush1.bf16.msra.mxu0 0
      %322 = vmatprep.subr.bf16.mxu0 0
      %323 = vmatpush1.bf16.msra.mxu0 0
      %324 = vmatprep.subr.bf16.mxu0 0
      %325 = vmatpush1.bf16.msra.mxu0 0
      %326 = vmatprep.subr.bf16.mxu0 0
      %327 = vmatpush1.bf16.msra.mxu0 0
      %328 = vmatprep.subr.bf16.mxu0 0
      %329 = vmatpush1.bf16.msra.mxu0 0
      %330 = vmatprep.subr.bf16.mxu0 0
      %331 = vmatpush1.bf16.msra.mxu0 0
      %332 = vmatprep.subr.bf16.mxu0 0
      %333 = vmatpush1.bf16.msra.mxu0 0
      %334 = vmatprep.subr.bf16.mxu0 0
      %335 = vmatpush1.bf16.msra.mxu0 0
      %336 = vmatprep.mubr.bf16.mxu0 0
      %337 = vmatmul.mubr.bf16.gmra.mrb[0].mxu0 %v292
      %v338 = vpop.f32.mrb[0].mxu0
      %v339 = vadd.f32 0.0, %v338
      %v340 = vpop.f32.mrb[0].mxu0
      %v341 = vpop.f32.mrb[0].mxu0
      %v342 = vadd.f32 0.0, %v341
      %v343 = vpop.f32.mrb[0].mxu0
      %344 = vmatprep.mubr.bf16.mxu0 0
      %345 = vmatmul.mubr.bf16.gmra.mrb[0].mxu0 %v295
      %v346 = vpop.f32.mrb[0].mxu0
      %v347 = vadd.f32 0.0, %v346
      %v348 = vpop.f32.mrb[0].mxu0
      %v349 = vpop.f32.mrb[0].mxu0
      %v350 = vadd.f32 0.0, %v349
      %v351 = vpop.f32.mrb[0].mxu0
      %352 = vmatprep.mubr.bf16.mxu0 0
      %353 = vmatmul.mubr.bf16.gmra.mrb[0].mxu0 %v298
      %v354 = vpop.f32.mrb[0].mxu0
      %v355 = vadd.f32 0.0, %v354
      %v356 = vpop.f32.mrb[0].mxu0
      %v357 = vpop.f32.mrb[0].mxu0
      %v358 = vpop.f32.mrb[0].mxu0
      %359 = vdwg.mxu0
      %v365 = vunpack.c.l.b16 %v263
      %v366 = vunpack.c.l.b16 %v264
      %v367 = vunpack.c.l.b16 %v265
      %v368 = vunpack.c.l.b16 %v266
      %v369 = vunpack.c.l.b16 %v267
      %v370 = vpack.c.b16 %v366, %v365
      %v371 = vpack.c.b16 %v368, %v367
      %v372 = vpack.c.b16 %v369, %v369
      %v374 = vsel %vm290, %v370, 0
      %v377 = vsel %vm290, %v371, 0
      %v380 = vsel %vm290, %v372, 0
      %v383 = vsel %vm300, %v268, 0
      %385 = vmatprep.subr.bf16.mxu0 0
      %386 = vmatpush1.bf16.msra.mxu0 %v383
      %387 = vmatprep.subr.bf16.mxu0 0
      %388 = vmatpush1.bf16.msra.mxu0 0
      %389 = vmatprep.subr.bf16.mxu0 0
      %390 = vmatpush1.bf16.msra.mxu0 0
      %391 = vmatprep.subr.bf16.mxu0 0
      %392 = vmatpush1.bf16.msra.mxu0 0
      %393 = vmatprep.subr.bf16.mxu0 0
      %394 = vmatpush1.bf16.msra.mxu0 0
      %395 = vmatprep.subr.bf16.mxu0 0
      %396 = vmatpush1.bf16.msra.mxu0 0
      %397 = vmatprep.subr.bf16.mxu0 0
      %398 = vmatpush1.bf16.msra.mxu0 0
      %399 = vmatprep.subr.bf16.mxu0 0
      %400 = vmatpush1.bf16.msra.mxu0 0
      %401 = vmatprep.subr.bf16.mxu0 0
      %402 = vmatpush1.bf16.msra.mxu0 0
      %403 = vmatprep.subr.bf16.mxu0 0
      %404 = vmatpush1.bf16.msra.mxu0 0
      %405 = vmatprep.subr.bf16.mxu0 0
      %406 = vmatpush1.bf16.msra.mxu0 0
      %407 = vmatprep.subr.bf16.mxu0 0
      %408 = vmatpush1.bf16.msra.mxu0 0
      %409 = vmatprep.subr.bf16.mxu0 0
      %410 = vmatpush1.bf16.msra.mxu0 0
      %411 = vmatprep.subr.bf16.mxu0 0
      %412 = vmatpush1.bf16.msra.mxu0 0
      %413 = vmatprep.subr.bf16.mxu0 0
      %414 = vmatpush1.bf16.msra.mxu0 0
      %415 = vmatprep.subr.bf16.mxu0 0
      %416 = vmatpush1.bf16.msra.mxu0 0
      %417 = vmatprep.mubr.bf16.mxu0 0
      %418 = vmatmul.mubr.bf16.gmra.mrb[0].mxu0 %v374
      %v419 = vpop.f32.mrb[0].mxu0
      %v420 = vadd.f32 %v339, %v419
      %v421 = vpop.f32.mrb[0].mxu0
      %v422 = vpop.f32.mrb[0].mxu0
      %v423 = vadd.f32 %v342, %v422
      %v424 = vpop.f32.mrb[0].mxu0
      %425 = vmatprep.mubr.bf16.mxu0 0
      %426 = vmatmul.mubr.bf16.gmra.mrb[0].mxu0 %v377
      %v427 = vpop.f32.mrb[0].mxu0
      %v428 = vadd.f32 %v347, %v427
      %v429 = vpop.f32.mrb[0].mxu0
      %v430 = vpop.f32.mrb[0].mxu0
      %v431 = vadd.f32 %v350, %v430
      %v432 = vpop.f32.mrb[0].mxu0
      %433 = vmatprep.mubr.bf16.mxu0 0
      %434 = vmatmul.mubr.bf16.gmra.mrb[0].mxu0 %v380
      %v435 = vpop.f32.mrb[0].mxu0
      %v436 = vadd.f32 %v355, %v435
      %v437 = vpop.f32.mrb[0].mxu0
      %v438 = vpop.f32.mrb[0].mxu0
      %v439 = vpop.f32.mrb[0].mxu0
      %440 = vdwg.mxu0
      %v441 = vld [vmem:[%s244] sm:$0xf]
      %v442 = vld [vmem:[%s244 + $0x4] sm:$0xf]
      %v443 = vld [vmem:[%s244 + $0x8] sm:$0xf]
      %v444 = vld [vmem:[%s244 + $0xc] sm:$0xf]
      %v445 = vld [vmem:[%s244 + $0x10] sm:$0xf]
      %v446 = vld [vmem:[%s244 + $0x14] sm:$0x1]
      %s447 = scalar_lea.vmem %s2, 8
      %v448 = vld [vmem:[%s447] sm:$0xf]
      %v455 = vunpack.c.l.b16 %v441
      %v456 = vunpack.c.l.b16 %v442
      %v457 = vunpack.c.l.b16 %v443
      %v458 = vunpack.c.l.b16 %v444
      %v459 = vunpack.c.l.b16 %v445
      %v460 = vunpack.c.l.b16 %v446
      %v461 = vpack.c.b16 %v456, %v455
      %v462 = vpack.c.b16 %v458, %v457
      %v463 = vpack.c.b16 %v460, %v459
      %vm464 = vsmask.f32 7424
      %v466 = vshrl.u32 %v461, 16
      %v468 = vshll.u32 %v461, 16
      %v470 = vrot.slane %v468, 1
      %v471 = vor.u32 %v466, %v470
      %v473 = vshll.u32 %v462, 16
      %v475 = vrot.slane %v473, 1
      %v476 = vsel %vm464, %v471, %v475
      %v477 = vshrl.u32 %v462, 16
      %v479 = vor.u32 %v477, %v475
      %v481 = vshll.u32 %v463, 16
      %v483 = vrot.slane %v481, 1
      %v484 = vsel %vm464, %v479, %v483
      %v485 = vshrl.u32 %v463, 16
      %v487 = vor.u32 %v485, %v483
      %v489 = vsel %vm290, %v476, 0
      %v492 = vsel %vm290, %v484, 0
      %v495 = vsel %vm290, %v487, 0
      %v498 = vsel %vm300, %v448, 0
      %500 = vmatprep.subr.bf16.mxu0 0
      %501 = vmatpush1.bf16.msra.mxu0 %v498
      %502 = vmatprep.subr.bf16.mxu0 0
      %503 = vmatpush1.bf16.msra.mxu0 0
      %504 = vmatprep.subr.bf16.mxu0 0
      %505 = vmatpush1.bf16.msra.mxu0 0
      %506 = vmatprep.subr.bf16.mxu0 0
      %507 = vmatpush1.bf16.msra.mxu0 0
      %508 = vmatprep.subr.bf16.mxu0 0
      %509 = vmatpush1.bf16.msra.mxu0 0
      %510 = vmatprep.subr.bf16.mxu0 0
      %511 = vmatpush1.bf16.msra.mxu0 0
      %512 = vmatprep.subr.bf16.mxu0 0
      %513 = vmatpush1.bf16.msra.mxu0 0
      %514 = vmatprep.subr.bf16.mxu0 0
      %515 = vmatpush1.bf16.msra.mxu0 0
      %516 = vmatprep.subr.bf16.mxu0 0
      %517 = vmatpush1.bf16.msra.mxu0 0
      %518 = vmatprep.subr.bf16.mxu0 0
      %519 = vmatpush1.bf16.msra.mxu0 0
      %520 = vmatprep.subr.bf16.mxu0 0
      %521 = vmatpush1.bf16.msra.mxu0 0
      %522 = vmatprep.subr.bf16.mxu0 0
      %523 = vmatpush1.bf16.msra.mxu0 0
      %524 = vmatprep.subr.bf16.mxu0 0
      %525 = vmatpush1.bf16.msra.mxu0 0
      %526 = vmatprep.subr.bf16.mxu0 0
      %527 = vmatpush1.bf16.msra.mxu0 0
      %528 = vmatprep.subr.bf16.mxu0 0
      %529 = vmatpush1.bf16.msra.mxu0 0
      %530 = vmatprep.subr.bf16.mxu0 0
      %531 = vmatpush1.bf16.msra.mxu0 0
      %532 = vmatprep.mubr.bf16.mxu0 0
      %533 = vmatmul.mubr.bf16.gmra.mrb[0].mxu0 %v489
      %v534 = vpop.f32.mrb[0].mxu0
      %v535 = vadd.f32 0.0, %v534
      %v536 = vpop.f32.mrb[0].mxu0
      %v537 = vpop.f32.mrb[0].mxu0
      %v538 = vadd.f32 0.0, %v537
      %v539 = vpop.f32.mrb[0].mxu0
      %540 = vmatprep.mubr.bf16.mxu0 0
      %541 = vmatmul.mubr.bf16.gmra.mrb[0].mxu0 %v492
      %v542 = vpop.f32.mrb[0].mxu0
      %v543 = vadd.f32 0.0, %v542
      %v544 = vpop.f32.mrb[0].mxu0
      %v545 = vpop.f32.mrb[0].mxu0
      %v546 = vadd.f32 0.0, %v545
      %v547 = vpop.f32.mrb[0].mxu0
      %548 = vmatprep.mubr.bf16.mxu0 0
      %549 = vmatmul.mubr.bf16.gmra.mrb[0].mxu0 %v495
      %v550 = vpop.f32.mrb[0].mxu0
      %v551 = vadd.f32 0.0, %v550
      %v552 = vpop.f32.mrb[0].mxu0
      %v553 = vpop.f32.mrb[0].mxu0
      %v554 = vpop.f32.mrb[0].mxu0
      %555 = vdwg.mxu0
      %v556 = vadd.f32 %v420, %v535
      %v557 = vadd.f32 %v423, %v538
      %v558 = vadd.f32 %v428, %v543
      %v559 = vadd.f32 %v431, %v546
      %v560 = vadd.f32 %v436, %v551
      %v561 = vld [vmem:[%s269] sm:$0xf]
      %v562 = vld [vmem:[%s269 + $0x4] sm:$0xf]
      %v563 = vld [vmem:[%s269 + $0x8] sm:$0xf]
      %v564 = vld [vmem:[%s269 + $0xc] sm:$0xf]
      %v565 = vld [vmem:[%s269 + $0x10] sm:$0xf]
      %v566 = vld [vmem:[%s269 + $0x14] sm:$0x1]
      %s567 = scalar_lea.vmem %s2, 12
      %v568 = vld [vmem:[%s567] sm:$0xf]
      %v575 = vunpack.c.l.b16 %v561
      %v576 = vunpack.c.l.b16 %v562
      %v577 = vunpack.c.l.b16 %v563
      %v578 = vunpack.c.l.b16 %v564
      %v579 = vunpack.c.l.b16 %v565
      %v580 = vunpack.c.l.b16 %v566
      %v581 = vpack.c.b16 %v576, %v575
      %v582 = vpack.c.b16 %v578, %v577
      %v583 = vpack.c.b16 %v580, %v579
      %v585 = vshrl.u32 %v581, 16
      %v587 = vshll.u32 %v581, 16
      %v589 = vrot.slane %v587, 1
      %v590 = vor.u32 %v585, %v589
      %v592 = vshll.u32 %v582, 16
      %v594 = vrot.slane %v592, 1
      %v595 = vsel %vm464, %v590, %v594
      %v596 = vshrl.u32 %v582, 16
      %v598 = vor.u32 %v596, %v594
      %v600 = vshll.u32 %v583, 16
      %v602 = vrot.slane %v600, 1
      %v603 = vsel %vm464, %v598, %v602
      %v604 = vshrl.u32 %v583, 16
      %v606 = vor.u32 %v604, %v602
      %v608 = vsel %vm290, %v595, 0
      %v611 = vsel %vm290, %v603, 0
      %v614 = vsel %vm290, %v606, 0
      %v617 = vsel %vm300, %v568, 0
      %619 = vmatprep.subr.bf16.mxu0 0
      %620 = vmatpush1.bf16.msra.mxu0 %v617
      %621 = vmatprep.subr.bf16.mxu0 0
      %622 = vmatpush1.bf16.msra.mxu0 0
      %623 = vmatprep.subr.bf16.mxu0 0
      %624 = vmatpush1.bf16.msra.mxu0 0
      %625 = vmatprep.subr.bf16.mxu0 0
      %626 = vmatpush1.bf16.msra.mxu0 0
      %627 = vmatprep.subr.bf16.mxu0 0
      %628 = vmatpush1.bf16.msra.mxu0 0
      %629 = vmatprep.subr.bf16.mxu0 0
      %630 = vmatpush1.bf16.msra.mxu0 0
      %631 = vmatprep.subr.bf16.mxu0 0
      %632 = vmatpush1.bf16.msra.mxu0 0
      %633 = vmatprep.subr.bf16.mxu0 0
      %634 = vmatpush1.bf16.msra.mxu0 0
      %635 = vmatprep.subr.bf16.mxu0 0
      %636 = vmatpush1.bf16.msra.mxu0 0
      %637 = vmatprep.subr.bf16.mxu0 0
      %638 = vmatpush1.bf16.msra.mxu0 0
      %639 = vmatprep.subr.bf16.mxu0 0
      %640 = vmatpush1.bf16.msra.mxu0 0
      %641 = vmatprep.subr.bf16.mxu0 0
      %642 = vmatpush1.bf16.msra.mxu0 0
      %643 = vmatprep.subr.bf16.mxu0 0
      %644 = vmatpush1.bf16.msra.mxu0 0
      %645 = vmatprep.subr.bf16.mxu0 0
      %646 = vmatpush1.bf16.msra.mxu0 0
      %647 = vmatprep.subr.bf16.mxu0 0
      %648 = vmatpush1.bf16.msra.mxu0 0
      %649 = vmatprep.subr.bf16.mxu0 0
      %650 = vmatpush1.bf16.msra.mxu0 0
      %651 = vmatprep.mubr.bf16.mxu0 0
      %652 = vmatmul.mubr.bf16.gmra.mrb[0].mxu0 %v608
      %v653 = vpop.f32.mrb[0].mxu0
      %v654 = vadd.f32 0.0, %v653
      %v655 = vpop.f32.mrb[0].mxu0
      %v656 = vpop.f32.mrb[0].mxu0
      %v657 = vadd.f32 0.0, %v656
      %v658 = vpop.f32.mrb[0].mxu0
      %659 = vmatprep.mubr.bf16.mxu0 0
      %660 = vmatmul.mubr.bf16.gmra.mrb[0].mxu0 %v611
      %v661 = vpop.f32.mrb[0].mxu0
      %v662 = vadd.f32 0.0, %v661
      %v663 = vpop.f32.mrb[0].mxu0
      %v664 = vpop.f32.mrb[0].mxu0
      %v665 = vadd.f32 0.0, %v664
      %v666 = vpop.f32.mrb[0].mxu0
      %667 = vmatprep.mubr.bf16.mxu0 0
      %668 = vmatmul.mubr.bf16.gmra.mrb[0].mxu0 %v614
      %v669 = vpop.f32.mrb[0].mxu0
      %v670 = vadd.f32 0.0, %v669
      %v671 = vpop.f32.mrb[0].mxu0
      %v672 = vpop.f32.mrb[0].mxu0
      %v673 = vpop.f32.mrb[0].mxu0
      %674 = vdwg.mxu0
      %v675 = vadd.f32 %v556, %v654
      %v676 = vadd.f32 %v557, %v657
      %v677 = vadd.f32 %v558, %v662
      %v678 = vadd.f32 %v559, %v665
      %v679 = vadd.f32 %v560, %v670
      %s680 = scalar_lea.vmem %s244, 56
      %v681 = vld [vmem:[%s680] sm:$0xf]
      %v682 = vld [vmem:[%s680 + $0x4] sm:$0xf]
      %v683 = vld [vmem:[%s680 + $0x8] sm:$0xf]
      %v684 = vld [vmem:[%s680 + $0xc] sm:$0xf]
      %v685 = vld [vmem:[%s680 + $0x10] sm:$0xf]
      %s686 = scalar_lea.vmem %s2, 16
      %v687 = vld [vmem:[%s686] sm:$0xf]
      %v693 = vunpack.c.l.b16 %v681
      %v694 = vunpack.c.l.b16 %v682
      %v695 = vunpack.c.l.b16 %v683
      %v696 = vunpack.c.l.b16 %v684
      %v697 = vunpack.c.l.b16 %v685
      %v698 = vpack.c.b16 %v694, %v693
      %v699 = vpack.c.b16 %v696, %v695
      %v700 = vpack.c.b16 %v697, %v697
      %v702 = vsel %vm290, %v698, 0
      %v705 = vsel %vm290, %v699, 0
      %v708 = vsel %vm290, %v700, 0
      %v711 = vsel %vm300, %v687, 0
      %713 = vmatprep.subr.bf16.mxu0 0
      %714 = vmatpush1.bf16.msra.mxu0 %v711
      %715 = vmatprep.subr.bf16.mxu0 0
      %716 = vmatpush1.bf16.msra.mxu0 0
      %717 = vmatprep.subr.bf16.mxu0 0
      %718 = vmatpush1.bf16.msra.mxu0 0
      %719 = vmatprep.subr.bf16.mxu0 0
      %720 = vmatpush1.bf16.msra.mxu0 0
      %721 = vmatprep.subr.bf16.mxu0 0
      %722 = vmatpush1.bf16.msra.mxu0 0
      %723 = vmatprep.subr.bf16.mxu0 0
      %724 = vmatpush1.bf16.msra.mxu0 0
      %725 = vmatprep.subr.bf16.mxu0 0
      %726 = vmatpush1.bf16.msra.mxu0 0
      %727 = vmatprep.subr.bf16.mxu0 0
      %728 = vmatpush1.bf16.msra.mxu0 0
      %729 = vmatprep.subr.bf16.mxu0 0
      %730 = vmatpush1.bf16.msra.mxu0 0
      %731 = vmatprep.subr.bf16.mxu0 0
      %732 = vmatpush1.bf16.msra.mxu0 0
      %733 = vmatprep.subr.bf16.mxu0 0
      %734 = vmatpush1.bf16.msra.mxu0 0
      %735 = vmatprep.subr.bf16.mxu0 0
      %736 = vmatpush1.bf16.msra.mxu0 0
      %737 = vmatprep.subr.bf16.mxu0 0
      %738 = vmatpush1.bf16.msra.mxu0 0
      %739 = vmatprep.subr.bf16.mxu0 0
      %740 = vmatpush1.bf16.msra.mxu0 0
      %741 = vmatprep.subr.bf16.mxu0 0
      %742 = vmatpush1.bf16.msra.mxu0 0
      %743 = vmatprep.subr.bf16.mxu0 0
      %744 = vmatpush1.bf16.msra.mxu0 0
      %745 = vmatprep.mubr.bf16.mxu0 0
      %746 = vmatmul.mubr.bf16.gmra.mrb[0].mxu0 %v702
      %v747 = vpop.f32.mrb[0].mxu0
      %v748 = vadd.f32 0.0, %v747
      %v749 = vpop.f32.mrb[0].mxu0
      %v750 = vpop.f32.mrb[0].mxu0
      %v751 = vadd.f32 0.0, %v750
      %v752 = vpop.f32.mrb[0].mxu0
      %753 = vmatprep.mubr.bf16.mxu0 0
      %754 = vmatmul.mubr.bf16.gmra.mrb[0].mxu0 %v705
      %v755 = vpop.f32.mrb[0].mxu0
      %v756 = vadd.f32 0.0, %v755
      %v757 = vpop.f32.mrb[0].mxu0
      %v758 = vpop.f32.mrb[0].mxu0
      %v759 = vadd.f32 0.0, %v758
      %v760 = vpop.f32.mrb[0].mxu0
      %761 = vmatprep.mubr.bf16.mxu0 0
      %762 = vmatmul.mubr.bf16.gmra.mrb[0].mxu0 %v708
      %v763 = vpop.f32.mrb[0].mxu0
      %v764 = vadd.f32 0.0, %v763
      %v765 = vpop.f32.mrb[0].mxu0
      %v766 = vpop.f32.mrb[0].mxu0
      %v767 = vpop.f32.mrb[0].mxu0
      %768 = vdwg.mxu0
      %v769 = vadd.f32 %v675, %v748
      %v770 = vadd.f32 %v676, %v751
      %v771 = vadd.f32 %v677, %v756
      %v772 = vadd.f32 %v678, %v759
      %v773 = vadd.f32 %v679, %v764
      %s774 = scalar_lea.vmem %s244, 84
      %v775 = vld [vmem:[%s774] sm:$0xf]
      %v776 = vld [vmem:[%s774 + $0x4] sm:$0xf]
      %v777 = vld [vmem:[%s774 + $0x8] sm:$0xf]
      %v778 = vld [vmem:[%s774 + $0xc] sm:$0xf]
      %v779 = vld [vmem:[%s774 + $0x10] sm:$0xf]
      %s780 = scalar_lea.vmem %s2, 20
      %v781 = vld [vmem:[%s780] sm:$0xf]
      %v787 = vunpack.c.l.b16 %v775
      %v788 = vunpack.c.l.b16 %v776
      %v789 = vunpack.c.l.b16 %v777
      %v790 = vunpack.c.l.b16 %v778
      %v791 = vunpack.c.l.b16 %v779
      %v792 = vpack.c.b16 %v788, %v787
      %v793 = vpack.c.b16 %v790, %v789
      %v794 = vpack.c.b16 %v791, %v791
      %v796 = vsel %vm290, %v792, 0
      %v799 = vsel %vm290, %v793, 0
      %v802 = vsel %vm290, %v794, 0
      %v805 = vsel %vm300, %v781, 0
      %807 = vmatprep.subr.bf16.mxu0 0
      %808 = vmatpush1.bf16.msra.mxu0 %v805
      %809 = vmatprep.subr.bf16.mxu0 0
      %810 = vmatpush1.bf16.msra.mxu0 0
      %811 = vmatprep.subr.bf16.mxu0 0
      %812 = vmatpush1.bf16.msra.mxu0 0
      %813 = vmatprep.subr.bf16.mxu0 0
      %814 = vmatpush1.bf16.msra.mxu0 0
      %815 = vmatprep.subr.bf16.mxu0 0
      %816 = vmatpush1.bf16.msra.mxu0 0
      %817 = vmatprep.subr.bf16.mxu0 0
      %818 = vmatpush1.bf16.msra.mxu0 0
      %819 = vmatprep.subr.bf16.mxu0 0
      %820 = vmatpush1.bf16.msra.mxu0 0
      %821 = vmatprep.subr.bf16.mxu0 0
      %822 = vmatpush1.bf16.msra.mxu0 0
      %823 = vmatprep.subr.bf16.mxu0 0
      %824 = vmatpush1.bf16.msra.mxu0 0
      %825 = vmatprep.subr.bf16.mxu0 0
      %826 = vmatpush1.bf16.msra.mxu0 0
      %827 = vmatprep.subr.bf16.mxu0 0
      %828 = vmatpush1.bf16.msra.mxu0 0
      %829 = vmatprep.subr.bf16.mxu0 0
      %830 = vmatpush1.bf16.msra.mxu0 0
      %831 = vmatprep.subr.bf16.mxu0 0
      %832 = vmatpush1.bf16.msra.mxu0 0
      %833 = vmatprep.subr.bf16.mxu0 0
      %834 = vmatpush1.bf16.msra.mxu0 0
      %835 = vmatprep.subr.bf16.mxu0 0
      %836 = vmatpush1.bf16.msra.mxu0 0
      %837 = vmatprep.subr.bf16.mxu0 0
      %838 = vmatpush1.bf16.msra.mxu0 0
      %839 = vmatprep.mubr.bf16.mxu0 0
      %840 = vmatmul.mubr.bf16.gmra.mrb[0].mxu0 %v796
      %v841 = vpop.f32.mrb[0].mxu0
      %v842 = vadd.f32 0.0, %v841
      %v843 = vpop.f32.mrb[0].mxu0
      %v844 = vpop.f32.mrb[0].mxu0
      %v845 = vadd.f32 0.0, %v844
      %v846 = vpop.f32.mrb[0].mxu0
      %847 = vmatprep.mubr.bf16.mxu0 0
      %848 = vmatmul.mubr.bf16.gmra.mrb[0].mxu0 %v799
      %v849 = vpop.f32.mrb[0].mxu0
      %v850 = vadd.f32 0.0, %v849
      %v851 = vpop.f32.mrb[0].mxu0
      %v852 = vpop.f32.mrb[0].mxu0
      %v853 = vadd.f32 0.0, %v852
      %v854 = vpop.f32.mrb[0].mxu0
      %855 = vmatprep.mubr.bf16.mxu0 0
      %856 = vmatmul.mubr.bf16.gmra.mrb[0].mxu0 %v802
      %v857 = vpop.f32.mrb[0].mxu0
      %v858 = vadd.f32 0.0, %v857
      %v859 = vpop.f32.mrb[0].mxu0
      %v860 = vpop.f32.mrb[0].mxu0
      %v861 = vpop.f32.mrb[0].mxu0
      %862 = vdwg.mxu0
      %v863 = vadd.f32 %v769, %v842
      %v864 = vadd.f32 %v770, %v845
      %v865 = vadd.f32 %v771, %v850
      %v866 = vadd.f32 %v772, %v853
      %v867 = vadd.f32 %v773, %v858
      %v868 = vld [vmem:[%s680] sm:$0xf]
      %v869 = vld [vmem:[%s680 + $0x4] sm:$0xf]
      %v870 = vld [vmem:[%s680 + $0x8] sm:$0xf]
      %v871 = vld [vmem:[%s680 + $0xc] sm:$0xf]
      %v872 = vld [vmem:[%s680 + $0x10] sm:$0xf]
      %v873 = vld [vmem:[%s680 + $0x14] sm:$0x1]
      %s874 = scalar_lea.vmem %s2, 24
      %v875 = vld [vmem:[%s874] sm:$0xf]
      %v882 = vunpack.c.l.b16 %v868
      %v883 = vunpack.c.l.b16 %v869
      %v884 = vunpack.c.l.b16 %v870
      %v885 = vunpack.c.l.b16 %v871
      %v886 = vunpack.c.l.b16 %v872
      %v887 = vunpack.c.l.b16 %v873
      %v888 = vpack.c.b16 %v883, %v882
      %v889 = vpack.c.b16 %v885, %v884
      %v890 = vpack.c.b16 %v887, %v886
      %v892 = vshrl.u32 %v888, 16
      %v894 = vshll.u32 %v888, 16
      %v896 = vrot.slane %v894, 1
      %v897 = vor.u32 %v892, %v896
      %v899 = vshll.u32 %v889, 16
      %v901 = vrot.slane %v899, 1
      %v902 = vsel %vm464, %v897, %v901
      %v903 = vshrl.u32 %v889, 16
      %v905 = vor.u32 %v903, %v901
      %v907 = vshll.u32 %v890, 16
      %v909 = vrot.slane %v907, 1
      %v910 = vsel %vm464, %v905, %v909
      %v911 = vshrl.u32 %v890, 16
      %v913 = vor.u32 %v911, %v909
      %v915 = vsel %vm290, %v902, 0
      %v918 = vsel %vm290, %v910, 0
      %v921 = vsel %vm290, %v913, 0
      %v924 = vsel %vm300, %v875, 0
      %926 = vmatprep.subr.bf16.mxu0 0
      %927 = vmatpush1.bf16.msra.mxu0 %v924
      %928 = vmatprep.subr.bf16.mxu0 0
      %929 = vmatpush1.bf16.msra.mxu0 0
      %930 = vmatprep.subr.bf16.mxu0 0
      %931 = vmatpush1.bf16.msra.mxu0 0
      %932 = vmatprep.subr.bf16.mxu0 0
      %933 = vmatpush1.bf16.msra.mxu0 0
      %934 = vmatprep.subr.bf16.mxu0 0
      %935 = vmatpush1.bf16.msra.mxu0 0
      %936 = vmatprep.subr.bf16.mxu0 0
      %937 = vmatpush1.bf16.msra.mxu0 0
      %938 = vmatprep.subr.bf16.mxu0 0
      %939 = vmatpush1.bf16.msra.mxu0 0
      %940 = vmatprep.subr.bf16.mxu0 0
      %941 = vmatpush1.bf16.msra.mxu0 0
      %942 = vmatprep.subr.bf16.mxu0 0
      %943 = vmatpush1.bf16.msra.mxu0 0
      %944 = vmatprep.subr.bf16.mxu0 0
      %945 = vmatpush1.bf16.msra.mxu0 0
      %946 = vmatprep.subr.bf16.mxu0 0
      %947 = vmatpush1.bf16.msra.mxu0 0
      %948 = vmatprep.subr.bf16.mxu0 0
      %949 = vmatpush1.bf16.msra.mxu0 0
      %950 = vmatprep.subr.bf16.mxu0 0
      %951 = vmatpush1.bf16.msra.mxu0 0
      %952 = vmatprep.subr.bf16.mxu0 0
      %953 = vmatpush1.bf16.msra.mxu0 0
      %954 = vmatprep.subr.bf16.mxu0 0
      %955 = vmatpush1.bf16.msra.mxu0 0
      %956 = vmatprep.subr.bf16.mxu0 0
      %957 = vmatpush1.bf16.msra.mxu0 0
      %958 = vmatprep.mubr.bf16.mxu0 0
      %959 = vmatmul.mubr.bf16.gmra.mrb[0].mxu0 %v915
      %v960 = vpop.f32.mrb[0].mxu0
      %v961 = vadd.f32 0.0, %v960
      %v962 = vpop.f32.mrb[0].mxu0
      %v963 = vpop.f32.mrb[0].mxu0
      %v964 = vadd.f32 0.0, %v963
      %v965 = vpop.f32.mrb[0].mxu0
      %966 = vmatprep.mubr.bf16.mxu0 0
      %967 = vmatmul.mubr.bf16.gmra.mrb[0].mxu0 %v918
      %v968 = vpop.f32.mrb[0].mxu0
      %v969 = vadd.f32 0.0, %v968
      %v970 = vpop.f32.mrb[0].mxu0
      %v971 = vpop.f32.mrb[0].mxu0
      %v972 = vadd.f32 0.0, %v971
      %v973 = vpop.f32.mrb[0].mxu0
      %974 = vmatprep.mubr.bf16.mxu0 0
      %975 = vmatmul.mubr.bf16.gmra.mrb[0].mxu0 %v921
      %v976 = vpop.f32.mrb[0].mxu0
      %v977 = vadd.f32 0.0, %v976
      %v978 = vpop.f32.mrb[0].mxu0
      %v979 = vpop.f32.mrb[0].mxu0
      %v980 = vpop.f32.mrb[0].mxu0
      %981 = vdwg.mxu0
      %v982 = vadd.f32 %v863, %v961
      %v983 = vadd.f32 %v864, %v964
      %v984 = vadd.f32 %v865, %v969
      %v985 = vadd.f32 %v866, %v972
      %v986 = vadd.f32 %v867, %v977
      %v987 = vld [vmem:[%s774] sm:$0xf]
      %v988 = vld [vmem:[%s774 + $0x4] sm:$0xf]
      %v989 = vld [vmem:[%s774 + $0x8] sm:$0xf]
      %v990 = vld [vmem:[%s774 + $0xc] sm:$0xf]
      %v991 = vld [vmem:[%s774 + $0x10] sm:$0xf]
      %v992 = vld [vmem:[%s774 + $0x14] sm:$0x1]
      %s993 = scalar_lea.vmem %s2, 28
      %v994 = vld [vmem:[%s993] sm:$0xf]
      %v1001 = vunpack.c.l.b16 %v987
      %v1002 = vunpack.c.l.b16 %v988
      %v1003 = vunpack.c.l.b16 %v989
      %v1004 = vunpack.c.l.b16 %v990
      %v1005 = vunpack.c.l.b16 %v991
      %v1006 = vunpack.c.l.b16 %v992
      %v1007 = vpack.c.b16 %v1002, %v1001
      %v1008 = vpack.c.b16 %v1004, %v1003
      %v1009 = vpack.c.b16 %v1006, %v1005
      %v1011 = vshrl.u32 %v1007, 16
      %v1013 = vshll.u32 %v1007, 16
      %v1015 = vrot.slane %v1013, 1
      %v1016 = vor.u32 %v1011, %v1015
      %v1018 = vshll.u32 %v1008, 16
      %v1020 = vrot.slane %v1018, 1
      %v1021 = vsel %vm464, %v1016, %v1020
      %v1022 = vshrl.u32 %v1008, 16
      %v1024 = vor.u32 %v1022, %v1020
      %v1026 = vshll.u32 %v1009, 16
      %v1028 = vrot.slane %v1026, 1
      %v1029 = vsel %vm464, %v1024, %v1028
      %v1030 = vshrl.u32 %v1009, 16
      %v1032 = vor.u32 %v1030, %v1028
      %v1034 = vsel %vm290, %v1021, 0
      %v1037 = vsel %vm290, %v1029, 0
      %v1040 = vsel %vm290, %v1032, 0
      %v1043 = vsel %vm300, %v994, 0
      %1045 = vmatprep.subr.bf16.mxu0 0
      %1046 = vmatpush1.bf16.msra.mxu0 %v1043
      %1047 = vmatprep.subr.bf16.mxu0 0
      %1048 = vmatpush1.bf16.msra.mxu0 0
      %1049 = vmatprep.subr.bf16.mxu0 0
      %1050 = vmatpush1.bf16.msra.mxu0 0
      %1051 = vmatprep.subr.bf16.mxu0 0
      %1052 = vmatpush1.bf16.msra.mxu0 0
      %1053 = vmatprep.subr.bf16.mxu0 0
      %1054 = vmatpush1.bf16.msra.mxu0 0
      %1055 = vmatprep.subr.bf16.mxu0 0
      %1056 = vmatpush1.bf16.msra.mxu0 0
      %1057 = vmatprep.subr.bf16.mxu0 0
      %1058 = vmatpush1.bf16.msra.mxu0 0
      %1059 = vmatprep.subr.bf16.mxu0 0
      %1060 = vmatpush1.bf16.msra.mxu0 0
      %1061 = vmatprep.subr.bf16.mxu0 0
      %1062 = vmatpush1.bf16.msra.mxu0 0
      %1063 = vmatprep.subr.bf16.mxu0 0
      %1064 = vmatpush1.bf16.msra.mxu0 0
      %1065 = vmatprep.subr.bf16.mxu0 0
      %1066 = vmatpush1.bf16.msra.mxu0 0
      %1067 = vmatprep.subr.bf16.mxu0 0
      %1068 = vmatpush1.bf16.msra.mxu0 0
      %1069 = vmatprep.subr.bf16.mxu0 0
      %1070 = vmatpush1.bf16.msra.mxu0 0
      %1071 = vmatprep.subr.bf16.mxu0 0
      %1072 = vmatpush1.bf16.msra.mxu0 0
      %1073 = vmatprep.subr.bf16.mxu0 0
      %1074 = vmatpush1.bf16.msra.mxu0 0
      %1075 = vmatprep.subr.bf16.mxu0 0
      %1076 = vmatpush1.bf16.msra.mxu0 0
      %1077 = vmatprep.mubr.bf16.mxu0 0
      %1078 = vmatmul.mubr.bf16.gmra.mrb[0].mxu0 %v1034
      %v1079 = vpop.f32.mrb[0].mxu0
      %v1080 = vadd.f32 0.0, %v1079
      %v1081 = vpop.f32.mrb[0].mxu0
      %v1082 = vpop.f32.mrb[0].mxu0
      %v1083 = vadd.f32 0.0, %v1082
      %v1084 = vpop.f32.mrb[0].mxu0
      %1085 = vmatprep.mubr.bf16.mxu0 0
      %1086 = vmatmul.mubr.bf16.gmra.mrb[0].mxu0 %v1037
      %v1087 = vpop.f32.mrb[0].mxu0
      %v1088 = vadd.f32 0.0, %v1087
      %v1089 = vpop.f32.mrb[0].mxu0
      %v1090 = vpop.f32.mrb[0].mxu0
      %v1091 = vadd.f32 0.0, %v1090
      %v1092 = vpop.f32.mrb[0].mxu0
      %1093 = vmatprep.mubr.bf16.mxu0 0
      %1094 = vmatmul.mubr.bf16.gmra.mrb[0].mxu0 %v1040
      %v1095 = vpop.f32.mrb[0].mxu0
      %v1096 = vadd.f32 0.0, %v1095
      %v1097 = vpop.f32.mrb[0].mxu0
      %v1098 = vpop.f32.mrb[0].mxu0
      %v1099 = vpop.f32.mrb[0].mxu0
      %1100 = vdwg.mxu0
      %v1101 = vadd.f32 %v982, %v1080
      %v1102 = vadd.f32 %v983, %v1083
      %v1103 = vadd.f32 %v984, %v1088
      %v1104 = vadd.f32 %v985, %v1091
      %v1105 = vadd.f32 %v986, %v1096
      %v1106 = vld [vmem:[%s244] sm:$0x8]
      %v1107 = vld [vmem:[%s244 + $0x14] sm:$0xf]
      %s1108 = scalar_lea.vmem %s2, 32
      %v1109 = vld [vmem:[%s1108] sm:$0xf]
      %v1112 = vunpack.c.l.b16 %v1106
      %v1113 = vunpack.c.l.b16 %v1107
      %v1114 = vpack.c.b16 %v456, %v1112
      %v1115 = vpack.c.b16 %v1113, %v459
      %vm1116 = vsmask.f32 4352
      %v1118 = vshrl.u32 %v1114, 16
      %v1120 = vrot.slane %v1118, 3
      %v1121 = vshll.u32 %v1114, 16
      %v1123 = vrot.slane %v1121, 4
      %v1124 = vor.u32 %v1120, %v1123
      %v1125 = vrot.slane %v477, 3
      %v1126 = vrot.slane %v473, 4
      %v1127 = vor.u32 %v1125, %v1126
      %v1128 = vsel %vm1116, %v1124, %v1127
      %v1130 = vshrl.u32 %v1115, 16
      %v1132 = vrot.slane %v1130, 3
      %v1133 = vshll.u32 %v1115, 16
      %v1135 = vrot.slane %v1133, 4
      %v1136 = vor.u32 %v1132, %v1135
      %v1137 = vsel %vm1116, %v1127, %v1136
      %v1139 = vsel %vm290, %v1128, 0
      %v1142 = vsel %vm290, %v1137, 0
      %v1145 = vsel %vm290, %v1136, 0
      %v1148 = vsel %vm300, %v1109, 0
      %1150 = vmatprep.subr.bf16.mxu0 0
      %1151 = vmatpush1.bf16.msra.mxu0 %v1148
      %1152 = vmatprep.subr.bf16.mxu0 0
      %1153 = vmatpush1.bf16.msra.mxu0 0
      %1154 = vmatprep.subr.bf16.mxu0 0
      %1155 = vmatpush1.bf16.msra.mxu0 0
      %1156 = vmatprep.subr.bf16.mxu0 0
      %1157 = vmatpush1.bf16.msra.mxu0 0
      %1158 = vmatprep.subr.bf16.mxu0 0
      %1159 = vmatpush1.bf16.msra.mxu0 0
      %1160 = vmatprep.subr.bf16.mxu0 0
      %1161 = vmatpush1.bf16.msra.mxu0 0
      %1162 = vmatprep.subr.bf16.mxu0 0
      %1163 = vmatpush1.bf16.msra.mxu0 0
      %1164 = vmatprep.subr.bf16.mxu0 0
      %1165 = vmatpush1.bf16.msra.mxu0 0
      %1166 = vmatprep.subr.bf16.mxu0 0
      %1167 = vmatpush1.bf16.msra.mxu0 0
      %1168 = vmatprep.subr.bf16.mxu0 0
      %1169 = vmatpush1.bf16.msra.mxu0 0
      %1170 = vmatprep.subr.bf16.mxu0 0
      %1171 = vmatpush1.bf16.msra.mxu0 0
      %1172 = vmatprep.subr.bf16.mxu0 0
      %1173 = vmatpush1.bf16.msra.mxu0 0
      %1174 = vmatprep.subr.bf16.mxu0 0
      %1175 = vmatpush1.bf16.msra.mxu0 0
      %1176 = vmatprep.subr.bf16.mxu0 0
      %1177 = vmatpush1.bf16.msra.mxu0 0
      %1178 = vmatprep.subr.bf16.mxu0 0
      %1179 = vmatpush1.bf16.msra.mxu0 0
      %1180 = vmatprep.subr.bf16.mxu0 0
      %1181 = vmatpush1.bf16.msra.mxu0 0
      %1182 = vmatprep.mubr.bf16.mxu0 0
      %1183 = vmatmul.mubr.bf16.gmra.mrb[0].mxu0 %v1139
      %v1184 = vpop.f32.mrb[0].mxu0
      %v1185 = vadd.f32 0.0, %v1184
      %v1186 = vpop.f32.mrb[0].mxu0
      %v1187 = vpop.f32.mrb[0].mxu0
      %v1188 = vadd.f32 0.0, %v1187
      %v1189 = vpop.f32.mrb[0].mxu0
      %1190 = vmatprep.mubr.bf16.mxu0 0
      %1191 = vmatmul.mubr.bf16.gmra.mrb[0].mxu0 %v1142
      %v1192 = vpop.f32.mrb[0].mxu0
      %v1193 = vadd.f32 0.0, %v1192
      %v1194 = vpop.f32.mrb[0].mxu0
      %v1195 = vpop.f32.mrb[0].mxu0
      %v1196 = vadd.f32 0.0, %v1195
      %v1197 = vpop.f32.mrb[0].mxu0
      %1198 = vmatprep.mubr.bf16.mxu0 0
      %1199 = vmatmul.mubr.bf16.gmra.mrb[0].mxu0 %v1145
      %v1200 = vpop.f32.mrb[0].mxu0
      %v1201 = vadd.f32 0.0, %v1200
      %v1202 = vpop.f32.mrb[0].mxu0
      %v1203 = vpop.f32.mrb[0].mxu0
      %v1204 = vpop.f32.mrb[0].mxu0
      %1205 = vdwg.mxu0
      %v1206 = vadd.f32 %v1101, %v1185
      %v1207 = vadd.f32 %v1102, %v1188
      %v1208 = vadd.f32 %v1103, %v1193
      %v1209 = vadd.f32 %v1104, %v1196
      %v1210 = vadd.f32 %v1105, %v1201
      %v1211 = vld [vmem:[%s269] sm:$0x8]
      %v1212 = vld [vmem:[%s269 + $0x14] sm:$0xf]
      %s1213 = scalar_lea.vmem %s2, 36
      %v1214 = vld [vmem:[%s1213] sm:$0xf]
      %v1217 = vunpack.c.l.b16 %v1211
      %v1218 = vunpack.c.l.b16 %v1212
      %v1219 = vpack.c.b16 %v576, %v1217
      %v1220 = vpack.c.b16 %v1218, %v579
      %v1222 = vshrl.u32 %v1219, 16
      %v1224 = vrot.slane %v1222, 3
      %v1225 = vshll.u32 %v1219, 16
      %v1227 = vrot.slane %v1225, 4
      %v1228 = vor.u32 %v1224, %v1227
      %v1229 = vrot.slane %v596, 3
      %v1230 = vrot.slane %v592, 4
      %v1231 = vor.u32 %v1229, %v1230
      %v1232 = vsel %vm1116, %v1228, %v1231
      %v1234 = vshrl.u32 %v1220, 16
      %v1236 = vrot.slane %v1234, 3
      %v1237 = vshll.u32 %v1220, 16
      %v1239 = vrot.slane %v1237, 4
      %v1240 = vor.u32 %v1236, %v1239
      %v1241 = vsel %vm1116, %v1231, %v1240
      %v1243 = vsel %vm290, %v1232, 0
      %v1246 = vsel %vm290, %v1241, 0
      %v1249 = vsel %vm290, %v1240, 0
      %v1252 = vsel %vm300, %v1214, 0
      %1254 = vmatprep.subr.bf16.mxu0 0
      %1255 = vmatpush1.bf16.msra.mxu0 %v1252
      %1256 = vmatprep.subr.bf16.mxu0 0
      %1257 = vmatpush1.bf16.msra.mxu0 0
      %1258 = vmatprep.subr.bf16.mxu0 0
      %1259 = vmatpush1.bf16.msra.mxu0 0
      %1260 = vmatprep.subr.bf16.mxu0 0
      %1261 = vmatpush1.bf16.msra.mxu0 0
      %1262 = vmatprep.subr.bf16.mxu0 0
      %1263 = vmatpush1.bf16.msra.mxu0 0
      %1264 = vmatprep.subr.bf16.mxu0 0
      %1265 = vmatpush1.bf16.msra.mxu0 0
      %1266 = vmatprep.subr.bf16.mxu0 0
      %1267 = vmatpush1.bf16.msra.mxu0 0
      %1268 = vmatprep.subr.bf16.mxu0 0
      %1269 = vmatpush1.bf16.msra.mxu0 0
      %1270 = vmatprep.subr.bf16.mxu0 0
      %1271 = vmatpush1.bf16.msra.mxu0 0
      %1272 = vmatprep.subr.bf16.mxu0 0
      %1273 = vmatpush1.bf16.msra.mxu0 0
      %1274 = vmatprep.subr.bf16.mxu0 0
      %1275 = vmatpush1.bf16.msra.mxu0 0
      %1276 = vmatprep.subr.bf16.mxu0 0
      %1277 = vmatpush1.bf16.msra.mxu0 0
      %1278 = vmatprep.subr.bf16.mxu0 0
      %1279 = vmatpush1.bf16.msra.mxu0 0
      %1280 = vmatprep.subr.bf16.mxu0 0
      %1281 = vmatpush1.bf16.msra.mxu0 0
      %1282 = vmatprep.subr.bf16.mxu0 0
      %1283 = vmatpush1.bf16.msra.mxu0 0
      %1284 = vmatprep.subr.bf16.mxu0 0
      %1285 = vmatpush1.bf16.msra.mxu0 0
      %1286 = vmatprep.mubr.bf16.mxu0 0
      %1287 = vmatmul.mubr.bf16.gmra.mrb[0].mxu0 %v1243
      %v1288 = vpop.f32.mrb[0].mxu0
      %v1289 = vadd.f32 0.0, %v1288
      %v1290 = vpop.f32.mrb[0].mxu0
      %v1291 = vpop.f32.mrb[0].mxu0
      %v1292 = vadd.f32 0.0, %v1291
      %v1293 = vpop.f32.mrb[0].mxu0
      %1294 = vmatprep.mubr.bf16.mxu0 0
      %1295 = vmatmul.mubr.bf16.gmra.mrb[0].mxu0 %v1246
      %v1296 = vpop.f32.mrb[0].mxu0
      %v1297 = vadd.f32 0.0, %v1296
      %v1298 = vpop.f32.mrb[0].mxu0
      %v1299 = vpop.f32.mrb[0].mxu0
      %v1300 = vadd.f32 0.0, %v1299
      %v1301 = vpop.f32.mrb[0].mxu0
      %1302 = vmatprep.mubr.bf16.mxu0 0
      %1303 = vmatmul.mubr.bf16.gmra.mrb[0].mxu0 %v1249
      %v1304 = vpop.f32.mrb[0].mxu0
      %v1305 = vadd.f32 0.0, %v1304
      %v1306 = vpop.f32.mrb[0].mxu0
      %v1307 = vpop.f32.mrb[0].mxu0
      %v1308 = vpop.f32.mrb[0].mxu0
      %1309 = vdwg.mxu0
      %v1310 = vadd.f32 %v1206, %v1289
      %v1311 = vadd.f32 %v1207, %v1292
      %v1312 = vadd.f32 %v1208, %v1297
      %v1313 = vadd.f32 %v1209, %v1300
      %v1314 = vadd.f32 %v1210, %v1305
      %s1315 = scalar_lea.vmem %s2, 40
      %v1316 = vld [vmem:[%s1315] sm:$0xf]
      %v1317 = vpack.c.b16 %v457, %v456
      %v1318 = vpack.c.b16 %v459, %v458
      %v1319 = vpack.c.b16 %v1113, %v1113
      %v1321 = vsel %vm290, %v1317, 0
      %v1324 = vsel %vm290, %v1318, 0
      %v1327 = vsel %vm290, %v1319, 0
      %v1330 = vsel %vm300, %v1316, 0
      %1332 = vmatprep.subr.bf16.mxu0 0
      %1333 = vmatpush1.bf16.msra.mxu0 %v1330
      %1334 = vmatprep.subr.bf16.mxu0 0
      %1335 = vmatpush1.bf16.msra.mxu0 0
      %1336 = vmatprep.subr.bf16.mxu0 0
      %1337 = vmatpush1.bf16.msra.mxu0 0
      %1338 = vmatprep.subr.bf16.mxu0 0
      %1339 = vmatpush1.bf16.msra.mxu0 0
      %1340 = vmatprep.subr.bf16.mxu0 0
      %1341 = vmatpush1.bf16.msra.mxu0 0
      %1342 = vmatprep.subr.bf16.mxu0 0
      %1343 = vmatpush1.bf16.msra.mxu0 0
      %1344 = vmatprep.subr.bf16.mxu0 0
      %1345 = vmatpush1.bf16.msra.mxu0 0
      %1346 = vmatprep.subr.bf16.mxu0 0
      %1347 = vmatpush1.bf16.msra.mxu0 0
      %1348 = vmatprep.subr.bf16.mxu0 0
      %1349 = vmatpush1.bf16.msra.mxu0 0
      %1350 = vmatprep.subr.bf16.mxu0 0
      %1351 = vmatpush1.bf16.msra.mxu0 0
      %1352 = vmatprep.subr.bf16.mxu0 0
      %1353 = vmatpush1.bf16.msra.mxu0 0
      %1354 = vmatprep.subr.bf16.mxu0 0
      %1355 = vmatpush1.bf16.msra.mxu0 0
      %1356 = vmatprep.subr.bf16.mxu0 0
      %1357 = vmatpush1.bf16.msra.mxu0 0
      %1358 = vmatprep.subr.bf16.mxu0 0
      %1359 = vmatpush1.bf16.msra.mxu0 0
      %1360 = vmatprep.subr.bf16.mxu0 0
      %1361 = vmatpush1.bf16.msra.mxu0 0
      %1362 = vmatprep.subr.bf16.mxu0 0
      %1363 = vmatpush1.bf16.msra.mxu0 0
      %1364 = vmatprep.mubr.bf16.mxu0 0
      %1365 = vmatmul.mubr.bf16.gmra.mrb[0].mxu0 %v1321
      %v1366 = vpop.f32.mrb[0].mxu0
      %v1367 = vadd.f32 0.0, %v1366
      %v1368 = vpop.f32.mrb[0].mxu0
      %v1369 = vpop.f32.mrb[0].mxu0
      %v1370 = vadd.f32 0.0, %v1369
      %v1371 = vpop.f32.mrb[0].mxu0
      %1372 = vmatprep.mubr.bf16.mxu0 0
      %1373 = vmatmul.mubr.bf16.gmra.mrb[0].mxu0 %v1324
      %v1374 = vpop.f32.mrb[0].mxu0
      %v1375 = vadd.f32 0.0, %v1374
      %v1376 = vpop.f32.mrb[0].mxu0
      %v1377 = vpop.f32.mrb[0].mxu0
      %v1378 = vadd.f32 0.0, %v1377
      %v1379 = vpop.f32.mrb[0].mxu0
      %1380 = vmatprep.mubr.bf16.mxu0 0
      %1381 = vmatmul.mubr.bf16.gmra.mrb[0].mxu0 %v1327
      %v1382 = vpop.f32.mrb[0].mxu0
      %v1383 = vadd.f32 0.0, %v1382
      %v1384 = vpop.f32.mrb[0].mxu0
      %v1385 = vpop.f32.mrb[0].mxu0
      %v1386 = vpop.f32.mrb[0].mxu0
      %1387 = vdwg.mxu0
      %v1388 = vadd.f32 %v1310, %v1367
      %v1389 = vadd.f32 %v1311, %v1370
      %v1390 = vadd.f32 %v1312, %v1375
      %v1391 = vadd.f32 %v1313, %v1378
      %v1392 = vadd.f32 %v1314, %v1383
      %s1393 = scalar_lea.vmem %s2, 44
      %v1394 = vld [vmem:[%s1393] sm:$0xf]
      %v1395 = vpack.c.b16 %v577, %v576
      %v1396 = vpack.c.b16 %v579, %v578
      %v1397 = vpack.c.b16 %v1218, %v1218
      %v1399 = vsel %vm290, %v1395, 0
      %v1402 = vsel %vm290, %v1396, 0
      %v1405 = vsel %vm290, %v1397, 0
      %v1408 = vsel %vm300, %v1394, 0
      %1410 = vmatprep.subr.bf16.mxu0 0
      %1411 = vmatpush1.bf16.msra.mxu0 %v1408
      %1412 = vmatprep.subr.bf16.mxu0 0
      %1413 = vmatpush1.bf16.msra.mxu0 0
      %1414 = vmatprep.subr.bf16.mxu0 0
      %1415 = vmatpush1.bf16.msra.mxu0 0
      %1416 = vmatprep.subr.bf16.mxu0 0
      %1417 = vmatpush1.bf16.msra.mxu0 0
      %1418 = vmatprep.subr.bf16.mxu0 0
      %1419 = vmatpush1.bf16.msra.mxu0 0
      %1420 = vmatprep.subr.bf16.mxu0 0
      %1421 = vmatpush1.bf16.msra.mxu0 0
      %1422 = vmatprep.subr.bf16.mxu0 0
      %1423 = vmatpush1.bf16.msra.mxu0 0
      %1424 = vmatprep.subr.bf16.mxu0 0
      %1425 = vmatpush1.bf16.msra.mxu0 0
      %1426 = vmatprep.subr.bf16.mxu0 0
      %1427 = vmatpush1.bf16.msra.mxu0 0
      %1428 = vmatprep.subr.bf16.mxu0 0
      %1429 = vmatpush1.bf16.msra.mxu0 0
      %1430 = vmatprep.subr.bf16.mxu0 0
      %1431 = vmatpush1.bf16.msra.mxu0 0
      %1432 = vmatprep.subr.bf16.mxu0 0
      %1433 = vmatpush1.bf16.msra.mxu0 0
      %1434 = vmatprep.subr.bf16.mxu0 0
      %1435 = vmatpush1.bf16.msra.mxu0 0
      %1436 = vmatprep.subr.bf16.mxu0 0
      %1437 = vmatpush1.bf16.msra.mxu0 0
      %1438 = vmatprep.subr.bf16.mxu0 0
      %1439 = vmatpush1.bf16.msra.mxu0 0
      %1440 = vmatprep.subr.bf16.mxu0 0
      %1441 = vmatpush1.bf16.msra.mxu0 0
      %1442 = vmatprep.mubr.bf16.mxu0 0
      %1443 = vmatmul.mubr.bf16.gmra.mrb[0].mxu0 %v1399
      %v1444 = vpop.f32.mrb[0].mxu0
      %v1445 = vadd.f32 0.0, %v1444
      %v1446 = vpop.f32.mrb[0].mxu0
      %v1447 = vpop.f32.mrb[0].mxu0
      %v1448 = vadd.f32 0.0, %v1447
      %v1449 = vpop.f32.mrb[0].mxu0
      %1450 = vmatprep.mubr.bf16.mxu0 0
      %1451 = vmatmul.mubr.bf16.gmra.mrb[0].mxu0 %v1402
      %v1452 = vpop.f32.mrb[0].mxu0
      %v1453 = vadd.f32 0.0, %v1452
      %v1454 = vpop.f32.mrb[0].mxu0
      %v1455 = vpop.f32.mrb[0].mxu0
      %v1456 = vadd.f32 0.0, %v1455
      %v1457 = vpop.f32.mrb[0].mxu0
      %1458 = vmatprep.mubr.bf16.mxu0 0
      %1459 = vmatmul.mubr.bf16.gmra.mrb[0].mxu0 %v1405
      %v1460 = vpop.f32.mrb[0].mxu0
      %v1461 = vadd.f32 0.0, %v1460
      %v1462 = vpop.f32.mrb[0].mxu0
      %v1463 = vpop.f32.mrb[0].mxu0
      %v1464 = vpop.f32.mrb[0].mxu0
      %1465 = vdwg.mxu0
      %v1466 = vadd.f32 %v1388, %v1445
      %v1467 = vadd.f32 %v1389, %v1448
      %v1468 = vadd.f32 %v1390, %v1453
      %v1469 = vadd.f32 %v1391, %v1456
      %v1470 = vadd.f32 %v1392, %v1461
      %v1471 = vld [vmem:[%s680] sm:$0x8]
      %v1472 = vld [vmem:[%s680 + $0x14] sm:$0xf]
      %s1473 = scalar_lea.vmem %s2, 48
      %v1474 = vld [vmem:[%s1473] sm:$0xf]
      %v1477 = vunpack.c.l.b16 %v1471
      %v1478 = vunpack.c.l.b16 %v1472
      %v1479 = vpack.c.b16 %v883, %v1477
      %v1480 = vpack.c.b16 %v1478, %v886
      %v1482 = vshrl.u32 %v1479, 16
      %v1484 = vrot.slane %v1482, 3
      %v1485 = vshll.u32 %v1479, 16
      %v1487 = vrot.slane %v1485, 4
      %v1488 = vor.u32 %v1484, %v1487
      %v1489 = vrot.slane %v903, 3
      %v1490 = vrot.slane %v899, 4
      %v1491 = vor.u32 %v1489, %v1490
      %v1492 = vsel %vm1116, %v1488, %v1491
      %v1494 = vshrl.u32 %v1480, 16
      %v1496 = vrot.slane %v1494, 3
      %v1497 = vshll.u32 %v1480, 16
      %v1499 = vrot.slane %v1497, 4
      %v1500 = vor.u32 %v1496, %v1499
      %v1501 = vsel %vm1116, %v1491, %v1500
      %v1503 = vsel %vm290, %v1492, 0
      %v1506 = vsel %vm290, %v1501, 0
      %v1509 = vsel %vm290, %v1500, 0
      %v1512 = vsel %vm300, %v1474, 0
      %1514 = vmatprep.subr.bf16.mxu0 0
      %1515 = vmatpush1.bf16.msra.mxu0 %v1512
      %1516 = vmatprep.subr.bf16.mxu0 0
      %1517 = vmatpush1.bf16.msra.mxu0 0
      %1518 = vmatprep.subr.bf16.mxu0 0
      %1519 = vmatpush1.bf16.msra.mxu0 0
      %1520 = vmatprep.subr.bf16.mxu0 0
      %1521 = vmatpush1.bf16.msra.mxu0 0
      %1522 = vmatprep.subr.bf16.mxu0 0
      %1523 = vmatpush1.bf16.msra.mxu0 0
      %1524 = vmatprep.subr.bf16.mxu0 0
      %1525 = vmatpush1.bf16.msra.mxu0 0
      %1526 = vmatprep.subr.bf16.mxu0 0
      %1527 = vmatpush1.bf16.msra.mxu0 0
      %1528 = vmatprep.subr.bf16.mxu0 0
      %1529 = vmatpush1.bf16.msra.mxu0 0
      %1530 = vmatprep.subr.bf16.mxu0 0
      %1531 = vmatpush1.bf16.msra.mxu0 0
      %1532 = vmatprep.subr.bf16.mxu0 0
      %1533 = vmatpush1.bf16.msra.mxu0 0
      %1534 = vmatprep.subr.bf16.mxu0 0
      %1535 = vmatpush1.bf16.msra.mxu0 0
      %1536 = vmatprep.subr.bf16.mxu0 0
      %1537 = vmatpush1.bf16.msra.mxu0 0
      %1538 = vmatprep.subr.bf16.mxu0 0
      %1539 = vmatpush1.bf16.msra.mxu0 0
      %1540 = vmatprep.subr.bf16.mxu0 0
      %1541 = vmatpush1.bf16.msra.mxu0 0
      %1542 = vmatprep.subr.bf16.mxu0 0
      %1543 = vmatpush1.bf16.msra.mxu0 0
      %1544 = vmatprep.subr.bf16.mxu0 0
      %1545 = vmatpush1.bf16.msra.mxu0 0
      %1546 = vmatprep.mubr.bf16.mxu0 0
      %1547 = vmatmul.mubr.bf16.gmra.mrb[0].mxu0 %v1503
      %v1548 = vpop.f32.mrb[0].mxu0
      %v1549 = vadd.f32 0.0, %v1548
      %v1550 = vpop.f32.mrb[0].mxu0
      %v1551 = vpop.f32.mrb[0].mxu0
      %v1552 = vadd.f32 0.0, %v1551
      %v1553 = vpop.f32.mrb[0].mxu0
      %1554 = vmatprep.mubr.bf16.mxu0 0
      %1555 = vmatmul.mubr.bf16.gmra.mrb[0].mxu0 %v1506
      %v1556 = vpop.f32.mrb[0].mxu0
      %v1557 = vadd.f32 0.0, %v1556
      %v1558 = vpop.f32.mrb[0].mxu0
      %v1559 = vpop.f32.mrb[0].mxu0
      %v1560 = vadd.f32 0.0, %v1559
      %v1561 = vpop.f32.mrb[0].mxu0
      %1562 = vmatprep.mubr.bf16.mxu0 0
      %1563 = vmatmul.mubr.bf16.gmra.mrb[0].mxu0 %v1509
      %v1564 = vpop.f32.mrb[0].mxu0
      %v1565 = vadd.f32 0.0, %v1564
      %v1566 = vpop.f32.mrb[0].mxu0
      %v1567 = vpop.f32.mrb[0].mxu0
      %v1568 = vpop.f32.mrb[0].mxu0
      %1569 = vdwg.mxu0
      %v1570 = vadd.f32 %v1466, %v1549
      %v1571 = vadd.f32 %v1467, %v1552
      %v1572 = vadd.f32 %v1468, %v1557
      %v1573 = vadd.f32 %v1469, %v1560
      %v1574 = vadd.f32 %v1470, %v1565
      %v1575 = vld [vmem:[%s774] sm:$0x8]
      %v1576 = vld [vmem:[%s774 + $0x14] sm:$0xf]
      %s1577 = scalar_lea.vmem %s2, 52
      %v1578 = vld [vmem:[%s1577] sm:$0xf]
      %v1581 = vunpack.c.l.b16 %v1575
      %v1582 = vunpack.c.l.b16 %v1576
      %v1583 = vpack.c.b16 %v1002, %v1581
      %v1584 = vpack.c.b16 %v1582, %v1005
      %v1586 = vshrl.u32 %v1583, 16
      %v1588 = vrot.slane %v1586, 3
      %v1589 = vshll.u32 %v1583, 16
      %v1591 = vrot.slane %v1589, 4
      %v1592 = vor.u32 %v1588, %v1591
      %v1593 = vrot.slane %v1022, 3
      %v1594 = vrot.slane %v1018, 4
      %v1595 = vor.u32 %v1593, %v1594
      %v1596 = vsel %vm1116, %v1592, %v1595
      %v1598 = vshrl.u32 %v1584, 16
      %v1600 = vrot.slane %v1598, 3
      %v1601 = vshll.u32 %v1584, 16
      %v1603 = vrot.slane %v1601, 4
      %v1604 = vor.u32 %v1600, %v1603
      %v1605 = vsel %vm1116, %v1595, %v1604
      %v1607 = vsel %vm290, %v1596, 0
      %v1610 = vsel %vm290, %v1605, 0
      %v1613 = vsel %vm290, %v1604, 0
      %v1616 = vsel %vm300, %v1578, 0
      %1618 = vmatprep.subr.bf16.mxu0 0
      %1619 = vmatpush1.bf16.msra.mxu0 %v1616
      %1620 = vmatprep.subr.bf16.mxu0 0
      %1621 = vmatpush1.bf16.msra.mxu0 0
      %1622 = vmatprep.subr.bf16.mxu0 0
      %1623 = vmatpush1.bf16.msra.mxu0 0
      %1624 = vmatprep.subr.bf16.mxu0 0
      %1625 = vmatpush1.bf16.msra.mxu0 0
      %1626 = vmatprep.subr.bf16.mxu0 0
      %1627 = vmatpush1.bf16.msra.mxu0 0
      %1628 = vmatprep.subr.bf16.mxu0 0
      %1629 = vmatpush1.bf16.msra.mxu0 0
      %1630 = vmatprep.subr.bf16.mxu0 0
      %1631 = vmatpush1.bf16.msra.mxu0 0
      %1632 = vmatprep.subr.bf16.mxu0 0
      %1633 = vmatpush1.bf16.msra.mxu0 0
      %1634 = vmatprep.subr.bf16.mxu0 0
      %1635 = vmatpush1.bf16.msra.mxu0 0
      %1636 = vmatprep.subr.bf16.mxu0 0
      %1637 = vmatpush1.bf16.msra.mxu0 0
      %1638 = vmatprep.subr.bf16.mxu0 0
      %1639 = vmatpush1.bf16.msra.mxu0 0
      %1640 = vmatprep.subr.bf16.mxu0 0
      %1641 = vmatpush1.bf16.msra.mxu0 0
      %1642 = vmatprep.subr.bf16.mxu0 0
      %1643 = vmatpush1.bf16.msra.mxu0 0
      %1644 = vmatprep.subr.bf16.mxu0 0
      %1645 = vmatpush1.bf16.msra.mxu0 0
      %1646 = vmatprep.subr.bf16.mxu0 0
      %1647 = vmatpush1.bf16.msra.mxu0 0
      %1648 = vmatprep.subr.bf16.mxu0 0
      %1649 = vmatpush1.bf16.msra.mxu0 0
      %1650 = vmatprep.mubr.bf16.mxu0 0
      %1651 = vmatmul.mubr.bf16.gmra.mrb[0].mxu0 %v1607
      %v1652 = vpop.f32.mrb[0].mxu0
      %v1653 = vadd.f32 0.0, %v1652
      %v1654 = vpop.f32.mrb[0].mxu0
      %v1655 = vpop.f32.mrb[0].mxu0
      %v1656 = vadd.f32 0.0, %v1655
      %v1657 = vpop.f32.mrb[0].mxu0
      %1658 = vmatprep.mubr.bf16.mxu0 0
      %1659 = vmatmul.mubr.bf16.gmra.mrb[0].mxu0 %v1610
      %v1660 = vpop.f32.mrb[0].mxu0
      %v1661 = vadd.f32 0.0, %v1660
      %v1662 = vpop.f32.mrb[0].mxu0
      %v1663 = vpop.f32.mrb[0].mxu0
      %v1664 = vadd.f32 0.0, %v1663
      %v1665 = vpop.f32.mrb[0].mxu0
      %1666 = vmatprep.mubr.bf16.mxu0 0
      %1667 = vmatmul.mubr.bf16.gmra.mrb[0].mxu0 %v1613
      %v1668 = vpop.f32.mrb[0].mxu0
      %v1669 = vadd.f32 0.0, %v1668
      %v1670 = vpop.f32.mrb[0].mxu0
      %v1671 = vpop.f32.mrb[0].mxu0
      %v1672 = vpop.f32.mrb[0].mxu0
      %1673 = vdwg.mxu0
      %v1674 = vadd.f32 %v1570, %v1653
      %v1675 = vadd.f32 %v1571, %v1656
      %v1676 = vadd.f32 %v1572, %v1661
      %v1677 = vadd.f32 %v1573, %v1664
      %v1678 = vadd.f32 %v1574, %v1669
      %s1679 = scalar_lea.vmem %s2, 56
      %v1680 = vld [vmem:[%s1679] sm:$0xf]
      %v1681 = vpack.c.b16 %v884, %v883
      %v1682 = vpack.c.b16 %v886, %v885
      %v1683 = vpack.c.b16 %v1478, %v1478
      %v1685 = vsel %vm290, %v1681, 0
      %v1688 = vsel %vm290, %v1682, 0
      %v1691 = vsel %vm290, %v1683, 0
      %v1694 = vsel %vm300, %v1680, 0
      %1696 = vmatprep.subr.bf16.mxu0 0
      %1697 = vmatpush1.bf16.msra.mxu0 %v1694
      %1698 = vmatprep.subr.bf16.mxu0 0
      %1699 = vmatpush1.bf16.msra.mxu0 0
      %1700 = vmatprep.subr.bf16.mxu0 0
      %1701 = vmatpush1.bf16.msra.mxu0 0
      %1702 = vmatprep.subr.bf16.mxu0 0
      %1703 = vmatpush1.bf16.msra.mxu0 0
      %1704 = vmatprep.subr.bf16.mxu0 0
      %1705 = vmatpush1.bf16.msra.mxu0 0
      %1706 = vmatprep.subr.bf16.mxu0 0
      %1707 = vmatpush1.bf16.msra.mxu0 0
      %1708 = vmatprep.subr.bf16.mxu0 0
      %1709 = vmatpush1.bf16.msra.mxu0 0
      %1710 = vmatprep.subr.bf16.mxu0 0
      %1711 = vmatpush1.bf16.msra.mxu0 0
      %1712 = vmatprep.subr.bf16.mxu0 0
      %1713 = vmatpush1.bf16.msra.mxu0 0
      %1714 = vmatprep.subr.bf16.mxu0 0
      %1715 = vmatpush1.bf16.msra.mxu0 0
      %1716 = vmatprep.subr.bf16.mxu0 0
      %1717 = vmatpush1.bf16.msra.mxu0 0
      %1718 = vmatprep.subr.bf16.mxu0 0
      %1719 = vmatpush1.bf16.msra.mxu0 0
      %1720 = vmatprep.subr.bf16.mxu0 0
      %1721 = vmatpush1.bf16.msra.mxu0 0
      %1722 = vmatprep.subr.bf16.mxu0 0
      %1723 = vmatpush1.bf16.msra.mxu0 0
      %1724 = vmatprep.subr.bf16.mxu0 0
      %1725 = vmatpush1.bf16.msra.mxu0 0
      %1726 = vmatprep.subr.bf16.mxu0 0
      %1727 = vmatpush1.bf16.msra.mxu0 0
      %1728 = vmatprep.mubr.bf16.mxu0 0
      %1729 = vmatmul.mubr.bf16.gmra.mrb[0].mxu0 %v1685
      %v1730 = vpop.f32.mrb[0].mxu0
      %v1731 = vadd.f32 0.0, %v1730
      %v1732 = vpop.f32.mrb[0].mxu0
      %v1733 = vpop.f32.mrb[0].mxu0
      %v1734 = vadd.f32 0.0, %v1733
      %v1735 = vpop.f32.mrb[0].mxu0
      %1736 = vmatprep.mubr.bf16.mxu0 0
      %1737 = vmatmul.mubr.bf16.gmra.mrb[0].mxu0 %v1688
      %v1738 = vpop.f32.mrb[0].mxu0
      %v1739 = vadd.f32 0.0, %v1738
      %v1740 = vpop.f32.mrb[0].mxu0
      %v1741 = vpop.f32.mrb[0].mxu0
      %v1742 = vadd.f32 0.0, %v1741
      %v1743 = vpop.f32.mrb[0].mxu0
      %1744 = vmatprep.mubr.bf16.mxu0 0
      %1745 = vmatmul.mubr.bf16.gmra.mrb[0].mxu0 %v1691
      %v1746 = vpop.f32.mrb[0].mxu0
      %v1747 = vadd.f32 0.0, %v1746
      %v1748 = vpop.f32.mrb[0].mxu0
      %v1749 = vpop.f32.mrb[0].mxu0
      %v1750 = vpop.f32.mrb[0].mxu0
      %1751 = vdwg.mxu0
      %v1752 = vadd.f32 %v1674, %v1731
      %v1753 = vadd.f32 %v1675, %v1734
      %v1754 = vadd.f32 %v1676, %v1739
      %v1755 = vadd.f32 %v1677, %v1742
      %v1756 = vadd.f32 %v1678, %v1747
      %s1757 = scalar_lea.vmem %s2, 60
      %v1758 = vld [vmem:[%s1757] sm:$0xf]
      %v1759 = vpack.c.b16 %v1003, %v1002
      %v1760 = vpack.c.b16 %v1005, %v1004
      %v1761 = vpack.c.b16 %v1582, %v1582
      %v1763 = vsel %vm290, %v1759, 0
      %v1766 = vsel %vm290, %v1760, 0
      %v1769 = vsel %vm290, %v1761, 0
      %v1772 = vsel %vm300, %v1758, 0
      %1774 = vmatprep.subr.bf16.mxu0 0
      %1775 = vmatpush1.bf16.msra.mxu0 %v1772
      %1776 = vmatprep.subr.bf16.mxu0 0
      %1777 = vmatpush1.bf16.msra.mxu0 0
      %1778 = vmatprep.subr.bf16.mxu0 0
      %1779 = vmatpush1.bf16.msra.mxu0 0
      %1780 = vmatprep.subr.bf16.mxu0 0
      %1781 = vmatpush1.bf16.msra.mxu0 0
      %1782 = vmatprep.subr.bf16.mxu0 0
      %1783 = vmatpush1.bf16.msra.mxu0 0
      %1784 = vmatprep.subr.bf16.mxu0 0
      %1785 = vmatpush1.bf16.msra.mxu0 0
      %1786 = vmatprep.subr.bf16.mxu0 0
      %1787 = vmatpush1.bf16.msra.mxu0 0
      %1788 = vmatprep.subr.bf16.mxu0 0
      %1789 = vmatpush1.bf16.msra.mxu0 0
      %1790 = vmatprep.subr.bf16.mxu0 0
      %1791 = vmatpush1.bf16.msra.mxu0 0
      %1792 = vmatprep.subr.bf16.mxu0 0
      %1793 = vmatpush1.bf16.msra.mxu0 0
      %1794 = vmatprep.subr.bf16.mxu0 0
      %1795 = vmatpush1.bf16.msra.mxu0 0
      %1796 = vmatprep.subr.bf16.mxu0 0
      %1797 = vmatpush1.bf16.msra.mxu0 0
      %1798 = vmatprep.subr.bf16.mxu0 0
      %1799 = vmatpush1.bf16.msra.mxu0 0
      %1800 = vmatprep.subr.bf16.mxu0 0
      %1801 = vmatpush1.bf16.msra.mxu0 0
      %1802 = vmatprep.subr.bf16.mxu0 0
      %1803 = vmatpush1.bf16.msra.mxu0 0
      %1804 = vmatprep.subr.bf16.mxu0 0
      %1805 = vmatpush1.bf16.msra.mxu0 0
      %1806 = vmatprep.mubr.bf16.mxu0 0
      %1807 = vmatmul.mubr.bf16.gmra.mrb[0].mxu0 %v1763
      %v1808 = vpop.f32.mrb[0].mxu0
      %v1809 = vadd.f32 0.0, %v1808
      %v1810 = vpop.f32.mrb[0].mxu0
      %v1811 = vpop.f32.mrb[0].mxu0
      %v1812 = vadd.f32 0.0, %v1811
      %v1813 = vpop.f32.mrb[0].mxu0
      %1814 = vmatprep.mubr.bf16.mxu0 0
      %1815 = vmatmul.mubr.bf16.gmra.mrb[0].mxu0 %v1766
      %v1816 = vpop.f32.mrb[0].mxu0
      %v1817 = vadd.f32 0.0, %v1816
      %v1818 = vpop.f32.mrb[0].mxu0
      %v1819 = vpop.f32.mrb[0].mxu0
      %v1820 = vadd.f32 0.0, %v1819
      %v1821 = vpop.f32.mrb[0].mxu0
      %1822 = vmatprep.mubr.bf16.mxu0 0
      %1823 = vmatmul.mubr.bf16.gmra.mrb[0].mxu0 %v1769
      %v1824 = vpop.f32.mrb[0].mxu0
      %v1825 = vadd.f32 0.0, %v1824
      %v1826 = vpop.f32.mrb[0].mxu0
      %v1827 = vpop.f32.mrb[0].mxu0
      %v1828 = vpop.f32.mrb[0].mxu0
      %1829 = vdwg.mxu0
      %v1830 = vadd.f32 %v1752, %v1809
      %v1831 = vadd.f32 %v1753, %v1812
      %v1832 = vadd.f32 %v1754, %v1817
      %v1833 = vadd.f32 %v1755, %v1820
      %v1834 = vadd.f32 %v1756, %v1825
      %v1835 = vpack.c.bf16 %v1831, %v1830
      %v1836 = vpack.c.bf16 %v1833, %v1832
      %v1837 = vpack.c.bf16 %v1834, %v1834
      %v1841 = vunpack.c.l.b16 %v1835
      %v1842 = vunpack.c.h.b16 %v1835
      %v1843 = vunpack.c.l.b16 %v1836
      %v1844 = vunpack.c.h.b16 %v1836
      %v1845 = vunpack.c.l.b16 %v1837
      %v1846 = vpack.c.b16 %v1841, %v1841
      %v1847 = vpack.c.b16 %v1842, %v1842
      %v1848 = vpack.c.b16 %v1843, %v1843
      %v1849 = vpack.c.b16 %v1844, %v1844
      %v1850 = vpack.c.b16 %v1845, %v1845
      %1856 = vst [vmem:[%s253] sm:$0xf] %v1846
      %1857 = vst [vmem:[%s253 + $0x4] sm:$0xf] %v1847
      %1858 = vst [vmem:[%s253 + $0x8] sm:$0xf] %v1848
      %1859 = vst [vmem:[%s253 + $0xc] sm:$0xf] %v1849
      %1860 = vst [vmem:[%s253 + $0x10] sm:$0xf] %v1850
      %v1861 = vld [vmem:[%s238] sm:$0xff]
      %v1862 = vld [vmem:[%s238 + $0x8] sm:$0xff]
      %v1863 = vld [vmem:[%s238 + $0x10] sm:$0xff]
      %v1864 = vld [vmem:[%s238 + $0x18] sm:$0xff]
      %v1865 = vld [vmem:[%s238 + $0x20] sm:$0xff]
      %vm1866 = vcmask 7168
      %v1867 = vsel %vm1866, %v1861, 0.0
      %v1868 = vsel %vm1866, %v1862, 0.0
      %v1869 = vadd.f32 %v1867, %v1868
      %v1870 = vsel %vm1866, %v1863, 0.0
      %v1871 = vadd.f32 %v1869, %v1870
      %v1872 = vsel %vm1866, %v1864, 0.0
      %v1873 = vadd.f32 %v1871, %v1872
      %v1874 = vsel %vm1866, %v1865, 0.0
      %v1875 = vadd.f32 %v1873, %v1874
      %v1876 = vrot.slane %v1875, 4
      %v1877 = vadd.f32 %v1875, %v1876
      %v1878 = vrot.slane %v1877, 2
      %v1879 = vadd.f32 %v1877, %v1878
      %v1880 = vrot.slane %v1879, 1
      %v1881 = vadd.f32 %v1879, %v1880
      %1883 = vset.pattern.permute.xlu0 0
      %1884 = vperm.xlu0 %1883, %v1861
      %v1885 = vpop.permute.xlu0 %1884
      %1888 = vset.pattern.permute.xlu0 0
      %1889 = vperm.xlu0 %1888, %v1862
      %v1890 = vpop.permute.xlu0 %1889
      %1893 = vset.pattern.permute.xlu0 0
      %1894 = vperm.xlu0 %1893, %v1863
      %v1895 = vpop.permute.xlu0 %1894
      %1898 = vset.pattern.permute.xlu0 0
      %1899 = vperm.xlu0 %1898, %v1864
      %v1900 = vpop.permute.xlu0 %1899
      %1903 = vset.pattern.permute.xlu0 0
      %1904 = vperm.xlu0 %1903, %v1865
      %v1905 = vpop.permute.xlu0 %1904
      %v1907 = vmul.f32 %v1830, %v1885
      %v1908 = vmul.f32 %v1831, %v1890
      %v1909 = vmul.f32 %v1832, %v1895
      %v1910 = vmul.f32 %v1833, %v1900
      %v1911 = vmul.f32 %v1834, %v1905
      %v1912 = vadd.f32 %v1907, %v1908
      %v1913 = vadd.f32 %v1912, %v1909
      %v1914 = vadd.f32 %v1913, %v1910
      %v1915 = vadd.f32 %v1914, %v1911
      %v1916 = vrot.slane %v1915, 4
      %v1917 = vadd.f32 %v1915, %v1916
      %v1918 = vrot.slane %v1917, 2
      %v1919 = vadd.f32 %v1917, %v1918
      %v1920 = vrot.slane %v1919, 1
      %v1921 = vadd.f32 %v1919, %v1920
      %v1922 = vmax.f32 %v1881, 1.0
      %1924 = vset.pattern.permute.xlu0 0
      %1925 = vperm.xlu0 %1924, %v1922
      %v1926 = vpop.permute.xlu0 %1925
      %v1928 = vrcp.pop %v1926
      %v1929 = vmul.f32 %v1921, %v1928
      %v1930 = vsub.f32 %v1830, %v1929
      %v1931 = vsub.f32 %v1831, %v1929
      %v1932 = vsub.f32 %v1832, %v1929
      %v1933 = vsub.f32 %v1833, %v1929
      %v1934 = vsub.f32 %v1834, %v1929
      %v1935 = vmul.f32 %v1930, %v1885
      %v1936 = vmul.f32 %v1931, %v1890
      %v1937 = vmul.f32 %v1932, %v1895
      %v1938 = vmul.f32 %v1933, %v1900
      %v1939 = vmul.f32 %v1934, %v1905
      %v1940 = vmul.f32 %v1935, %v1935
      %v1941 = vmul.f32 %v1936, %v1936
      %v1942 = vmul.f32 %v1937, %v1937
      %v1943 = vmul.f32 %v1938, %v1938
      %v1944 = vmul.f32 %v1939, %v1939
      %v1945 = vadd.f32 %v1940, %v1941
      %v1946 = vadd.f32 %v1945, %v1942
      %v1947 = vadd.f32 %v1946, %v1943
      %v1948 = vadd.f32 %v1947, %v1944
      %v1949 = vrot.slane %v1948, 4
      %v1950 = vadd.f32 %v1948, %v1949
      %v1951 = vrot.slane %v1950, 2
      %v1952 = vadd.f32 %v1950, %v1951
      %v1953 = vrot.slane %v1952, 1
      %v1954 = vadd.f32 %v1952, %v1953
      %1955 = vst [vmem:[%s261] sm:$0x1] %v1921
      %1956 = vst [vmem:[%s261 + $0x1] sm:$0x1] %v1954
      %1958 = vset.pattern.permute.xlu0 0
      %1959 = vperm.xlu0 %1958, %v1881
      %v1960 = vpop.permute.xlu0 %1959
      %v1962 = vadd.f32 %v1960, 0.0
      %1963 = vst [vmem:[%s261 + $0x2] sm:$0x1] %v1962
      %s1964 = smul.u32 5, %s21
      %p1965 = scmp.lt.s32.totalorder %s20, 1
      %s1966 = scalar_select %p1965, %s20, 1
      %p1967 = scmp.lt.s32.totalorder %s1964, 4
      %s1968 = scalar_select %p1967, %s1964, 4
      %s1969 = smul.addr %s1966, 5
      %s1970 = sadd.s32 %s1968, %s1969
      %s1971 = smul.addr %s1970, 4
      %s1972 = scalar_lea.vmem %s3, %s1971
      %p1973 = scmp.lt.s32.totalorder %s20, 1
      %s1974 = scalar_select %p1973, %s20, 1
      %p1975 = scmp.lt.s32.totalorder %s21, 0
      %s1976 = scalar_select %p1975, %s21, 0
      %s1977 = sadd.s32 %s1976, %s1974
      %s1978 = smul.addr %s1977, 4
      %s1979 = scalar_lea.vmem %s4, %s1978
      // Predicated region
      $region33: #{_lambda_.7} parent=31 // pred_check
        %p1980 = pneg %p121
      $region34: #{_lambda_.7} parent=31 // pred_check_branch
        %1982 = sbr.rel (%p1980) target = $region36
      $region35: #{_lambda_.7} parent=31 // pred_region
        %s1983 = smul.u32 5, %s21
      $region36: #{_lambda_.7} parent=31 // pred_fallthru
        _
      // Predicated region
      $region37: #{_lambda_.7} parent=31 // pred_check
        %p1984 = pneg %p149
      $region38: #{_lambda_.7} parent=31 // pred_check_branch
        %1986 = sbr.rel (%p1984) target = $region40
      $region39: #{_lambda_.7} parent=31 // pred_region
        _
      $region40: #{_lambda_.7} parent=31 // pred_fallthru
        _
    $region32: #{_lambda_.7} parent=5 // pred_fallthru
      _
    %p1987 = scmp.le.s32.totalorder 2, %s11
    // Predicated region
    $region41: #{_lambda_.7} parent=5 // pred_check
      %p1988 = pneg %p1987
    $region42: #{_lambda_.7} parent=5 // pred_check_branch
      %1990 = sbr.rel (%p1988) target = $region44
    $region43: #{_lambda_.7} parent=5 // pred_region
      %s1991 = ssub.s32 %s11, 2
      // Predicated region
      $region45: #{_lambda_.7} parent=43 // pred_check
        %p1992 = pneg %p127
      $region46: #{_lambda_.7} parent=43 // pred_check_branch
        %1994 = sbr.rel (%p1992) target = $region48
      $region47: #{_lambda_.7} parent=43 // pred_region
        %s1995 = smul.u32 5, %s23
        %p1996 = scmp.lt.s32.totalorder %s22, 1
        %s1997 = scalar_select %p1996, %s22, 1
        %p1998 = scmp.lt.s32.totalorder %s1995, 4
        %s1999 = scalar_select %p1998, %s1995, 4
        %s2000 = smul.addr %s1997, 5
        %s2001 = sadd.s32 %s1999, %s2000
        %s2002 = smul.addr %s2001, 4
        %s2003 = scalar_lea.vmem %s3, %s2002
      $region48: #{_lambda_.7} parent=43 // pred_fallthru
        _
      // Predicated region
      $region49: #{_lambda_.7} parent=43 // pred_check
        %p2004 = pneg %p155
      $region50: #{_lambda_.7} parent=43 // pred_check_branch
        %2006 = sbr.rel (%p2004) target = $region52
      $region51: #{_lambda_.7} parent=43 // pred_region
        %p2007 = scmp.lt.s32.totalorder %s22, 1
        %s2008 = scalar_select %p2007, %s22, 1
        %p2009 = scmp.lt.s32.totalorder %s23, 0
        %s2010 = scalar_select %p2009, %s23, 0
        %s2011 = sadd.s32 %s2010, %s2008
        %s2012 = smul.addr %s2011, 4
        %s2013 = scalar_lea.vmem %s4, %s2012
      $region52: #{_lambda_.7} parent=43 // pred_fallthru
        _
    $region44: #{_lambda_.7} parent=5 // pred_fallthru
      _
  $region6: #{_lambda_.7} parent=0 // loop_footer
    %s15 = sadd.s32 1, %s11
  $region7: #{_lambda_.7} parent=0 // loop_footer_branch
    %10 = sbr.rel target = $region3
  $region8: #{_lambda_.7} parent=0 // loop_exit
    _

// kernel: _lambda_.10
$region0: #{_lambda_.10}
  #allocation0 [shape = 'u32[]', space=smem, size = 0x4, offset = 0x4, fixed_abs, tag = 'smem constant byte address 0x4 - core index']
  #allocation1 [shape = 'u32[144,128]{1,0:T(1,128)}', space=vmem, size = 0x12000, scoped, tag = 'internal scratch']
  %s0 = inlined_call_operand.vmem [shape: bf16[2,56,128], index: 0, kind: input, shape index: {}]
  %s1 = inlined_call_operand.vmem [shape: f32[1,128], index: 1, kind: input, shape index: {}]
  %s2 = inlined_call_operand.vmem [shape: f32[1,128], index: 2, kind: input, shape index: {}]
  %s3 = inlined_call_operand.vmem [shape: bf16[2,56,128], index: 3, kind: output, shape index: {}]
  %s4 = sld [smem:[#allocation0]]
  $region45: #{_lambda_.10} parent=0
    _
  %s6 = ssub.s32 1, %s4
  %s7 = scalar_select 0, %s6, %s4
  loop: start=0, step=1, limit=4
  $region2: #{_lambda_.10} parent=0 // loop_pre_header
    _
  $region3: #{_lambda_.10} parent=0 // loop_header
    %s9 = sphi 0, %s13
    %p10 = scmp.ge.s32.totalorder %s9, 4
    %s16 = sphi 0, %s28
    %s17 = sphi 0, %s24
    %s18 = sphi 0, %s16
    %s19 = sphi 0, %s17
    %s20 = sphi 0, %s18
    %s21 = sphi 0, %s19
    %s33 = sphi 0, %s35
    %s36 = sphi 0, %s33
    %s37 = sphi 0, %s36
    %s53 = sphi 0, %s37
    %s57 = sphi 0, %s57
    %s59 = sphi 0, %s57
    %s60 = sphi 0, %s59
    %s74 = sphi 0, %s60
    %s78 = sphi 0, %s78
    %s80 = sphi 0, %s78
    %s81 = sphi 0, %s80
    %s95 = sphi 0, %s81
    %s103 = sphi 0, %s105
    %s106 = sphi 0, %s103
    %s107 = sphi 0, %s106
    %s123 = sphi 0, %s107
  $region4: #{_lambda_.10} parent=0 // loop_header_branch
    %12 = sbr.rel (%p10) target = $region8
  $region5: #{_lambda_.10} parent=0 // loop_body
    %s14 = ssub.s32 %s9, 1
    %s15 = ssub.s32 %s9, 2
    %s22 = sadd.s32 1, %s17
    %p23 = scmp.ge.s32.totalorder %s22, 1
    %s24 = scalar_select %p23, 0, %s22
    %s25 = sadd.s32 1, %s16
    %s26 = scalar_select %p23, %s25, %s16
    %p27 = scmp.ge.s32.totalorder %s26, 2
    %s28 = scalar_select %p27, 0, %s26
    %s29 = ssub.s32 %s16, %s28
    %s30 = ssub.s32 %s17, %s24
    %s31 = sor.u32 %s29, %s30
    %p32 = scmp.eq.s32.totalorder %s31, 0
    %s34 = sadd.s32 %s33, 1
    %s35 = scalar_select %p32, %s33, %s34
    %p38 = pneg %p32
    %p39 = scmp.eq.s32.totalorder %s9, 1
    %p40 = por %p38, %p39
    %p41 = scmp.ne.s32.totalorder %s33, %s36
    %p42 = scmp.eq.s32.totalorder %s9, 0
    %p43 = por %p41, %p42
    %p44 = scmp.ne.s32.totalorder %s33, %s36
    %p45 = scmp.eq.s32.totalorder %s14, 1
    %p46 = por %p44, %p45
    %p47 = scmp.ne.s32.totalorder %s36, %s37
    %p48 = scmp.eq.s32.totalorder %s14, 0
    %p49 = por %p47, %p48
    %p50 = scmp.ne.s32.totalorder %s36, %s37
    %p51 = scmp.eq.s32.totalorder %s15, 1
    %p52 = por %p50, %p51
    %p54 = scmp.ne.s32.totalorder %s37, %s53
    %p55 = scmp.eq.s32.totalorder %s15, 0
    %p56 = por %p54, %p55
    %s58 = sadd.s32 %s57, 1
    %p61 = scmp.eq.s32.totalorder %s9, 1
    %p62 = scmp.ne.s32.totalorder %s57, %s59
    %p63 = scmp.eq.s32.totalorder %s9, 0
    %p64 = por %p62, %p63
    %p65 = scmp.ne.s32.totalorder %s57, %s59
    %p66 = scmp.eq.s32.totalorder %s14, 1
    %p67 = por %p65, %p66
    %p68 = scmp.ne.s32.totalorder %s59, %s60
    %p69 = scmp.eq.s32.totalorder %s14, 0
    %p70 = por %p68, %p69
    %p71 = scmp.ne.s32.totalorder %s59, %s60
    %p72 = scmp.eq.s32.totalorder %s15, 1
    %p73 = por %p71, %p72
    %p75 = scmp.ne.s32.totalorder %s60, %s74
    %p76 = scmp.eq.s32.totalorder %s15, 0
    %p77 = por %p75, %p76
    %s79 = sadd.s32 %s78, 1
    %p82 = scmp.eq.s32.totalorder %s9, 1
    %p83 = scmp.ne.s32.totalorder %s78, %s80
    %p84 = scmp.eq.s32.totalorder %s9, 0
    %p85 = por %p83, %p84
    %p86 = scmp.ne.s32.totalorder %s78, %s80
    %p87 = scmp.eq.s32.totalorder %s14, 1
    %p88 = por %p86, %p87
    %p89 = scmp.ne.s32.totalorder %s80, %s81
    %p90 = scmp.eq.s32.totalorder %s14, 0
    %p91 = por %p89, %p90
    %p92 = scmp.ne.s32.totalorder %s80, %s81
    %p93 = scmp.eq.s32.totalorder %s15, 1
    %p94 = por %p92, %p93
    %p96 = scmp.ne.s32.totalorder %s81, %s95
    %p97 = scmp.eq.s32.totalorder %s15, 0
    %p98 = por %p96, %p97
    %s99 = ssub.s32 %s16, %s28
    %s100 = ssub.s32 %s17, %s24
    %s101 = sor.u32 %s99, %s100
    %p102 = scmp.eq.s32.totalorder %s101, 0
    %s104 = sadd.s32 %s103, 1
    %s105 = scalar_select %p102, %s103, %s104
    %p108 = pneg %p102
    %p109 = scmp.eq.s32.totalorder %s9, 1
    %p110 = por %p108, %p109
    %p111 = scmp.ne.s32.totalorder %s103, %s106
    %p112 = scmp.eq.s32.totalorder %s9, 0
    %p113 = por %p111, %p112
    %p114 = scmp.ne.s32.totalorder %s103, %s106
    %p115 = scmp.eq.s32.totalorder %s14, 1
    %p116 = por %p114, %p115
    %p117 = scmp.ne.s32.totalorder %s106, %s107
    %p118 = scmp.eq.s32.totalorder %s14, 0
    %p119 = por %p117, %p118
    %p120 = scmp.ne.s32.totalorder %s106, %s107
    %p121 = scmp.eq.s32.totalorder %s15, 1
    %p122 = por %p120, %p121
    %p124 = scmp.ne.s32.totalorder %s107, %s123
    %p125 = scmp.eq.s32.totalorder %s15, 0
    %p126 = por %p124, %p125
    %p127 = scmp.le.s32.totalorder 1, %s9
    %p128 = scmp.lt.s32.totalorder %s9, 3
    %p129 = pnand %p127, %p128
    %p130 = pneg %p129
    // Predicated region
    $region9: #{_lambda_.10} parent=5 // pred_check
      _
    $region10: #{_lambda_.10} parent=5 // pred_check_branch
      %132 = sbr.rel (%p129) target = $region12
    $region11: #{_lambda_.10} parent=5 // pred_region
      %s133 = ssub.s32 %s9, 1
      // Predicated region
      $region13: #{_lambda_.10} parent=11 // pred_check
        %p134 = pneg %p70
      $region14: #{_lambda_.10} parent=11 // pred_check_branch
        %136 = sbr.rel (%p134) target = $region16
      $region15: #{_lambda_.10} parent=11 // pred_region
        _
      $region16: #{_lambda_.10} parent=11 // pred_fallthru
        _
      // Predicated region
      $region17: #{_lambda_.10} parent=11 // pred_check
        %p137 = pneg %p91
      $region18: #{_lambda_.10} parent=11 // pred_check_branch
        %139 = sbr.rel (%p137) target = $region20
      $region19: #{_lambda_.10} parent=11 // pred_region
        _
      $region20: #{_lambda_.10} parent=11 // pred_fallthru
        _
    $region12: #{_lambda_.10} parent=5 // pred_fallthru
      _
    %p140 = scmp.lt.s32.totalorder %s9, 2
    // Predicated region
    $region21: #{_lambda_.10} parent=5 // pred_check
      %p141 = pneg %p140
    $region22: #{_lambda_.10} parent=5 // pred_check_branch
      %143 = sbr.rel (%p141) target = $region24
    $region23: #{_lambda_.10} parent=5 // pred_region
      // Predicated region
      $region25: #{_lambda_.10} parent=23 // pred_check
        %p144 = pneg %p43
      $region26: #{_lambda_.10} parent=23 // pred_check_branch
        %146 = sbr.rel (%p144) target = $region28
      $region27: #{_lambda_.10} parent=23 // pred_region
        %s147 = smul.u32 7, %s17
        %p148 = scmp.lt.s32.totalorder %s16, 1
        %s149 = scalar_select %p148, %s16, 1
        %p150 = scmp.lt.s32.totalorder %s147, 6
        %s151 = scalar_select %p150, %s147, 6
        %s152 = smul.addr %s149, 7
        %s153 = sadd.s32 %s151, %s152
        %s154 = smul.addr %s153, 4
        %s155 = scalar_lea.vmem %s0, %s154
        %s156 = smul.u32 7, %s17
      $region28: #{_lambda_.10} parent=23 // pred_fallthru
        _
    $region24: #{_lambda_.10} parent=5 // pred_fallthru
      _
    %p157 = scmp.le.s32.totalorder 1, %s9
    %p158 = scmp.lt.s32.totalorder %s9, 3
    %p159 = pnand %p157, %p158
    %p160 = pneg %p159
    // Predicated region
    $region29: #{_lambda_.10} parent=5 // pred_check
      _
    $region30: #{_lambda_.10} parent=5 // pred_check_branch
      %162 = sbr.rel (%p159) target = $region32
    $region31: #{_lambda_.10} parent=5 // pred_region
      %s163 = ssub.s32 %s9, 1
      %s164 = smul.u32 7, %s19
      %p165 = scmp.lt.s32.totalorder %s18, 1
      %s166 = scalar_select %p165, %s18, 1
      %p167 = scmp.lt.s32.totalorder %s164, 6
      %s168 = scalar_select %p167, %s164, 6
      %s169 = smul.addr %s166, 7
      %s170 = sadd.s32 %s168, %s169
      %s171 = smul.addr %s170, 4
      %s172 = scalar_lea.vmem %s0, %s171
      %p173 = pneg %p49
      %p174 = pneg %p46
      %p175 = pneg %p70
      %p176 = pneg %p67
      %p177 = pneg %p91
      %p178 = pneg %p88
      %p179 = pneg %p119
      %p180 = pneg %p116
      %s181 = smul.u32 7, %s19
      %p182 = scmp.lt.s32.totalorder %s18, 1
      %s183 = scalar_select %p182, %s18, 1
      %p184 = scmp.lt.s32.totalorder %s181, 6
      %s185 = scalar_select %p184, %s181, 6
      %s186 = smul.addr %s183, 7
      %s187 = sadd.s32 %s185, %s186
      %s188 = smul.addr %s187, 4
      %s189 = scalar_lea.vmem %s3, %s188
      %s190 = smul.u32 7, %s19
      %p191 = scmp.lt.s32.totalorder %s18, 1
      %s192 = scalar_select %p191, %s18, 1
      %p193 = scmp.lt.s32.totalorder %s190, 6
      %s194 = scalar_select %p193, %s190, 6
      %s195 = smul.addr %s192, 7
      %s196 = sadd.s32 %s194, %s195
      %s197 = smul.addr %s196, 4
      %s198 = scalar_lea.vmem %s0, %s197
      %s199 = smul.u32 7, %s19
      %s200 = smul.u32 7, %s19
      %p201 = scmp.lt.s32.totalorder %s18, 1
      %s202 = scalar_select %p201, %s18, 1
      %p203 = scmp.lt.s32.totalorder %s200, 6
      %s204 = scalar_select %p203, %s200, 6
      %s205 = smul.addr %s202, 7
      %s206 = sadd.s32 %s204, %s205
      %s207 = smul.addr %s206, 4
      %s208 = scalar_lea.vmem %s3, %s207
      %s209 = smul.u32 7, %s19
      %v210 = vld [vmem:[%s198] sm:$0xf]
      %v211 = vld [vmem:[%s198 + $0x4] sm:$0xf]
      %v212 = vld [vmem:[%s198 + $0x8] sm:$0xf]
      %v213 = vld [vmem:[%s198 + $0xc] sm:$0xf]
      %v214 = vld [vmem:[%s198 + $0x10] sm:$0xf]
      %v215 = vld [vmem:[%s198 + $0x14] sm:$0xf]
      %v216 = vld [vmem:[%s198 + $0x18] sm:$0xf]
      %v217 = vunpack.c.l.bf16 %v210
      %v218 = vunpack.c.l.bf16 %v211
      %v219 = vunpack.c.l.bf16 %v212
      %v220 = vunpack.c.l.bf16 %v213
      %v221 = vunpack.c.l.bf16 %v214
      %v222 = vunpack.c.l.bf16 %v215
      %v223 = vunpack.c.l.bf16 %v216
      %v224 = vld [vmem:[%s1] sm:$0x1]
      %v226 = vlaneseq
      %v227 = vshrl.u32 %v226, 7
      %v228 = vsub.s32 0, %v227
      %v229 = vrot.slane %v224, %v228
      %v231 = vmul.f32 %v217, %v229
      %v232 = vmul.f32 %v218, %v229
      %v233 = vmul.f32 %v219, %v229
      %v234 = vmul.f32 %v220, %v229
      %v235 = vmul.f32 %v221, %v229
      %v236 = vmul.f32 %v222, %v229
      %v237 = vmul.f32 %v223, %v229
      %v238 = vld [vmem:[%s2] sm:$0x1]
      %v240 = vlaneseq
      %v241 = vshrl.u32 %v240, 7
      %v242 = vsub.s32 0, %v241
      %v243 = vrot.slane %v238, %v242
      %v245 = vadd.f32 %v231, %v243
      %v246 = vadd.f32 %v232, %v243
      %v247 = vadd.f32 %v233, %v243
      %v248 = vadd.f32 %v234, %v243
      %v249 = vadd.f32 %v235, %v243
      %v250 = vadd.f32 %v236, %v243
      %v251 = vadd.f32 %v237, %v243
      %vm252 = vcmp.ge.f32.partialorder %v245, 0.0
      %vm253 = vcmp.ge.f32.partialorder %v246, 0.0
      %vm254 = vcmp.ge.f32.partialorder %v247, 0.0
      %vm255 = vcmp.ge.f32.partialorder %v248, 0.0
      %vm256 = vcmp.ge.f32.partialorder %v249, 0.0
      %vm257 = vcmp.ge.f32.partialorder %v250, 0.0
      %vm258 = vcmp.ge.f32.partialorder %v251, 0.0
      %v259 = vmul.f32 %v245, 0.2
      %v260 = vmul.f32 %v246, 0.2
      %v261 = vmul.f32 %v247, 0.2
      %v262 = vmul.f32 %v248, 0.2
      %v263 = vmul.f32 %v249, 0.2
      %v264 = vmul.f32 %v250, 0.2
      %v265 = vmul.f32 %v251, 0.2
      %v266 = vsel %vm252, %v245, %v259
      %v267 = vsel %vm253, %v246, %v260
      %v268 = vsel %vm254, %v247, %v261
      %v269 = vsel %vm255, %v248, %v262
      %v270 = vsel %vm256, %v249, %v263
      %v271 = vsel %vm257, %v250, %v264
      %v272 = vsel %vm258, %v251, %v265
      %v273 = vpack.c.bf16 %v267, %v266
      %v274 = vpack.c.bf16 %v269, %v268
      %v275 = vpack.c.bf16 %v271, %v270
      %v276 = vpack.c.bf16 %v272, %v272
      %v281 = vunpack.c.l.b16 %v273
      %v282 = vunpack.c.h.b16 %v273
      %v283 = vunpack.c.l.b16 %v274
      %v284 = vunpack.c.h.b16 %v274
      %v285 = vunpack.c.l.b16 %v275
      %v286 = vunpack.c.h.b16 %v275
      %v287 = vunpack.c.l.b16 %v276
      %v288 = vpack.c.b16 %v281, %v281
      %v289 = vpack.c.b16 %v282, %v282
      %v290 = vpack.c.b16 %v283, %v283
      %v291 = vpack.c.b16 %v284, %v284
      %v292 = vpack.c.b16 %v285, %v285
      %v293 = vpack.c.b16 %v286, %v286
      %v294 = vpack.c.b16 %v287, %v287
      %302 = vst [vmem:[%s208] sm:$0xf] %v288
      %303 = vst [vmem:[%s208 + $0x4] sm:$0xf] %v289
      %304 = vst [vmem:[%s208 + $0x8] sm:$0xf] %v290
      %305 = vst [vmem:[%s208 + $0xc] sm:$0xf] %v291
      %306 = vst [vmem:[%s208 + $0x10] sm:$0xf] %v292
      %307 = vst [vmem:[%s208 + $0x14] sm:$0xf] %v293
      %308 = vst [vmem:[%s208 + $0x18] sm:$0xf] %v294
      %s309 = smul.u32 7, %s19
      %p310 = scmp.lt.s32.totalorder %s18, 1
      %s311 = scalar_select %p310, %s18, 1
      %p312 = scmp.lt.s32.totalorder %s309, 6
      %s313 = scalar_select %p312, %s309, 6
      %s314 = smul.addr %s311, 7
      %s315 = sadd.s32 %s313, %s314
      %s316 = smul.addr %s315, 4
      %s317 = scalar_lea.vmem %s3, %s316
      // Predicated region
      $region33: #{_lambda_.10} parent=31 // pred_check
        %p318 = pneg %p116
      $region34: #{_lambda_.10} parent=31 // pred_check_branch
        %320 = sbr.rel (%p318) target = $region36
      $region35: #{_lambda_.10} parent=31 // pred_region
        %s321 = smul.u32 7, %s19
      $region36: #{_lambda_.10} parent=31 // pred_fallthru
        _
    $region32: #{_lambda_.10} parent=5 // pred_fallthru
      _
    %p322 = scmp.le.s32.totalorder 2, %s9
    // Predicated region
    $region37: #{_lambda_.10} parent=5 // pred_check
      %p323 = pneg %p322
    $region38: #{_lambda_.10} parent=5 // pred_check_branch
      %325 = sbr.rel (%p323) target = $region40
    $region39: #{_lambda_.10} parent=5 // pred_region
      %s326 = ssub.s32 %s9, 2
      // Predicated region
      $region41: #{_lambda_.10} parent=39 // pred_check
        %p327 = pneg %p122
      $region42: #{_lambda_.10} parent=39 // pred_check_branch
        %329 = sbr.rel (%p327) target = $region44
      $region43: #{_lambda_.10} parent=39 // pred_region
        %s330 = smul.u32 7, %s21
        %p331 = scmp.lt.s32.totalorder %s20, 1
        %s332 = scalar_select %p331, %s20, 1
        %p333 = scmp.lt.s32.totalorder %s330, 6
        %s334 = scalar_select %p333, %s330, 6
        %s335 = smul.addr %s332, 7
        %s336 = sadd.s32 %s334, %s335
        %s337 = smul.addr %s336, 4
        %s338 = scalar_lea.vmem %s3, %s337
      $region44: #{_lambda_.10} parent=39 // pred_fallthru
        _
    $region40: #{_lambda_.10} parent=5 // pred_fallthru
      _
  $region6: #{_lambda_.10} parent=0 // loop_footer
    %s13 = sadd.s32 1, %s9
  $region7: #{_lambda_.10} parent=0 // loop_footer_branch
    %8 = sbr.rel target = $region3
  $region8: #{_lambda_.10} parent=0 // loop_exit
    _

// kernel: _lambda_.9
$region0: #{_lambda_.9}
  #allocation0 [shape = 'u32[]', space=smem, size = 0x4, offset = 0x4, fixed_abs, tag = 'smem constant byte address 0x4 - core index']
  #allocation1 [shape = 'u32[144,128]{1,0:T(1,128)}', space=vmem, size = 0x12000, scoped, tag = 'internal scratch']
  %s0 = inlined_call_operand.vmem [shape: f32[56,1], index: 0, kind: input, shape index: {}]
  %s1 = inlined_call_operand.vmem [shape: bf16[2,1,86,16], index: 1, kind: input, shape index: {}]
  %s2 = inlined_call_operand.vmem [shape: bf16[16,16,128], index: 2, kind: input, shape index: {}]
  %s3 = inlined_call_operand.vmem [shape: bf16[2,56,128], index: 3, kind: output, shape index: {0}]
  %s4 = inlined_call_operand.vmem [shape: f32[2,1,3,128], index: 4, kind: output, shape index: {1}]
  %5 = xla_tuple %s3, %s4
  %s6 = sld [smem:[#allocation0]]
  $region53: #{_lambda_.9} parent=0
    _
  %s8 = ssub.s32 1, %s6
  %s9 = scalar_select 0, %s8, %s6
  loop: start=0, step=1, limit=4
  $region2: #{_lambda_.9} parent=0 // loop_pre_header
    _
  $region3: #{_lambda_.9} parent=0 // loop_header
    %s11 = sphi 0, %s15
    %p12 = scmp.ge.s32.totalorder %s11, 4
    %s18 = sphi 0, %s30
    %s19 = sphi 0, %s26
    %s20 = sphi 0, %s18
    %s21 = sphi 0, %s19
    %s22 = sphi 0, %s20
    %s23 = sphi 0, %s21
    %s33 = sphi 0, %s35
    %s36 = sphi 0, %s33
    %s37 = sphi 0, %s36
    %s53 = sphi 0, %s37
    %s59 = sphi 0, %s61
    %s62 = sphi 0, %s59
    %s63 = sphi 0, %s62
    %s79 = sphi 0, %s63
    %s83 = sphi 0, %s83
    %s85 = sphi 0, %s83
    %s86 = sphi 0, %s85
    %s100 = sphi 0, %s86
    %s108 = sphi 0, %s110
    %s111 = sphi 0, %s108
    %s112 = sphi 0, %s111
    %s128 = sphi 0, %s112
    %s136 = sphi 0, %s138
    %s139 = sphi 0, %s136
    %s140 = sphi 0, %s139
    %s156 = sphi 0, %s140
  $region4: #{_lambda_.9} parent=0 // loop_header_branch
    %14 = sbr.rel (%p12) target = $region8
  $region5: #{_lambda_.9} parent=0 // loop_body
    %s16 = ssub.s32 %s11, 1
    %s17 = ssub.s32 %s11, 2
    %s24 = sadd.s32 1, %s19
    %p25 = scmp.ge.s32.totalorder %s24, 1
    %s26 = scalar_select %p25, 0, %s24
    %s27 = sadd.s32 1, %s18
    %s28 = scalar_select %p25, %s27, %s18
    %p29 = scmp.ge.s32.totalorder %s28, 2
    %s30 = scalar_select %p29, 0, %s28
    %s31 = ssub.s32 %s19, %s26
    %p32 = scmp.eq.s32.totalorder %s31, 0
    %s34 = sadd.s32 %s33, 1
    %s35 = scalar_select %p32, %s33, %s34
    %p38 = pneg %p32
    %p39 = scmp.eq.s32.totalorder %s11, 1
    %p40 = por %p38, %p39
    %p41 = scmp.ne.s32.totalorder %s33, %s36
    %p42 = scmp.eq.s32.totalorder %s11, 0
    %p43 = por %p41, %p42
    %p44 = scmp.ne.s32.totalorder %s33, %s36
    %p45 = scmp.eq.s32.totalorder %s16, 1
    %p46 = por %p44, %p45
    %p47 = scmp.ne.s32.totalorder %s36, %s37
    %p48 = scmp.eq.s32.totalorder %s16, 0
    %p49 = por %p47, %p48
    %p50 = scmp.ne.s32.totalorder %s36, %s37
    %p51 = scmp.eq.s32.totalorder %s17, 1
    %p52 = por %p50, %p51
    %p54 = scmp.ne.s32.totalorder %s37, %s53
    %p55 = scmp.eq.s32.totalorder %s17, 0
    %p56 = por %p54, %p55
    %s57 = ssub.s32 %s18, %s30
    %p58 = scmp.eq.s32.totalorder %s57, 0
    %s60 = sadd.s32 %s59, 1
    %s61 = scalar_select %p58, %s59, %s60
    %p64 = pneg %p58
    %p65 = scmp.eq.s32.totalorder %s11, 1
    %p66 = por %p64, %p65
    %p67 = scmp.ne.s32.totalorder %s59, %s62
    %p68 = scmp.eq.s32.totalorder %s11, 0
    %p69 = por %p67, %p68
    %p70 = scmp.ne.s32.totalorder %s59, %s62
    %p71 = scmp.eq.s32.totalorder %s16, 1
    %p72 = por %p70, %p71
    %p73 = scmp.ne.s32.totalorder %s62, %s63
    %p74 = scmp.eq.s32.totalorder %s16, 0
    %p75 = por %p73, %p74
    %p76 = scmp.ne.s32.totalorder %s62, %s63
    %p77 = scmp.eq.s32.totalorder %s17, 1
    %p78 = por %p76, %p77
    %p80 = scmp.ne.s32.totalorder %s63, %s79
    %p81 = scmp.eq.s32.totalorder %s17, 0
    %p82 = por %p80, %p81
    %s84 = sadd.s32 %s83, 1
    %p87 = scmp.eq.s32.totalorder %s11, 1
    %p88 = scmp.ne.s32.totalorder %s83, %s85
    %p89 = scmp.eq.s32.totalorder %s11, 0
    %p90 = por %p88, %p89
    %p91 = scmp.ne.s32.totalorder %s83, %s85
    %p92 = scmp.eq.s32.totalorder %s16, 1
    %p93 = por %p91, %p92
    %p94 = scmp.ne.s32.totalorder %s85, %s86
    %p95 = scmp.eq.s32.totalorder %s16, 0
    %p96 = por %p94, %p95
    %p97 = scmp.ne.s32.totalorder %s85, %s86
    %p98 = scmp.eq.s32.totalorder %s17, 1
    %p99 = por %p97, %p98
    %p101 = scmp.ne.s32.totalorder %s86, %s100
    %p102 = scmp.eq.s32.totalorder %s17, 0
    %p103 = por %p101, %p102
    %s104 = ssub.s32 %s18, %s30
    %s105 = ssub.s32 %s19, %s26
    %s106 = sor.u32 %s104, %s105
    %p107 = scmp.eq.s32.totalorder %s106, 0
    %s109 = sadd.s32 %s108, 1
    %s110 = scalar_select %p107, %s108, %s109
    %p113 = pneg %p107
    %p114 = scmp.eq.s32.totalorder %s11, 1
    %p115 = por %p113, %p114
    %p116 = scmp.ne.s32.totalorder %s108, %s111
    %p117 = scmp.eq.s32.totalorder %s11, 0
    %p118 = por %p116, %p117
    %p119 = scmp.ne.s32.totalorder %s108, %s111
    %p120 = scmp.eq.s32.totalorder %s16, 1
    %p121 = por %p119, %p120
    %p122 = scmp.ne.s32.totalorder %s111, %s112
    %p123 = scmp.eq.s32.totalorder %s16, 0
    %p124 = por %p122, %p123
    %p125 = scmp.ne.s32.totalorder %s111, %s112
    %p126 = scmp.eq.s32.totalorder %s17, 1
    %p127 = por %p125, %p126
    %p129 = scmp.ne.s32.totalorder %s112, %s128
    %p130 = scmp.eq.s32.totalorder %s17, 0
    %p131 = por %p129, %p130
    %s132 = ssub.s32 %s18, %s30
    %s133 = ssub.s32 %s19, %s26
    %s134 = sor.u32 %s132, %s133
    %p135 = scmp.eq.s32.totalorder %s134, 0
    %s137 = sadd.s32 %s136, 1
    %s138 = scalar_select %p135, %s136, %s137
    %p141 = pneg %p135
    %p142 = scmp.eq.s32.totalorder %s11, 1
    %p143 = por %p141, %p142
    %p144 = scmp.ne.s32.totalorder %s136, %s139
    %p145 = scmp.eq.s32.totalorder %s11, 0
    %p146 = por %p144, %p145
    %p147 = scmp.ne.s32.totalorder %s136, %s139
    %p148 = scmp.eq.s32.totalorder %s16, 1
    %p149 = por %p147, %p148
    %p150 = scmp.ne.s32.totalorder %s139, %s140
    %p151 = scmp.eq.s32.totalorder %s16, 0
    %p152 = por %p150, %p151
    %p153 = scmp.ne.s32.totalorder %s139, %s140
    %p154 = scmp.eq.s32.totalorder %s17, 1
    %p155 = por %p153, %p154
    %p157 = scmp.ne.s32.totalorder %s140, %s156
    %p158 = scmp.eq.s32.totalorder %s17, 0
    %p159 = por %p157, %p158
    %p160 = scmp.le.s32.totalorder 1, %s11
    %p161 = scmp.lt.s32.totalorder %s11, 3
    %p162 = pnand %p160, %p161
    %p163 = pneg %p162
    // Predicated region
    $region9: #{_lambda_.9} parent=5 // pred_check
      _
    $region10: #{_lambda_.9} parent=5 // pred_check_branch
      %165 = sbr.rel (%p162) target = $region12
    $region11: #{_lambda_.9} parent=5 // pred_region
      %s166 = ssub.s32 %s11, 1
      // Predicated region
      $region13: #{_lambda_.9} parent=11 // pred_check
        %p167 = pneg %p49
      $region14: #{_lambda_.9} parent=11 // pred_check_branch
        %169 = sbr.rel (%p167) target = $region16
      $region15: #{_lambda_.9} parent=11 // pred_region
        %s170 = smul.u32 7, %s21
        %p171 = scmp.lt.s32.totalorder %s170, 6
        %s172 = scalar_select %p171, %s170, 6
        %s173 = smul.addr %s172, 8
        %s174 = scalar_lea.vmem %s0, %s173
        %s175 = smul.u32 7, %s21
      $region16: #{_lambda_.9} parent=11 // pred_fallthru
        _
      // Predicated region
      $region17: #{_lambda_.9} parent=11 // pred_check
        %p176 = pneg %p96
      $region18: #{_lambda_.9} parent=11 // pred_check_branch
        %178 = sbr.rel (%p176) target = $region20
      $region19: #{_lambda_.9} parent=11 // pred_region
        _
      $region20: #{_lambda_.9} parent=11 // pred_fallthru
        _
    $region12: #{_lambda_.9} parent=5 // pred_fallthru
      _
    %p179 = scmp.lt.s32.totalorder %s11, 2
    // Predicated region
    $region21: #{_lambda_.9} parent=5 // pred_check
      %p180 = pneg %p179
    $region22: #{_lambda_.9} parent=5 // pred_check_branch
      %182 = sbr.rel (%p180) target = $region24
    $region23: #{_lambda_.9} parent=5 // pred_region
      // Predicated region
      $region25: #{_lambda_.9} parent=23 // pred_check
        %p183 = pneg %p69
      $region26: #{_lambda_.9} parent=23 // pred_check_branch
        %185 = sbr.rel (%p183) target = $region28
      $region27: #{_lambda_.9} parent=23 // pred_region
        %p186 = scmp.lt.s32.totalorder %s18, 1
        %s187 = scalar_select %p186, %s18, 1
        %s188 = smul.addr %s187, 11
        %s189 = smul.addr %s188, 4
        %s190 = scalar_lea.vmem %s1, %s189
      $region28: #{_lambda_.9} parent=23 // pred_fallthru
        _
    $region24: #{_lambda_.9} parent=5 // pred_fallthru
      _
    %p191 = scmp.le.s32.totalorder 1, %s11
    %p192 = scmp.lt.s32.totalorder %s11, 3
    %p193 = pnand %p191, %p192
    %p194 = pneg %p193
    // Predicated region
    $region29: #{_lambda_.9} parent=5 // pred_check
      _
    $region30: #{_lambda_.9} parent=5 // pred_check_branch
      %196 = sbr.rel (%p193) target = $region32
    $region31: #{_lambda_.9} parent=5 // pred_region
      %s197 = ssub.s32 %s11, 1
      %s198 = smul.u32 7, %s21
      %p199 = scmp.lt.s32.totalorder %s198, 6
      %s200 = scalar_select %p199, %s198, 6
      %s201 = smul.addr %s200, 8
      %s202 = scalar_lea.vmem %s0, %s201
      %p203 = pneg %p49
      %p204 = pneg %p46
      %p205 = scmp.lt.s32.totalorder %s20, 1
      %s206 = scalar_select %p205, %s20, 1
      %s207 = smul.addr %s206, 11
      %s208 = smul.addr %s207, 4
      %s209 = scalar_lea.vmem %s1, %s208
      %p210 = pneg %p75
      %p211 = pneg %p72
      %p212 = pneg %p96
      %p213 = pneg %p93
      %p214 = pneg %p124
      %p215 = pneg %p121
      %s216 = smul.u32 7, %s21
      %p217 = scmp.lt.s32.totalorder %s20, 1
      %s218 = scalar_select %p217, %s20, 1
      %p219 = scmp.lt.s32.totalorder %s216, 6
      %s220 = scalar_select %p219, %s216, 6
      %s221 = smul.addr %s218, 7
      %s222 = sadd.s32 %s220, %s221
      %s223 = smul.addr %s222, 4
      %s224 = scalar_lea.vmem %s3, %s223
      %p225 = pneg %p152
      %p226 = pneg %p149
      %p227 = scmp.lt.s32.totalorder %s20, 1
      %s228 = scalar_select %p227, %s20, 1
      %p229 = scmp.lt.s32.totalorder %s21, 0
      %s230 = scalar_select %p229, %s21, 0
      %s231 = sadd.s32 %s230, %s228
      %s232 = smul.addr %s231, 4
      %s233 = scalar_lea.vmem %s4, %s232
      %s234 = smul.u32 7, %s21
      %p235 = scmp.lt.s32.totalorder %s234, 6
      %s236 = scalar_select %p235, %s234, 6
      %s237 = smul.addr %s236, 8
      %s238 = scalar_lea.vmem %s0, %s237
      %s239 = smul.u32 7, %s21
      %p240 = scmp.lt.s32.totalorder %s20, 1
      %s241 = scalar_select %p240, %s20, 1
      %s242 = smul.addr %s241, 11
      %s243 = smul.addr %s242, 4
      %s244 = scalar_lea.vmem %s1, %s243
      %s245 = smul.u32 7, %s21
      %p246 = scmp.lt.s32.totalorder %s20, 1
      %s247 = scalar_select %p246, %s20, 1
      %p248 = scmp.lt.s32.totalorder %s245, 6
      %s249 = scalar_select %p248, %s245, 6
      %s250 = smul.addr %s247, 7
      %s251 = sadd.s32 %s249, %s250
      %s252 = smul.addr %s251, 4
      %s253 = scalar_lea.vmem %s3, %s252
      %s254 = smul.u32 7, %s21
      %p255 = scmp.lt.s32.totalorder %s20, 1
      %s256 = scalar_select %p255, %s20, 1
      %p257 = scmp.lt.s32.totalorder %s21, 0
      %s258 = scalar_select %p257, %s21, 0
      %s259 = sadd.s32 %s258, %s256
      %s260 = smul.addr %s259, 4
      %s261 = scalar_lea.vmem %s4, %s260
      %v263 = vld [vmem:[%s244] sm:$0xf]
      %v264 = vld [vmem:[%s244 + $0x4] sm:$0xf]
      %v265 = vld [vmem:[%s244 + $0x8] sm:$0xf]
      %v266 = vld [vmem:[%s244 + $0xc] sm:$0xf]
      %v267 = vld [vmem:[%s244 + $0x10] sm:$0xf]
      %v268 = vld [vmem:[%s244 + $0x14] sm:$0xf]
      %v269 = vld [vmem:[%s244 + $0x18] sm:$0xf]
      %v270 = vld [vmem:[%s2] sm:$0xf]
      %v271 = vld [vmem:[%s2 + $0x4] sm:$0xf]
      %v272 = vld [vmem:[%s244 + $0x1c] sm:$0x1]
      %s273 = scalar_lea.vmem %s2, 8
      %v274 = vld [vmem:[%s273] sm:$0xf]
      %v275 = vld [vmem:[%s273 + $0x4] sm:$0xf]
      %v284 = vunpack.c.l.b16 %v263
      %v285 = vunpack.c.l.b16 %v264
      %v286 = vunpack.c.l.b16 %v265
      %v287 = vunpack.c.l.b16 %v266
      %v288 = vunpack.c.l.b16 %v267
      %v289 = vunpack.c.l.b16 %v268
      %v290 = vunpack.c.l.b16 %v269
      %v291 = vunpack.c.l.b16 %v272
      %v292 = vpack.c.b16 %v285, %v284
      %v293 = vpack.c.b16 %v287, %v286
      %v294 = vpack.c.b16 %v289, %v288
      %v295 = vpack.c.b16 %v291, %v290
      %vm296 = vsmask.f32 7424
      %v298 = vshrl.u32 %v292, 16
      %v300 = vshll.u32 %v292, 16
      %v302 = vrot.slane %v300, 1
      %v303 = vor.u32 %v298, %v302
      %v305 = vshll.u32 %v293, 16
      %v307 = vrot.slane %v305, 1
      %v308 = vsel %vm296, %v303, %v307
      %v309 = vshrl.u32 %v293, 16
      %v311 = vor.u32 %v309, %v307
      %v313 = vshll.u32 %v294, 16
      %v315 = vrot.slane %v313, 1
      %v316 = vsel %vm296, %v311, %v315
      %v317 = vshrl.u32 %v294, 16
      %v319 = vor.u32 %v317, %v315
      %v321 = vshll.u32 %v295, 16
      %v323 = vrot.slane %v321, 1
      %v324 = vsel %vm296, %v319, %v323
      %v325 = vshrl.u32 %v295, 16
      %v327 = vor.u32 %v325, %v323
      %v330 = vunpack.c.l.b16 %v274
      %v331 = vunpack.c.l.b16 %v275
      %v332 = vpack.c.b16 %v331, %v330
      %vm334 = vcmask 130048
      %v336 = vsel %vm334, %v308, 0
      %v339 = vsel %vm334, %v316, 0
      %v342 = vsel %vm334, %v324, 0
      %v345 = vsel %vm334, %v327, 0
      %347 = vmatprep.subr.bf16.mxu0 0
      %348 = vmatpush1.bf16.msra.mxu0 %v332
      %349 = vmatprep.subr.bf16.mxu0 0
      %350 = vmatpush1.bf16.msra.mxu0 0
      %351 = vmatprep.subr.bf16.mxu0 0
      %352 = vmatpush1.bf16.msra.mxu0 0
      %353 = vmatprep.subr.bf16.mxu0 0
      %354 = vmatpush1.bf16.msra.mxu0 0
      %355 = vmatprep.subr.bf16.mxu0 0
      %356 = vmatpush1.bf16.msra.mxu0 0
      %357 = vmatprep.subr.bf16.mxu0 0
      %358 = vmatpush1.bf16.msra.mxu0 0
      %359 = vmatprep.subr.bf16.mxu0 0
      %360 = vmatpush1.bf16.msra.mxu0 0
      %361 = vmatprep.subr.bf16.mxu0 0
      %362 = vmatpush1.bf16.msra.mxu0 0
      %363 = vmatprep.subr.bf16.mxu0 0
      %364 = vmatpush1.bf16.msra.mxu0 0
      %365 = vmatprep.subr.bf16.mxu0 0
      %366 = vmatpush1.bf16.msra.mxu0 0
      %367 = vmatprep.subr.bf16.mxu0 0
      %368 = vmatpush1.bf16.msra.mxu0 0
      %369 = vmatprep.subr.bf16.mxu0 0
      %370 = vmatpush1.bf16.msra.mxu0 0
      %371 = vmatprep.subr.bf16.mxu0 0
      %372 = vmatpush1.bf16.msra.mxu0 0
      %373 = vmatprep.subr.bf16.mxu0 0
      %374 = vmatpush1.bf16.msra.mxu0 0
      %375 = vmatprep.subr.bf16.mxu0 0
      %376 = vmatpush1.bf16.msra.mxu0 0
      %377 = vmatprep.subr.bf16.mxu0 0
      %378 = vmatpush1.bf16.msra.mxu0 0
      %379 = vmatprep.mubr.bf16.mxu0 0
      %380 = vmatmul.mubr.bf16.gmra.mrb[0].mxu0 %v336
      %v381 = vpop.f32.mrb[0].mxu0
      %v382 = vadd.f32 0.0, %v381
      %v383 = vpop.f32.mrb[0].mxu0
      %v384 = vpop.f32.mrb[0].mxu0
      %v385 = vadd.f32 0.0, %v384
      %v386 = vpop.f32.mrb[0].mxu0
      %387 = vmatprep.mubr.bf16.mxu0 0
      %388 = vmatmul.mubr.bf16.gmra.mrb[0].mxu0 %v339
      %v389 = vpop.f32.mrb[0].mxu0
      %v390 = vadd.f32 0.0, %v389
      %v391 = vpop.f32.mrb[0].mxu0
      %v392 = vpop.f32.mrb[0].mxu0
      %v393 = vadd.f32 0.0, %v392
      %v394 = vpop.f32.mrb[0].mxu0
      %395 = vmatprep.mubr.bf16.mxu0 0
      %396 = vmatmul.mubr.bf16.gmra.mrb[0].mxu0 %v342
      %v397 = vpop.f32.mrb[0].mxu0
      %v398 = vadd.f32 0.0, %v397
      %v399 = vpop.f32.mrb[0].mxu0
      %v400 = vpop.f32.mrb[0].mxu0
      %v401 = vadd.f32 0.0, %v400
      %v402 = vpop.f32.mrb[0].mxu0
      %403 = vmatprep.mubr.bf16.mxu0 0
      %404 = vmatmul.mubr.bf16.gmra.mrb[0].mxu0 %v345
      %v405 = vpop.f32.mrb[0].mxu0
      %v406 = vadd.f32 0.0, %v405
      %v407 = vpop.f32.mrb[0].mxu0
      %v408 = vpop.f32.mrb[0].mxu0
      %v409 = vpop.f32.mrb[0].mxu0
      %410 = vdwg.mxu0
      %v411 = vpack.c.b16 %v290, %v290
      %v414 = vunpack.c.l.b16 %v270
      %v415 = vunpack.c.l.b16 %v271
      %v416 = vpack.c.b16 %v415, %v414
      %v418 = vsel %vm334, %v292, 0
      %v420 = vsel %vm334, %v293, 0
      %v422 = vsel %vm334, %v294, 0
      %v425 = vsel %vm334, %v411, 0
      %427 = vmatprep.subr.bf16.mxu0 0
      %428 = vmatpush1.bf16.msra.mxu0 %v416
      %429 = vmatprep.subr.bf16.mxu0 0
      %430 = vmatpush1.bf16.msra.mxu0 0
      %431 = vmatprep.subr.bf16.mxu0 0
      %432 = vmatpush1.bf16.msra.mxu0 0
      %433 = vmatprep.subr.bf16.mxu0 0
      %434 = vmatpush1.bf16.msra.mxu0 0
      %435 = vmatprep.subr.bf16.mxu0 0
      %436 = vmatpush1.bf16.msra.mxu0 0
      %437 = vmatprep.subr.bf16.mxu0 0
      %438 = vmatpush1.bf16.msra.mxu0 0
      %439 = vmatprep.subr.bf16.mxu0 0
      %440 = vmatpush1.bf16.msra.mxu0 0
      %441 = vmatprep.subr.bf16.mxu0 0
      %442 = vmatpush1.bf16.msra.mxu0 0
      %443 = vmatprep.subr.bf16.mxu0 0
      %444 = vmatpush1.bf16.msra.mxu0 0
      %445 = vmatprep.subr.bf16.mxu0 0
      %446 = vmatpush1.bf16.msra.mxu0 0
      %447 = vmatprep.subr.bf16.mxu0 0
      %448 = vmatpush1.bf16.msra.mxu0 0
      %449 = vmatprep.subr.bf16.mxu0 0
      %450 = vmatpush1.bf16.msra.mxu0 0
      %451 = vmatprep.subr.bf16.mxu0 0
      %452 = vmatpush1.bf16.msra.mxu0 0
      %453 = vmatprep.subr.bf16.mxu0 0
      %454 = vmatpush1.bf16.msra.mxu0 0
      %455 = vmatprep.subr.bf16.mxu0 0
      %456 = vmatpush1.bf16.msra.mxu0 0
      %457 = vmatprep.subr.bf16.mxu0 0
      %458 = vmatpush1.bf16.msra.mxu0 0
      %459 = vmatprep.mubr.bf16.mxu0 0
      %460 = vmatmul.mubr.bf16.gmra.mrb[0].mxu0 %v418
      %v461 = vpop.f32.mrb[0].mxu0
      %v462 = vadd.f32 %v382, %v461
      %v463 = vpop.f32.mrb[0].mxu0
      %v464 = vpop.f32.mrb[0].mxu0
      %v465 = vadd.f32 %v385, %v464
      %v466 = vpop.f32.mrb[0].mxu0
      %467 = vmatprep.mubr.bf16.mxu0 0
      %468 = vmatmul.mubr.bf16.gmra.mrb[0].mxu0 %v420
      %v469 = vpop.f32.mrb[0].mxu0
      %v470 = vadd.f32 %v390, %v469
      %v471 = vpop.f32.mrb[0].mxu0
      %v472 = vpop.f32.mrb[0].mxu0
      %v473 = vadd.f32 %v393, %v472
      %v474 = vpop.f32.mrb[0].mxu0
      %475 = vmatprep.mubr.bf16.mxu0 0
      %476 = vmatmul.mubr.bf16.gmra.mrb[0].mxu0 %v422
      %v477 = vpop.f32.mrb[0].mxu0
      %v478 = vadd.f32 %v398, %v477
      %v479 = vpop.f32.mrb[0].mxu0
      %v480 = vpop.f32.mrb[0].mxu0
      %v481 = vadd.f32 %v401, %v480
      %v482 = vpop.f32.mrb[0].mxu0
      %483 = vmatprep.mubr.bf16.mxu0 0
      %484 = vmatmul.mubr.bf16.gmra.mrb[0].mxu0 %v425
      %v485 = vpop.f32.mrb[0].mxu0
      %v486 = vadd.f32 %v406, %v485
      %v487 = vpop.f32.mrb[0].mxu0
      %v488 = vpop.f32.mrb[0].mxu0
      %v489 = vpop.f32.mrb[0].mxu0
      %490 = vdwg.mxu0
      %v491 = vld [vmem:[%s244] sm:$0xe]
      %s492 = scalar_lea.vmem %s2, 16
      %v493 = vld [vmem:[%s492] sm:$0xf]
      %v494 = vld [vmem:[%s492 + $0x4] sm:$0xf]
      %v496 = vunpack.c.l.b16 %v491
      %v497 = vpack.c.b16 %v285, %v496
      %vm498 = vcmask 1046528
      %v499 = vrot.slane %v497, 1
      %v500 = vrot.slane %v293, 1
      %v501 = vsel %vm498, %v499, %v500
      %v502 = vrot.slane %v294, 1
      %v503 = vsel %vm498, %v500, %v502
      %v504 = vrot.slane %v295, 1
      %v505 = vsel %vm498, %v502, %v504
      %v508 = vunpack.c.l.b16 %v493
      %v509 = vunpack.c.l.b16 %v494
      %v510 = vpack.c.b16 %v509, %v508
      %v513 = vsel %vm334, %v501, 0
      %v516 = vsel %vm334, %v503, 0
      %v519 = vsel %vm334, %v505, 0
      %v522 = vsel %vm334, %v504, 0
      %524 = vmatprep.subr.bf16.mxu0 0
      %525 = vmatpush1.bf16.msra.mxu0 %v510
      %526 = vmatprep.subr.bf16.mxu0 0
      %527 = vmatpush1.bf16.msra.mxu0 0
      %528 = vmatprep.subr.bf16.mxu0 0
      %529 = vmatpush1.bf16.msra.mxu0 0
      %530 = vmatprep.subr.bf16.mxu0 0
      %531 = vmatpush1.bf16.msra.mxu0 0
      %532 = vmatprep.subr.bf16.mxu0 0
      %533 = vmatpush1.bf16.msra.mxu0 0
      %534 = vmatprep.subr.bf16.mxu0 0
      %535 = vmatpush1.bf16.msra.mxu0 0
      %536 = vmatprep.subr.bf16.mxu0 0
      %537 = vmatpush1.bf16.msra.mxu0 0
      %538 = vmatprep.subr.bf16.mxu0 0
      %539 = vmatpush1.bf16.msra.mxu0 0
      %540 = vmatprep.subr.bf16.mxu0 0
      %541 = vmatpush1.bf16.msra.mxu0 0
      %542 = vmatprep.subr.bf16.mxu0 0
      %543 = vmatpush1.bf16.msra.mxu0 0
      %544 = vmatprep.subr.bf16.mxu0 0
      %545 = vmatpush1.bf16.msra.mxu0 0
      %546 = vmatprep.subr.bf16.mxu0 0
      %547 = vmatpush1.bf16.msra.mxu0 0
      %548 = vmatprep.subr.bf16.mxu0 0
      %549 = vmatpush1.bf16.msra.mxu0 0
      %550 = vmatprep.subr.bf16.mxu0 0
      %551 = vmatpush1.bf16.msra.mxu0 0
      %552 = vmatprep.subr.bf16.mxu0 0
      %553 = vmatpush1.bf16.msra.mxu0 0
      %554 = vmatprep.subr.bf16.mxu0 0
      %555 = vmatpush1.bf16.msra.mxu0 0
      %556 = vmatprep.mubr.bf16.mxu0 0
      %557 = vmatmul.mubr.bf16.gmra.mrb[0].mxu0 %v513
      %v558 = vpop.f32.mrb[0].mxu0
      %v559 = vadd.f32 0.0, %v558
      %v560 = vpop.f32.mrb[0].mxu0
      %v561 = vpop.f32.mrb[0].mxu0
      %v562 = vadd.f32 0.0, %v561
      %v563 = vpop.f32.mrb[0].mxu0
      %564 = vmatprep.mubr.bf16.mxu0 0
      %565 = vmatmul.mubr.bf16.gmra.mrb[0].mxu0 %v516
      %v566 = vpop.f32.mrb[0].mxu0
      %v567 = vadd.f32 0.0, %v566
      %v568 = vpop.f32.mrb[0].mxu0
      %v569 = vpop.f32.mrb[0].mxu0
      %v570 = vadd.f32 0.0, %v569
      %v571 = vpop.f32.mrb[0].mxu0
      %572 = vmatprep.mubr.bf16.mxu0 0
      %573 = vmatmul.mubr.bf16.gmra.mrb[0].mxu0 %v519
      %v574 = vpop.f32.mrb[0].mxu0
      %v575 = vadd.f32 0.0, %v574
      %v576 = vpop.f32.mrb[0].mxu0
      %v577 = vpop.f32.mrb[0].mxu0
      %v578 = vadd.f32 0.0, %v577
      %v579 = vpop.f32.mrb[0].mxu0
      %580 = vmatprep.mubr.bf16.mxu0 0
      %581 = vmatmul.mubr.bf16.gmra.mrb[0].mxu0 %v522
      %v582 = vpop.f32.mrb[0].mxu0
      %v583 = vadd.f32 0.0, %v582
      %v584 = vpop.f32.mrb[0].mxu0
      %v585 = vpop.f32.mrb[0].mxu0
      %v586 = vpop.f32.mrb[0].mxu0
      %587 = vdwg.mxu0
      %v588 = vadd.f32 %v462, %v559
      %v589 = vadd.f32 %v465, %v562
      %v590 = vadd.f32 %v470, %v567
      %v591 = vadd.f32 %v473, %v570
      %v592 = vadd.f32 %v478, %v575
      %v593 = vadd.f32 %v481, %v578
      %v594 = vadd.f32 %v486, %v583
      %v595 = vld [vmem:[%s244 + $0x1c] sm:$0x3]
      %s596 = scalar_lea.vmem %s2, 24
      %v597 = vld [vmem:[%s596] sm:$0xf]
      %v598 = vld [vmem:[%s596 + $0x4] sm:$0xf]
      %v600 = vunpack.c.l.b16 %v595
      %v601 = vpack.c.b16 %v600, %v290
      %vm602 = vsmask.f32 6400
      %v604 = vshrl.u32 %v497, 16
      %v606 = vrot.slane %v604, 1
      %v607 = vshll.u32 %v497, 16
      %v609 = vrot.slane %v607, 2
      %v610 = vor.u32 %v606, %v609
      %v611 = vrot.slane %v309, 1
      %v612 = vrot.slane %v305, 2
      %v613 = vor.u32 %v611, %v612
      %v614 = vsel %vm602, %v610, %v613
      %v615 = vrot.slane %v317, 1
      %v616 = vrot.slane %v313, 2
      %v617 = vor.u32 %v615, %v616
      %v618 = vsel %vm602, %v613, %v617
      %v620 = vshrl.u32 %v601, 16
      %v622 = vrot.slane %v620, 1
      %v623 = vshll.u32 %v601, 16
      %v625 = vrot.slane %v623, 2
      %v626 = vor.u32 %v622, %v625
      %v627 = vsel %vm602, %v617, %v626
      %v630 = vunpack.c.l.b16 %v597
      %v631 = vunpack.c.l.b16 %v598
      %v632 = vpack.c.b16 %v631, %v630
      %v635 = vsel %vm334, %v614, 0
      %v638 = vsel %vm334, %v618, 0
      %v641 = vsel %vm334, %v627, 0
      %v644 = vsel %vm334, %v626, 0
      %646 = vmatprep.subr.bf16.mxu0 0
      %647 = vmatpush1.bf16.msra.mxu0 %v632
      %648 = vmatprep.subr.bf16.mxu0 0
      %649 = vmatpush1.bf16.msra.mxu0 0
      %650 = vmatprep.subr.bf16.mxu0 0
      %651 = vmatpush1.bf16.msra.mxu0 0
      %652 = vmatprep.subr.bf16.mxu0 0
      %653 = vmatpush1.bf16.msra.mxu0 0
      %654 = vmatprep.subr.bf16.mxu0 0
      %655 = vmatpush1.bf16.msra.mxu0 0
      %656 = vmatprep.subr.bf16.mxu0 0
      %657 = vmatpush1.bf16.msra.mxu0 0
      %658 = vmatprep.subr.bf16.mxu0 0
      %659 = vmatpush1.bf16.msra.mxu0 0
      %660 = vmatprep.subr.bf16.mxu0 0
      %661 = vmatpush1.bf16.msra.mxu0 0
      %662 = vmatprep.subr.bf16.mxu0 0
      %663 = vmatpush1.bf16.msra.mxu0 0
      %664 = vmatprep.subr.bf16.mxu0 0
      %665 = vmatpush1.bf16.msra.mxu0 0
      %666 = vmatprep.subr.bf16.mxu0 0
      %667 = vmatpush1.bf16.msra.mxu0 0
      %668 = vmatprep.subr.bf16.mxu0 0
      %669 = vmatpush1.bf16.msra.mxu0 0
      %670 = vmatprep.subr.bf16.mxu0 0
      %671 = vmatpush1.bf16.msra.mxu0 0
      %672 = vmatprep.subr.bf16.mxu0 0
      %673 = vmatpush1.bf16.msra.mxu0 0
      %674 = vmatprep.subr.bf16.mxu0 0
      %675 = vmatpush1.bf16.msra.mxu0 0
      %676 = vmatprep.subr.bf16.mxu0 0
      %677 = vmatpush1.bf16.msra.mxu0 0
      %678 = vmatprep.mubr.bf16.mxu0 0
      %679 = vmatmul.mubr.bf16.gmra.mrb[0].mxu0 %v635
      %v680 = vpop.f32.mrb[0].mxu0
      %v681 = vadd.f32 0.0, %v680
      %v682 = vpop.f32.mrb[0].mxu0
      %v683 = vpop.f32.mrb[0].mxu0
      %v684 = vadd.f32 0.0, %v683
      %v685 = vpop.f32.mrb[0].mxu0
      %686 = vmatprep.mubr.bf16.mxu0 0
      %687 = vmatmul.mubr.bf16.gmra.mrb[0].mxu0 %v638
      %v688 = vpop.f32.mrb[0].mxu0
      %v689 = vadd.f32 0.0, %v688
      %v690 = vpop.f32.mrb[0].mxu0
      %v691 = vpop.f32.mrb[0].mxu0
      %v692 = vadd.f32 0.0, %v691
      %v693 = vpop.f32.mrb[0].mxu0
      %694 = vmatprep.mubr.bf16.mxu0 0
      %695 = vmatmul.mubr.bf16.gmra.mrb[0].mxu0 %v641
      %v696 = vpop.f32.mrb[0].mxu0
      %v697 = vadd.f32 0.0, %v696
      %v698 = vpop.f32.mrb[0].mxu0
      %v699 = vpop.f32.mrb[0].mxu0
      %v700 = vadd.f32 0.0, %v699
      %v701 = vpop.f32.mrb[0].mxu0
      %702 = vmatprep.mubr.bf16.mxu0 0
      %703 = vmatmul.mubr.bf16.gmra.mrb[0].mxu0 %v644
      %v704 = vpop.f32.mrb[0].mxu0
      %v705 = vadd.f32 0.0, %v704
      %v706 = vpop.f32.mrb[0].mxu0
      %v707 = vpop.f32.mrb[0].mxu0
      %v708 = vpop.f32.mrb[0].mxu0
      %709 = vdwg.mxu0
      %v710 = vadd.f32 %v588, %v681
      %v711 = vadd.f32 %v589, %v684
      %v712 = vadd.f32 %v590, %v689
      %v713 = vadd.f32 %v591, %v692
      %v714 = vadd.f32 %v592, %v697
      %v715 = vadd.f32 %v593, %v700
      %v716 = vadd.f32 %v594, %v705
      %v717 = vld [vmem:[%s244 + $0x4] sm:$0xf]
      %v718 = vld [vmem:[%s244 + $0x8] sm:$0xf]
      %v719 = vld [vmem:[%s244 + $0xc] sm:$0xf]
      %v720 = vld [vmem:[%s244 + $0x10] sm:$0xf]
      %v721 = vld [vmem:[%s244 + $0x14] sm:$0xf]
      %v722 = vld [vmem:[%s244 + $0x18] sm:$0xf]
      %v723 = vld [vmem:[%s244 + $0x1c] sm:$0xf]
      %v724 = vld [vmem:[%s244 + $0x20] sm:$0x1]
      %s725 = scalar_lea.vmem %s2, 32
      %v726 = vld [vmem:[%s725] sm:$0xf]
      %v727 = vld [vmem:[%s725 + $0x4] sm:$0xf]
      %v736 = vunpack.c.l.b16 %v717
      %v737 = vunpack.c.l.b16 %v718
      %v738 = vunpack.c.l.b16 %v719
      %v739 = vunpack.c.l.b16 %v720
      %v740 = vunpack.c.l.b16 %v721
      %v741 = vunpack.c.l.b16 %v722
      %v742 = vunpack.c.l.b16 %v723
      %v743 = vunpack.c.l.b16 %v724
      %v744 = vpack.c.b16 %v737, %v736
      %v745 = vpack.c.b16 %v739, %v738
      %v746 = vpack.c.b16 %v741, %v740
      %v747 = vpack.c.b16 %v743, %v742
      %v749 = vshrl.u32 %v744, 16
      %v751 = vshll.u32 %v744, 16
      %v753 = vrot.slane %v751, 1
      %v754 = vor.u32 %v749, %v753
      %v756 = vshll.u32 %v745, 16
      %v758 = vrot.slane %v756, 1
      %v759 = vsel %vm296, %v754, %v758
      %v760 = vshrl.u32 %v745, 16
      %v762 = vor.u32 %v760, %v758
      %v764 = vshll.u32 %v746, 16
      %v766 = vrot.slane %v764, 1
      %v767 = vsel %vm296, %v762, %v766
      %v768 = vshrl.u32 %v746, 16
      %v770 = vor.u32 %v768, %v766
      %v772 = vshll.u32 %v747, 16
      %v774 = vrot.slane %v772, 1
      %v775 = vsel %vm296, %v770, %v774
      %v776 = vshrl.u32 %v747, 16
      %v778 = vor.u32 %v776, %v774
      %v781 = vunpack.c.l.b16 %v726
      %v782 = vunpack.c.l.b16 %v727
      %v783 = vpack.c.b16 %v782, %v781
      %v786 = vsel %vm334, %v759, 0
      %v789 = vsel %vm334, %v767, 0
      %v792 = vsel %vm334, %v775, 0
      %v795 = vsel %vm334, %v778, 0
      %797 = vmatprep.subr.bf16.mxu0 0
      %798 = vmatpush1.bf16.msra.mxu0 %v783
      %799 = vmatprep.subr.bf16.mxu0 0
      %800 = vmatpush1.bf16.msra.mxu0 0
      %801 = vmatprep.subr.bf16.mxu0 0
      %802 = vmatpush1.bf16.msra.mxu0 0
      %803 = vmatprep.subr.bf16.mxu0 0
      %804 = vmatpush1.bf16.msra.mxu0 0
      %805 = vmatprep.subr.bf16.mxu0 0
      %806 = vmatpush1.bf16.msra.mxu0 0
      %807 = vmatprep.subr.bf16.mxu0 0
      %808 = vmatpush1.bf16.msra.mxu0 0
      %809 = vmatprep.subr.bf16.mxu0 0
      %810 = vmatpush1.bf16.msra.mxu0 0
      %811 = vmatprep.subr.bf16.mxu0 0
      %812 = vmatpush1.bf16.msra.mxu0 0
      %813 = vmatprep.subr.bf16.mxu0 0
      %814 = vmatpush1.bf16.msra.mxu0 0
      %815 = vmatprep.subr.bf16.mxu0 0
      %816 = vmatpush1.bf16.msra.mxu0 0
      %817 = vmatprep.subr.bf16.mxu0 0
      %818 = vmatpush1.bf16.msra.mxu0 0
      %819 = vmatprep.subr.bf16.mxu0 0
      %820 = vmatpush1.bf16.msra.mxu0 0
      %821 = vmatprep.subr.bf16.mxu0 0
      %822 = vmatpush1.bf16.msra.mxu0 0
      %823 = vmatprep.subr.bf16.mxu0 0
      %824 = vmatpush1.bf16.msra.mxu0 0
      %825 = vmatprep.subr.bf16.mxu0 0
      %826 = vmatpush1.bf16.msra.mxu0 0
      %827 = vmatprep.subr.bf16.mxu0 0
      %828 = vmatpush1.bf16.msra.mxu0 0
      %829 = vmatprep.mubr.bf16.mxu0 0
      %830 = vmatmul.mubr.bf16.gmra.mrb[0].mxu0 %v786
      %v831 = vpop.f32.mrb[0].mxu0
      %v832 = vadd.f32 0.0, %v831
      %v833 = vpop.f32.mrb[0].mxu0
      %v834 = vpop.f32.mrb[0].mxu0
      %v835 = vadd.f32 0.0, %v834
      %v836 = vpop.f32.mrb[0].mxu0
      %837 = vmatprep.mubr.bf16.mxu0 0
      %838 = vmatmul.mubr.bf16.gmra.mrb[0].mxu0 %v789
      %v839 = vpop.f32.mrb[0].mxu0
      %v840 = vadd.f32 0.0, %v839
      %v841 = vpop.f32.mrb[0].mxu0
      %v842 = vpop.f32.mrb[0].mxu0
      %v843 = vadd.f32 0.0, %v842
      %v844 = vpop.f32.mrb[0].mxu0
      %845 = vmatprep.mubr.bf16.mxu0 0
      %846 = vmatmul.mubr.bf16.gmra.mrb[0].mxu0 %v792
      %v847 = vpop.f32.mrb[0].mxu0
      %v848 = vadd.f32 0.0, %v847
      %v849 = vpop.f32.mrb[0].mxu0
      %v850 = vpop.f32.mrb[0].mxu0
      %v851 = vadd.f32 0.0, %v850
      %v852 = vpop.f32.mrb[0].mxu0
      %853 = vmatprep.mubr.bf16.mxu0 0
      %854 = vmatmul.mubr.bf16.gmra.mrb[0].mxu0 %v795
      %v855 = vpop.f32.mrb[0].mxu0
      %v856 = vadd.f32 0.0, %v855
      %v857 = vpop.f32.mrb[0].mxu0
      %v858 = vpop.f32.mrb[0].mxu0
      %v859 = vpop.f32.mrb[0].mxu0
      %860 = vdwg.mxu0
      %v861 = vadd.f32 %v710, %v832
      %v862 = vadd.f32 %v711, %v835
      %v863 = vadd.f32 %v712, %v840
      %v864 = vadd.f32 %v713, %v843
      %v865 = vadd.f32 %v714, %v848
      %v866 = vadd.f32 %v715, %v851
      %v867 = vadd.f32 %v716, %v856
      %v868 = vld [vmem:[%s244 + $0x4] sm:$0xe]
      %s869 = scalar_lea.vmem %s2, 40
      %v870 = vld [vmem:[%s869] sm:$0xf]
      %v871 = vld [vmem:[%s869 + $0x4] sm:$0xf]
      %v873 = vunpack.c.l.b16 %v868
      %v874 = vpack.c.b16 %v737, %v873
      %v875 = vrot.slane %v874, 1
      %v876 = vrot.slane %v745, 1
      %v877 = vsel %vm498, %v875, %v876
      %v878 = vrot.slane %v746, 1
      %v879 = vsel %vm498, %v876, %v878
      %v880 = vrot.slane %v747, 1
      %v881 = vsel %vm498, %v878, %v880
      %v884 = vunpack.c.l.b16 %v870
      %v885 = vunpack.c.l.b16 %v871
      %v886 = vpack.c.b16 %v885, %v884
      %v889 = vsel %vm334, %v877, 0
      %v892 = vsel %vm334, %v879, 0
      %v895 = vsel %vm334, %v881, 0
      %v898 = vsel %vm334, %v880, 0
      %900 = vmatprep.subr.bf16.mxu0 0
      %901 = vmatpush1.bf16.msra.mxu0 %v886
      %902 = vmatprep.subr.bf16.mxu0 0
      %903 = vmatpush1.bf16.msra.mxu0 0
      %904 = vmatprep.subr.bf16.mxu0 0
      %905 = vmatpush1.bf16.msra.mxu0 0
      %906 = vmatprep.subr.bf16.mxu0 0
      %907 = vmatpush1.bf16.msra.mxu0 0
      %908 = vmatprep.subr.bf16.mxu0 0
      %909 = vmatpush1.bf16.msra.mxu0 0
      %910 = vmatprep.subr.bf16.mxu0 0
      %911 = vmatpush1.bf16.msra.mxu0 0
      %912 = vmatprep.subr.bf16.mxu0 0
      %913 = vmatpush1.bf16.msra.mxu0 0
      %914 = vmatprep.subr.bf16.mxu0 0
      %915 = vmatpush1.bf16.msra.mxu0 0
      %916 = vmatprep.subr.bf16.mxu0 0
      %917 = vmatpush1.bf16.msra.mxu0 0
      %918 = vmatprep.subr.bf16.mxu0 0
      %919 = vmatpush1.bf16.msra.mxu0 0
      %920 = vmatprep.subr.bf16.mxu0 0
      %921 = vmatpush1.bf16.msra.mxu0 0
      %922 = vmatprep.subr.bf16.mxu0 0
      %923 = vmatpush1.bf16.msra.mxu0 0
      %924 = vmatprep.subr.bf16.mxu0 0
      %925 = vmatpush1.bf16.msra.mxu0 0
      %926 = vmatprep.subr.bf16.mxu0 0
      %927 = vmatpush1.bf16.msra.mxu0 0
      %928 = vmatprep.subr.bf16.mxu0 0
      %929 = vmatpush1.bf16.msra.mxu0 0
      %930 = vmatprep.subr.bf16.mxu0 0
      %931 = vmatpush1.bf16.msra.mxu0 0
      %932 = vmatprep.mubr.bf16.mxu0 0
      %933 = vmatmul.mubr.bf16.gmra.mrb[0].mxu0 %v889
      %v934 = vpop.f32.mrb[0].mxu0
      %v935 = vadd.f32 0.0, %v934
      %v936 = vpop.f32.mrb[0].mxu0
      %v937 = vpop.f32.mrb[0].mxu0
      %v938 = vadd.f32 0.0, %v937
      %v939 = vpop.f32.mrb[0].mxu0
      %940 = vmatprep.mubr.bf16.mxu0 0
      %941 = vmatmul.mubr.bf16.gmra.mrb[0].mxu0 %v892
      %v942 = vpop.f32.mrb[0].mxu0
      %v943 = vadd.f32 0.0, %v942
      %v944 = vpop.f32.mrb[0].mxu0
      %v945 = vpop.f32.mrb[0].mxu0
      %v946 = vadd.f32 0.0, %v945
      %v947 = vpop.f32.mrb[0].mxu0
      %948 = vmatprep.mubr.bf16.mxu0 0
      %949 = vmatmul.mubr.bf16.gmra.mrb[0].mxu0 %v895
      %v950 = vpop.f32.mrb[0].mxu0
      %v951 = vadd.f32 0.0, %v950
      %v952 = vpop.f32.mrb[0].mxu0
      %v953 = vpop.f32.mrb[0].mxu0
      %v954 = vadd.f32 0.0, %v953
      %v955 = vpop.f32.mrb[0].mxu0
      %956 = vmatprep.mubr.bf16.mxu0 0
      %957 = vmatmul.mubr.bf16.gmra.mrb[0].mxu0 %v898
      %v958 = vpop.f32.mrb[0].mxu0
      %v959 = vadd.f32 0.0, %v958
      %v960 = vpop.f32.mrb[0].mxu0
      %v961 = vpop.f32.mrb[0].mxu0
      %v962 = vpop.f32.mrb[0].mxu0
      %963 = vdwg.mxu0
      %v964 = vadd.f32 %v861, %v935
      %v965 = vadd.f32 %v862, %v938
      %v966 = vadd.f32 %v863, %v943
      %v967 = vadd.f32 %v864, %v946
      %v968 = vadd.f32 %v865, %v951
      %v969 = vadd.f32 %v866, %v954
      %v970 = vadd.f32 %v867, %v959
      %v971 = vld [vmem:[%s244 + $0x20] sm:$0x3]
      %s972 = scalar_lea.vmem %s2, 48
      %v973 = vld [vmem:[%s972] sm:$0xf]
      %v974 = vld [vmem:[%s972 + $0x4] sm:$0xf]
      %v976 = vunpack.c.l.b16 %v971
      %v977 = vpack.c.b16 %v976, %v742
      %v979 = vshrl.u32 %v874, 16
      %v981 = vrot.slane %v979, 1
      %v982 = vshll.u32 %v874, 16
      %v984 = vrot.slane %v982, 2
      %v985 = vor.u32 %v981, %v984
      %v986 = vrot.slane %v760, 1
      %v987 = vrot.slane %v756, 2
      %v988 = vor.u32 %v986, %v987
      %v989 = vsel %vm602, %v985, %v988
      %v990 = vrot.slane %v768, 1
      %v991 = vrot.slane %v764, 2
      %v992 = vor.u32 %v990, %v991
      %v993 = vsel %vm602, %v988, %v992
      %v995 = vshrl.u32 %v977, 16
      %v997 = vrot.slane %v995, 1
      %v998 = vshll.u32 %v977, 16
      %v1000 = vrot.slane %v998, 2
      %v1001 = vor.u32 %v997, %v1000
      %v1002 = vsel %vm602, %v992, %v1001
      %v1005 = vunpack.c.l.b16 %v973
      %v1006 = vunpack.c.l.b16 %v974
      %v1007 = vpack.c.b16 %v1006, %v1005
      %v1010 = vsel %vm334, %v989, 0
      %v1013 = vsel %vm334, %v993, 0
      %v1016 = vsel %vm334, %v1002, 0
      %v1019 = vsel %vm334, %v1001, 0
      %1021 = vmatprep.subr.bf16.mxu0 0
      %1022 = vmatpush1.bf16.msra.mxu0 %v1007
      %1023 = vmatprep.subr.bf16.mxu0 0
      %1024 = vmatpush1.bf16.msra.mxu0 0
      %1025 = vmatprep.subr.bf16.mxu0 0
      %1026 = vmatpush1.bf16.msra.mxu0 0
      %1027 = vmatprep.subr.bf16.mxu0 0
      %1028 = vmatpush1.bf16.msra.mxu0 0
      %1029 = vmatprep.subr.bf16.mxu0 0
      %1030 = vmatpush1.bf16.msra.mxu0 0
      %1031 = vmatprep.subr.bf16.mxu0 0
      %1032 = vmatpush1.bf16.msra.mxu0 0
      %1033 = vmatprep.subr.bf16.mxu0 0
      %1034 = vmatpush1.bf16.msra.mxu0 0
      %1035 = vmatprep.subr.bf16.mxu0 0
      %1036 = vmatpush1.bf16.msra.mxu0 0
      %1037 = vmatprep.subr.bf16.mxu0 0
      %1038 = vmatpush1.bf16.msra.mxu0 0
      %1039 = vmatprep.subr.bf16.mxu0 0
      %1040 = vmatpush1.bf16.msra.mxu0 0
      %1041 = vmatprep.subr.bf16.mxu0 0
      %1042 = vmatpush1.bf16.msra.mxu0 0
      %1043 = vmatprep.subr.bf16.mxu0 0
      %1044 = vmatpush1.bf16.msra.mxu0 0
      %1045 = vmatprep.subr.bf16.mxu0 0
      %1046 = vmatpush1.bf16.msra.mxu0 0
      %1047 = vmatprep.subr.bf16.mxu0 0
      %1048 = vmatpush1.bf16.msra.mxu0 0
      %1049 = vmatprep.subr.bf16.mxu0 0
      %1050 = vmatpush1.bf16.msra.mxu0 0
      %1051 = vmatprep.subr.bf16.mxu0 0
      %1052 = vmatpush1.bf16.msra.mxu0 0
      %1053 = vmatprep.mubr.bf16.mxu0 0
      %1054 = vmatmul.mubr.bf16.gmra.mrb[0].mxu0 %v1010
      %v1055 = vpop.f32.mrb[0].mxu0
      %v1056 = vadd.f32 0.0, %v1055
      %v1057 = vpop.f32.mrb[0].mxu0
      %v1058 = vpop.f32.mrb[0].mxu0
      %v1059 = vadd.f32 0.0, %v1058
      %v1060 = vpop.f32.mrb[0].mxu0
      %1061 = vmatprep.mubr.bf16.mxu0 0
      %1062 = vmatmul.mubr.bf16.gmra.mrb[0].mxu0 %v1013
      %v1063 = vpop.f32.mrb[0].mxu0
      %v1064 = vadd.f32 0.0, %v1063
      %v1065 = vpop.f32.mrb[0].mxu0
      %v1066 = vpop.f32.mrb[0].mxu0
      %v1067 = vadd.f32 0.0, %v1066
      %v1068 = vpop.f32.mrb[0].mxu0
      %1069 = vmatprep.mubr.bf16.mxu0 0
      %1070 = vmatmul.mubr.bf16.gmra.mrb[0].mxu0 %v1016
      %v1071 = vpop.f32.mrb[0].mxu0
      %v1072 = vadd.f32 0.0, %v1071
      %v1073 = vpop.f32.mrb[0].mxu0
      %v1074 = vpop.f32.mrb[0].mxu0
      %v1075 = vadd.f32 0.0, %v1074
      %v1076 = vpop.f32.mrb[0].mxu0
      %1077 = vmatprep.mubr.bf16.mxu0 0
      %1078 = vmatmul.mubr.bf16.gmra.mrb[0].mxu0 %v1019
      %v1079 = vpop.f32.mrb[0].mxu0
      %v1080 = vadd.f32 0.0, %v1079
      %v1081 = vpop.f32.mrb[0].mxu0
      %v1082 = vpop.f32.mrb[0].mxu0
      %v1083 = vpop.f32.mrb[0].mxu0
      %1084 = vdwg.mxu0
      %v1085 = vadd.f32 %v964, %v1056
      %v1086 = vadd.f32 %v965, %v1059
      %v1087 = vadd.f32 %v966, %v1064
      %v1088 = vadd.f32 %v967, %v1067
      %v1089 = vadd.f32 %v968, %v1072
      %v1090 = vadd.f32 %v969, %v1075
      %v1091 = vadd.f32 %v970, %v1080
      %v1092 = vld [vmem:[%s244 + $0x4] sm:$0xc]
      %s1093 = scalar_lea.vmem %s2, 56
      %v1094 = vld [vmem:[%s1093] sm:$0xf]
      %v1095 = vld [vmem:[%s1093 + $0x4] sm:$0xf]
      %v1097 = vunpack.c.l.b16 %v1092
      %v1098 = vpack.c.b16 %v737, %v1097
      %vm1099 = vcmask 1045504
      %v1100 = vrot.slane %v1098, 2
      %v1101 = vrot.slane %v745, 2
      %v1102 = vsel %vm1099, %v1100, %v1101
      %v1103 = vrot.slane %v746, 2
      %v1104 = vsel %vm1099, %v1101, %v1103
      %v1105 = vrot.slane %v977, 2
      %v1106 = vsel %vm1099, %v1103, %v1105
      %v1109 = vunpack.c.l.b16 %v1094
      %v1110 = vunpack.c.l.b16 %v1095
      %v1111 = vpack.c.b16 %v1110, %v1109
      %v1114 = vsel %vm334, %v1102, 0
      %v1117 = vsel %vm334, %v1104, 0
      %v1120 = vsel %vm334, %v1106, 0
      %v1123 = vsel %vm334, %v1105, 0
      %1125 = vmatprep.subr.bf16.mxu0 0
      %1126 = vmatpush1.bf16.msra.mxu0 %v1111
      %1127 = vmatprep.subr.bf16.mxu0 0
      %1128 = vmatpush1.bf16.msra.mxu0 0
      %1129 = vmatprep.subr.bf16.mxu0 0
      %1130 = vmatpush1.bf16.msra.mxu0 0
      %1131 = vmatprep.subr.bf16.mxu0 0
      %1132 = vmatpush1.bf16.msra.mxu0 0
      %1133 = vmatprep.subr.bf16.mxu0 0
      %1134 = vmatpush1.bf16.msra.mxu0 0
      %1135 = vmatprep.subr.bf16.mxu0 0
      %1136 = vmatpush1.bf16.msra.mxu0 0
      %1137 = vmatprep.subr.bf16.mxu0 0
      %1138 = vmatpush1.bf16.msra.mxu0 0
      %1139 = vmatprep.subr.bf16.mxu0 0
      %1140 = vmatpush1.bf16.msra.mxu0 0
      %1141 = vmatprep.subr.bf16.mxu0 0
      %1142 = vmatpush1.bf16.msra.mxu0 0
      %1143 = vmatprep.subr.bf16.mxu0 0
      %1144 = vmatpush1.bf16.msra.mxu0 0
      %1145 = vmatprep.subr.bf16.mxu0 0
      %1146 = vmatpush1.bf16.msra.mxu0 0
      %1147 = vmatprep.subr.bf16.mxu0 0
      %1148 = vmatpush1.bf16.msra.mxu0 0
      %1149 = vmatprep.subr.bf16.mxu0 0
      %1150 = vmatpush1.bf16.msra.mxu0 0
      %1151 = vmatprep.subr.bf16.mxu0 0
      %1152 = vmatpush1.bf16.msra.mxu0 0
      %1153 = vmatprep.subr.bf16.mxu0 0
      %1154 = vmatpush1.bf16.msra.mxu0 0
      %1155 = vmatprep.subr.bf16.mxu0 0
      %1156 = vmatpush1.bf16.msra.mxu0 0
      %1157 = vmatprep.mubr.bf16.mxu0 0
      %1158 = vmatmul.mubr.bf16.gmra.mrb[0].mxu0 %v1114
      %v1159 = vpop.f32.mrb[0].mxu0
      %v1160 = vadd.f32 0.0, %v1159
      %v1161 = vpop.f32.mrb[0].mxu0
      %v1162 = vpop.f32.mrb[0].mxu0
      %v1163 = vadd.f32 0.0, %v1162
      %v1164 = vpop.f32.mrb[0].mxu0
      %1165 = vmatprep.mubr.bf16.mxu0 0
      %1166 = vmatmul.mubr.bf16.gmra.mrb[0].mxu0 %v1117
      %v1167 = vpop.f32.mrb[0].mxu0
      %v1168 = vadd.f32 0.0, %v1167
      %v1169 = vpop.f32.mrb[0].mxu0
      %v1170 = vpop.f32.mrb[0].mxu0
      %v1171 = vadd.f32 0.0, %v1170
      %v1172 = vpop.f32.mrb[0].mxu0
      %1173 = vmatprep.mubr.bf16.mxu0 0
      %1174 = vmatmul.mubr.bf16.gmra.mrb[0].mxu0 %v1120
      %v1175 = vpop.f32.mrb[0].mxu0
      %v1176 = vadd.f32 0.0, %v1175
      %v1177 = vpop.f32.mrb[0].mxu0
      %v1178 = vpop.f32.mrb[0].mxu0
      %v1179 = vadd.f32 0.0, %v1178
      %v1180 = vpop.f32.mrb[0].mxu0
      %1181 = vmatprep.mubr.bf16.mxu0 0
      %1182 = vmatmul.mubr.bf16.gmra.mrb[0].mxu0 %v1123
      %v1183 = vpop.f32.mrb[0].mxu0
      %v1184 = vadd.f32 0.0, %v1183
      %v1185 = vpop.f32.mrb[0].mxu0
      %v1186 = vpop.f32.mrb[0].mxu0
      %v1187 = vpop.f32.mrb[0].mxu0
      %1188 = vdwg.mxu0
      %v1189 = vadd.f32 %v1085, %v1160
      %v1190 = vadd.f32 %v1086, %v1163
      %v1191 = vadd.f32 %v1087, %v1168
      %v1192 = vadd.f32 %v1088, %v1171
      %v1193 = vadd.f32 %v1089, %v1176
      %v1194 = vadd.f32 %v1090, %v1179
      %v1195 = vadd.f32 %v1091, %v1184
      %v1196 = vld [vmem:[%s244 + $0x8] sm:$0xe]
      %v1197 = vld [vmem:[%s244 + $0xc] sm:$0xf]
      %v1198 = vld [vmem:[%s244 + $0x10] sm:$0xf]
      %v1199 = vld [vmem:[%s244 + $0x14] sm:$0xf]
      %v1200 = vld [vmem:[%s244 + $0x18] sm:$0xf]
      %v1201 = vld [vmem:[%s244 + $0x1c] sm:$0xf]
      %v1202 = vld [vmem:[%s244 + $0x20] sm:$0xf]
      %v1203 = vld [vmem:[%s244 + $0x24] sm:$0x1]
      %s1204 = scalar_lea.vmem %s2, 64
      %v1205 = vld [vmem:[%s1204] sm:$0xf]
      %v1206 = vld [vmem:[%s1204 + $0x4] sm:$0xf]
      %v1215 = vunpack.c.l.b16 %v1196
      %v1216 = vunpack.c.l.b16 %v1197
      %v1217 = vunpack.c.l.b16 %v1198
      %v1218 = vunpack.c.l.b16 %v1199
      %v1219 = vunpack.c.l.b16 %v1200
      %v1220 = vunpack.c.l.b16 %v1201
      %v1221 = vunpack.c.l.b16 %v1202
      %v1222 = vunpack.c.l.b16 %v1203
      %v1223 = vpack.c.b16 %v1216, %v1215
      %v1224 = vpack.c.b16 %v1218, %v1217
      %v1225 = vpack.c.b16 %v1220, %v1219
      %v1226 = vpack.c.b16 %v1222, %v1221
      %v1227 = vrot.slane %v1223, 1
      %v1228 = vrot.slane %v1224, 1
      %v1229 = vsel %vm498, %v1227, %v1228
      %v1230 = vrot.slane %v1225, 1
      %v1231 = vsel %vm498, %v1228, %v1230
      %v1232 = vrot.slane %v1226, 1
      %v1233 = vsel %vm498, %v1230, %v1232
      %v1236 = vunpack.c.l.b16 %v1205
      %v1237 = vunpack.c.l.b16 %v1206
      %v1238 = vpack.c.b16 %v1237, %v1236
      %v1241 = vsel %vm334, %v1229, 0
      %v1244 = vsel %vm334, %v1231, 0
      %v1247 = vsel %vm334, %v1233, 0
      %v1250 = vsel %vm334, %v1232, 0
      %1252 = vmatprep.subr.bf16.mxu0 0
      %1253 = vmatpush1.bf16.msra.mxu0 %v1238
      %1254 = vmatprep.subr.bf16.mxu0 0
      %1255 = vmatpush1.bf16.msra.mxu0 0
      %1256 = vmatprep.subr.bf16.mxu0 0
      %1257 = vmatpush1.bf16.msra.mxu0 0
      %1258 = vmatprep.subr.bf16.mxu0 0
      %1259 = vmatpush1.bf16.msra.mxu0 0
      %1260 = vmatprep.subr.bf16.mxu0 0
      %1261 = vmatpush1.bf16.msra.mxu0 0
      %1262 = vmatprep.subr.bf16.mxu0 0
      %1263 = vmatpush1.bf16.msra.mxu0 0
      %1264 = vmatprep.subr.bf16.mxu0 0
      %1265 = vmatpush1.bf16.msra.mxu0 0
      %1266 = vmatprep.subr.bf16.mxu0 0
      %1267 = vmatpush1.bf16.msra.mxu0 0
      %1268 = vmatprep.subr.bf16.mxu0 0
      %1269 = vmatpush1.bf16.msra.mxu0 0
      %1270 = vmatprep.subr.bf16.mxu0 0
      %1271 = vmatpush1.bf16.msra.mxu0 0
      %1272 = vmatprep.subr.bf16.mxu0 0
      %1273 = vmatpush1.bf16.msra.mxu0 0
      %1274 = vmatprep.subr.bf16.mxu0 0
      %1275 = vmatpush1.bf16.msra.mxu0 0
      %1276 = vmatprep.subr.bf16.mxu0 0
      %1277 = vmatpush1.bf16.msra.mxu0 0
      %1278 = vmatprep.subr.bf16.mxu0 0
      %1279 = vmatpush1.bf16.msra.mxu0 0
      %1280 = vmatprep.subr.bf16.mxu0 0
      %1281 = vmatpush1.bf16.msra.mxu0 0
      %1282 = vmatprep.subr.bf16.mxu0 0
      %1283 = vmatpush1.bf16.msra.mxu0 0
      %1284 = vmatprep.mubr.bf16.mxu0 0
      %1285 = vmatmul.mubr.bf16.gmra.mrb[0].mxu0 %v1241
      %v1286 = vpop.f32.mrb[0].mxu0
      %v1287 = vadd.f32 0.0, %v1286
      %v1288 = vpop.f32.mrb[0].mxu0
      %v1289 = vpop.f32.mrb[0].mxu0
      %v1290 = vadd.f32 0.0, %v1289
      %v1291 = vpop.f32.mrb[0].mxu0
      %1292 = vmatprep.mubr.bf16.mxu0 0
      %1293 = vmatmul.mubr.bf16.gmra.mrb[0].mxu0 %v1244
      %v1294 = vpop.f32.mrb[0].mxu0
      %v1295 = vadd.f32 0.0, %v1294
      %v1296 = vpop.f32.mrb[0].mxu0
      %v1297 = vpop.f32.mrb[0].mxu0
      %v1298 = vadd.f32 0.0, %v1297
      %v1299 = vpop.f32.mrb[0].mxu0
      %1300 = vmatprep.mubr.bf16.mxu0 0
      %1301 = vmatmul.mubr.bf16.gmra.mrb[0].mxu0 %v1247
      %v1302 = vpop.f32.mrb[0].mxu0
      %v1303 = vadd.f32 0.0, %v1302
      %v1304 = vpop.f32.mrb[0].mxu0
      %v1305 = vpop.f32.mrb[0].mxu0
      %v1306 = vadd.f32 0.0, %v1305
      %v1307 = vpop.f32.mrb[0].mxu0
      %1308 = vmatprep.mubr.bf16.mxu0 0
      %1309 = vmatmul.mubr.bf16.gmra.mrb[0].mxu0 %v1250
      %v1310 = vpop.f32.mrb[0].mxu0
      %v1311 = vadd.f32 0.0, %v1310
      %v1312 = vpop.f32.mrb[0].mxu0
      %v1313 = vpop.f32.mrb[0].mxu0
      %v1314 = vpop.f32.mrb[0].mxu0
      %1315 = vdwg.mxu0
      %v1316 = vadd.f32 %v1189, %v1287
      %v1317 = vadd.f32 %v1190, %v1290
      %v1318 = vadd.f32 %v1191, %v1295
      %v1319 = vadd.f32 %v1192, %v1298
      %v1320 = vadd.f32 %v1193, %v1303
      %v1321 = vadd.f32 %v1194, %v1306
      %v1322 = vadd.f32 %v1195, %v1311
      %v1323 = vld [vmem:[%s244 + $0x24] sm:$0x3]
      %s1324 = scalar_lea.vmem %s2, 72
      %v1325 = vld [vmem:[%s1324] sm:$0xf]
      %v1326 = vld [vmem:[%s1324 + $0x4] sm:$0xf]
      %v1328 = vunpack.c.l.b16 %v1323
      %v1329 = vpack.c.b16 %v1328, %v1221
      %v1331 = vshrl.u32 %v1223, 16
      %v1333 = vrot.slane %v1331, 1
      %v1334 = vshll.u32 %v1223, 16
      %v1336 = vrot.slane %v1334, 2
      %v1337 = vor.u32 %v1333, %v1336
      %v1339 = vshrl.u32 %v1224, 16
      %v1341 = vrot.slane %v1339, 1
      %v1342 = vshll.u32 %v1224, 16
      %v1344 = vrot.slane %v1342, 2
      %v1345 = vor.u32 %v1341, %v1344
      %v1346 = vsel %vm602, %v1337, %v1345
      %v1348 = vshrl.u32 %v1225, 16
      %v1350 = vrot.slane %v1348, 1
      %v1351 = vshll.u32 %v1225, 16
      %v1353 = vrot.slane %v1351, 2
      %v1354 = vor.u32 %v1350, %v1353
      %v1355 = vsel %vm602, %v1345, %v1354
      %v1357 = vshrl.u32 %v1329, 16
      %v1359 = vrot.slane %v1357, 1
      %v1360 = vshll.u32 %v1329, 16
      %v1362 = vrot.slane %v1360, 2
      %v1363 = vor.u32 %v1359, %v1362
      %v1364 = vsel %vm602, %v1354, %v1363
      %v1367 = vunpack.c.l.b16 %v1325
      %v1368 = vunpack.c.l.b16 %v1326
      %v1369 = vpack.c.b16 %v1368, %v1367
      %v1372 = vsel %vm334, %v1346, 0
      %v1375 = vsel %vm334, %v1355, 0
      %v1378 = vsel %vm334, %v1364, 0
      %v1381 = vsel %vm334, %v1363, 0
      %1383 = vmatprep.subr.bf16.mxu0 0
      %1384 = vmatpush1.bf16.msra.mxu0 %v1369
      %1385 = vmatprep.subr.bf16.mxu0 0
      %1386 = vmatpush1.bf16.msra.mxu0 0
      %1387 = vmatprep.subr.bf16.mxu0 0
      %1388 = vmatpush1.bf16.msra.mxu0 0
      %1389 = vmatprep.subr.bf16.mxu0 0
      %1390 = vmatpush1.bf16.msra.mxu0 0
      %1391 = vmatprep.subr.bf16.mxu0 0
      %1392 = vmatpush1.bf16.msra.mxu0 0
      %1393 = vmatprep.subr.bf16.mxu0 0
      %1394 = vmatpush1.bf16.msra.mxu0 0
      %1395 = vmatprep.subr.bf16.mxu0 0
      %1396 = vmatpush1.bf16.msra.mxu0 0
      %1397 = vmatprep.subr.bf16.mxu0 0
      %1398 = vmatpush1.bf16.msra.mxu0 0
      %1399 = vmatprep.subr.bf16.mxu0 0
      %1400 = vmatpush1.bf16.msra.mxu0 0
      %1401 = vmatprep.subr.bf16.mxu0 0
      %1402 = vmatpush1.bf16.msra.mxu0 0
      %1403 = vmatprep.subr.bf16.mxu0 0
      %1404 = vmatpush1.bf16.msra.mxu0 0
      %1405 = vmatprep.subr.bf16.mxu0 0
      %1406 = vmatpush1.bf16.msra.mxu0 0
      %1407 = vmatprep.subr.bf16.mxu0 0
      %1408 = vmatpush1.bf16.msra.mxu0 0
      %1409 = vmatprep.subr.bf16.mxu0 0
      %1410 = vmatpush1.bf16.msra.mxu0 0
      %1411 = vmatprep.subr.bf16.mxu0 0
      %1412 = vmatpush1.bf16.msra.mxu0 0
      %1413 = vmatprep.subr.bf16.mxu0 0
      %1414 = vmatpush1.bf16.msra.mxu0 0
      %1415 = vmatprep.mubr.bf16.mxu0 0
      %1416 = vmatmul.mubr.bf16.gmra.mrb[0].mxu0 %v1372
      %v1417 = vpop.f32.mrb[0].mxu0
      %v1418 = vadd.f32 0.0, %v1417
      %v1419 = vpop.f32.mrb[0].mxu0
      %v1420 = vpop.f32.mrb[0].mxu0
      %v1421 = vadd.f32 0.0, %v1420
      %v1422 = vpop.f32.mrb[0].mxu0
      %1423 = vmatprep.mubr.bf16.mxu0 0
      %1424 = vmatmul.mubr.bf16.gmra.mrb[0].mxu0 %v1375
      %v1425 = vpop.f32.mrb[0].mxu0
      %v1426 = vadd.f32 0.0, %v1425
      %v1427 = vpop.f32.mrb[0].mxu0
      %v1428 = vpop.f32.mrb[0].mxu0
      %v1429 = vadd.f32 0.0, %v1428
      %v1430 = vpop.f32.mrb[0].mxu0
      %1431 = vmatprep.mubr.bf16.mxu0 0
      %1432 = vmatmul.mubr.bf16.gmra.mrb[0].mxu0 %v1378
      %v1433 = vpop.f32.mrb[0].mxu0
      %v1434 = vadd.f32 0.0, %v1433
      %v1435 = vpop.f32.mrb[0].mxu0
      %v1436 = vpop.f32.mrb[0].mxu0
      %v1437 = vadd.f32 0.0, %v1436
      %v1438 = vpop.f32.mrb[0].mxu0
      %1439 = vmatprep.mubr.bf16.mxu0 0
      %1440 = vmatmul.mubr.bf16.gmra.mrb[0].mxu0 %v1381
      %v1441 = vpop.f32.mrb[0].mxu0
      %v1442 = vadd.f32 0.0, %v1441
      %v1443 = vpop.f32.mrb[0].mxu0
      %v1444 = vpop.f32.mrb[0].mxu0
      %v1445 = vpop.f32.mrb[0].mxu0
      %1446 = vdwg.mxu0
      %v1447 = vadd.f32 %v1316, %v1418
      %v1448 = vadd.f32 %v1317, %v1421
      %v1449 = vadd.f32 %v1318, %v1426
      %v1450 = vadd.f32 %v1319, %v1429
      %v1451 = vadd.f32 %v1320, %v1434
      %v1452 = vadd.f32 %v1321, %v1437
      %v1453 = vadd.f32 %v1322, %v1442
      %v1454 = vld [vmem:[%s244 + $0x8] sm:$0xc]
      %s1455 = scalar_lea.vmem %s2, 80
      %v1456 = vld [vmem:[%s1455] sm:$0xf]
      %v1457 = vld [vmem:[%s1455 + $0x4] sm:$0xf]
      %v1459 = vunpack.c.l.b16 %v1454
      %v1460 = vpack.c.b16 %v1216, %v1459
      %v1461 = vrot.slane %v1460, 2
      %v1462 = vrot.slane %v1224, 2
      %v1463 = vsel %vm1099, %v1461, %v1462
      %v1464 = vrot.slane %v1225, 2
      %v1465 = vsel %vm1099, %v1462, %v1464
      %v1466 = vrot.slane %v1329, 2
      %v1467 = vsel %vm1099, %v1464, %v1466
      %v1470 = vunpack.c.l.b16 %v1456
      %v1471 = vunpack.c.l.b16 %v1457
      %v1472 = vpack.c.b16 %v1471, %v1470
      %v1475 = vsel %vm334, %v1463, 0
      %v1478 = vsel %vm334, %v1465, 0
      %v1481 = vsel %vm334, %v1467, 0
      %v1484 = vsel %vm334, %v1466, 0
      %1486 = vmatprep.subr.bf16.mxu0 0
      %1487 = vmatpush1.bf16.msra.mxu0 %v1472
      %1488 = vmatprep.subr.bf16.mxu0 0
      %1489 = vmatpush1.bf16.msra.mxu0 0
      %1490 = vmatprep.subr.bf16.mxu0 0
      %1491 = vmatpush1.bf16.msra.mxu0 0
      %1492 = vmatprep.subr.bf16.mxu0 0
      %1493 = vmatpush1.bf16.msra.mxu0 0
      %1494 = vmatprep.subr.bf16.mxu0 0
      %1495 = vmatpush1.bf16.msra.mxu0 0
      %1496 = vmatprep.subr.bf16.mxu0 0
      %1497 = vmatpush1.bf16.msra.mxu0 0
      %1498 = vmatprep.subr.bf16.mxu0 0
      %1499 = vmatpush1.bf16.msra.mxu0 0
      %1500 = vmatprep.subr.bf16.mxu0 0
      %1501 = vmatpush1.bf16.msra.mxu0 0
      %1502 = vmatprep.subr.bf16.mxu0 0
      %1503 = vmatpush1.bf16.msra.mxu0 0
      %1504 = vmatprep.subr.bf16.mxu0 0
      %1505 = vmatpush1.bf16.msra.mxu0 0
      %1506 = vmatprep.subr.bf16.mxu0 0
      %1507 = vmatpush1.bf16.msra.mxu0 0
      %1508 = vmatprep.subr.bf16.mxu0 0
      %1509 = vmatpush1.bf16.msra.mxu0 0
      %1510 = vmatprep.subr.bf16.mxu0 0
      %1511 = vmatpush1.bf16.msra.mxu0 0
      %1512 = vmatprep.subr.bf16.mxu0 0
      %1513 = vmatpush1.bf16.msra.mxu0 0
      %1514 = vmatprep.subr.bf16.mxu0 0
      %1515 = vmatpush1.bf16.msra.mxu0 0
      %1516 = vmatprep.subr.bf16.mxu0 0
      %1517 = vmatpush1.bf16.msra.mxu0 0
      %1518 = vmatprep.mubr.bf16.mxu0 0
      %1519 = vmatmul.mubr.bf16.gmra.mrb[0].mxu0 %v1475
      %v1520 = vpop.f32.mrb[0].mxu0
      %v1521 = vadd.f32 0.0, %v1520
      %v1522 = vpop.f32.mrb[0].mxu0
      %v1523 = vpop.f32.mrb[0].mxu0
      %v1524 = vadd.f32 0.0, %v1523
      %v1525 = vpop.f32.mrb[0].mxu0
      %1526 = vmatprep.mubr.bf16.mxu0 0
      %1527 = vmatmul.mubr.bf16.gmra.mrb[0].mxu0 %v1478
      %v1528 = vpop.f32.mrb[0].mxu0
      %v1529 = vadd.f32 0.0, %v1528
      %v1530 = vpop.f32.mrb[0].mxu0
      %v1531 = vpop.f32.mrb[0].mxu0
      %v1532 = vadd.f32 0.0, %v1531
      %v1533 = vpop.f32.mrb[0].mxu0
      %1534 = vmatprep.mubr.bf16.mxu0 0
      %1535 = vmatmul.mubr.bf16.gmra.mrb[0].mxu0 %v1481
      %v1536 = vpop.f32.mrb[0].mxu0
      %v1537 = vadd.f32 0.0, %v1536
      %v1538 = vpop.f32.mrb[0].mxu0
      %v1539 = vpop.f32.mrb[0].mxu0
      %v1540 = vadd.f32 0.0, %v1539
      %v1541 = vpop.f32.mrb[0].mxu0
      %1542 = vmatprep.mubr.bf16.mxu0 0
      %1543 = vmatmul.mubr.bf16.gmra.mrb[0].mxu0 %v1484
      %v1544 = vpop.f32.mrb[0].mxu0
      %v1545 = vadd.f32 0.0, %v1544
      %v1546 = vpop.f32.mrb[0].mxu0
      %v1547 = vpop.f32.mrb[0].mxu0
      %v1548 = vpop.f32.mrb[0].mxu0
      %1549 = vdwg.mxu0
      %v1550 = vadd.f32 %v1447, %v1521
      %v1551 = vadd.f32 %v1448, %v1524
      %v1552 = vadd.f32 %v1449, %v1529
      %v1553 = vadd.f32 %v1450, %v1532
      %v1554 = vadd.f32 %v1451, %v1537
      %v1555 = vadd.f32 %v1452, %v1540
      %v1556 = vadd.f32 %v1453, %v1545
      %v1557 = vld [vmem:[%s244 + $0x24] sm:$0x7]
      %s1558 = scalar_lea.vmem %s2, 88
      %v1559 = vld [vmem:[%s1558] sm:$0xf]
      %v1560 = vld [vmem:[%s1558 + $0x4] sm:$0xf]
      %v1562 = vunpack.c.l.b16 %v1557
      %v1563 = vpack.c.b16 %v1562, %v1221
      %vm1564 = vsmask.f32 5376
      %v1566 = vshrl.u32 %v1460, 16
      %v1568 = vrot.slane %v1566, 2
      %v1569 = vshll.u32 %v1460, 16
      %v1571 = vrot.slane %v1569, 3
      %v1572 = vor.u32 %v1568, %v1571
      %v1573 = vrot.slane %v1339, 2
      %v1574 = vrot.slane %v1342, 3
      %v1575 = vor.u32 %v1573, %v1574
      %v1576 = vsel %vm1564, %v1572, %v1575
      %v1577 = vrot.slane %v1348, 2
      %v1578 = vrot.slane %v1351, 3
      %v1579 = vor.u32 %v1577, %v1578
      %v1580 = vsel %vm1564, %v1575, %v1579
      %v1582 = vshrl.u32 %v1563, 16
      %v1584 = vrot.slane %v1582, 2
      %v1585 = vshll.u32 %v1563, 16
      %v1587 = vrot.slane %v1585, 3
      %v1588 = vor.u32 %v1584, %v1587
      %v1589 = vsel %vm1564, %v1579, %v1588
      %v1592 = vunpack.c.l.b16 %v1559
      %v1593 = vunpack.c.l.b16 %v1560
      %v1594 = vpack.c.b16 %v1593, %v1592
      %v1597 = vsel %vm334, %v1576, 0
      %v1600 = vsel %vm334, %v1580, 0
      %v1603 = vsel %vm334, %v1589, 0
      %v1606 = vsel %vm334, %v1588, 0
      %1608 = vmatprep.subr.bf16.mxu0 0
      %1609 = vmatpush1.bf16.msra.mxu0 %v1594
      %1610 = vmatprep.subr.bf16.mxu0 0
      %1611 = vmatpush1.bf16.msra.mxu0 0
      %1612 = vmatprep.subr.bf16.mxu0 0
      %1613 = vmatpush1.bf16.msra.mxu0 0
      %1614 = vmatprep.subr.bf16.mxu0 0
      %1615 = vmatpush1.bf16.msra.mxu0 0
      %1616 = vmatprep.subr.bf16.mxu0 0
      %1617 = vmatpush1.bf16.msra.mxu0 0
      %1618 = vmatprep.subr.bf16.mxu0 0
      %1619 = vmatpush1.bf16.msra.mxu0 0
      %1620 = vmatprep.subr.bf16.mxu0 0
      %1621 = vmatpush1.bf16.msra.mxu0 0
      %1622 = vmatprep.subr.bf16.mxu0 0
      %1623 = vmatpush1.bf16.msra.mxu0 0
      %1624 = vmatprep.subr.bf16.mxu0 0
      %1625 = vmatpush1.bf16.msra.mxu0 0
      %1626 = vmatprep.subr.bf16.mxu0 0
      %1627 = vmatpush1.bf16.msra.mxu0 0
      %1628 = vmatprep.subr.bf16.mxu0 0
      %1629 = vmatpush1.bf16.msra.mxu0 0
      %1630 = vmatprep.subr.bf16.mxu0 0
      %1631 = vmatpush1.bf16.msra.mxu0 0
      %1632 = vmatprep.subr.bf16.mxu0 0
      %1633 = vmatpush1.bf16.msra.mxu0 0
      %1634 = vmatprep.subr.bf16.mxu0 0
      %1635 = vmatpush1.bf16.msra.mxu0 0
      %1636 = vmatprep.subr.bf16.mxu0 0
      %1637 = vmatpush1.bf16.msra.mxu0 0
      %1638 = vmatprep.subr.bf16.mxu0 0
      %1639 = vmatpush1.bf16.msra.mxu0 0
      %1640 = vmatprep.mubr.bf16.mxu0 0
      %1641 = vmatmul.mubr.bf16.gmra.mrb[0].mxu0 %v1597
      %v1642 = vpop.f32.mrb[0].mxu0
      %v1643 = vadd.f32 0.0, %v1642
      %v1644 = vpop.f32.mrb[0].mxu0
      %v1645 = vpop.f32.mrb[0].mxu0
      %v1646 = vadd.f32 0.0, %v1645
      %v1647 = vpop.f32.mrb[0].mxu0
      %1648 = vmatprep.mubr.bf16.mxu0 0
      %1649 = vmatmul.mubr.bf16.gmra.mrb[0].mxu0 %v1600
      %v1650 = vpop.f32.mrb[0].mxu0
      %v1651 = vadd.f32 0.0, %v1650
      %v1652 = vpop.f32.mrb[0].mxu0
      %v1653 = vpop.f32.mrb[0].mxu0
      %v1654 = vadd.f32 0.0, %v1653
      %v1655 = vpop.f32.mrb[0].mxu0
      %1656 = vmatprep.mubr.bf16.mxu0 0
      %1657 = vmatmul.mubr.bf16.gmra.mrb[0].mxu0 %v1603
      %v1658 = vpop.f32.mrb[0].mxu0
      %v1659 = vadd.f32 0.0, %v1658
      %v1660 = vpop.f32.mrb[0].mxu0
      %v1661 = vpop.f32.mrb[0].mxu0
      %v1662 = vadd.f32 0.0, %v1661
      %v1663 = vpop.f32.mrb[0].mxu0
      %1664 = vmatprep.mubr.bf16.mxu0 0
      %1665 = vmatmul.mubr.bf16.gmra.mrb[0].mxu0 %v1606
      %v1666 = vpop.f32.mrb[0].mxu0
      %v1667 = vadd.f32 0.0, %v1666
      %v1668 = vpop.f32.mrb[0].mxu0
      %v1669 = vpop.f32.mrb[0].mxu0
      %v1670 = vpop.f32.mrb[0].mxu0
      %1671 = vdwg.mxu0
      %v1672 = vadd.f32 %v1550, %v1643
      %v1673 = vadd.f32 %v1551, %v1646
      %v1674 = vadd.f32 %v1552, %v1651
      %v1675 = vadd.f32 %v1553, %v1654
      %v1676 = vadd.f32 %v1554, %v1659
      %v1677 = vadd.f32 %v1555, %v1662
      %v1678 = vadd.f32 %v1556, %v1667
      %v1679 = vld [vmem:[%s244 + $0xc] sm:$0xe]
      %v1680 = vld [vmem:[%s244 + $0x10] sm:$0xf]
      %v1681 = vld [vmem:[%s244 + $0x14] sm:$0xf]
      %v1682 = vld [vmem:[%s244 + $0x18] sm:$0xf]
      %v1683 = vld [vmem:[%s244 + $0x1c] sm:$0xf]
      %v1684 = vld [vmem:[%s244 + $0x20] sm:$0xf]
      %v1685 = vld [vmem:[%s244 + $0x24] sm:$0xf]
      %v1686 = vld [vmem:[%s244 + $0x28] sm:$0x3]
      %s1687 = scalar_lea.vmem %s2, 96
      %v1688 = vld [vmem:[%s1687] sm:$0xf]
      %v1689 = vld [vmem:[%s1687 + $0x4] sm:$0xf]
      %v1698 = vunpack.c.l.b16 %v1679
      %v1699 = vunpack.c.l.b16 %v1680
      %v1700 = vunpack.c.l.b16 %v1681
      %v1701 = vunpack.c.l.b16 %v1682
      %v1702 = vunpack.c.l.b16 %v1683
      %v1703 = vunpack.c.l.b16 %v1684
      %v1704 = vunpack.c.l.b16 %v1685
      %v1705 = vunpack.c.l.b16 %v1686
      %v1706 = vpack.c.b16 %v1699, %v1698
      %v1707 = vpack.c.b16 %v1701, %v1700
      %v1708 = vpack.c.b16 %v1703, %v1702
      %v1709 = vpack.c.b16 %v1705, %v1704
      %v1711 = vshrl.u32 %v1706, 16
      %v1713 = vrot.slane %v1711, 1
      %v1714 = vshll.u32 %v1706, 16
      %v1716 = vrot.slane %v1714, 2
      %v1717 = vor.u32 %v1713, %v1716
      %v1719 = vshrl.u32 %v1707, 16
      %v1721 = vrot.slane %v1719, 1
      %v1722 = vshll.u32 %v1707, 16
      %v1724 = vrot.slane %v1722, 2
      %v1725 = vor.u32 %v1721, %v1724
      %v1726 = vsel %vm602, %v1717, %v1725
      %v1728 = vshrl.u32 %v1708, 16
      %v1730 = vrot.slane %v1728, 1
      %v1731 = vshll.u32 %v1708, 16
      %v1733 = vrot.slane %v1731, 2
      %v1734 = vor.u32 %v1730, %v1733
      %v1735 = vsel %vm602, %v1725, %v1734
      %v1737 = vshrl.u32 %v1709, 16
      %v1739 = vrot.slane %v1737, 1
      %v1740 = vshll.u32 %v1709, 16
      %v1742 = vrot.slane %v1740, 2
      %v1743 = vor.u32 %v1739, %v1742
      %v1744 = vsel %vm602, %v1734, %v1743
      %v1747 = vunpack.c.l.b16 %v1688
      %v1748 = vunpack.c.l.b16 %v1689
      %v1749 = vpack.c.b16 %v1748, %v1747
      %v1752 = vsel %vm334, %v1726, 0
      %v1755 = vsel %vm334, %v1735, 0
      %v1758 = vsel %vm334, %v1744, 0
      %v1761 = vsel %vm334, %v1743, 0
      %1763 = vmatprep.subr.bf16.mxu0 0
      %1764 = vmatpush1.bf16.msra.mxu0 %v1749
      %1765 = vmatprep.subr.bf16.mxu0 0
      %1766 = vmatpush1.bf16.msra.mxu0 0
      %1767 = vmatprep.subr.bf16.mxu0 0
      %1768 = vmatpush1.bf16.msra.mxu0 0
      %1769 = vmatprep.subr.bf16.mxu0 0
      %1770 = vmatpush1.bf16.msra.mxu0 0
      %1771 = vmatprep.subr.bf16.mxu0 0
      %1772 = vmatpush1.bf16.msra.mxu0 0
      %1773 = vmatprep.subr.bf16.mxu0 0
      %1774 = vmatpush1.bf16.msra.mxu0 0
      %1775 = vmatprep.subr.bf16.mxu0 0
      %1776 = vmatpush1.bf16.msra.mxu0 0
      %1777 = vmatprep.subr.bf16.mxu0 0
      %1778 = vmatpush1.bf16.msra.mxu0 0
      %1779 = vmatprep.subr.bf16.mxu0 0
      %1780 = vmatpush1.bf16.msra.mxu0 0
      %1781 = vmatprep.subr.bf16.mxu0 0
      %1782 = vmatpush1.bf16.msra.mxu0 0
      %1783 = vmatprep.subr.bf16.mxu0 0
      %1784 = vmatpush1.bf16.msra.mxu0 0
      %1785 = vmatprep.subr.bf16.mxu0 0
      %1786 = vmatpush1.bf16.msra.mxu0 0
      %1787 = vmatprep.subr.bf16.mxu0 0
      %1788 = vmatpush1.bf16.msra.mxu0 0
      %1789 = vmatprep.subr.bf16.mxu0 0
      %1790 = vmatpush1.bf16.msra.mxu0 0
      %1791 = vmatprep.subr.bf16.mxu0 0
      %1792 = vmatpush1.bf16.msra.mxu0 0
      %1793 = vmatprep.subr.bf16.mxu0 0
      %1794 = vmatpush1.bf16.msra.mxu0 0
      %1795 = vmatprep.mubr.bf16.mxu0 0
      %1796 = vmatmul.mubr.bf16.gmra.mrb[0].mxu0 %v1752
      %v1797 = vpop.f32.mrb[0].mxu0
      %v1798 = vadd.f32 0.0, %v1797
      %v1799 = vpop.f32.mrb[0].mxu0
      %v1800 = vpop.f32.mrb[0].mxu0
      %v1801 = vadd.f32 0.0, %v1800
      %v1802 = vpop.f32.mrb[0].mxu0
      %1803 = vmatprep.mubr.bf16.mxu0 0
      %1804 = vmatmul.mubr.bf16.gmra.mrb[0].mxu0 %v1755
      %v1805 = vpop.f32.mrb[0].mxu0
      %v1806 = vadd.f32 0.0, %v1805
      %v1807 = vpop.f32.mrb[0].mxu0
      %v1808 = vpop.f32.mrb[0].mxu0
      %v1809 = vadd.f32 0.0, %v1808
      %v1810 = vpop.f32.mrb[0].mxu0
      %1811 = vmatprep.mubr.bf16.mxu0 0
      %1812 = vmatmul.mubr.bf16.gmra.mrb[0].mxu0 %v1758
      %v1813 = vpop.f32.mrb[0].mxu0
      %v1814 = vadd.f32 0.0, %v1813
      %v1815 = vpop.f32.mrb[0].mxu0
      %v1816 = vpop.f32.mrb[0].mxu0
      %v1817 = vadd.f32 0.0, %v1816
      %v1818 = vpop.f32.mrb[0].mxu0
      %1819 = vmatprep.mubr.bf16.mxu0 0
      %1820 = vmatmul.mubr.bf16.gmra.mrb[0].mxu0 %v1761
      %v1821 = vpop.f32.mrb[0].mxu0
      %v1822 = vadd.f32 0.0, %v1821
      %v1823 = vpop.f32.mrb[0].mxu0
      %v1824 = vpop.f32.mrb[0].mxu0
      %v1825 = vpop.f32.mrb[0].mxu0
      %1826 = vdwg.mxu0
      %v1827 = vadd.f32 %v1672, %v1798
      %v1828 = vadd.f32 %v1673, %v1801
      %v1829 = vadd.f32 %v1674, %v1806
      %v1830 = vadd.f32 %v1675, %v1809
      %v1831 = vadd.f32 %v1676, %v1814
      %v1832 = vadd.f32 %v1677, %v1817
      %v1833 = vadd.f32 %v1678, %v1822
      %v1834 = vld [vmem:[%s244 + $0xc] sm:$0xc]
      %s1835 = scalar_lea.vmem %s2, 104
      %v1836 = vld [vmem:[%s1835] sm:$0xf]
      %v1837 = vld [vmem:[%s1835 + $0x4] sm:$0xf]
      %v1839 = vunpack.c.l.b16 %v1834
      %v1840 = vpack.c.b16 %v1699, %v1839
      %v1841 = vrot.slane %v1840, 2
      %v1842 = vrot.slane %v1707, 2
      %v1843 = vsel %vm1099, %v1841, %v1842
      %v1844 = vrot.slane %v1708, 2
      %v1845 = vsel %vm1099, %v1842, %v1844
      %v1846 = vrot.slane %v1709, 2
      %v1847 = vsel %vm1099, %v1844, %v1846
      %v1850 = vunpack.c.l.b16 %v1836
      %v1851 = vunpack.c.l.b16 %v1837
      %v1852 = vpack.c.b16 %v1851, %v1850
      %v1855 = vsel %vm334, %v1843, 0
      %v1858 = vsel %vm334, %v1845, 0
      %v1861 = vsel %vm334, %v1847, 0
      %v1864 = vsel %vm334, %v1846, 0
      %1866 = vmatprep.subr.bf16.mxu0 0
      %1867 = vmatpush1.bf16.msra.mxu0 %v1852
      %1868 = vmatprep.subr.bf16.mxu0 0
      %1869 = vmatpush1.bf16.msra.mxu0 0
      %1870 = vmatprep.subr.bf16.mxu0 0
      %1871 = vmatpush1.bf16.msra.mxu0 0
      %1872 = vmatprep.subr.bf16.mxu0 0
      %1873 = vmatpush1.bf16.msra.mxu0 0
      %1874 = vmatprep.subr.bf16.mxu0 0
      %1875 = vmatpush1.bf16.msra.mxu0 0
      %1876 = vmatprep.subr.bf16.mxu0 0
      %1877 = vmatpush1.bf16.msra.mxu0 0
      %1878 = vmatprep.subr.bf16.mxu0 0
      %1879 = vmatpush1.bf16.msra.mxu0 0
      %1880 = vmatprep.subr.bf16.mxu0 0
      %1881 = vmatpush1.bf16.msra.mxu0 0
      %1882 = vmatprep.subr.bf16.mxu0 0
      %1883 = vmatpush1.bf16.msra.mxu0 0
      %1884 = vmatprep.subr.bf16.mxu0 0
      %1885 = vmatpush1.bf16.msra.mxu0 0
      %1886 = vmatprep.subr.bf16.mxu0 0
      %1887 = vmatpush1.bf16.msra.mxu0 0
      %1888 = vmatprep.subr.bf16.mxu0 0
      %1889 = vmatpush1.bf16.msra.mxu0 0
      %1890 = vmatprep.subr.bf16.mxu0 0
      %1891 = vmatpush1.bf16.msra.mxu0 0
      %1892 = vmatprep.subr.bf16.mxu0 0
      %1893 = vmatpush1.bf16.msra.mxu0 0
      %1894 = vmatprep.subr.bf16.mxu0 0
      %1895 = vmatpush1.bf16.msra.mxu0 0
      %1896 = vmatprep.subr.bf16.mxu0 0
      %1897 = vmatpush1.bf16.msra.mxu0 0
      %1898 = vmatprep.mubr.bf16.mxu0 0
      %1899 = vmatmul.mubr.bf16.gmra.mrb[0].mxu0 %v1855
      %v1900 = vpop.f32.mrb[0].mxu0
      %v1901 = vadd.f32 0.0, %v1900
      %v1902 = vpop.f32.mrb[0].mxu0
      %v1903 = vpop.f32.mrb[0].mxu0
      %v1904 = vadd.f32 0.0, %v1903
      %v1905 = vpop.f32.mrb[0].mxu0
      %1906 = vmatprep.mubr.bf16.mxu0 0
      %1907 = vmatmul.mubr.bf16.gmra.mrb[0].mxu0 %v1858
      %v1908 = vpop.f32.mrb[0].mxu0
      %v1909 = vadd.f32 0.0, %v1908
      %v1910 = vpop.f32.mrb[0].mxu0
      %v1911 = vpop.f32.mrb[0].mxu0
      %v1912 = vadd.f32 0.0, %v1911
      %v1913 = vpop.f32.mrb[0].mxu0
      %1914 = vmatprep.mubr.bf16.mxu0 0
      %1915 = vmatmul.mubr.bf16.gmra.mrb[0].mxu0 %v1861
      %v1916 = vpop.f32.mrb[0].mxu0
      %v1917 = vadd.f32 0.0, %v1916
      %v1918 = vpop.f32.mrb[0].mxu0
      %v1919 = vpop.f32.mrb[0].mxu0
      %v1920 = vadd.f32 0.0, %v1919
      %v1921 = vpop.f32.mrb[0].mxu0
      %1922 = vmatprep.mubr.bf16.mxu0 0
      %1923 = vmatmul.mubr.bf16.gmra.mrb[0].mxu0 %v1864
      %v1924 = vpop.f32.mrb[0].mxu0
      %v1925 = vadd.f32 0.0, %v1924
      %v1926 = vpop.f32.mrb[0].mxu0
      %v1927 = vpop.f32.mrb[0].mxu0
      %v1928 = vpop.f32.mrb[0].mxu0
      %1929 = vdwg.mxu0
      %v1930 = vadd.f32 %v1827, %v1901
      %v1931 = vadd.f32 %v1828, %v1904
      %v1932 = vadd.f32 %v1829, %v1909
      %v1933 = vadd.f32 %v1830, %v1912
      %v1934 = vadd.f32 %v1831, %v1917
      %v1935 = vadd.f32 %v1832, %v1920
      %v1936 = vadd.f32 %v1833, %v1925
      %v1937 = vld [vmem:[%s244 + $0x28] sm:$0x7]
      %s1938 = scalar_lea.vmem %s2, 112
      %v1939 = vld [vmem:[%s1938] sm:$0xf]
      %v1940 = vld [vmem:[%s1938 + $0x4] sm:$0xf]
      %v1942 = vunpack.c.l.b16 %v1937
      %v1943 = vpack.c.b16 %v1942, %v1704
      %v1945 = vshrl.u32 %v1840, 16
      %v1947 = vrot.slane %v1945, 2
      %v1948 = vshll.u32 %v1840, 16
      %v1950 = vrot.slane %v1948, 3
      %v1951 = vor.u32 %v1947, %v1950
      %v1952 = vrot.slane %v1719, 2
      %v1953 = vrot.slane %v1722, 3
      %v1954 = vor.u32 %v1952, %v1953
      %v1955 = vsel %vm1564, %v1951, %v1954
      %v1956 = vrot.slane %v1728, 2
      %v1957 = vrot.slane %v1731, 3
      %v1958 = vor.u32 %v1956, %v1957
      %v1959 = vsel %vm1564, %v1954, %v1958
      %v1961 = vshrl.u32 %v1943, 16
      %v1963 = vrot.slane %v1961, 2
      %v1964 = vshll.u32 %v1943, 16
      %v1966 = vrot.slane %v1964, 3
      %v1967 = vor.u32 %v1963, %v1966
      %v1968 = vsel %vm1564, %v1958, %v1967
      %v1971 = vunpack.c.l.b16 %v1939
      %v1972 = vunpack.c.l.b16 %v1940
      %v1973 = vpack.c.b16 %v1972, %v1971
      %v1976 = vsel %vm334, %v1955, 0
      %v1979 = vsel %vm334, %v1959, 0
      %v1982 = vsel %vm334, %v1968, 0
      %v1985 = vsel %vm334, %v1967, 0
      %1987 = vmatprep.subr.bf16.mxu0 0
      %1988 = vmatpush1.bf16.msra.mxu0 %v1973
      %1989 = vmatprep.subr.bf16.mxu0 0
      %1990 = vmatpush1.bf16.msra.mxu0 0
      %1991 = vmatprep.subr.bf16.mxu0 0
      %1992 = vmatpush1.bf16.msra.mxu0 0
      %1993 = vmatprep.subr.bf16.mxu0 0
      %1994 = vmatpush1.bf16.msra.mxu0 0
      %1995 = vmatprep.subr.bf16.mxu0 0
      %1996 = vmatpush1.bf16.msra.mxu0 0
      %1997 = vmatprep.subr.bf16.mxu0 0
      %1998 = vmatpush1.bf16.msra.mxu0 0
      %1999 = vmatprep.subr.bf16.mxu0 0
      %2000 = vmatpush1.bf16.msra.mxu0 0
      %2001 = vmatprep.subr.bf16.mxu0 0
      %2002 = vmatpush1.bf16.msra.mxu0 0
      %2003 = vmatprep.subr.bf16.mxu0 0
      %2004 = vmatpush1.bf16.msra.mxu0 0
      %2005 = vmatprep.subr.bf16.mxu0 0
      %2006 = vmatpush1.bf16.msra.mxu0 0
      %2007 = vmatprep.subr.bf16.mxu0 0
      %2008 = vmatpush1.bf16.msra.mxu0 0
      %2009 = vmatprep.subr.bf16.mxu0 0
      %2010 = vmatpush1.bf16.msra.mxu0 0
      %2011 = vmatprep.subr.bf16.mxu0 0
      %2012 = vmatpush1.bf16.msra.mxu0 0
      %2013 = vmatprep.subr.bf16.mxu0 0
      %2014 = vmatpush1.bf16.msra.mxu0 0
      %2015 = vmatprep.subr.bf16.mxu0 0
      %2016 = vmatpush1.bf16.msra.mxu0 0
      %2017 = vmatprep.subr.bf16.mxu0 0
      %2018 = vmatpush1.bf16.msra.mxu0 0
      %2019 = vmatprep.mubr.bf16.mxu0 0
      %2020 = vmatmul.mubr.bf16.gmra.mrb[0].mxu0 %v1976
      %v2021 = vpop.f32.mrb[0].mxu0
      %v2022 = vadd.f32 0.0, %v2021
      %v2023 = vpop.f32.mrb[0].mxu0
      %v2024 = vpop.f32.mrb[0].mxu0
      %v2025 = vadd.f32 0.0, %v2024
      %v2026 = vpop.f32.mrb[0].mxu0
      %2027 = vmatprep.mubr.bf16.mxu0 0
      %2028 = vmatmul.mubr.bf16.gmra.mrb[0].mxu0 %v1979
      %v2029 = vpop.f32.mrb[0].mxu0
      %v2030 = vadd.f32 0.0, %v2029
      %v2031 = vpop.f32.mrb[0].mxu0
      %v2032 = vpop.f32.mrb[0].mxu0
      %v2033 = vadd.f32 0.0, %v2032
      %v2034 = vpop.f32.mrb[0].mxu0
      %2035 = vmatprep.mubr.bf16.mxu0 0
      %2036 = vmatmul.mubr.bf16.gmra.mrb[0].mxu0 %v1982
      %v2037 = vpop.f32.mrb[0].mxu0
      %v2038 = vadd.f32 0.0, %v2037
      %v2039 = vpop.f32.mrb[0].mxu0
      %v2040 = vpop.f32.mrb[0].mxu0
      %v2041 = vadd.f32 0.0, %v2040
      %v2042 = vpop.f32.mrb[0].mxu0
      %2043 = vmatprep.mubr.bf16.mxu0 0
      %2044 = vmatmul.mubr.bf16.gmra.mrb[0].mxu0 %v1985
      %v2045 = vpop.f32.mrb[0].mxu0
      %v2046 = vadd.f32 0.0, %v2045
      %v2047 = vpop.f32.mrb[0].mxu0
      %v2048 = vpop.f32.mrb[0].mxu0
      %v2049 = vpop.f32.mrb[0].mxu0
      %2050 = vdwg.mxu0
      %v2051 = vadd.f32 %v1930, %v2022
      %v2052 = vadd.f32 %v1931, %v2025
      %v2053 = vadd.f32 %v1932, %v2030
      %v2054 = vadd.f32 %v1933, %v2033
      %v2055 = vadd.f32 %v1934, %v2038
      %v2056 = vadd.f32 %v1935, %v2041
      %v2057 = vadd.f32 %v1936, %v2046
      %v2058 = vld [vmem:[%s244 + $0xc] sm:$0x8]
      %s2059 = scalar_lea.vmem %s2, 120
      %v2060 = vld [vmem:[%s2059] sm:$0xf]
      %v2061 = vld [vmem:[%s2059 + $0x4] sm:$0xf]
      %v2063 = vunpack.c.l.b16 %v2058
      %v2064 = vpack.c.b16 %v1699, %v2063
      %vm2065 = vcmask 1044480
      %v2066 = vrot.slane %v2064, 3
      %v2067 = vrot.slane %v1707, 3
      %v2068 = vsel %vm2065, %v2066, %v2067
      %v2069 = vrot.slane %v1708, 3
      %v2070 = vsel %vm2065, %v2067, %v2069
      %v2071 = vrot.slane %v1943, 3
      %v2072 = vsel %vm2065, %v2069, %v2071
      %v2075 = vunpack.c.l.b16 %v2060
      %v2076 = vunpack.c.l.b16 %v2061
      %v2077 = vpack.c.b16 %v2076, %v2075
      %v2080 = vsel %vm334, %v2068, 0
      %v2083 = vsel %vm334, %v2070, 0
      %v2086 = vsel %vm334, %v2072, 0
      %v2089 = vsel %vm334, %v2071, 0
      %2091 = vmatprep.subr.bf16.mxu0 0
      %2092 = vmatpush1.bf16.msra.mxu0 %v2077
      %2093 = vmatprep.subr.bf16.mxu0 0
      %2094 = vmatpush1.bf16.msra.mxu0 0
      %2095 = vmatprep.subr.bf16.mxu0 0
      %2096 = vmatpush1.bf16.msra.mxu0 0
      %2097 = vmatprep.subr.bf16.mxu0 0
      %2098 = vmatpush1.bf16.msra.mxu0 0
      %2099 = vmatprep.subr.bf16.mxu0 0
      %2100 = vmatpush1.bf16.msra.mxu0 0
      %2101 = vmatprep.subr.bf16.mxu0 0
      %2102 = vmatpush1.bf16.msra.mxu0 0
      %2103 = vmatprep.subr.bf16.mxu0 0
      %2104 = vmatpush1.bf16.msra.mxu0 0
      %2105 = vmatprep.subr.bf16.mxu0 0
      %2106 = vmatpush1.bf16.msra.mxu0 0
      %2107 = vmatprep.subr.bf16.mxu0 0
      %2108 = vmatpush1.bf16.msra.mxu0 0
      %2109 = vmatprep.subr.bf16.mxu0 0
      %2110 = vmatpush1.bf16.msra.mxu0 0
      %2111 = vmatprep.subr.bf16.mxu0 0
      %2112 = vmatpush1.bf16.msra.mxu0 0
      %2113 = vmatprep.subr.bf16.mxu0 0
      %2114 = vmatpush1.bf16.msra.mxu0 0
      %2115 = vmatprep.subr.bf16.mxu0 0
      %2116 = vmatpush1.bf16.msra.mxu0 0
      %2117 = vmatprep.subr.bf16.mxu0 0
      %2118 = vmatpush1.bf16.msra.mxu0 0
      %2119 = vmatprep.subr.bf16.mxu0 0
      %2120 = vmatpush1.bf16.msra.mxu0 0
      %2121 = vmatprep.subr.bf16.mxu0 0
      %2122 = vmatpush1.bf16.msra.mxu0 0
      %2123 = vmatprep.mubr.bf16.mxu0 0
      %2124 = vmatmul.mubr.bf16.gmra.mrb[0].mxu0 %v2080
      %v2125 = vpop.f32.mrb[0].mxu0
      %v2126 = vadd.f32 0.0, %v2125
      %v2127 = vpop.f32.mrb[0].mxu0
      %v2128 = vpop.f32.mrb[0].mxu0
      %v2129 = vadd.f32 0.0, %v2128
      %v2130 = vpop.f32.mrb[0].mxu0
      %2131 = vmatprep.mubr.bf16.mxu0 0
      %2132 = vmatmul.mubr.bf16.gmra.mrb[0].mxu0 %v2083
      %v2133 = vpop.f32.mrb[0].mxu0
      %v2134 = vadd.f32 0.0, %v2133
      %v2135 = vpop.f32.mrb[0].mxu0
      %v2136 = vpop.f32.mrb[0].mxu0
      %v2137 = vadd.f32 0.0, %v2136
      %v2138 = vpop.f32.mrb[0].mxu0
      %2139 = vmatprep.mubr.bf16.mxu0 0
      %2140 = vmatmul.mubr.bf16.gmra.mrb[0].mxu0 %v2086
      %v2141 = vpop.f32.mrb[0].mxu0
      %v2142 = vadd.f32 0.0, %v2141
      %v2143 = vpop.f32.mrb[0].mxu0
      %v2144 = vpop.f32.mrb[0].mxu0
      %v2145 = vadd.f32 0.0, %v2144
      %v2146 = vpop.f32.mrb[0].mxu0
      %2147 = vmatprep.mubr.bf16.mxu0 0
      %2148 = vmatmul.mubr.bf16.gmra.mrb[0].mxu0 %v2089
      %v2149 = vpop.f32.mrb[0].mxu0
      %v2150 = vadd.f32 0.0, %v2149
      %v2151 = vpop.f32.mrb[0].mxu0
      %v2152 = vpop.f32.mrb[0].mxu0
      %v2153 = vpop.f32.mrb[0].mxu0
      %2154 = vdwg.mxu0
      %v2155 = vadd.f32 %v2051, %v2126
      %v2156 = vadd.f32 %v2052, %v2129
      %v2157 = vadd.f32 %v2053, %v2134
      %v2158 = vadd.f32 %v2054, %v2137
      %v2159 = vadd.f32 %v2055, %v2142
      %v2160 = vadd.f32 %v2056, %v2145
      %v2161 = vadd.f32 %v2057, %v2150
      %v2162 = vpack.c.bf16 %v2156, %v2155
      %v2163 = vpack.c.bf16 %v2158, %v2157
      %v2164 = vpack.c.bf16 %v2160, %v2159
      %v2165 = vpack.c.bf16 %v2161, %v2161
      %v2170 = vunpack.c.l.b16 %v2162
      %v2171 = vunpack.c.h.b16 %v2162
      %v2172 = vunpack.c.l.b16 %v2163
      %v2173 = vunpack.c.h.b16 %v2163
      %v2174 = vunpack.c.l.b16 %v2164
      %v2175 = vunpack.c.h.b16 %v2164
      %v2176 = vunpack.c.l.b16 %v2165
      %v2177 = vpack.c.b16 %v2170, %v2170
      %v2178 = vpack.c.b16 %v2171, %v2171
      %v2179 = vpack.c.b16 %v2172, %v2172
      %v2180 = vpack.c.b16 %v2173, %v2173
      %v2181 = vpack.c.b16 %v2174, %v2174
      %v2182 = vpack.c.b16 %v2175, %v2175
      %v2183 = vpack.c.b16 %v2176, %v2176
      %2191 = vst [vmem:[%s253] sm:$0xf] %v2177
      %2192 = vst [vmem:[%s253 + $0x4] sm:$0xf] %v2178
      %2193 = vst [vmem:[%s253 + $0x8] sm:$0xf] %v2179
      %2194 = vst [vmem:[%s253 + $0xc] sm:$0xf] %v2180
      %2195 = vst [vmem:[%s253 + $0x10] sm:$0xf] %v2181
      %2196 = vst [vmem:[%s253 + $0x14] sm:$0xf] %v2182
      %2197 = vst [vmem:[%s253 + $0x18] sm:$0xf] %v2183
      %v2198 = vld [vmem:[%s238] sm:$0xff]
      %v2199 = vld [vmem:[%s238 + $0x8] sm:$0xff]
      %v2200 = vld [vmem:[%s238 + $0x10] sm:$0xff]
      %v2201 = vld [vmem:[%s238 + $0x18] sm:$0xff]
      %v2202 = vld [vmem:[%s238 + $0x20] sm:$0xff]
      %v2203 = vld [vmem:[%s238 + $0x28] sm:$0xff]
      %v2204 = vld [vmem:[%s238 + $0x30] sm:$0xff]
      %vm2205 = vcmask 7168
      %v2206 = vsel %vm2205, %v2198, 0.0
      %v2207 = vsel %vm2205, %v2199, 0.0
      %v2208 = vadd.f32 %v2206, %v2207
      %v2209 = vsel %vm2205, %v2200, 0.0
      %v2210 = vadd.f32 %v2208, %v2209
      %v2211 = vsel %vm2205, %v2201, 0.0
      %v2212 = vadd.f32 %v2210, %v2211
      %v2213 = vsel %vm2205, %v2202, 0.0
      %v2214 = vadd.f32 %v2212, %v2213
      %v2215 = vsel %vm2205, %v2203, 0.0
      %v2216 = vadd.f32 %v2214, %v2215
      %v2217 = vsel %vm2205, %v2204, 0.0
      %v2218 = vadd.f32 %v2216, %v2217
      %v2219 = vrot.slane %v2218, 4
      %v2220 = vadd.f32 %v2218, %v2219
      %v2221 = vrot.slane %v2220, 2
      %v2222 = vadd.f32 %v2220, %v2221
      %v2223 = vrot.slane %v2222, 1
      %v2224 = vadd.f32 %v2222, %v2223
      %2226 = vset.pattern.permute.xlu0 0
      %2227 = vperm.xlu0 %2226, %v2198
      %v2228 = vpop.permute.xlu0 %2227
      %2231 = vset.pattern.permute.xlu0 0
      %2232 = vperm.xlu0 %2231, %v2199
      %v2233 = vpop.permute.xlu0 %2232
      %2236 = vset.pattern.permute.xlu0 0
      %2237 = vperm.xlu0 %2236, %v2200
      %v2238 = vpop.permute.xlu0 %2237
      %2241 = vset.pattern.permute.xlu0 0
      %2242 = vperm.xlu0 %2241, %v2201
      %v2243 = vpop.permute.xlu0 %2242
      %2246 = vset.pattern.permute.xlu0 0
      %2247 = vperm.xlu0 %2246, %v2202
      %v2248 = vpop.permute.xlu0 %2247
      %2251 = vset.pattern.permute.xlu0 0
      %2252 = vperm.xlu0 %2251, %v2203
      %v2253 = vpop.permute.xlu0 %2252
      %2256 = vset.pattern.permute.xlu0 0
      %2257 = vperm.xlu0 %2256, %v2204
      %v2258 = vpop.permute.xlu0 %2257
      %v2260 = vmul.f32 %v2155, %v2228
      %v2261 = vmul.f32 %v2156, %v2233
      %v2262 = vmul.f32 %v2157, %v2238
      %v2263 = vmul.f32 %v2158, %v2243
      %v2264 = vmul.f32 %v2159, %v2248
      %v2265 = vmul.f32 %v2160, %v2253
      %v2266 = vmul.f32 %v2161, %v2258
      %v2267 = vadd.f32 %v2260, %v2261
      %v2268 = vadd.f32 %v2267, %v2262
      %v2269 = vadd.f32 %v2268, %v2263
      %v2270 = vadd.f32 %v2269, %v2264
      %v2271 = vadd.f32 %v2270, %v2265
      %v2272 = vadd.f32 %v2271, %v2266
      %v2273 = vrot.slane %v2272, 4
      %v2274 = vadd.f32 %v2272, %v2273
      %v2275 = vrot.slane %v2274, 2
      %v2276 = vadd.f32 %v2274, %v2275
      %v2277 = vrot.slane %v2276, 1
      %v2278 = vadd.f32 %v2276, %v2277
      %v2279 = vmax.f32 %v2224, 1.0
      %2281 = vset.pattern.permute.xlu0 0
      %2282 = vperm.xlu0 %2281, %v2279
      %v2283 = vpop.permute.xlu0 %2282
      %v2285 = vrcp.pop %v2283
      %v2286 = vmul.f32 %v2278, %v2285
      %v2287 = vsub.f32 %v2155, %v2286
      %v2288 = vsub.f32 %v2156, %v2286
      %v2289 = vsub.f32 %v2157, %v2286
      %v2290 = vsub.f32 %v2158, %v2286
      %v2291 = vsub.f32 %v2159, %v2286
      %v2292 = vsub.f32 %v2160, %v2286
      %v2293 = vsub.f32 %v2161, %v2286
      %v2294 = vmul.f32 %v2287, %v2228
      %v2295 = vmul.f32 %v2288, %v2233
      %v2296 = vmul.f32 %v2289, %v2238
      %v2297 = vmul.f32 %v2290, %v2243
      %v2298 = vmul.f32 %v2291, %v2248
      %v2299 = vmul.f32 %v2292, %v2253
      %v2300 = vmul.f32 %v2293, %v2258
      %v2301 = vmul.f32 %v2294, %v2294
      %v2302 = vmul.f32 %v2295, %v2295
      %v2303 = vmul.f32 %v2296, %v2296
      %v2304 = vmul.f32 %v2297, %v2297
      %v2305 = vmul.f32 %v2298, %v2298
      %v2306 = vmul.f32 %v2299, %v2299
      %v2307 = vmul.f32 %v2300, %v2300
      %v2308 = vadd.f32 %v2301, %v2302
      %v2309 = vadd.f32 %v2308, %v2303
      %v2310 = vadd.f32 %v2309, %v2304
      %v2311 = vadd.f32 %v2310, %v2305
      %v2312 = vadd.f32 %v2311, %v2306
      %v2313 = vadd.f32 %v2312, %v2307
      %v2314 = vrot.slane %v2313, 4
      %v2315 = vadd.f32 %v2313, %v2314
      %v2316 = vrot.slane %v2315, 2
      %v2317 = vadd.f32 %v2315, %v2316
      %v2318 = vrot.slane %v2317, 1
      %v2319 = vadd.f32 %v2317, %v2318
      %2320 = vst [vmem:[%s261] sm:$0x1] %v2278
      %2321 = vst [vmem:[%s261 + $0x1] sm:$0x1] %v2319
      %2323 = vset.pattern.permute.xlu0 0
      %2324 = vperm.xlu0 %2323, %v2224
      %v2325 = vpop.permute.xlu0 %2324
      %v2327 = vadd.f32 %v2325, 0.0
      %2328 = vst [vmem:[%s261 + $0x2] sm:$0x1] %v2327
      %s2329 = smul.u32 7, %s21
      %p2330 = scmp.lt.s32.totalorder %s20, 1
      %s2331 = scalar_select %p2330, %s20, 1
      %p2332 = scmp.lt.s32.totalorder %s2329, 6
      %s2333 = scalar_select %p2332, %s2329, 6
      %s2334 = smul.addr %s2331, 7
      %s2335 = sadd.s32 %s2333, %s2334
      %s2336 = smul.addr %s2335, 4
      %s2337 = scalar_lea.vmem %s3, %s2336
      %p2338 = scmp.lt.s32.totalorder %s20, 1
      %s2339 = scalar_select %p2338, %s20, 1
      %p2340 = scmp.lt.s32.totalorder %s21, 0
      %s2341 = scalar_select %p2340, %s21, 0
      %s2342 = sadd.s32 %s2341, %s2339
      %s2343 = smul.addr %s2342, 4
      %s2344 = scalar_lea.vmem %s4, %s2343
      // Predicated region
      $region33: #{_lambda_.9} parent=31 // pred_check
        %p2345 = pneg %p121
      $region34: #{_lambda_.9} parent=31 // pred_check_branch
        %2347 = sbr.rel (%p2345) target = $region36
      $region35: #{_lambda_.9} parent=31 // pred_region
        %s2348 = smul.u32 7, %s21
      $region36: #{_lambda_.9} parent=31 // pred_fallthru
        _
      // Predicated region
      $region37: #{_lambda_.9} parent=31 // pred_check
        %p2349 = pneg %p149
      $region38: #{_lambda_.9} parent=31 // pred_check_branch
        %2351 = sbr.rel (%p2349) target = $region40
      $region39: #{_lambda_.9} parent=31 // pred_region
        _
      $region40: #{_lambda_.9} parent=31 // pred_fallthru
        _
    $region32: #{_lambda_.9} parent=5 // pred_fallthru
      _
    %p2352 = scmp.le.s32.totalorder 2, %s11
    // Predicated region
    $region41: #{_lambda_.9} parent=5 // pred_check
      %p2353 = pneg %p2352
    $region42: #{_lambda_.9} parent=5 // pred_check_branch
      %2355 = sbr.rel (%p2353) target = $region44
    $region43: #{_lambda_.9} parent=5 // pred_region
      %s2356 = ssub.s32 %s11, 2
      // Predicated region
      $region45: #{_lambda_.9} parent=43 // pred_check
        %p2357 = pneg %p127
      $region46: #{_lambda_.9} parent=43 // pred_check_branch
        %2359 = sbr.rel (%p2357) target = $region48
      $region47: #{_lambda_.9} parent=43 // pred_region
        %s2360 = smul.u32 7, %s23
        %p2361 = scmp.lt.s32.totalorder %s22, 1
        %s2362 = scalar_select %p2361, %s22, 1
        %p2363 = scmp.lt.s32.totalorder %s2360, 6
        %s2364 = scalar_select %p2363, %s2360, 6
        %s2365 = smul.addr %s2362, 7
        %s2366 = sadd.s32 %s2364, %s2365
        %s2367 = smul.addr %s2366, 4
        %s2368 = scalar_lea.vmem %s3, %s2367
      $region48: #{_lambda_.9} parent=43 // pred_fallthru
        _
      // Predicated region
      $region49: #{_lambda_.9} parent=43 // pred_check
        %p2369 = pneg %p155
      $region50: #{_lambda_.9} parent=43 // pred_check_branch
        %2371 = sbr.rel (%p2369) target = $region52
      $region51: #{_lambda_.9} parent=43 // pred_region
        %p2372 = scmp.lt.s32.totalorder %s22, 1
        %s2373 = scalar_select %p2372, %s22, 1
        %p2374 = scmp.lt.s32.totalorder %s23, 0
        %s2375 = scalar_select %p2374, %s23, 0
        %s2376 = sadd.s32 %s2375, %s2373
        %s2377 = smul.addr %s2376, 4
        %s2378 = scalar_lea.vmem %s4, %s2377
      $region52: #{_lambda_.9} parent=43 // pred_fallthru
        _
    $region44: #{_lambda_.9} parent=5 // pred_fallthru
      _
  $region6: #{_lambda_.9} parent=0 // loop_footer
    %s15 = sadd.s32 1, %s11
  $region7: #{_lambda_.9} parent=0 // loop_footer_branch
    %10 = sbr.rel target = $region3
  $region8: #{_lambda_.9} parent=0 // loop_exit
    _

// kernel: _lambda_.11
$region0: #{_lambda_.11}
  #allocation0 [shape = 'u32[]', space=smem, size = 0x4, offset = 0x4, fixed_abs, tag = 'smem constant byte address 0x4 - core index']
  #allocation1 [shape = 'u32[144,128]{1,0:T(1,128)}', space=vmem, size = 0x12000, scoped, tag = 'internal scratch']
  %s0 = inlined_call_operand.vmem [shape: bf16[2,1,105,32], index: 0, kind: input, shape index: {}]
  %s1 = inlined_call_operand.vmem [shape: bf16[16,32,128], index: 1, kind: input, shape index: {}]
  %s2 = inlined_call_operand.vmem [shape: f32[1,128], index: 2, kind: input, shape index: {}]
  %s3 = inlined_call_operand.vmem [shape: bf16[2,72,128], index: 3, kind: output, shape index: {}]
  %s4 = sld [smem:[#allocation0]]
  $region45: #{_lambda_.11} parent=0
    _
  %s6 = ssub.s32 1, %s4
  %s7 = scalar_select 0, %s6, %s4
  loop: start=0, step=1, limit=4
  $region2: #{_lambda_.11} parent=0 // loop_pre_header
    _
  $region3: #{_lambda_.11} parent=0 // loop_header
    %s9 = sphi 0, %s13
    %p10 = scmp.ge.s32.totalorder %s9, 4
    %s16 = sphi 0, %s28
    %s17 = sphi 0, %s24
    %s18 = sphi 0, %s16
    %s19 = sphi 0, %s17
    %s20 = sphi 0, %s18
    %s21 = sphi 0, %s19
    %s31 = sphi 0, %s33
    %s34 = sphi 0, %s31
    %s35 = sphi 0, %s34
    %s51 = sphi 0, %s35
    %s55 = sphi 0, %s55
    %s57 = sphi 0, %s55
    %s58 = sphi 0, %s57
    %s72 = sphi 0, %s58
    %s76 = sphi 0, %s76
    %s78 = sphi 0, %s76
    %s79 = sphi 0, %s78
    %s93 = sphi 0, %s79
    %s101 = sphi 0, %s103
    %s104 = sphi 0, %s101
    %s105 = sphi 0, %s104
    %s121 = sphi 0, %s105
  $region4: #{_lambda_.11} parent=0 // loop_header_branch
    %12 = sbr.rel (%p10) target = $region8
  $region5: #{_lambda_.11} parent=0 // loop_body
    %s14 = ssub.s32 %s9, 1
    %s15 = ssub.s32 %s9, 2
    %s22 = sadd.s32 1, %s17
    %p23 = scmp.ge.s32.totalorder %s22, 1
    %s24 = scalar_select %p23, 0, %s22
    %s25 = sadd.s32 1, %s16
    %s26 = scalar_select %p23, %s25, %s16
    %p27 = scmp.ge.s32.totalorder %s26, 2
    %s28 = scalar_select %p27, 0, %s26
    %s29 = ssub.s32 %s16, %s28
    %p30 = scmp.eq.s32.totalorder %s29, 0
    %s32 = sadd.s32 %s31, 1
    %s33 = scalar_select %p30, %s31, %s32
    %p36 = pneg %p30
    %p37 = scmp.eq.s32.totalorder %s9, 1
    %p38 = por %p36, %p37
    %p39 = scmp.ne.s32.totalorder %s31, %s34
    %p40 = scmp.eq.s32.totalorder %s9, 0
    %p41 = por %p39, %p40
    %p42 = scmp.ne.s32.totalorder %s31, %s34
    %p43 = scmp.eq.s32.totalorder %s14, 1
    %p44 = por %p42, %p43
    %p45 = scmp.ne.s32.totalorder %s34, %s35
    %p46 = scmp.eq.s32.totalorder %s14, 0
    %p47 = por %p45, %p46
    %p48 = scmp.ne.s32.totalorder %s34, %s35
    %p49 = scmp.eq.s32.totalorder %s15, 1
    %p50 = por %p48, %p49
    %p52 = scmp.ne.s32.totalorder %s35, %s51
    %p53 = scmp.eq.s32.totalorder %s15, 0
    %p54 = por %p52, %p53
    %s56 = sadd.s32 %s55, 1
    %p59 = scmp.eq.s32.totalorder %s9, 1
    %p60 = scmp.ne.s32.totalorder %s55, %s57
    %p61 = scmp.eq.s32.totalorder %s9, 0
    %p62 = por %p60, %p61
    %p63 = scmp.ne.s32.totalorder %s55, %s57
    %p64 = scmp.eq.s32.totalorder %s14, 1
    %p65 = por %p63, %p64
    %p66 = scmp.ne.s32.totalorder %s57, %s58
    %p67 = scmp.eq.s32.totalorder %s14, 0
    %p68 = por %p66, %p67
    %p69 = scmp.ne.s32.totalorder %s57, %s58
    %p70 = scmp.eq.s32.totalorder %s15, 1
    %p71 = por %p69, %p70
    %p73 = scmp.ne.s32.totalorder %s58, %s72
    %p74 = scmp.eq.s32.totalorder %s15, 0
    %p75 = por %p73, %p74
    %s77 = sadd.s32 %s76, 1
    %p80 = scmp.eq.s32.totalorder %s9, 1
    %p81 = scmp.ne.s32.totalorder %s76, %s78
    %p82 = scmp.eq.s32.totalorder %s9, 0
    %p83 = por %p81, %p82
    %p84 = scmp.ne.s32.totalorder %s76, %s78
    %p85 = scmp.eq.s32.totalorder %s14, 1
    %p86 = por %p84, %p85
    %p87 = scmp.ne.s32.totalorder %s78, %s79
    %p88 = scmp.eq.s32.totalorder %s14, 0
    %p89 = por %p87, %p88
    %p90 = scmp.ne.s32.totalorder %s78, %s79
    %p91 = scmp.eq.s32.totalorder %s15, 1
    %p92 = por %p90, %p91
    %p94 = scmp.ne.s32.totalorder %s79, %s93
    %p95 = scmp.eq.s32.totalorder %s15, 0
    %p96 = por %p94, %p95
    %s97 = ssub.s32 %s16, %s28
    %s98 = ssub.s32 %s17, %s24
    %s99 = sor.u32 %s97, %s98
    %p100 = scmp.eq.s32.totalorder %s99, 0
    %s102 = sadd.s32 %s101, 1
    %s103 = scalar_select %p100, %s101, %s102
    %p106 = pneg %p100
    %p107 = scmp.eq.s32.totalorder %s9, 1
    %p108 = por %p106, %p107
    %p109 = scmp.ne.s32.totalorder %s101, %s104
    %p110 = scmp.eq.s32.totalorder %s9, 0
    %p111 = por %p109, %p110
    %p112 = scmp.ne.s32.totalorder %s101, %s104
    %p113 = scmp.eq.s32.totalorder %s14, 1
    %p114 = por %p112, %p113
    %p115 = scmp.ne.s32.totalorder %s104, %s105
    %p116 = scmp.eq.s32.totalorder %s14, 0
    %p117 = por %p115, %p116
    %p118 = scmp.ne.s32.totalorder %s104, %s105
    %p119 = scmp.eq.s32.totalorder %s15, 1
    %p120 = por %p118, %p119
    %p122 = scmp.ne.s32.totalorder %s105, %s121
    %p123 = scmp.eq.s32.totalorder %s15, 0
    %p124 = por %p122, %p123
    %p125 = scmp.le.s32.totalorder 1, %s9
    %p126 = scmp.lt.s32.totalorder %s9, 3
    %p127 = pnand %p125, %p126
    %p128 = pneg %p127
    // Predicated region
    $region9: #{_lambda_.11} parent=5 // pred_check
      _
    $region10: #{_lambda_.11} parent=5 // pred_check_branch
      %130 = sbr.rel (%p127) target = $region12
    $region11: #{_lambda_.11} parent=5 // pred_region
      %s131 = ssub.s32 %s9, 1
      // Predicated region
      $region13: #{_lambda_.11} parent=11 // pred_check
        %p132 = pneg %p68
      $region14: #{_lambda_.11} parent=11 // pred_check_branch
        %134 = sbr.rel (%p132) target = $region16
      $region15: #{_lambda_.11} parent=11 // pred_region
        _
      $region16: #{_lambda_.11} parent=11 // pred_fallthru
        _
      // Predicated region
      $region17: #{_lambda_.11} parent=11 // pred_check
        %p135 = pneg %p89
      $region18: #{_lambda_.11} parent=11 // pred_check_branch
        %137 = sbr.rel (%p135) target = $region20
      $region19: #{_lambda_.11} parent=11 // pred_region
        _
      $region20: #{_lambda_.11} parent=11 // pred_fallthru
        _
    $region12: #{_lambda_.11} parent=5 // pred_fallthru
      _
    %p138 = scmp.lt.s32.totalorder %s9, 2
    // Predicated region
    $region21: #{_lambda_.11} parent=5 // pred_check
      %p139 = pneg %p138
    $region22: #{_lambda_.11} parent=5 // pred_check_branch
      %141 = sbr.rel (%p139) target = $region24
    $region23: #{_lambda_.11} parent=5 // pred_region
      // Predicated region
      $region25: #{_lambda_.11} parent=23 // pred_check
        %p142 = pneg %p41
      $region26: #{_lambda_.11} parent=23 // pred_check_branch
        %144 = sbr.rel (%p142) target = $region28
      $region27: #{_lambda_.11} parent=23 // pred_region
        %p145 = scmp.lt.s32.totalorder %s16, 1
        %s146 = scalar_select %p145, %s16, 1
        %s147 = smul.addr %s146, 14
        %s148 = smul.addr %s147, 4
        %s149 = scalar_lea.vmem %s0, %s148
      $region28: #{_lambda_.11} parent=23 // pred_fallthru
        _
    $region24: #{_lambda_.11} parent=5 // pred_fallthru
      _
    %p150 = scmp.le.s32.totalorder 1, %s9
    %p151 = scmp.lt.s32.totalorder %s9, 3
    %p152 = pnand %p150, %p151
    %p153 = pneg %p152
    // Predicated region
    $region29: #{_lambda_.11} parent=5 // pred_check
      _
    $region30: #{_lambda_.11} parent=5 // pred_check_branch
      %155 = sbr.rel (%p152) target = $region32
    $region31: #{_lambda_.11} parent=5 // pred_region
      %s156 = ssub.s32 %s9, 1
      %p157 = scmp.lt.s32.totalorder %s18, 1
      %s158 = scalar_select %p157, %s18, 1
      %s159 = smul.addr %s158, 14
      %s160 = smul.addr %s159, 4
      %s161 = scalar_lea.vmem %s0, %s160
      %p162 = pneg %p47
      %p163 = pneg %p44
      %p164 = pneg %p68
      %p165 = pneg %p65
      %p166 = pneg %p89
      %p167 = pneg %p86
      %p168 = pneg %p117
      %p169 = pneg %p114
      %s170 = smul.u32 9, %s19
      %p171 = scmp.lt.s32.totalorder %s18, 1
      %s172 = scalar_select %p171, %s18, 1
      %p173 = scmp.lt.s32.totalorder %s170, 8
      %s174 = scalar_select %p173, %s170, 8
      %s175 = smul.addr %s172, 9
      %s176 = sadd.s32 %s174, %s175
      %s177 = smul.addr %s176, 4
      %s178 = scalar_lea.vmem %s3, %s177
      %p179 = scmp.lt.s32.totalorder %s18, 1
      %s180 = scalar_select %p179, %s18, 1
      %s181 = smul.addr %s180, 14
      %s182 = smul.addr %s181, 4
      %s183 = scalar_lea.vmem %s0, %s182
      %s184 = smul.u32 9, %s19
      %p185 = scmp.lt.s32.totalorder %s18, 1
      %s186 = scalar_select %p185, %s18, 1
      %p187 = scmp.lt.s32.totalorder %s184, 8
      %s188 = scalar_select %p187, %s184, 8
      %s189 = smul.addr %s186, 9
      %s190 = sadd.s32 %s188, %s189
      %s191 = smul.addr %s190, 4
      %s192 = scalar_lea.vmem %s3, %s191
      %s193 = smul.u32 9, %s19
      %v195 = vld [vmem:[%s183] sm:$0xf]
      %v196 = vld [vmem:[%s183 + $0x4] sm:$0xf]
      %v197 = vld [vmem:[%s183 + $0x8] sm:$0xf]
      %v198 = vld [vmem:[%s183 + $0xc] sm:$0xf]
      %v199 = vld [vmem:[%s183 + $0x10] sm:$0xf]
      %v200 = vld [vmem:[%s183 + $0x14] sm:$0xf]
      %v201 = vld [vmem:[%s183 + $0x18] sm:$0xf]
      %v202 = vld [vmem:[%s183 + $0x1c] sm:$0xf]
      %v203 = vld [vmem:[%s183 + $0x20] sm:$0xf]
      %v204 = vld [vmem:[%s1] sm:$0xf]
      %v205 = vld [vmem:[%s1 + $0x4] sm:$0xf]
      %v206 = vld [vmem:[%s1 + $0x8] sm:$0xf]
      %v207 = vld [vmem:[%s1 + $0xc] sm:$0xf]
      %v208 = vld [vmem:[%s183 + $0x24] sm:$0x1]
      %s209 = scalar_lea.vmem %s1, 16
      %v210 = vld [vmem:[%s209] sm:$0xf]
      %v211 = vld [vmem:[%s209 + $0x4] sm:$0xf]
      %v212 = vld [vmem:[%s209 + $0x8] sm:$0xf]
      %v213 = vld [vmem:[%s209 + $0xc] sm:$0xf]
      %v224 = vunpack.c.l.b16 %v195
      %v225 = vunpack.c.l.b16 %v196
      %v226 = vunpack.c.l.b16 %v197
      %v227 = vunpack.c.l.b16 %v198
      %v228 = vunpack.c.l.b16 %v199
      %v229 = vunpack.c.l.b16 %v200
      %v230 = vunpack.c.l.b16 %v201
      %v231 = vunpack.c.l.b16 %v202
      %v232 = vunpack.c.l.b16 %v203
      %v233 = vunpack.c.l.b16 %v208
      %v234 = vpack.c.b16 %v225, %v224
      %v235 = vpack.c.b16 %v227, %v226
      %v236 = vpack.c.b16 %v229, %v228
      %v237 = vpack.c.b16 %v231, %v230
      %v238 = vpack.c.b16 %v233, %v232
      %vm239 = vsmask.f32 7424
      %v241 = vshrl.u32 %v234, 16
      %v243 = vshll.u32 %v234, 16
      %v245 = vrot.slane %v243, 1
      %v246 = vor.u32 %v241, %v245
      %v248 = vshll.u32 %v235, 16
      %v250 = vrot.slane %v248, 1
      %v251 = vsel %vm239, %v246, %v250
      %v252 = vshrl.u32 %v235, 16
      %v254 = vor.u32 %v252, %v250
      %v256 = vshll.u32 %v236, 16
      %v258 = vrot.slane %v256, 1
      %v259 = vsel %vm239, %v254, %v258
      %v260 = vshrl.u32 %v236, 16
      %v262 = vor.u32 %v260, %v258
      %v264 = vshll.u32 %v237, 16
      %v266 = vrot.slane %v264, 1
      %v267 = vsel %vm239, %v262, %v266
      %v268 = vshrl.u32 %v237, 16
      %v270 = vor.u32 %v268, %v266
      %v272 = vshll.u32 %v238, 16
      %v274 = vrot.slane %v272, 1
      %v275 = vsel %vm239, %v270, %v274
      %v276 = vshrl.u32 %v238, 16
      %v278 = vor.u32 %v276, %v274
      %v283 = vunpack.c.l.b16 %v210
      %v284 = vunpack.c.l.b16 %v211
      %v285 = vunpack.c.l.b16 %v212
      %v286 = vunpack.c.l.b16 %v213
      %v287 = vpack.c.b16 %v284, %v283
      %v288 = vpack.c.b16 %v286, %v285
      %vm291 = vcmask 261120
      %v293 = vsel %vm291, %v251, 0
      %v296 = vsel %vm291, %v259, 0
      %v299 = vsel %vm291, %v267, 0
      %v302 = vsel %vm291, %v275, 0
      %v305 = vsel %vm291, %v278, 0
      %307 = vmatprep.subr.bf16.mxu0 0
      %308 = vmatpush1.bf16.msra.mxu0 %v287
      %309 = vmatprep.subr.bf16.mxu0 0
      %310 = vmatpush1.bf16.msra.mxu0 %v288
      %311 = vmatprep.subr.bf16.mxu0 0
      %312 = vmatpush1.bf16.msra.mxu0 0
      %313 = vmatprep.subr.bf16.mxu0 0
      %314 = vmatpush1.bf16.msra.mxu0 0
      %315 = vmatprep.subr.bf16.mxu0 0
      %316 = vmatpush1.bf16.msra.mxu0 0
      %317 = vmatprep.subr.bf16.mxu0 0
      %318 = vmatpush1.bf16.msra.mxu0 0
      %319 = vmatprep.subr.bf16.mxu0 0
      %320 = vmatpush1.bf16.msra.mxu0 0
      %321 = vmatprep.subr.bf16.mxu0 0
      %322 = vmatpush1.bf16.msra.mxu0 0
      %323 = vmatprep.subr.bf16.mxu0 0
      %324 = vmatpush1.bf16.msra.mxu0 0
      %325 = vmatprep.subr.bf16.mxu0 0
      %326 = vmatpush1.bf16.msra.mxu0 0
      %327 = vmatprep.subr.bf16.mxu0 0
      %328 = vmatpush1.bf16.msra.mxu0 0
      %329 = vmatprep.subr.bf16.mxu0 0
      %330 = vmatpush1.bf16.msra.mxu0 0
      %331 = vmatprep.subr.bf16.mxu0 0
      %332 = vmatpush1.bf16.msra.mxu0 0
      %333 = vmatprep.subr.bf16.mxu0 0
      %334 = vmatpush1.bf16.msra.mxu0 0
      %335 = vmatprep.subr.bf16.mxu0 0
      %336 = vmatpush1.bf16.msra.mxu0 0
      %337 = vmatprep.subr.bf16.mxu0 0
      %338 = vmatpush1.bf16.msra.mxu0 0
      %339 = vmatprep.mubr.bf16.mxu0 0
      %340 = vmatmul.mubr.bf16.gmra.mrb[0].mxu0 %v293
      %v341 = vpop.f32.mrb[0].mxu0
      %v342 = vadd.f32 0.0, %v341
      %v343 = vpop.f32.mrb[0].mxu0
      %v344 = vpop.f32.mrb[0].mxu0
      %v345 = vadd.f32 0.0, %v344
      %v346 = vpop.f32.mrb[0].mxu0
      %347 = vmatprep.mubr.bf16.mxu0 0
      %348 = vmatmul.mubr.bf16.gmra.mrb[0].mxu0 %v296
      %v349 = vpop.f32.mrb[0].mxu0
      %v350 = vadd.f32 0.0, %v349
      %v351 = vpop.f32.mrb[0].mxu0
      %v352 = vpop.f32.mrb[0].mxu0
      %v353 = vadd.f32 0.0, %v352
      %v354 = vpop.f32.mrb[0].mxu0
      %355 = vmatprep.mubr.bf16.mxu0 0
      %356 = vmatmul.mubr.bf16.gmra.mrb[0].mxu0 %v299
      %v357 = vpop.f32.mrb[0].mxu0
      %v358 = vadd.f32 0.0, %v357
      %v359 = vpop.f32.mrb[0].mxu0
      %v360 = vpop.f32.mrb[0].mxu0
      %v361 = vadd.f32 0.0, %v360
      %v362 = vpop.f32.mrb[0].mxu0
      %363 = vmatprep.mubr.bf16.mxu0 0
      %364 = vmatmul.mubr.bf16.gmra.mrb[0].mxu0 %v302
      %v365 = vpop.f32.mrb[0].mxu0
      %v366 = vadd.f32 0.0, %v365
      %v367 = vpop.f32.mrb[0].mxu0
      %v368 = vpop.f32.mrb[0].mxu0
      %v369 = vadd.f32 0.0, %v368
      %v370 = vpop.f32.mrb[0].mxu0
      %371 = vmatprep.mubr.bf16.mxu0 0
      %372 = vmatmul.mubr.bf16.gmra.mrb[0].mxu0 %v305
      %v373 = vpop.f32.mrb[0].mxu0
      %v374 = vadd.f32 0.0, %v373
      %v375 = vpop.f32.mrb[0].mxu0
      %v376 = vpop.f32.mrb[0].mxu0
      %v377 = vpop.f32.mrb[0].mxu0
      %378 = vdwg.mxu0
      %v379 = vpack.c.b16 %v232, %v232
      %v384 = vunpack.c.l.b16 %v204
      %v385 = vunpack.c.l.b16 %v205
      %v386 = vunpack.c.l.b16 %v206
      %v387 = vunpack.c.l.b16 %v207
      %v388 = vpack.c.b16 %v385, %v384
      %v389 = vpack.c.b16 %v387, %v386
      %v392 = vsel %vm291, %v234, 0
      %v394 = vsel %vm291, %v235, 0
      %v396 = vsel %vm291, %v236, 0
      %v398 = vsel %vm291, %v237, 0
      %v401 = vsel %vm291, %v379, 0
      %403 = vmatprep.subr.bf16.mxu0 0
      %404 = vmatpush1.bf16.msra.mxu0 %v388
      %405 = vmatprep.subr.bf16.mxu0 0
      %406 = vmatpush1.bf16.msra.mxu0 %v389
      %407 = vmatprep.subr.bf16.mxu0 0
      %408 = vmatpush1.bf16.msra.mxu0 0
      %409 = vmatprep.subr.bf16.mxu0 0
      %410 = vmatpush1.bf16.msra.mxu0 0
      %411 = vmatprep.subr.bf16.mxu0 0
      %412 = vmatpush1.bf16.msra.mxu0 0
      %413 = vmatprep.subr.bf16.mxu0 0
      %414 = vmatpush1.bf16.msra.mxu0 0
      %415 = vmatprep.subr.bf16.mxu0 0
      %416 = vmatpush1.bf16.msra.mxu0 0
      %417 = vmatprep.subr.bf16.mxu0 0
      %418 = vmatpush1.bf16.msra.mxu0 0
      %419 = vmatprep.subr.bf16.mxu0 0
      %420 = vmatpush1.bf16.msra.mxu0 0
      %421 = vmatprep.subr.bf16.mxu0 0
      %422 = vmatpush1.bf16.msra.mxu0 0
      %423 = vmatprep.subr.bf16.mxu0 0
      %424 = vmatpush1.bf16.msra.mxu0 0
      %425 = vmatprep.subr.bf16.mxu0 0
      %426 = vmatpush1.bf16.msra.mxu0 0
      %427 = vmatprep.subr.bf16.mxu0 0
      %428 = vmatpush1.bf16.msra.mxu0 0
      %429 = vmatprep.subr.bf16.mxu0 0
      %430 = vmatpush1.bf16.msra.mxu0 0
      %431 = vmatprep.subr.bf16.mxu0 0
      %432 = vmatpush1.bf16.msra.mxu0 0
      %433 = vmatprep.subr.bf16.mxu0 0
      %434 = vmatpush1.bf16.msra.mxu0 0
      %435 = vmatprep.mubr.bf16.mxu0 0
      %436 = vmatmul.mubr.bf16.gmra.mrb[0].mxu0 %v392
      %v437 = vpop.f32.mrb[0].mxu0
      %v438 = vadd.f32 %v342, %v437
      %v439 = vpop.f32.mrb[0].mxu0
      %v440 = vpop.f32.mrb[0].mxu0
      %v441 = vadd.f32 %v345, %v440
      %v442 = vpop.f32.mrb[0].mxu0
      %443 = vmatprep.mubr.bf16.mxu0 0
      %444 = vmatmul.mubr.bf16.gmra.mrb[0].mxu0 %v394
      %v445 = vpop.f32.mrb[0].mxu0
      %v446 = vadd.f32 %v350, %v445
      %v447 = vpop.f32.mrb[0].mxu0
      %v448 = vpop.f32.mrb[0].mxu0
      %v449 = vadd.f32 %v353, %v448
      %v450 = vpop.f32.mrb[0].mxu0
      %451 = vmatprep.mubr.bf16.mxu0 0
      %452 = vmatmul.mubr.bf16.gmra.mrb[0].mxu0 %v396
      %v453 = vpop.f32.mrb[0].mxu0
      %v454 = vadd.f32 %v358, %v453
      %v455 = vpop.f32.mrb[0].mxu0
      %v456 = vpop.f32.mrb[0].mxu0
      %v457 = vadd.f32 %v361, %v456
      %v458 = vpop.f32.mrb[0].mxu0
      %459 = vmatprep.mubr.bf16.mxu0 0
      %460 = vmatmul.mubr.bf16.gmra.mrb[0].mxu0 %v398
      %v461 = vpop.f32.mrb[0].mxu0
      %v462 = vadd.f32 %v366, %v461
      %v463 = vpop.f32.mrb[0].mxu0
      %v464 = vpop.f32.mrb[0].mxu0
      %v465 = vadd.f32 %v369, %v464
      %v466 = vpop.f32.mrb[0].mxu0
      %467 = vmatprep.mubr.bf16.mxu0 0
      %468 = vmatmul.mubr.bf16.gmra.mrb[0].mxu0 %v401
      %v469 = vpop.f32.mrb[0].mxu0
      %v470 = vadd.f32 %v374, %v469
      %v471 = vpop.f32.mrb[0].mxu0
      %v472 = vpop.f32.mrb[0].mxu0
      %v473 = vpop.f32.mrb[0].mxu0
      %474 = vdwg.mxu0
      %v475 = vld [vmem:[%s183] sm:$0xe]
      %s476 = scalar_lea.vmem %s1, 32
      %v477 = vld [vmem:[%s476] sm:$0xf]
      %v478 = vld [vmem:[%s476 + $0x4] sm:$0xf]
      %v479 = vld [vmem:[%s476 + $0x8] sm:$0xf]
      %v480 = vld [vmem:[%s476 + $0xc] sm:$0xf]
      %v482 = vunpack.c.l.b16 %v475
      %v483 = vpack.c.b16 %v225, %v482
      %vm484 = vcmask 1046528
      %v485 = vrot.slane %v483, 1
      %v486 = vrot.slane %v235, 1
      %v487 = vsel %vm484, %v485, %v486
      %v488 = vrot.slane %v236, 1
      %v489 = vsel %vm484, %v486, %v488
      %v490 = vrot.slane %v237, 1
      %v491 = vsel %vm484, %v488, %v490
      %v492 = vrot.slane %v238, 1
      %v493 = vsel %vm484, %v490, %v492
      %v498 = vunpack.c.l.b16 %v477
      %v499 = vunpack.c.l.b16 %v478
      %v500 = vunpack.c.l.b16 %v479
      %v501 = vunpack.c.l.b16 %v480
      %v502 = vpack.c.b16 %v499, %v498
      %v503 = vpack.c.b16 %v501, %v500
      %v507 = vsel %vm291, %v487, 0
      %v510 = vsel %vm291, %v489, 0
      %v513 = vsel %vm291, %v491, 0
      %v516 = vsel %vm291, %v493, 0
      %v519 = vsel %vm291, %v492, 0
      %521 = vmatprep.subr.bf16.mxu0 0
      %522 = vmatpush1.bf16.msra.mxu0 %v502
      %523 = vmatprep.subr.bf16.mxu0 0
      %524 = vmatpush1.bf16.msra.mxu0 %v503
      %525 = vmatprep.subr.bf16.mxu0 0
      %526 = vmatpush1.bf16.msra.mxu0 0
      %527 = vmatprep.subr.bf16.mxu0 0
      %528 = vmatpush1.bf16.msra.mxu0 0
      %529 = vmatprep.subr.bf16.mxu0 0
      %530 = vmatpush1.bf16.msra.mxu0 0
      %531 = vmatprep.subr.bf16.mxu0 0
      %532 = vmatpush1.bf16.msra.mxu0 0
      %533 = vmatprep.subr.bf16.mxu0 0
      %534 = vmatpush1.bf16.msra.mxu0 0
      %535 = vmatprep.subr.bf16.mxu0 0
      %536 = vmatpush1.bf16.msra.mxu0 0
      %537 = vmatprep.subr.bf16.mxu0 0
      %538 = vmatpush1.bf16.msra.mxu0 0
      %539 = vmatprep.subr.bf16.mxu0 0
      %540 = vmatpush1.bf16.msra.mxu0 0
      %541 = vmatprep.subr.bf16.mxu0 0
      %542 = vmatpush1.bf16.msra.mxu0 0
      %543 = vmatprep.subr.bf16.mxu0 0
      %544 = vmatpush1.bf16.msra.mxu0 0
      %545 = vmatprep.subr.bf16.mxu0 0
      %546 = vmatpush1.bf16.msra.mxu0 0
      %547 = vmatprep.subr.bf16.mxu0 0
      %548 = vmatpush1.bf16.msra.mxu0 0
      %549 = vmatprep.subr.bf16.mxu0 0
      %550 = vmatpush1.bf16.msra.mxu0 0
      %551 = vmatprep.subr.bf16.mxu0 0
      %552 = vmatpush1.bf16.msra.mxu0 0
      %553 = vmatprep.mubr.bf16.mxu0 0
      %554 = vmatmul.mubr.bf16.gmra.mrb[0].mxu0 %v507
      %v555 = vpop.f32.mrb[0].mxu0
      %v556 = vadd.f32 0.0, %v555
      %v557 = vpop.f32.mrb[0].mxu0
      %v558 = vpop.f32.mrb[0].mxu0
      %v559 = vadd.f32 0.0, %v558
      %v560 = vpop.f32.mrb[0].mxu0
      %561 = vmatprep.mubr.bf16.mxu0 0
      %562 = vmatmul.mubr.bf16.gmra.mrb[0].mxu0 %v510
      %v563 = vpop.f32.mrb[0].mxu0
      %v564 = vadd.f32 0.0, %v563
      %v565 = vpop.f32.mrb[0].mxu0
      %v566 = vpop.f32.mrb[0].mxu0
      %v567 = vadd.f32 0.0, %v566
      %v568 = vpop.f32.mrb[0].mxu0
      %569 = vmatprep.mubr.bf16.mxu0 0
      %570 = vmatmul.mubr.bf16.gmra.mrb[0].mxu0 %v513
      %v571 = vpop.f32.mrb[0].mxu0
      %v572 = vadd.f32 0.0, %v571
      %v573 = vpop.f32.mrb[0].mxu0
      %v574 = vpop.f32.mrb[0].mxu0
      %v575 = vadd.f32 0.0, %v574
      %v576 = vpop.f32.mrb[0].mxu0
      %577 = vmatprep.mubr.bf16.mxu0 0
      %578 = vmatmul.mubr.bf16.gmra.mrb[0].mxu0 %v516
      %v579 = vpop.f32.mrb[0].mxu0
      %v580 = vadd.f32 0.0, %v579
      %v581 = vpop.f32.mrb[0].mxu0
      %v582 = vpop.f32.mrb[0].mxu0
      %v583 = vadd.f32 0.0, %v582
      %v584 = vpop.f32.mrb[0].mxu0
      %585 = vmatprep.mubr.bf16.mxu0 0
      %586 = vmatmul.mubr.bf16.gmra.mrb[0].mxu0 %v519
      %v587 = vpop.f32.mrb[0].mxu0
      %v588 = vadd.f32 0.0, %v587
      %v589 = vpop.f32.mrb[0].mxu0
      %v590 = vpop.f32.mrb[0].mxu0
      %v591 = vpop.f32.mrb[0].mxu0
      %592 = vdwg.mxu0
      %v593 = vadd.f32 %v438, %v556
      %v594 = vadd.f32 %v441, %v559
      %v595 = vadd.f32 %v446, %v564
      %v596 = vadd.f32 %v449, %v567
      %v597 = vadd.f32 %v454, %v572
      %v598 = vadd.f32 %v457, %v575
      %v599 = vadd.f32 %v462, %v580
      %v600 = vadd.f32 %v465, %v583
      %v601 = vadd.f32 %v470, %v588
      %v602 = vld [vmem:[%s183 + $0x24] sm:$0x3]
      %s603 = scalar_lea.vmem %s1, 48
      %v604 = vld [vmem:[%s603] sm:$0xf]
      %v605 = vld [vmem:[%s603 + $0x4] sm:$0xf]
      %v606 = vld [vmem:[%s603 + $0x8] sm:$0xf]
      %v607 = vld [vmem:[%s603 + $0xc] sm:$0xf]
      %v609 = vunpack.c.l.b16 %v602
      %v610 = vpack.c.b16 %v609, %v232
      %vm611 = vsmask.f32 6400
      %v613 = vshrl.u32 %v483, 16
      %v615 = vrot.slane %v613, 1
      %v616 = vshll.u32 %v483, 16
      %v618 = vrot.slane %v616, 2
      %v619 = vor.u32 %v615, %v618
      %v620 = vrot.slane %v252, 1
      %v621 = vrot.slane %v248, 2
      %v622 = vor.u32 %v620, %v621
      %v623 = vsel %vm611, %v619, %v622
      %v624 = vrot.slane %v260, 1
      %v625 = vrot.slane %v256, 2
      %v626 = vor.u32 %v624, %v625
      %v627 = vsel %vm611, %v622, %v626
      %v628 = vrot.slane %v268, 1
      %v629 = vrot.slane %v264, 2
      %v630 = vor.u32 %v628, %v629
      %v631 = vsel %vm611, %v626, %v630
      %v633 = vshrl.u32 %v610, 16
      %v635 = vrot.slane %v633, 1
      %v636 = vshll.u32 %v610, 16
      %v638 = vrot.slane %v636, 2
      %v639 = vor.u32 %v635, %v638
      %v640 = vsel %vm611, %v630, %v639
      %v645 = vunpack.c.l.b16 %v604
      %v646 = vunpack.c.l.b16 %v605
      %v647 = vunpack.c.l.b16 %v606
      %v648 = vunpack.c.l.b16 %v607
      %v649 = vpack.c.b16 %v646, %v645
      %v650 = vpack.c.b16 %v648, %v647
      %v654 = vsel %vm291, %v623, 0
      %v657 = vsel %vm291, %v627, 0
      %v660 = vsel %vm291, %v631, 0
      %v663 = vsel %vm291, %v640, 0
      %v666 = vsel %vm291, %v639, 0
      %668 = vmatprep.subr.bf16.mxu0 0
      %669 = vmatpush1.bf16.msra.mxu0 %v649
      %670 = vmatprep.subr.bf16.mxu0 0
      %671 = vmatpush1.bf16.msra.mxu0 %v650
      %672 = vmatprep.subr.bf16.mxu0 0
      %673 = vmatpush1.bf16.msra.mxu0 0
      %674 = vmatprep.subr.bf16.mxu0 0
      %675 = vmatpush1.bf16.msra.mxu0 0
      %676 = vmatprep.subr.bf16.mxu0 0
      %677 = vmatpush1.bf16.msra.mxu0 0
      %678 = vmatprep.subr.bf16.mxu0 0
      %679 = vmatpush1.bf16.msra.mxu0 0
      %680 = vmatprep.subr.bf16.mxu0 0
      %681 = vmatpush1.bf16.msra.mxu0 0
      %682 = vmatprep.subr.bf16.mxu0 0
      %683 = vmatpush1.bf16.msra.mxu0 0
      %684 = vmatprep.subr.bf16.mxu0 0
      %685 = vmatpush1.bf16.msra.mxu0 0
      %686 = vmatprep.subr.bf16.mxu0 0
      %687 = vmatpush1.bf16.msra.mxu0 0
      %688 = vmatprep.subr.bf16.mxu0 0
      %689 = vmatpush1.bf16.msra.mxu0 0
      %690 = vmatprep.subr.bf16.mxu0 0
      %691 = vmatpush1.bf16.msra.mxu0 0
      %692 = vmatprep.subr.bf16.mxu0 0
      %693 = vmatpush1.bf16.msra.mxu0 0
      %694 = vmatprep.subr.bf16.mxu0 0
      %695 = vmatpush1.bf16.msra.mxu0 0
      %696 = vmatprep.subr.bf16.mxu0 0
      %697 = vmatpush1.bf16.msra.mxu0 0
      %698 = vmatprep.subr.bf16.mxu0 0
      %699 = vmatpush1.bf16.msra.mxu0 0
      %700 = vmatprep.mubr.bf16.mxu0 0
      %701 = vmatmul.mubr.bf16.gmra.mrb[0].mxu0 %v654
      %v702 = vpop.f32.mrb[0].mxu0
      %v703 = vadd.f32 0.0, %v702
      %v704 = vpop.f32.mrb[0].mxu0
      %v705 = vpop.f32.mrb[0].mxu0
      %v706 = vadd.f32 0.0, %v705
      %v707 = vpop.f32.mrb[0].mxu0
      %708 = vmatprep.mubr.bf16.mxu0 0
      %709 = vmatmul.mubr.bf16.gmra.mrb[0].mxu0 %v657
      %v710 = vpop.f32.mrb[0].mxu0
      %v711 = vadd.f32 0.0, %v710
      %v712 = vpop.f32.mrb[0].mxu0
      %v713 = vpop.f32.mrb[0].mxu0
      %v714 = vadd.f32 0.0, %v713
      %v715 = vpop.f32.mrb[0].mxu0
      %716 = vmatprep.mubr.bf16.mxu0 0
      %717 = vmatmul.mubr.bf16.gmra.mrb[0].mxu0 %v660
      %v718 = vpop.f32.mrb[0].mxu0
      %v719 = vadd.f32 0.0, %v718
      %v720 = vpop.f32.mrb[0].mxu0
      %v721 = vpop.f32.mrb[0].mxu0
      %v722 = vadd.f32 0.0, %v721
      %v723 = vpop.f32.mrb[0].mxu0
      %724 = vmatprep.mubr.bf16.mxu0 0
      %725 = vmatmul.mubr.bf16.gmra.mrb[0].mxu0 %v663
      %v726 = vpop.f32.mrb[0].mxu0
      %v727 = vadd.f32 0.0, %v726
      %v728 = vpop.f32.mrb[0].mxu0
      %v729 = vpop.f32.mrb[0].mxu0
      %v730 = vadd.f32 0.0, %v729
      %v731 = vpop.f32.mrb[0].mxu0
      %732 = vmatprep.mubr.bf16.mxu0 0
      %733 = vmatmul.mubr.bf16.gmra.mrb[0].mxu0 %v666
      %v734 = vpop.f32.mrb[0].mxu0
      %v735 = vadd.f32 0.0, %v734
      %v736 = vpop.f32.mrb[0].mxu0
      %v737 = vpop.f32.mrb[0].mxu0
      %v738 = vpop.f32.mrb[0].mxu0
      %739 = vdwg.mxu0
      %v740 = vadd.f32 %v593, %v703
      %v741 = vadd.f32 %v594, %v706
      %v742 = vadd.f32 %v595, %v711
      %v743 = vadd.f32 %v596, %v714
      %v744 = vadd.f32 %v597, %v719
      %v745 = vadd.f32 %v598, %v722
      %v746 = vadd.f32 %v599, %v727
      %v747 = vadd.f32 %v600, %v730
      %v748 = vadd.f32 %v601, %v735
      %v749 = vld [vmem:[%s183 + $0x4] sm:$0xe]
      %v750 = vld [vmem:[%s183 + $0x8] sm:$0xf]
      %v751 = vld [vmem:[%s183 + $0xc] sm:$0xf]
      %v752 = vld [vmem:[%s183 + $0x10] sm:$0xf]
      %v753 = vld [vmem:[%s183 + $0x14] sm:$0xf]
      %v754 = vld [vmem:[%s183 + $0x18] sm:$0xf]
      %v755 = vld [vmem:[%s183 + $0x1c] sm:$0xf]
      %v756 = vld [vmem:[%s183 + $0x20] sm:$0xf]
      %v757 = vld [vmem:[%s183 + $0x24] sm:$0xf]
      %v758 = vld [vmem:[%s183 + $0x28] sm:$0x1]
      %s759 = scalar_lea.vmem %s1, 64
      %v760 = vld [vmem:[%s759] sm:$0xf]
      %v761 = vld [vmem:[%s759 + $0x4] sm:$0xf]
      %v762 = vld [vmem:[%s759 + $0x8] sm:$0xf]
      %v763 = vld [vmem:[%s759 + $0xc] sm:$0xf]
      %v774 = vunpack.c.l.b16 %v749
      %v775 = vunpack.c.l.b16 %v750
      %v776 = vunpack.c.l.b16 %v751
      %v777 = vunpack.c.l.b16 %v752
      %v778 = vunpack.c.l.b16 %v753
      %v779 = vunpack.c.l.b16 %v754
      %v780 = vunpack.c.l.b16 %v755
      %v781 = vunpack.c.l.b16 %v756
      %v782 = vunpack.c.l.b16 %v757
      %v783 = vunpack.c.l.b16 %v758
      %v784 = vpack.c.b16 %v775, %v774
      %v785 = vpack.c.b16 %v777, %v776
      %v786 = vpack.c.b16 %v779, %v778
      %v787 = vpack.c.b16 %v781, %v780
      %v788 = vpack.c.b16 %v783, %v782
      %v789 = vrot.slane %v784, 1
      %v790 = vrot.slane %v785, 1
      %v791 = vsel %vm484, %v789, %v790
      %v792 = vrot.slane %v786, 1
      %v793 = vsel %vm484, %v790, %v792
      %v794 = vrot.slane %v787, 1
      %v795 = vsel %vm484, %v792, %v794
      %v796 = vrot.slane %v788, 1
      %v797 = vsel %vm484, %v794, %v796
      %v802 = vunpack.c.l.b16 %v760
      %v803 = vunpack.c.l.b16 %v761
      %v804 = vunpack.c.l.b16 %v762
      %v805 = vunpack.c.l.b16 %v763
      %v806 = vpack.c.b16 %v803, %v802
      %v807 = vpack.c.b16 %v805, %v804
      %v811 = vsel %vm291, %v791, 0
      %v814 = vsel %vm291, %v793, 0
      %v817 = vsel %vm291, %v795, 0
      %v820 = vsel %vm291, %v797, 0
      %v823 = vsel %vm291, %v796, 0
      %825 = vmatprep.subr.bf16.mxu0 0
      %826 = vmatpush1.bf16.msra.mxu0 %v806
      %827 = vmatprep.subr.bf16.mxu0 0
      %828 = vmatpush1.bf16.msra.mxu0 %v807
      %829 = vmatprep.subr.bf16.mxu0 0
      %830 = vmatpush1.bf16.msra.mxu0 0
      %831 = vmatprep.subr.bf16.mxu0 0
      %832 = vmatpush1.bf16.msra.mxu0 0
      %833 = vmatprep.subr.bf16.mxu0 0
      %834 = vmatpush1.bf16.msra.mxu0 0
      %835 = vmatprep.subr.bf16.mxu0 0
      %836 = vmatpush1.bf16.msra.mxu0 0
      %837 = vmatprep.subr.bf16.mxu0 0
      %838 = vmatpush1.bf16.msra.mxu0 0
      %839 = vmatprep.subr.bf16.mxu0 0
      %840 = vmatpush1.bf16.msra.mxu0 0
      %841 = vmatprep.subr.bf16.mxu0 0
      %842 = vmatpush1.bf16.msra.mxu0 0
      %843 = vmatprep.subr.bf16.mxu0 0
      %844 = vmatpush1.bf16.msra.mxu0 0
      %845 = vmatprep.subr.bf16.mxu0 0
      %846 = vmatpush1.bf16.msra.mxu0 0
      %847 = vmatprep.subr.bf16.mxu0 0
      %848 = vmatpush1.bf16.msra.mxu0 0
      %849 = vmatprep.subr.bf16.mxu0 0
      %850 = vmatpush1.bf16.msra.mxu0 0
      %851 = vmatprep.subr.bf16.mxu0 0
      %852 = vmatpush1.bf16.msra.mxu0 0
      %853 = vmatprep.subr.bf16.mxu0 0
      %854 = vmatpush1.bf16.msra.mxu0 0
      %855 = vmatprep.subr.bf16.mxu0 0
      %856 = vmatpush1.bf16.msra.mxu0 0
      %857 = vmatprep.mubr.bf16.mxu0 0
      %858 = vmatmul.mubr.bf16.gmra.mrb[0].mxu0 %v811
      %v859 = vpop.f32.mrb[0].mxu0
      %v860 = vadd.f32 0.0, %v859
      %v861 = vpop.f32.mrb[0].mxu0
      %v862 = vpop.f32.mrb[0].mxu0
      %v863 = vadd.f32 0.0, %v862
      %v864 = vpop.f32.mrb[0].mxu0
      %865 = vmatprep.mubr.bf16.mxu0 0
      %866 = vmatmul.mubr.bf16.gmra.mrb[0].mxu0 %v814
      %v867 = vpop.f32.mrb[0].mxu0
      %v868 = vadd.f32 0.0, %v867
      %v869 = vpop.f32.mrb[0].mxu0
      %v870 = vpop.f32.mrb[0].mxu0
      %v871 = vadd.f32 0.0, %v870
      %v872 = vpop.f32.mrb[0].mxu0
      %873 = vmatprep.mubr.bf16.mxu0 0
      %874 = vmatmul.mubr.bf16.gmra.mrb[0].mxu0 %v817
      %v875 = vpop.f32.mrb[0].mxu0
      %v876 = vadd.f32 0.0, %v875
      %v877 = vpop.f32.mrb[0].mxu0
      %v878 = vpop.f32.mrb[0].mxu0
      %v879 = vadd.f32 0.0, %v878
      %v880 = vpop.f32.mrb[0].mxu0
      %881 = vmatprep.mubr.bf16.mxu0 0
      %882 = vmatmul.mubr.bf16.gmra.mrb[0].mxu0 %v820
      %v883 = vpop.f32.mrb[0].mxu0
      %v884 = vadd.f32 0.0, %v883
      %v885 = vpop.f32.mrb[0].mxu0
      %v886 = vpop.f32.mrb[0].mxu0
      %v887 = vadd.f32 0.0, %v886
      %v888 = vpop.f32.mrb[0].mxu0
      %889 = vmatprep.mubr.bf16.mxu0 0
      %890 = vmatmul.mubr.bf16.gmra.mrb[0].mxu0 %v823
      %v891 = vpop.f32.mrb[0].mxu0
      %v892 = vadd.f32 0.0, %v891
      %v893 = vpop.f32.mrb[0].mxu0
      %v894 = vpop.f32.mrb[0].mxu0
      %v895 = vpop.f32.mrb[0].mxu0
      %896 = vdwg.mxu0
      %v897 = vadd.f32 %v740, %v860
      %v898 = vadd.f32 %v741, %v863
      %v899 = vadd.f32 %v742, %v868
      %v900 = vadd.f32 %v743, %v871
      %v901 = vadd.f32 %v744, %v876
      %v902 = vadd.f32 %v745, %v879
      %v903 = vadd.f32 %v746, %v884
      %v904 = vadd.f32 %v747, %v887
      %v905 = vadd.f32 %v748, %v892
      %v906 = vld [vmem:[%s183 + $0x28] sm:$0x3]
      %s907 = scalar_lea.vmem %s1, 80
      %v908 = vld [vmem:[%s907] sm:$0xf]
      %v909 = vld [vmem:[%s907 + $0x4] sm:$0xf]
      %v910 = vld [vmem:[%s907 + $0x8] sm:$0xf]
      %v911 = vld [vmem:[%s907 + $0xc] sm:$0xf]
      %v913 = vunpack.c.l.b16 %v906
      %v914 = vpack.c.b16 %v913, %v782
      %v916 = vshrl.u32 %v784, 16
      %v918 = vrot.slane %v916, 1
      %v919 = vshll.u32 %v784, 16
      %v921 = vrot.slane %v919, 2
      %v922 = vor.u32 %v918, %v921
      %v924 = vshrl.u32 %v785, 16
      %v926 = vrot.slane %v924, 1
      %v927 = vshll.u32 %v785, 16
      %v929 = vrot.slane %v927, 2
      %v930 = vor.u32 %v926, %v929
      %v931 = vsel %vm611, %v922, %v930
      %v933 = vshrl.u32 %v786, 16
      %v935 = vrot.slane %v933, 1
      %v936 = vshll.u32 %v786, 16
      %v938 = vrot.slane %v936, 2
      %v939 = vor.u32 %v935, %v938
      %v940 = vsel %vm611, %v930, %v939
      %v942 = vshrl.u32 %v787, 16
      %v944 = vrot.slane %v942, 1
      %v945 = vshll.u32 %v787, 16
      %v947 = vrot.slane %v945, 2
      %v948 = vor.u32 %v944, %v947
      %v949 = vsel %vm611, %v939, %v948
      %v951 = vshrl.u32 %v914, 16
      %v953 = vrot.slane %v951, 1
      %v954 = vshll.u32 %v914, 16
      %v956 = vrot.slane %v954, 2
      %v957 = vor.u32 %v953, %v956
      %v958 = vsel %vm611, %v948, %v957
      %v963 = vunpack.c.l.b16 %v908
      %v964 = vunpack.c.l.b16 %v909
      %v965 = vunpack.c.l.b16 %v910
      %v966 = vunpack.c.l.b16 %v911
      %v967 = vpack.c.b16 %v964, %v963
      %v968 = vpack.c.b16 %v966, %v965
      %v972 = vsel %vm291, %v931, 0
      %v975 = vsel %vm291, %v940, 0
      %v978 = vsel %vm291, %v949, 0
      %v981 = vsel %vm291, %v958, 0
      %v984 = vsel %vm291, %v957, 0
      %986 = vmatprep.subr.bf16.mxu0 0
      %987 = vmatpush1.bf16.msra.mxu0 %v967
      %988 = vmatprep.subr.bf16.mxu0 0
      %989 = vmatpush1.bf16.msra.mxu0 %v968
      %990 = vmatprep.subr.bf16.mxu0 0
      %991 = vmatpush1.bf16.msra.mxu0 0
      %992 = vmatprep.subr.bf16.mxu0 0
      %993 = vmatpush1.bf16.msra.mxu0 0
      %994 = vmatprep.subr.bf16.mxu0 0
      %995 = vmatpush1.bf16.msra.mxu0 0
      %996 = vmatprep.subr.bf16.mxu0 0
      %997 = vmatpush1.bf16.msra.mxu0 0
      %998 = vmatprep.subr.bf16.mxu0 0
      %999 = vmatpush1.bf16.msra.mxu0 0
      %1000 = vmatprep.subr.bf16.mxu0 0
      %1001 = vmatpush1.bf16.msra.mxu0 0
      %1002 = vmatprep.subr.bf16.mxu0 0
      %1003 = vmatpush1.bf16.msra.mxu0 0
      %1004 = vmatprep.subr.bf16.mxu0 0
      %1005 = vmatpush1.bf16.msra.mxu0 0
      %1006 = vmatprep.subr.bf16.mxu0 0
      %1007 = vmatpush1.bf16.msra.mxu0 0
      %1008 = vmatprep.subr.bf16.mxu0 0
      %1009 = vmatpush1.bf16.msra.mxu0 0
      %1010 = vmatprep.subr.bf16.mxu0 0
      %1011 = vmatpush1.bf16.msra.mxu0 0
      %1012 = vmatprep.subr.bf16.mxu0 0
      %1013 = vmatpush1.bf16.msra.mxu0 0
      %1014 = vmatprep.subr.bf16.mxu0 0
      %1015 = vmatpush1.bf16.msra.mxu0 0
      %1016 = vmatprep.subr.bf16.mxu0 0
      %1017 = vmatpush1.bf16.msra.mxu0 0
      %1018 = vmatprep.mubr.bf16.mxu0 0
      %1019 = vmatmul.mubr.bf16.gmra.mrb[0].mxu0 %v972
      %v1020 = vpop.f32.mrb[0].mxu0
      %v1021 = vadd.f32 0.0, %v1020
      %v1022 = vpop.f32.mrb[0].mxu0
      %v1023 = vpop.f32.mrb[0].mxu0
      %v1024 = vadd.f32 0.0, %v1023
      %v1025 = vpop.f32.mrb[0].mxu0
      %1026 = vmatprep.mubr.bf16.mxu0 0
      %1027 = vmatmul.mubr.bf16.gmra.mrb[0].mxu0 %v975
      %v1028 = vpop.f32.mrb[0].mxu0
      %v1029 = vadd.f32 0.0, %v1028
      %v1030 = vpop.f32.mrb[0].mxu0
      %v1031 = vpop.f32.mrb[0].mxu0
      %v1032 = vadd.f32 0.0, %v1031
      %v1033 = vpop.f32.mrb[0].mxu0
      %1034 = vmatprep.mubr.bf16.mxu0 0
      %1035 = vmatmul.mubr.bf16.gmra.mrb[0].mxu0 %v978
      %v1036 = vpop.f32.mrb[0].mxu0
      %v1037 = vadd.f32 0.0, %v1036
      %v1038 = vpop.f32.mrb[0].mxu0
      %v1039 = vpop.f32.mrb[0].mxu0
      %v1040 = vadd.f32 0.0, %v1039
      %v1041 = vpop.f32.mrb[0].mxu0
      %1042 = vmatprep.mubr.bf16.mxu0 0
      %1043 = vmatmul.mubr.bf16.gmra.mrb[0].mxu0 %v981
      %v1044 = vpop.f32.mrb[0].mxu0
      %v1045 = vadd.f32 0.0, %v1044
      %v1046 = vpop.f32.mrb[0].mxu0
      %v1047 = vpop.f32.mrb[0].mxu0
      %v1048 = vadd.f32 0.0, %v1047
      %v1049 = vpop.f32.mrb[0].mxu0
      %1050 = vmatprep.mubr.bf16.mxu0 0
      %1051 = vmatmul.mubr.bf16.gmra.mrb[0].mxu0 %v984
      %v1052 = vpop.f32.mrb[0].mxu0
      %v1053 = vadd.f32 0.0, %v1052
      %v1054 = vpop.f32.mrb[0].mxu0
      %v1055 = vpop.f32.mrb[0].mxu0
      %v1056 = vpop.f32.mrb[0].mxu0
      %1057 = vdwg.mxu0
      %v1058 = vadd.f32 %v897, %v1021
      %v1059 = vadd.f32 %v898, %v1024
      %v1060 = vadd.f32 %v899, %v1029
      %v1061 = vadd.f32 %v900, %v1032
      %v1062 = vadd.f32 %v901, %v1037
      %v1063 = vadd.f32 %v902, %v1040
      %v1064 = vadd.f32 %v903, %v1045
      %v1065 = vadd.f32 %v904, %v1048
      %v1066 = vadd.f32 %v905, %v1053
      %v1067 = vld [vmem:[%s183 + $0x4] sm:$0xc]
      %s1068 = scalar_lea.vmem %s1, 96
      %v1069 = vld [vmem:[%s1068] sm:$0xf]
      %v1070 = vld [vmem:[%s1068 + $0x4] sm:$0xf]
      %v1071 = vld [vmem:[%s1068 + $0x8] sm:$0xf]
      %v1072 = vld [vmem:[%s1068 + $0xc] sm:$0xf]
      %v1074 = vunpack.c.l.b16 %v1067
      %v1075 = vpack.c.b16 %v775, %v1074
      %vm1076 = vcmask 1045504
      %v1077 = vrot.slane %v1075, 2
      %v1078 = vrot.slane %v785, 2
      %v1079 = vsel %vm1076, %v1077, %v1078
      %v1080 = vrot.slane %v786, 2
      %v1081 = vsel %vm1076, %v1078, %v1080
      %v1082 = vrot.slane %v787, 2
      %v1083 = vsel %vm1076, %v1080, %v1082
      %v1084 = vrot.slane %v914, 2
      %v1085 = vsel %vm1076, %v1082, %v1084
      %v1090 = vunpack.c.l.b16 %v1069
      %v1091 = vunpack.c.l.b16 %v1070
      %v1092 = vunpack.c.l.b16 %v1071
      %v1093 = vunpack.c.l.b16 %v1072
      %v1094 = vpack.c.b16 %v1091, %v1090
      %v1095 = vpack.c.b16 %v1093, %v1092
      %v1099 = vsel %vm291, %v1079, 0
      %v1102 = vsel %vm291, %v1081, 0
      %v1105 = vsel %vm291, %v1083, 0
      %v1108 = vsel %vm291, %v1085, 0
      %v1111 = vsel %vm291, %v1084, 0
      %1113 = vmatprep.subr.bf16.mxu0 0
      %1114 = vmatpush1.bf16.msra.mxu0 %v1094
      %1115 = vmatprep.subr.bf16.mxu0 0
      %1116 = vmatpush1.bf16.msra.mxu0 %v1095
      %1117 = vmatprep.subr.bf16.mxu0 0
      %1118 = vmatpush1.bf16.msra.mxu0 0
      %1119 = vmatprep.subr.bf16.mxu0 0
      %1120 = vmatpush1.bf16.msra.mxu0 0
      %1121 = vmatprep.subr.bf16.mxu0 0
      %1122 = vmatpush1.bf16.msra.mxu0 0
      %1123 = vmatprep.subr.bf16.mxu0 0
      %1124 = vmatpush1.bf16.msra.mxu0 0
      %1125 = vmatprep.subr.bf16.mxu0 0
      %1126 = vmatpush1.bf16.msra.mxu0 0
      %1127 = vmatprep.subr.bf16.mxu0 0
      %1128 = vmatpush1.bf16.msra.mxu0 0
      %1129 = vmatprep.subr.bf16.mxu0 0
      %1130 = vmatpush1.bf16.msra.mxu0 0
      %1131 = vmatprep.subr.bf16.mxu0 0
      %1132 = vmatpush1.bf16.msra.mxu0 0
      %1133 = vmatprep.subr.bf16.mxu0 0
      %1134 = vmatpush1.bf16.msra.mxu0 0
      %1135 = vmatprep.subr.bf16.mxu0 0
      %1136 = vmatpush1.bf16.msra.mxu0 0
      %1137 = vmatprep.subr.bf16.mxu0 0
      %1138 = vmatpush1.bf16.msra.mxu0 0
      %1139 = vmatprep.subr.bf16.mxu0 0
      %1140 = vmatpush1.bf16.msra.mxu0 0
      %1141 = vmatprep.subr.bf16.mxu0 0
      %1142 = vmatpush1.bf16.msra.mxu0 0
      %1143 = vmatprep.subr.bf16.mxu0 0
      %1144 = vmatpush1.bf16.msra.mxu0 0
      %1145 = vmatprep.mubr.bf16.mxu0 0
      %1146 = vmatmul.mubr.bf16.gmra.mrb[0].mxu0 %v1099
      %v1147 = vpop.f32.mrb[0].mxu0
      %v1148 = vadd.f32 0.0, %v1147
      %v1149 = vpop.f32.mrb[0].mxu0
      %v1150 = vpop.f32.mrb[0].mxu0
      %v1151 = vadd.f32 0.0, %v1150
      %v1152 = vpop.f32.mrb[0].mxu0
      %1153 = vmatprep.mubr.bf16.mxu0 0
      %1154 = vmatmul.mubr.bf16.gmra.mrb[0].mxu0 %v1102
      %v1155 = vpop.f32.mrb[0].mxu0
      %v1156 = vadd.f32 0.0, %v1155
      %v1157 = vpop.f32.mrb[0].mxu0
      %v1158 = vpop.f32.mrb[0].mxu0
      %v1159 = vadd.f32 0.0, %v1158
      %v1160 = vpop.f32.mrb[0].mxu0
      %1161 = vmatprep.mubr.bf16.mxu0 0
      %1162 = vmatmul.mubr.bf16.gmra.mrb[0].mxu0 %v1105
      %v1163 = vpop.f32.mrb[0].mxu0
      %v1164 = vadd.f32 0.0, %v1163
      %v1165 = vpop.f32.mrb[0].mxu0
      %v1166 = vpop.f32.mrb[0].mxu0
      %v1167 = vadd.f32 0.0, %v1166
      %v1168 = vpop.f32.mrb[0].mxu0
      %1169 = vmatprep.mubr.bf16.mxu0 0
      %1170 = vmatmul.mubr.bf16.gmra.mrb[0].mxu0 %v1108
      %v1171 = vpop.f32.mrb[0].mxu0
      %v1172 = vadd.f32 0.0, %v1171
      %v1173 = vpop.f32.mrb[0].mxu0
      %v1174 = vpop.f32.mrb[0].mxu0
      %v1175 = vadd.f32 0.0, %v1174
      %v1176 = vpop.f32.mrb[0].mxu0
      %1177 = vmatprep.mubr.bf16.mxu0 0
      %1178 = vmatmul.mubr.bf16.gmra.mrb[0].mxu0 %v1111
      %v1179 = vpop.f32.mrb[0].mxu0
      %v1180 = vadd.f32 0.0, %v1179
      %v1181 = vpop.f32.mrb[0].mxu0
      %v1182 = vpop.f32.mrb[0].mxu0
      %v1183 = vpop.f32.mrb[0].mxu0
      %1184 = vdwg.mxu0
      %v1185 = vadd.f32 %v1058, %v1148
      %v1186 = vadd.f32 %v1059, %v1151
      %v1187 = vadd.f32 %v1060, %v1156
      %v1188 = vadd.f32 %v1061, %v1159
      %v1189 = vadd.f32 %v1062, %v1164
      %v1190 = vadd.f32 %v1063, %v1167
      %v1191 = vadd.f32 %v1064, %v1172
      %v1192 = vadd.f32 %v1065, %v1175
      %v1193 = vadd.f32 %v1066, %v1180
      %v1194 = vld [vmem:[%s183 + $0x28] sm:$0x7]
      %s1195 = scalar_lea.vmem %s1, 112
      %v1196 = vld [vmem:[%s1195] sm:$0xf]
      %v1197 = vld [vmem:[%s1195 + $0x4] sm:$0xf]
      %v1198 = vld [vmem:[%s1195 + $0x8] sm:$0xf]
      %v1199 = vld [vmem:[%s1195 + $0xc] sm:$0xf]
      %v1201 = vunpack.c.l.b16 %v1194
      %v1202 = vpack.c.b16 %v1201, %v782
      %vm1203 = vsmask.f32 5376
      %v1205 = vshrl.u32 %v1075, 16
      %v1207 = vrot.slane %v1205, 2
      %v1208 = vshll.u32 %v1075, 16
      %v1210 = vrot.slane %v1208, 3
      %v1211 = vor.u32 %v1207, %v1210
      %v1212 = vrot.slane %v924, 2
      %v1213 = vrot.slane %v927, 3
      %v1214 = vor.u32 %v1212, %v1213
      %v1215 = vsel %vm1203, %v1211, %v1214
      %v1216 = vrot.slane %v933, 2
      %v1217 = vrot.slane %v936, 3
      %v1218 = vor.u32 %v1216, %v1217
      %v1219 = vsel %vm1203, %v1214, %v1218
      %v1220 = vrot.slane %v942, 2
      %v1221 = vrot.slane %v945, 3
      %v1222 = vor.u32 %v1220, %v1221
      %v1223 = vsel %vm1203, %v1218, %v1222
      %v1225 = vshrl.u32 %v1202, 16
      %v1227 = vrot.slane %v1225, 2
      %v1228 = vshll.u32 %v1202, 16
      %v1230 = vrot.slane %v1228, 3
      %v1231 = vor.u32 %v1227, %v1230
      %v1232 = vsel %vm1203, %v1222, %v1231
      %v1237 = vunpack.c.l.b16 %v1196
      %v1238 = vunpack.c.l.b16 %v1197
      %v1239 = vunpack.c.l.b16 %v1198
      %v1240 = vunpack.c.l.b16 %v1199
      %v1241 = vpack.c.b16 %v1238, %v1237
      %v1242 = vpack.c.b16 %v1240, %v1239
      %v1246 = vsel %vm291, %v1215, 0
      %v1249 = vsel %vm291, %v1219, 0
      %v1252 = vsel %vm291, %v1223, 0
      %v1255 = vsel %vm291, %v1232, 0
      %v1258 = vsel %vm291, %v1231, 0
      %1260 = vmatprep.subr.bf16.mxu0 0
      %1261 = vmatpush1.bf16.msra.mxu0 %v1241
      %1262 = vmatprep.subr.bf16.mxu0 0
      %1263 = vmatpush1.bf16.msra.mxu0 %v1242
      %1264 = vmatprep.subr.bf16.mxu0 0
      %1265 = vmatpush1.bf16.msra.mxu0 0
      %1266 = vmatprep.subr.bf16.mxu0 0
      %1267 = vmatpush1.bf16.msra.mxu0 0
      %1268 = vmatprep.subr.bf16.mxu0 0
      %1269 = vmatpush1.bf16.msra.mxu0 0
      %1270 = vmatprep.subr.bf16.mxu0 0
      %1271 = vmatpush1.bf16.msra.mxu0 0
      %1272 = vmatprep.subr.bf16.mxu0 0
      %1273 = vmatpush1.bf16.msra.mxu0 0
      %1274 = vmatprep.subr.bf16.mxu0 0
      %1275 = vmatpush1.bf16.msra.mxu0 0
      %1276 = vmatprep.subr.bf16.mxu0 0
      %1277 = vmatpush1.bf16.msra.mxu0 0
      %1278 = vmatprep.subr.bf16.mxu0 0
      %1279 = vmatpush1.bf16.msra.mxu0 0
      %1280 = vmatprep.subr.bf16.mxu0 0
      %1281 = vmatpush1.bf16.msra.mxu0 0
      %1282 = vmatprep.subr.bf16.mxu0 0
      %1283 = vmatpush1.bf16.msra.mxu0 0
      %1284 = vmatprep.subr.bf16.mxu0 0
      %1285 = vmatpush1.bf16.msra.mxu0 0
      %1286 = vmatprep.subr.bf16.mxu0 0
      %1287 = vmatpush1.bf16.msra.mxu0 0
      %1288 = vmatprep.subr.bf16.mxu0 0
      %1289 = vmatpush1.bf16.msra.mxu0 0
      %1290 = vmatprep.subr.bf16.mxu0 0
      %1291 = vmatpush1.bf16.msra.mxu0 0
      %1292 = vmatprep.mubr.bf16.mxu0 0
      %1293 = vmatmul.mubr.bf16.gmra.mrb[0].mxu0 %v1246
      %v1294 = vpop.f32.mrb[0].mxu0
      %v1295 = vadd.f32 0.0, %v1294
      %v1296 = vpop.f32.mrb[0].mxu0
      %v1297 = vpop.f32.mrb[0].mxu0
      %v1298 = vadd.f32 0.0, %v1297
      %v1299 = vpop.f32.mrb[0].mxu0
      %1300 = vmatprep.mubr.bf16.mxu0 0
      %1301 = vmatmul.mubr.bf16.gmra.mrb[0].mxu0 %v1249
      %v1302 = vpop.f32.mrb[0].mxu0
      %v1303 = vadd.f32 0.0, %v1302
      %v1304 = vpop.f32.mrb[0].mxu0
      %v1305 = vpop.f32.mrb[0].mxu0
      %v1306 = vadd.f32 0.0, %v1305
      %v1307 = vpop.f32.mrb[0].mxu0
      %1308 = vmatprep.mubr.bf16.mxu0 0
      %1309 = vmatmul.mubr.bf16.gmra.mrb[0].mxu0 %v1252
      %v1310 = vpop.f32.mrb[0].mxu0
      %v1311 = vadd.f32 0.0, %v1310
      %v1312 = vpop.f32.mrb[0].mxu0
      %v1313 = vpop.f32.mrb[0].mxu0
      %v1314 = vadd.f32 0.0, %v1313
      %v1315 = vpop.f32.mrb[0].mxu0
      %1316 = vmatprep.mubr.bf16.mxu0 0
      %1317 = vmatmul.mubr.bf16.gmra.mrb[0].mxu0 %v1255
      %v1318 = vpop.f32.mrb[0].mxu0
      %v1319 = vadd.f32 0.0, %v1318
      %v1320 = vpop.f32.mrb[0].mxu0
      %v1321 = vpop.f32.mrb[0].mxu0
      %v1322 = vadd.f32 0.0, %v1321
      %v1323 = vpop.f32.mrb[0].mxu0
      %1324 = vmatprep.mubr.bf16.mxu0 0
      %1325 = vmatmul.mubr.bf16.gmra.mrb[0].mxu0 %v1258
      %v1326 = vpop.f32.mrb[0].mxu0
      %v1327 = vadd.f32 0.0, %v1326
      %v1328 = vpop.f32.mrb[0].mxu0
      %v1329 = vpop.f32.mrb[0].mxu0
      %v1330 = vpop.f32.mrb[0].mxu0
      %1331 = vdwg.mxu0
      %v1332 = vadd.f32 %v1185, %v1295
      %v1333 = vadd.f32 %v1186, %v1298
      %v1334 = vadd.f32 %v1187, %v1303
      %v1335 = vadd.f32 %v1188, %v1306
      %v1336 = vadd.f32 %v1189, %v1311
      %v1337 = vadd.f32 %v1190, %v1314
      %v1338 = vadd.f32 %v1191, %v1319
      %v1339 = vadd.f32 %v1192, %v1322
      %v1340 = vadd.f32 %v1193, %v1327
      %v1341 = vld [vmem:[%s183 + $0x8] sm:$0xc]
      %v1342 = vld [vmem:[%s183 + $0xc] sm:$0xf]
      %v1343 = vld [vmem:[%s183 + $0x10] sm:$0xf]
      %v1344 = vld [vmem:[%s183 + $0x14] sm:$0xf]
      %v1345 = vld [vmem:[%s183 + $0x18] sm:$0xf]
      %v1346 = vld [vmem:[%s183 + $0x1c] sm:$0xf]
      %v1347 = vld [vmem:[%s183 + $0x20] sm:$0xf]
      %v1348 = vld [vmem:[%s183 + $0x24] sm:$0xf]
      %v1349 = vld [vmem:[%s183 + $0x28] sm:$0xf]
      %v1350 = vld [vmem:[%s183 + $0x2c] sm:$0x3]
      %s1351 = scalar_lea.vmem %s1, 128
      %v1352 = vld [vmem:[%s1351] sm:$0xf]
      %v1353 = vld [vmem:[%s1351 + $0x4] sm:$0xf]
      %v1354 = vld [vmem:[%s1351 + $0x8] sm:$0xf]
      %v1355 = vld [vmem:[%s1351 + $0xc] sm:$0xf]
      %v1366 = vunpack.c.l.b16 %v1341
      %v1367 = vunpack.c.l.b16 %v1342
      %v1368 = vunpack.c.l.b16 %v1343
      %v1369 = vunpack.c.l.b16 %v1344
      %v1370 = vunpack.c.l.b16 %v1345
      %v1371 = vunpack.c.l.b16 %v1346
      %v1372 = vunpack.c.l.b16 %v1347
      %v1373 = vunpack.c.l.b16 %v1348
      %v1374 = vunpack.c.l.b16 %v1349
      %v1375 = vunpack.c.l.b16 %v1350
      %v1376 = vpack.c.b16 %v1367, %v1366
      %v1377 = vpack.c.b16 %v1369, %v1368
      %v1378 = vpack.c.b16 %v1371, %v1370
      %v1379 = vpack.c.b16 %v1373, %v1372
      %v1380 = vpack.c.b16 %v1375, %v1374
      %v1381 = vrot.slane %v1376, 2
      %v1382 = vrot.slane %v1377, 2
      %v1383 = vsel %vm1076, %v1381, %v1382
      %v1384 = vrot.slane %v1378, 2
      %v1385 = vsel %vm1076, %v1382, %v1384
      %v1386 = vrot.slane %v1379, 2
      %v1387 = vsel %vm1076, %v1384, %v1386
      %v1388 = vrot.slane %v1380, 2
      %v1389 = vsel %vm1076, %v1386, %v1388
      %v1394 = vunpack.c.l.b16 %v1352
      %v1395 = vunpack.c.l.b16 %v1353
      %v1396 = vunpack.c.l.b16 %v1354
      %v1397 = vunpack.c.l.b16 %v1355
      %v1398 = vpack.c.b16 %v1395, %v1394
      %v1399 = vpack.c.b16 %v1397, %v1396
      %v1403 = vsel %vm291, %v1383, 0
      %v1406 = vsel %vm291, %v1385, 0
      %v1409 = vsel %vm291, %v1387, 0
      %v1412 = vsel %vm291, %v1389, 0
      %v1415 = vsel %vm291, %v1388, 0
      %1417 = vmatprep.subr.bf16.mxu0 0
      %1418 = vmatpush1.bf16.msra.mxu0 %v1398
      %1419 = vmatprep.subr.bf16.mxu0 0
      %1420 = vmatpush1.bf16.msra.mxu0 %v1399
      %1421 = vmatprep.subr.bf16.mxu0 0
      %1422 = vmatpush1.bf16.msra.mxu0 0
      %1423 = vmatprep.subr.bf16.mxu0 0
      %1424 = vmatpush1.bf16.msra.mxu0 0
      %1425 = vmatprep.subr.bf16.mxu0 0
      %1426 = vmatpush1.bf16.msra.mxu0 0
      %1427 = vmatprep.subr.bf16.mxu0 0
      %1428 = vmatpush1.bf16.msra.mxu0 0
      %1429 = vmatprep.subr.bf16.mxu0 0
      %1430 = vmatpush1.bf16.msra.mxu0 0
      %1431 = vmatprep.subr.bf16.mxu0 0
      %1432 = vmatpush1.bf16.msra.mxu0 0
      %1433 = vmatprep.subr.bf16.mxu0 0
      %1434 = vmatpush1.bf16.msra.mxu0 0
      %1435 = vmatprep.subr.bf16.mxu0 0
      %1436 = vmatpush1.bf16.msra.mxu0 0
      %1437 = vmatprep.subr.bf16.mxu0 0
      %1438 = vmatpush1.bf16.msra.mxu0 0
      %1439 = vmatprep.subr.bf16.mxu0 0
      %1440 = vmatpush1.bf16.msra.mxu0 0
      %1441 = vmatprep.subr.bf16.mxu0 0
      %1442 = vmatpush1.bf16.msra.mxu0 0
      %1443 = vmatprep.subr.bf16.mxu0 0
      %1444 = vmatpush1.bf16.msra.mxu0 0
      %1445 = vmatprep.subr.bf16.mxu0 0
      %1446 = vmatpush1.bf16.msra.mxu0 0
      %1447 = vmatprep.subr.bf16.mxu0 0
      %1448 = vmatpush1.bf16.msra.mxu0 0
      %1449 = vmatprep.mubr.bf16.mxu0 0
      %1450 = vmatmul.mubr.bf16.gmra.mrb[0].mxu0 %v1403
      %v1451 = vpop.f32.mrb[0].mxu0
      %v1452 = vadd.f32 0.0, %v1451
      %v1453 = vpop.f32.mrb[0].mxu0
      %v1454 = vpop.f32.mrb[0].mxu0
      %v1455 = vadd.f32 0.0, %v1454
      %v1456 = vpop.f32.mrb[0].mxu0
      %1457 = vmatprep.mubr.bf16.mxu0 0
      %1458 = vmatmul.mubr.bf16.gmra.mrb[0].mxu0 %v1406
      %v1459 = vpop.f32.mrb[0].mxu0
      %v1460 = vadd.f32 0.0, %v1459
      %v1461 = vpop.f32.mrb[0].mxu0
      %v1462 = vpop.f32.mrb[0].mxu0
      %v1463 = vadd.f32 0.0, %v1462
      %v1464 = vpop.f32.mrb[0].mxu0
      %1465 = vmatprep.mubr.bf16.mxu0 0
      %1466 = vmatmul.mubr.bf16.gmra.mrb[0].mxu0 %v1409
      %v1467 = vpop.f32.mrb[0].mxu0
      %v1468 = vadd.f32 0.0, %v1467
      %v1469 = vpop.f32.mrb[0].mxu0
      %v1470 = vpop.f32.mrb[0].mxu0
      %v1471 = vadd.f32 0.0, %v1470
      %v1472 = vpop.f32.mrb[0].mxu0
      %1473 = vmatprep.mubr.bf16.mxu0 0
      %1474 = vmatmul.mubr.bf16.gmra.mrb[0].mxu0 %v1412
      %v1475 = vpop.f32.mrb[0].mxu0
      %v1476 = vadd.f32 0.0, %v1475
      %v1477 = vpop.f32.mrb[0].mxu0
      %v1478 = vpop.f32.mrb[0].mxu0
      %v1479 = vadd.f32 0.0, %v1478
      %v1480 = vpop.f32.mrb[0].mxu0
      %1481 = vmatprep.mubr.bf16.mxu0 0
      %1482 = vmatmul.mubr.bf16.gmra.mrb[0].mxu0 %v1415
      %v1483 = vpop.f32.mrb[0].mxu0
      %v1484 = vadd.f32 0.0, %v1483
      %v1485 = vpop.f32.mrb[0].mxu0
      %v1486 = vpop.f32.mrb[0].mxu0
      %v1487 = vpop.f32.mrb[0].mxu0
      %1488 = vdwg.mxu0
      %v1489 = vadd.f32 %v1332, %v1452
      %v1490 = vadd.f32 %v1333, %v1455
      %v1491 = vadd.f32 %v1334, %v1460
      %v1492 = vadd.f32 %v1335, %v1463
      %v1493 = vadd.f32 %v1336, %v1468
      %v1494 = vadd.f32 %v1337, %v1471
      %v1495 = vadd.f32 %v1338, %v1476
      %v1496 = vadd.f32 %v1339, %v1479
      %v1497 = vadd.f32 %v1340, %v1484
      %v1498 = vld [vmem:[%s183 + $0x2c] sm:$0x7]
      %s1499 = scalar_lea.vmem %s1, 144
      %v1500 = vld [vmem:[%s1499] sm:$0xf]
      %v1501 = vld [vmem:[%s1499 + $0x4] sm:$0xf]
      %v1502 = vld [vmem:[%s1499 + $0x8] sm:$0xf]
      %v1503 = vld [vmem:[%s1499 + $0xc] sm:$0xf]
      %v1505 = vunpack.c.l.b16 %v1498
      %v1506 = vpack.c.b16 %v1505, %v1374
      %v1508 = vshrl.u32 %v1376, 16
      %v1510 = vrot.slane %v1508, 2
      %v1511 = vshll.u32 %v1376, 16
      %v1513 = vrot.slane %v1511, 3
      %v1514 = vor.u32 %v1510, %v1513
      %v1516 = vshrl.u32 %v1377, 16
      %v1518 = vrot.slane %v1516, 2
      %v1519 = vshll.u32 %v1377, 16
      %v1521 = vrot.slane %v1519, 3
      %v1522 = vor.u32 %v1518, %v1521
      %v1523 = vsel %vm1203, %v1514, %v1522
      %v1525 = vshrl.u32 %v1378, 16
      %v1527 = vrot.slane %v1525, 2
      %v1528 = vshll.u32 %v1378, 16
      %v1530 = vrot.slane %v1528, 3
      %v1531 = vor.u32 %v1527, %v1530
      %v1532 = vsel %vm1203, %v1522, %v1531
      %v1534 = vshrl.u32 %v1379, 16
      %v1536 = vrot.slane %v1534, 2
      %v1537 = vshll.u32 %v1379, 16
      %v1539 = vrot.slane %v1537, 3
      %v1540 = vor.u32 %v1536, %v1539
      %v1541 = vsel %vm1203, %v1531, %v1540
      %v1543 = vshrl.u32 %v1506, 16
      %v1545 = vrot.slane %v1543, 2
      %v1546 = vshll.u32 %v1506, 16
      %v1548 = vrot.slane %v1546, 3
      %v1549 = vor.u32 %v1545, %v1548
      %v1550 = vsel %vm1203, %v1540, %v1549
      %v1555 = vunpack.c.l.b16 %v1500
      %v1556 = vunpack.c.l.b16 %v1501
      %v1557 = vunpack.c.l.b16 %v1502
      %v1558 = vunpack.c.l.b16 %v1503
      %v1559 = vpack.c.b16 %v1556, %v1555
      %v1560 = vpack.c.b16 %v1558, %v1557
      %v1564 = vsel %vm291, %v1523, 0
      %v1567 = vsel %vm291, %v1532, 0
      %v1570 = vsel %vm291, %v1541, 0
      %v1573 = vsel %vm291, %v1550, 0
      %v1576 = vsel %vm291, %v1549, 0
      %1578 = vmatprep.subr.bf16.mxu0 0
      %1579 = vmatpush1.bf16.msra.mxu0 %v1559
      %1580 = vmatprep.subr.bf16.mxu0 0
      %1581 = vmatpush1.bf16.msra.mxu0 %v1560
      %1582 = vmatprep.subr.bf16.mxu0 0
      %1583 = vmatpush1.bf16.msra.mxu0 0
      %1584 = vmatprep.subr.bf16.mxu0 0
      %1585 = vmatpush1.bf16.msra.mxu0 0
      %1586 = vmatprep.subr.bf16.mxu0 0
      %1587 = vmatpush1.bf16.msra.mxu0 0
      %1588 = vmatprep.subr.bf16.mxu0 0
      %1589 = vmatpush1.bf16.msra.mxu0 0
      %1590 = vmatprep.subr.bf16.mxu0 0
      %1591 = vmatpush1.bf16.msra.mxu0 0
      %1592 = vmatprep.subr.bf16.mxu0 0
      %1593 = vmatpush1.bf16.msra.mxu0 0
      %1594 = vmatprep.subr.bf16.mxu0 0
      %1595 = vmatpush1.bf16.msra.mxu0 0
      %1596 = vmatprep.subr.bf16.mxu0 0
      %1597 = vmatpush1.bf16.msra.mxu0 0
      %1598 = vmatprep.subr.bf16.mxu0 0
      %1599 = vmatpush1.bf16.msra.mxu0 0
      %1600 = vmatprep.subr.bf16.mxu0 0
      %1601 = vmatpush1.bf16.msra.mxu0 0
      %1602 = vmatprep.subr.bf16.mxu0 0
      %1603 = vmatpush1.bf16.msra.mxu0 0
      %1604 = vmatprep.subr.bf16.mxu0 0
      %1605 = vmatpush1.bf16.msra.mxu0 0
      %1606 = vmatprep.subr.bf16.mxu0 0
      %1607 = vmatpush1.bf16.msra.mxu0 0
      %1608 = vmatprep.subr.bf16.mxu0 0
      %1609 = vmatpush1.bf16.msra.mxu0 0
      %1610 = vmatprep.mubr.bf16.mxu0 0
      %1611 = vmatmul.mubr.bf16.gmra.mrb[0].mxu0 %v1564
      %v1612 = vpop.f32.mrb[0].mxu0
      %v1613 = vadd.f32 0.0, %v1612
      %v1614 = vpop.f32.mrb[0].mxu0
      %v1615 = vpop.f32.mrb[0].mxu0
      %v1616 = vadd.f32 0.0, %v1615
      %v1617 = vpop.f32.mrb[0].mxu0
      %1618 = vmatprep.mubr.bf16.mxu0 0
      %1619 = vmatmul.mubr.bf16.gmra.mrb[0].mxu0 %v1567
      %v1620 = vpop.f32.mrb[0].mxu0
      %v1621 = vadd.f32 0.0, %v1620
      %v1622 = vpop.f32.mrb[0].mxu0
      %v1623 = vpop.f32.mrb[0].mxu0
      %v1624 = vadd.f32 0.0, %v1623
      %v1625 = vpop.f32.mrb[0].mxu0
      %1626 = vmatprep.mubr.bf16.mxu0 0
      %1627 = vmatmul.mubr.bf16.gmra.mrb[0].mxu0 %v1570
      %v1628 = vpop.f32.mrb[0].mxu0
      %v1629 = vadd.f32 0.0, %v1628
      %v1630 = vpop.f32.mrb[0].mxu0
      %v1631 = vpop.f32.mrb[0].mxu0
      %v1632 = vadd.f32 0.0, %v1631
      %v1633 = vpop.f32.mrb[0].mxu0
      %1634 = vmatprep.mubr.bf16.mxu0 0
      %1635 = vmatmul.mubr.bf16.gmra.mrb[0].mxu0 %v1573
      %v1636 = vpop.f32.mrb[0].mxu0
      %v1637 = vadd.f32 0.0, %v1636
      %v1638 = vpop.f32.mrb[0].mxu0
      %v1639 = vpop.f32.mrb[0].mxu0
      %v1640 = vadd.f32 0.0, %v1639
      %v1641 = vpop.f32.mrb[0].mxu0
      %1642 = vmatprep.mubr.bf16.mxu0 0
      %1643 = vmatmul.mubr.bf16.gmra.mrb[0].mxu0 %v1576
      %v1644 = vpop.f32.mrb[0].mxu0
      %v1645 = vadd.f32 0.0, %v1644
      %v1646 = vpop.f32.mrb[0].mxu0
      %v1647 = vpop.f32.mrb[0].mxu0
      %v1648 = vpop.f32.mrb[0].mxu0
      %1649 = vdwg.mxu0
      %v1650 = vadd.f32 %v1489, %v1613
      %v1651 = vadd.f32 %v1490, %v1616
      %v1652 = vadd.f32 %v1491, %v1621
      %v1653 = vadd.f32 %v1492, %v1624
      %v1654 = vadd.f32 %v1493, %v1629
      %v1655 = vadd.f32 %v1494, %v1632
      %v1656 = vadd.f32 %v1495, %v1637
      %v1657 = vadd.f32 %v1496, %v1640
      %v1658 = vadd.f32 %v1497, %v1645
      %v1659 = vld [vmem:[%s183 + $0x8] sm:$0x8]
      %s1660 = scalar_lea.vmem %s1, 160
      %v1661 = vld [vmem:[%s1660] sm:$0xf]
      %v1662 = vld [vmem:[%s1660 + $0x4] sm:$0xf]
      %v1663 = vld [vmem:[%s1660 + $0x8] sm:$0xf]
      %v1664 = vld [vmem:[%s1660 + $0xc] sm:$0xf]
      %v1666 = vunpack.c.l.b16 %v1659
      %v1667 = vpack.c.b16 %v1367, %v1666
      %vm1668 = vcmask 1044480
      %v1669 = vrot.slane %v1667, 3
      %v1670 = vrot.slane %v1377, 3
      %v1671 = vsel %vm1668, %v1669, %v1670
      %v1672 = vrot.slane %v1378, 3
      %v1673 = vsel %vm1668, %v1670, %v1672
      %v1674 = vrot.slane %v1379, 3
      %v1675 = vsel %vm1668, %v1672, %v1674
      %v1676 = vrot.slane %v1506, 3
      %v1677 = vsel %vm1668, %v1674, %v1676
      %v1682 = vunpack.c.l.b16 %v1661
      %v1683 = vunpack.c.l.b16 %v1662
      %v1684 = vunpack.c.l.b16 %v1663
      %v1685 = vunpack.c.l.b16 %v1664
      %v1686 = vpack.c.b16 %v1683, %v1682
      %v1687 = vpack.c.b16 %v1685, %v1684
      %v1691 = vsel %vm291, %v1671, 0
      %v1694 = vsel %vm291, %v1673, 0
      %v1697 = vsel %vm291, %v1675, 0
      %v1700 = vsel %vm291, %v1677, 0
      %v1703 = vsel %vm291, %v1676, 0
      %1705 = vmatprep.subr.bf16.mxu0 0
      %1706 = vmatpush1.bf16.msra.mxu0 %v1686
      %1707 = vmatprep.subr.bf16.mxu0 0
      %1708 = vmatpush1.bf16.msra.mxu0 %v1687
      %1709 = vmatprep.subr.bf16.mxu0 0
      %1710 = vmatpush1.bf16.msra.mxu0 0
      %1711 = vmatprep.subr.bf16.mxu0 0
      %1712 = vmatpush1.bf16.msra.mxu0 0
      %1713 = vmatprep.subr.bf16.mxu0 0
      %1714 = vmatpush1.bf16.msra.mxu0 0
      %1715 = vmatprep.subr.bf16.mxu0 0
      %1716 = vmatpush1.bf16.msra.mxu0 0
      %1717 = vmatprep.subr.bf16.mxu0 0
      %1718 = vmatpush1.bf16.msra.mxu0 0
      %1719 = vmatprep.subr.bf16.mxu0 0
      %1720 = vmatpush1.bf16.msra.mxu0 0
      %1721 = vmatprep.subr.bf16.mxu0 0
      %1722 = vmatpush1.bf16.msra.mxu0 0
      %1723 = vmatprep.subr.bf16.mxu0 0
      %1724 = vmatpush1.bf16.msra.mxu0 0
      %1725 = vmatprep.subr.bf16.mxu0 0
      %1726 = vmatpush1.bf16.msra.mxu0 0
      %1727 = vmatprep.subr.bf16.mxu0 0
      %1728 = vmatpush1.bf16.msra.mxu0 0
      %1729 = vmatprep.subr.bf16.mxu0 0
      %1730 = vmatpush1.bf16.msra.mxu0 0
      %1731 = vmatprep.subr.bf16.mxu0 0
      %1732 = vmatpush1.bf16.msra.mxu0 0
      %1733 = vmatprep.subr.bf16.mxu0 0
      %1734 = vmatpush1.bf16.msra.mxu0 0
      %1735 = vmatprep.subr.bf16.mxu0 0
      %1736 = vmatpush1.bf16.msra.mxu0 0
      %1737 = vmatprep.mubr.bf16.mxu0 0
      %1738 = vmatmul.mubr.bf16.gmra.mrb[0].mxu0 %v1691
      %v1739 = vpop.f32.mrb[0].mxu0
      %v1740 = vadd.f32 0.0, %v1739
      %v1741 = vpop.f32.mrb[0].mxu0
      %v1742 = vpop.f32.mrb[0].mxu0
      %v1743 = vadd.f32 0.0, %v1742
      %v1744 = vpop.f32.mrb[0].mxu0
      %1745 = vmatprep.mubr.bf16.mxu0 0
      %1746 = vmatmul.mubr.bf16.gmra.mrb[0].mxu0 %v1694
      %v1747 = vpop.f32.mrb[0].mxu0
      %v1748 = vadd.f32 0.0, %v1747
      %v1749 = vpop.f32.mrb[0].mxu0
      %v1750 = vpop.f32.mrb[0].mxu0
      %v1751 = vadd.f32 0.0, %v1750
      %v1752 = vpop.f32.mrb[0].mxu0
      %1753 = vmatprep.mubr.bf16.mxu0 0
      %1754 = vmatmul.mubr.bf16.gmra.mrb[0].mxu0 %v1697
      %v1755 = vpop.f32.mrb[0].mxu0
      %v1756 = vadd.f32 0.0, %v1755
      %v1757 = vpop.f32.mrb[0].mxu0
      %v1758 = vpop.f32.mrb[0].mxu0
      %v1759 = vadd.f32 0.0, %v1758
      %v1760 = vpop.f32.mrb[0].mxu0
      %1761 = vmatprep.mubr.bf16.mxu0 0
      %1762 = vmatmul.mubr.bf16.gmra.mrb[0].mxu0 %v1700
      %v1763 = vpop.f32.mrb[0].mxu0
      %v1764 = vadd.f32 0.0, %v1763
      %v1765 = vpop.f32.mrb[0].mxu0
      %v1766 = vpop.f32.mrb[0].mxu0
      %v1767 = vadd.f32 0.0, %v1766
      %v1768 = vpop.f32.mrb[0].mxu0
      %1769 = vmatprep.mubr.bf16.mxu0 0
      %1770 = vmatmul.mubr.bf16.gmra.mrb[0].mxu0 %v1703
      %v1771 = vpop.f32.mrb[0].mxu0
      %v1772 = vadd.f32 0.0, %v1771
      %v1773 = vpop.f32.mrb[0].mxu0
      %v1774 = vpop.f32.mrb[0].mxu0
      %v1775 = vpop.f32.mrb[0].mxu0
      %1776 = vdwg.mxu0
      %v1777 = vadd.f32 %v1650, %v1740
      %v1778 = vadd.f32 %v1651, %v1743
      %v1779 = vadd.f32 %v1652, %v1748
      %v1780 = vadd.f32 %v1653, %v1751
      %v1781 = vadd.f32 %v1654, %v1756
      %v1782 = vadd.f32 %v1655, %v1759
      %v1783 = vadd.f32 %v1656, %v1764
      %v1784 = vadd.f32 %v1657, %v1767
      %v1785 = vadd.f32 %v1658, %v1772
      %v1786 = vld [vmem:[%s183 + $0x2c] sm:$0xf]
      %s1787 = scalar_lea.vmem %s1, 176
      %v1788 = vld [vmem:[%s1787] sm:$0xf]
      %v1789 = vld [vmem:[%s1787 + $0x4] sm:$0xf]
      %v1790 = vld [vmem:[%s1787 + $0x8] sm:$0xf]
      %v1791 = vld [vmem:[%s1787 + $0xc] sm:$0xf]
      %v1793 = vunpack.c.l.b16 %v1786
      %v1794 = vpack.c.b16 %v1793, %v1374
      %vm1795 = vsmask.f32 4352
      %v1797 = vshrl.u32 %v1667, 16
      %v1799 = vrot.slane %v1797, 3
      %v1800 = vshll.u32 %v1667, 16
      %v1802 = vrot.slane %v1800, 4
      %v1803 = vor.u32 %v1799, %v1802
      %v1804 = vrot.slane %v1516, 3
      %v1805 = vrot.slane %v1519, 4
      %v1806 = vor.u32 %v1804, %v1805
      %v1807 = vsel %vm1795, %v1803, %v1806
      %v1808 = vrot.slane %v1525, 3
      %v1809 = vrot.slane %v1528, 4
      %v1810 = vor.u32 %v1808, %v1809
      %v1811 = vsel %vm1795, %v1806, %v1810
      %v1812 = vrot.slane %v1534, 3
      %v1813 = vrot.slane %v1537, 4
      %v1814 = vor.u32 %v1812, %v1813
      %v1815 = vsel %vm1795, %v1810, %v1814
      %v1817 = vshrl.u32 %v1794, 16
      %v1819 = vrot.slane %v1817, 3
      %v1820 = vshll.u32 %v1794, 16
      %v1822 = vrot.slane %v1820, 4
      %v1823 = vor.u32 %v1819, %v1822
      %v1824 = vsel %vm1795, %v1814, %v1823
      %v1829 = vunpack.c.l.b16 %v1788
      %v1830 = vunpack.c.l.b16 %v1789
      %v1831 = vunpack.c.l.b16 %v1790
      %v1832 = vunpack.c.l.b16 %v1791
      %v1833 = vpack.c.b16 %v1830, %v1829
      %v1834 = vpack.c.b16 %v1832, %v1831
      %v1838 = vsel %vm291, %v1807, 0
      %v1841 = vsel %vm291, %v1811, 0
      %v1844 = vsel %vm291, %v1815, 0
      %v1847 = vsel %vm291, %v1824, 0
      %v1850 = vsel %vm291, %v1823, 0
      %1852 = vmatprep.subr.bf16.mxu0 0
      %1853 = vmatpush1.bf16.msra.mxu0 %v1833
      %1854 = vmatprep.subr.bf16.mxu0 0
      %1855 = vmatpush1.bf16.msra.mxu0 %v1834
      %1856 = vmatprep.subr.bf16.mxu0 0
      %1857 = vmatpush1.bf16.msra.mxu0 0
      %1858 = vmatprep.subr.bf16.mxu0 0
      %1859 = vmatpush1.bf16.msra.mxu0 0
      %1860 = vmatprep.subr.bf16.mxu0 0
      %1861 = vmatpush1.bf16.msra.mxu0 0
      %1862 = vmatprep.subr.bf16.mxu0 0
      %1863 = vmatpush1.bf16.msra.mxu0 0
      %1864 = vmatprep.subr.bf16.mxu0 0
      %1865 = vmatpush1.bf16.msra.mxu0 0
      %1866 = vmatprep.subr.bf16.mxu0 0
      %1867 = vmatpush1.bf16.msra.mxu0 0
      %1868 = vmatprep.subr.bf16.mxu0 0
      %1869 = vmatpush1.bf16.msra.mxu0 0
      %1870 = vmatprep.subr.bf16.mxu0 0
      %1871 = vmatpush1.bf16.msra.mxu0 0
      %1872 = vmatprep.subr.bf16.mxu0 0
      %1873 = vmatpush1.bf16.msra.mxu0 0
      %1874 = vmatprep.subr.bf16.mxu0 0
      %1875 = vmatpush1.bf16.msra.mxu0 0
      %1876 = vmatprep.subr.bf16.mxu0 0
      %1877 = vmatpush1.bf16.msra.mxu0 0
      %1878 = vmatprep.subr.bf16.mxu0 0
      %1879 = vmatpush1.bf16.msra.mxu0 0
      %1880 = vmatprep.subr.bf16.mxu0 0
      %1881 = vmatpush1.bf16.msra.mxu0 0
      %1882 = vmatprep.subr.bf16.mxu0 0
      %1883 = vmatpush1.bf16.msra.mxu0 0
      %1884 = vmatprep.mubr.bf16.mxu0 0
      %1885 = vmatmul.mubr.bf16.gmra.mrb[0].mxu0 %v1838
      %v1886 = vpop.f32.mrb[0].mxu0
      %v1887 = vadd.f32 0.0, %v1886
      %v1888 = vpop.f32.mrb[0].mxu0
      %v1889 = vpop.f32.mrb[0].mxu0
      %v1890 = vadd.f32 0.0, %v1889
      %v1891 = vpop.f32.mrb[0].mxu0
      %1892 = vmatprep.mubr.bf16.mxu0 0
      %1893 = vmatmul.mubr.bf16.gmra.mrb[0].mxu0 %v1841
      %v1894 = vpop.f32.mrb[0].mxu0
      %v1895 = vadd.f32 0.0, %v1894
      %v1896 = vpop.f32.mrb[0].mxu0
      %v1897 = vpop.f32.mrb[0].mxu0
      %v1898 = vadd.f32 0.0, %v1897
      %v1899 = vpop.f32.mrb[0].mxu0
      %1900 = vmatprep.mubr.bf16.mxu0 0
      %1901 = vmatmul.mubr.bf16.gmra.mrb[0].mxu0 %v1844
      %v1902 = vpop.f32.mrb[0].mxu0
      %v1903 = vadd.f32 0.0, %v1902
      %v1904 = vpop.f32.mrb[0].mxu0
      %v1905 = vpop.f32.mrb[0].mxu0
      %v1906 = vadd.f32 0.0, %v1905
      %v1907 = vpop.f32.mrb[0].mxu0
      %1908 = vmatprep.mubr.bf16.mxu0 0
      %1909 = vmatmul.mubr.bf16.gmra.mrb[0].mxu0 %v1847
      %v1910 = vpop.f32.mrb[0].mxu0
      %v1911 = vadd.f32 0.0, %v1910
      %v1912 = vpop.f32.mrb[0].mxu0
      %v1913 = vpop.f32.mrb[0].mxu0
      %v1914 = vadd.f32 0.0, %v1913
      %v1915 = vpop.f32.mrb[0].mxu0
      %1916 = vmatprep.mubr.bf16.mxu0 0
      %1917 = vmatmul.mubr.bf16.gmra.mrb[0].mxu0 %v1850
      %v1918 = vpop.f32.mrb[0].mxu0
      %v1919 = vadd.f32 0.0, %v1918
      %v1920 = vpop.f32.mrb[0].mxu0
      %v1921 = vpop.f32.mrb[0].mxu0
      %v1922 = vpop.f32.mrb[0].mxu0
      %1923 = vdwg.mxu0
      %v1924 = vadd.f32 %v1777, %v1887
      %v1925 = vadd.f32 %v1778, %v1890
      %v1926 = vadd.f32 %v1779, %v1895
      %v1927 = vadd.f32 %v1780, %v1898
      %v1928 = vadd.f32 %v1781, %v1903
      %v1929 = vadd.f32 %v1782, %v1906
      %v1930 = vadd.f32 %v1783, %v1911
      %v1931 = vadd.f32 %v1784, %v1914
      %v1932 = vadd.f32 %v1785, %v1919
      %v1933 = vld [vmem:[%s183 + $0xc] sm:$0x8]
      %v1934 = vld [vmem:[%s183 + $0x10] sm:$0xf]
      %v1935 = vld [vmem:[%s183 + $0x14] sm:$0xf]
      %v1936 = vld [vmem:[%s183 + $0x18] sm:$0xf]
      %v1937 = vld [vmem:[%s183 + $0x1c] sm:$0xf]
      %v1938 = vld [vmem:[%s183 + $0x20] sm:$0xf]
      %v1939 = vld [vmem:[%s183 + $0x24] sm:$0xf]
      %v1940 = vld [vmem:[%s183 + $0x28] sm:$0xf]
      %v1941 = vld [vmem:[%s183 + $0x2c] sm:$0xf]
      %v1942 = vld [vmem:[%s183 + $0x30] sm:$0x7]
      %s1943 = scalar_lea.vmem %s1, 192
      %v1944 = vld [vmem:[%s1943] sm:$0xf]
      %v1945 = vld [vmem:[%s1943 + $0x4] sm:$0xf]
      %v1946 = vld [vmem:[%s1943 + $0x8] sm:$0xf]
      %v1947 = vld [vmem:[%s1943 + $0xc] sm:$0xf]
      %v1958 = vunpack.c.l.b16 %v1933
      %v1959 = vunpack.c.l.b16 %v1934
      %v1960 = vunpack.c.l.b16 %v1935
      %v1961 = vunpack.c.l.b16 %v1936
      %v1962 = vunpack.c.l.b16 %v1937
      %v1963 = vunpack.c.l.b16 %v1938
      %v1964 = vunpack.c.l.b16 %v1939
      %v1965 = vunpack.c.l.b16 %v1940
      %v1966 = vunpack.c.l.b16 %v1941
      %v1967 = vunpack.c.l.b16 %v1942
      %v1968 = vpack.c.b16 %v1959, %v1958
      %v1969 = vpack.c.b16 %v1961, %v1960
      %v1970 = vpack.c.b16 %v1963, %v1962
      %v1971 = vpack.c.b16 %v1965, %v1964
      %v1972 = vpack.c.b16 %v1967, %v1966
      %v1973 = vrot.slane %v1968, 3
      %v1974 = vrot.slane %v1969, 3
      %v1975 = vsel %vm1668, %v1973, %v1974
      %v1976 = vrot.slane %v1970, 3
      %v1977 = vsel %vm1668, %v1974, %v1976
      %v1978 = vrot.slane %v1971, 3
      %v1979 = vsel %vm1668, %v1976, %v1978
      %v1980 = vrot.slane %v1972, 3
      %v1981 = vsel %vm1668, %v1978, %v1980
      %v1986 = vunpack.c.l.b16 %v1944
      %v1987 = vunpack.c.l.b16 %v1945
      %v1988 = vunpack.c.l.b16 %v1946
      %v1989 = vunpack.c.l.b16 %v1947
      %v1990 = vpack.c.b16 %v1987, %v1986
      %v1991 = vpack.c.b16 %v1989, %v1988
      %v1995 = vsel %vm291, %v1975, 0
      %v1998 = vsel %vm291, %v1977, 0
      %v2001 = vsel %vm291, %v1979, 0
      %v2004 = vsel %vm291, %v1981, 0
      %v2007 = vsel %vm291, %v1980, 0
      %2009 = vmatprep.subr.bf16.mxu0 0
      %2010 = vmatpush1.bf16.msra.mxu0 %v1990
      %2011 = vmatprep.subr.bf16.mxu0 0
      %2012 = vmatpush1.bf16.msra.mxu0 %v1991
      %2013 = vmatprep.subr.bf16.mxu0 0
      %2014 = vmatpush1.bf16.msra.mxu0 0
      %2015 = vmatprep.subr.bf16.mxu0 0
      %2016 = vmatpush1.bf16.msra.mxu0 0
      %2017 = vmatprep.subr.bf16.mxu0 0
      %2018 = vmatpush1.bf16.msra.mxu0 0
      %2019 = vmatprep.subr.bf16.mxu0 0
      %2020 = vmatpush1.bf16.msra.mxu0 0
      %2021 = vmatprep.subr.bf16.mxu0 0
      %2022 = vmatpush1.bf16.msra.mxu0 0
      %2023 = vmatprep.subr.bf16.mxu0 0
      %2024 = vmatpush1.bf16.msra.mxu0 0
      %2025 = vmatprep.subr.bf16.mxu0 0
      %2026 = vmatpush1.bf16.msra.mxu0 0
      %2027 = vmatprep.subr.bf16.mxu0 0
      %2028 = vmatpush1.bf16.msra.mxu0 0
      %2029 = vmatprep.subr.bf16.mxu0 0
      %2030 = vmatpush1.bf16.msra.mxu0 0
      %2031 = vmatprep.subr.bf16.mxu0 0
      %2032 = vmatpush1.bf16.msra.mxu0 0
      %2033 = vmatprep.subr.bf16.mxu0 0
      %2034 = vmatpush1.bf16.msra.mxu0 0
      %2035 = vmatprep.subr.bf16.mxu0 0
      %2036 = vmatpush1.bf16.msra.mxu0 0
      %2037 = vmatprep.subr.bf16.mxu0 0
      %2038 = vmatpush1.bf16.msra.mxu0 0
      %2039 = vmatprep.subr.bf16.mxu0 0
      %2040 = vmatpush1.bf16.msra.mxu0 0
      %2041 = vmatprep.mubr.bf16.mxu0 0
      %2042 = vmatmul.mubr.bf16.gmra.mrb[0].mxu0 %v1995
      %v2043 = vpop.f32.mrb[0].mxu0
      %v2044 = vadd.f32 0.0, %v2043
      %v2045 = vpop.f32.mrb[0].mxu0
      %v2046 = vpop.f32.mrb[0].mxu0
      %v2047 = vadd.f32 0.0, %v2046
      %v2048 = vpop.f32.mrb[0].mxu0
      %2049 = vmatprep.mubr.bf16.mxu0 0
      %2050 = vmatmul.mubr.bf16.gmra.mrb[0].mxu0 %v1998
      %v2051 = vpop.f32.mrb[0].mxu0
      %v2052 = vadd.f32 0.0, %v2051
      %v2053 = vpop.f32.mrb[0].mxu0
      %v2054 = vpop.f32.mrb[0].mxu0
      %v2055 = vadd.f32 0.0, %v2054
      %v2056 = vpop.f32.mrb[0].mxu0
      %2057 = vmatprep.mubr.bf16.mxu0 0
      %2058 = vmatmul.mubr.bf16.gmra.mrb[0].mxu0 %v2001
      %v2059 = vpop.f32.mrb[0].mxu0
      %v2060 = vadd.f32 0.0, %v2059
      %v2061 = vpop.f32.mrb[0].mxu0
      %v2062 = vpop.f32.mrb[0].mxu0
      %v2063 = vadd.f32 0.0, %v2062
      %v2064 = vpop.f32.mrb[0].mxu0
      %2065 = vmatprep.mubr.bf16.mxu0 0
      %2066 = vmatmul.mubr.bf16.gmra.mrb[0].mxu0 %v2004
      %v2067 = vpop.f32.mrb[0].mxu0
      %v2068 = vadd.f32 0.0, %v2067
      %v2069 = vpop.f32.mrb[0].mxu0
      %v2070 = vpop.f32.mrb[0].mxu0
      %v2071 = vadd.f32 0.0, %v2070
      %v2072 = vpop.f32.mrb[0].mxu0
      %2073 = vmatprep.mubr.bf16.mxu0 0
      %2074 = vmatmul.mubr.bf16.gmra.mrb[0].mxu0 %v2007
      %v2075 = vpop.f32.mrb[0].mxu0
      %v2076 = vadd.f32 0.0, %v2075
      %v2077 = vpop.f32.mrb[0].mxu0
      %v2078 = vpop.f32.mrb[0].mxu0
      %v2079 = vpop.f32.mrb[0].mxu0
      %2080 = vdwg.mxu0
      %v2081 = vadd.f32 %v1924, %v2044
      %v2082 = vadd.f32 %v1925, %v2047
      %v2083 = vadd.f32 %v1926, %v2052
      %v2084 = vadd.f32 %v1927, %v2055
      %v2085 = vadd.f32 %v1928, %v2060
      %v2086 = vadd.f32 %v1929, %v2063
      %v2087 = vadd.f32 %v1930, %v2068
      %v2088 = vadd.f32 %v1931, %v2071
      %v2089 = vadd.f32 %v1932, %v2076
      %v2090 = vld [vmem:[%s183 + $0x30] sm:$0xf]
      %s2091 = scalar_lea.vmem %s1, 208
      %v2092 = vld [vmem:[%s2091] sm:$0xf]
      %v2093 = vld [vmem:[%s2091 + $0x4] sm:$0xf]
      %v2094 = vld [vmem:[%s2091 + $0x8] sm:$0xf]
      %v2095 = vld [vmem:[%s2091 + $0xc] sm:$0xf]
      %v2097 = vunpack.c.l.b16 %v2090
      %v2098 = vpack.c.b16 %v2097, %v1966
      %v2100 = vshrl.u32 %v1968, 16
      %v2102 = vrot.slane %v2100, 3
      %v2103 = vshll.u32 %v1968, 16
      %v2105 = vrot.slane %v2103, 4
      %v2106 = vor.u32 %v2102, %v2105
      %v2108 = vshrl.u32 %v1969, 16
      %v2110 = vrot.slane %v2108, 3
      %v2111 = vshll.u32 %v1969, 16
      %v2113 = vrot.slane %v2111, 4
      %v2114 = vor.u32 %v2110, %v2113
      %v2115 = vsel %vm1795, %v2106, %v2114
      %v2117 = vshrl.u32 %v1970, 16
      %v2119 = vrot.slane %v2117, 3
      %v2120 = vshll.u32 %v1970, 16
      %v2122 = vrot.slane %v2120, 4
      %v2123 = vor.u32 %v2119, %v2122
      %v2124 = vsel %vm1795, %v2114, %v2123
      %v2126 = vshrl.u32 %v1971, 16
      %v2128 = vrot.slane %v2126, 3
      %v2129 = vshll.u32 %v1971, 16
      %v2131 = vrot.slane %v2129, 4
      %v2132 = vor.u32 %v2128, %v2131
      %v2133 = vsel %vm1795, %v2123, %v2132
      %v2135 = vshrl.u32 %v2098, 16
      %v2137 = vrot.slane %v2135, 3
      %v2138 = vshll.u32 %v2098, 16
      %v2140 = vrot.slane %v2138, 4
      %v2141 = vor.u32 %v2137, %v2140
      %v2142 = vsel %vm1795, %v2132, %v2141
      %v2147 = vunpack.c.l.b16 %v2092
      %v2148 = vunpack.c.l.b16 %v2093
      %v2149 = vunpack.c.l.b16 %v2094
      %v2150 = vunpack.c.l.b16 %v2095
      %v2151 = vpack.c.b16 %v2148, %v2147
      %v2152 = vpack.c.b16 %v2150, %v2149
      %v2156 = vsel %vm291, %v2115, 0
      %v2159 = vsel %vm291, %v2124, 0
      %v2162 = vsel %vm291, %v2133, 0
      %v2165 = vsel %vm291, %v2142, 0
      %v2168 = vsel %vm291, %v2141, 0
      %2170 = vmatprep.subr.bf16.mxu0 0
      %2171 = vmatpush1.bf16.msra.mxu0 %v2151
      %2172 = vmatprep.subr.bf16.mxu0 0
      %2173 = vmatpush1.bf16.msra.mxu0 %v2152
      %2174 = vmatprep.subr.bf16.mxu0 0
      %2175 = vmatpush1.bf16.msra.mxu0 0
      %2176 = vmatprep.subr.bf16.mxu0 0
      %2177 = vmatpush1.bf16.msra.mxu0 0
      %2178 = vmatprep.subr.bf16.mxu0 0
      %2179 = vmatpush1.bf16.msra.mxu0 0
      %2180 = vmatprep.subr.bf16.mxu0 0
      %2181 = vmatpush1.bf16.msra.mxu0 0
      %2182 = vmatprep.subr.bf16.mxu0 0
      %2183 = vmatpush1.bf16.msra.mxu0 0
      %2184 = vmatprep.subr.bf16.mxu0 0
      %2185 = vmatpush1.bf16.msra.mxu0 0
      %2186 = vmatprep.subr.bf16.mxu0 0
      %2187 = vmatpush1.bf16.msra.mxu0 0
      %2188 = vmatprep.subr.bf16.mxu0 0
      %2189 = vmatpush1.bf16.msra.mxu0 0
      %2190 = vmatprep.subr.bf16.mxu0 0
      %2191 = vmatpush1.bf16.msra.mxu0 0
      %2192 = vmatprep.subr.bf16.mxu0 0
      %2193 = vmatpush1.bf16.msra.mxu0 0
      %2194 = vmatprep.subr.bf16.mxu0 0
      %2195 = vmatpush1.bf16.msra.mxu0 0
      %2196 = vmatprep.subr.bf16.mxu0 0
      %2197 = vmatpush1.bf16.msra.mxu0 0
      %2198 = vmatprep.subr.bf16.mxu0 0
      %2199 = vmatpush1.bf16.msra.mxu0 0
      %2200 = vmatprep.subr.bf16.mxu0 0
      %2201 = vmatpush1.bf16.msra.mxu0 0
      %2202 = vmatprep.mubr.bf16.mxu0 0
      %2203 = vmatmul.mubr.bf16.gmra.mrb[0].mxu0 %v2156
      %v2204 = vpop.f32.mrb[0].mxu0
      %v2205 = vadd.f32 0.0, %v2204
      %v2206 = vpop.f32.mrb[0].mxu0
      %v2207 = vpop.f32.mrb[0].mxu0
      %v2208 = vadd.f32 0.0, %v2207
      %v2209 = vpop.f32.mrb[0].mxu0
      %2210 = vmatprep.mubr.bf16.mxu0 0
      %2211 = vmatmul.mubr.bf16.gmra.mrb[0].mxu0 %v2159
      %v2212 = vpop.f32.mrb[0].mxu0
      %v2213 = vadd.f32 0.0, %v2212
      %v2214 = vpop.f32.mrb[0].mxu0
      %v2215 = vpop.f32.mrb[0].mxu0
      %v2216 = vadd.f32 0.0, %v2215
      %v2217 = vpop.f32.mrb[0].mxu0
      %2218 = vmatprep.mubr.bf16.mxu0 0
      %2219 = vmatmul.mubr.bf16.gmra.mrb[0].mxu0 %v2162
      %v2220 = vpop.f32.mrb[0].mxu0
      %v2221 = vadd.f32 0.0, %v2220
      %v2222 = vpop.f32.mrb[0].mxu0
      %v2223 = vpop.f32.mrb[0].mxu0
      %v2224 = vadd.f32 0.0, %v2223
      %v2225 = vpop.f32.mrb[0].mxu0
      %2226 = vmatprep.mubr.bf16.mxu0 0
      %2227 = vmatmul.mubr.bf16.gmra.mrb[0].mxu0 %v2165
      %v2228 = vpop.f32.mrb[0].mxu0
      %v2229 = vadd.f32 0.0, %v2228
      %v2230 = vpop.f32.mrb[0].mxu0
      %v2231 = vpop.f32.mrb[0].mxu0
      %v2232 = vadd.f32 0.0, %v2231
      %v2233 = vpop.f32.mrb[0].mxu0
      %2234 = vmatprep.mubr.bf16.mxu0 0
      %2235 = vmatmul.mubr.bf16.gmra.mrb[0].mxu0 %v2168
      %v2236 = vpop.f32.mrb[0].mxu0
      %v2237 = vadd.f32 0.0, %v2236
      %v2238 = vpop.f32.mrb[0].mxu0
      %v2239 = vpop.f32.mrb[0].mxu0
      %v2240 = vpop.f32.mrb[0].mxu0
      %2241 = vdwg.mxu0
      %v2242 = vadd.f32 %v2081, %v2205
      %v2243 = vadd.f32 %v2082, %v2208
      %v2244 = vadd.f32 %v2083, %v2213
      %v2245 = vadd.f32 %v2084, %v2216
      %v2246 = vadd.f32 %v2085, %v2221
      %v2247 = vadd.f32 %v2086, %v2224
      %v2248 = vadd.f32 %v2087, %v2229
      %v2249 = vadd.f32 %v2088, %v2232
      %v2250 = vadd.f32 %v2089, %v2237
      %s2251 = scalar_lea.vmem %s1, 224
      %v2252 = vld [vmem:[%s2251] sm:$0xf]
      %v2253 = vld [vmem:[%s2251 + $0x4] sm:$0xf]
      %v2254 = vld [vmem:[%s2251 + $0x8] sm:$0xf]
      %v2255 = vld [vmem:[%s2251 + $0xc] sm:$0xf]
      %v2256 = vpack.c.b16 %v1960, %v1959
      %v2257 = vpack.c.b16 %v1962, %v1961
      %v2258 = vpack.c.b16 %v1964, %v1963
      %v2259 = vpack.c.b16 %v1966, %v1965
      %v2260 = vpack.c.b16 %v2097, %v2097
      %v2265 = vunpack.c.l.b16 %v2252
      %v2266 = vunpack.c.l.b16 %v2253
      %v2267 = vunpack.c.l.b16 %v2254
      %v2268 = vunpack.c.l.b16 %v2255
      %v2269 = vpack.c.b16 %v2266, %v2265
      %v2270 = vpack.c.b16 %v2268, %v2267
      %v2274 = vsel %vm291, %v2256, 0
      %v2277 = vsel %vm291, %v2257, 0
      %v2280 = vsel %vm291, %v2258, 0
      %v2283 = vsel %vm291, %v2259, 0
      %v2286 = vsel %vm291, %v2260, 0
      %2288 = vmatprep.subr.bf16.mxu0 0
      %2289 = vmatpush1.bf16.msra.mxu0 %v2269
      %2290 = vmatprep.subr.bf16.mxu0 0
      %2291 = vmatpush1.bf16.msra.mxu0 %v2270
      %2292 = vmatprep.subr.bf16.mxu0 0
      %2293 = vmatpush1.bf16.msra.mxu0 0
      %2294 = vmatprep.subr.bf16.mxu0 0
      %2295 = vmatpush1.bf16.msra.mxu0 0
      %2296 = vmatprep.subr.bf16.mxu0 0
      %2297 = vmatpush1.bf16.msra.mxu0 0
      %2298 = vmatprep.subr.bf16.mxu0 0
      %2299 = vmatpush1.bf16.msra.mxu0 0
      %2300 = vmatprep.subr.bf16.mxu0 0
      %2301 = vmatpush1.bf16.msra.mxu0 0
      %2302 = vmatprep.subr.bf16.mxu0 0
      %2303 = vmatpush1.bf16.msra.mxu0 0
      %2304 = vmatprep.subr.bf16.mxu0 0
      %2305 = vmatpush1.bf16.msra.mxu0 0
      %2306 = vmatprep.subr.bf16.mxu0 0
      %2307 = vmatpush1.bf16.msra.mxu0 0
      %2308 = vmatprep.subr.bf16.mxu0 0
      %2309 = vmatpush1.bf16.msra.mxu0 0
      %2310 = vmatprep.subr.bf16.mxu0 0
      %2311 = vmatpush1.bf16.msra.mxu0 0
      %2312 = vmatprep.subr.bf16.mxu0 0
      %2313 = vmatpush1.bf16.msra.mxu0 0
      %2314 = vmatprep.subr.bf16.mxu0 0
      %2315 = vmatpush1.bf16.msra.mxu0 0
      %2316 = vmatprep.subr.bf16.mxu0 0
      %2317 = vmatpush1.bf16.msra.mxu0 0
      %2318 = vmatprep.subr.bf16.mxu0 0
      %2319 = vmatpush1.bf16.msra.mxu0 0
      %2320 = vmatprep.mubr.bf16.mxu0 0
      %2321 = vmatmul.mubr.bf16.gmra.mrb[0].mxu0 %v2274
      %v2322 = vpop.f32.mrb[0].mxu0
      %v2323 = vadd.f32 0.0, %v2322
      %v2324 = vpop.f32.mrb[0].mxu0
      %v2325 = vpop.f32.mrb[0].mxu0
      %v2326 = vadd.f32 0.0, %v2325
      %v2327 = vpop.f32.mrb[0].mxu0
      %2328 = vmatprep.mubr.bf16.mxu0 0
      %2329 = vmatmul.mubr.bf16.gmra.mrb[0].mxu0 %v2277
      %v2330 = vpop.f32.mrb[0].mxu0
      %v2331 = vadd.f32 0.0, %v2330
      %v2332 = vpop.f32.mrb[0].mxu0
      %v2333 = vpop.f32.mrb[0].mxu0
      %v2334 = vadd.f32 0.0, %v2333
      %v2335 = vpop.f32.mrb[0].mxu0
      %2336 = vmatprep.mubr.bf16.mxu0 0
      %2337 = vmatmul.mubr.bf16.gmra.mrb[0].mxu0 %v2280
      %v2338 = vpop.f32.mrb[0].mxu0
      %v2339 = vadd.f32 0.0, %v2338
      %v2340 = vpop.f32.mrb[0].mxu0
      %v2341 = vpop.f32.mrb[0].mxu0
      %v2342 = vadd.f32 0.0, %v2341
      %v2343 = vpop.f32.mrb[0].mxu0
      %2344 = vmatprep.mubr.bf16.mxu0 0
      %2345 = vmatmul.mubr.bf16.gmra.mrb[0].mxu0 %v2283
      %v2346 = vpop.f32.mrb[0].mxu0
      %v2347 = vadd.f32 0.0, %v2346
      %v2348 = vpop.f32.mrb[0].mxu0
      %v2349 = vpop.f32.mrb[0].mxu0
      %v2350 = vadd.f32 0.0, %v2349
      %v2351 = vpop.f32.mrb[0].mxu0
      %2352 = vmatprep.mubr.bf16.mxu0 0
      %2353 = vmatmul.mubr.bf16.gmra.mrb[0].mxu0 %v2286
      %v2354 = vpop.f32.mrb[0].mxu0
      %v2355 = vadd.f32 0.0, %v2354
      %v2356 = vpop.f32.mrb[0].mxu0
      %v2357 = vpop.f32.mrb[0].mxu0
      %v2358 = vpop.f32.mrb[0].mxu0
      %2359 = vdwg.mxu0
      %v2360 = vadd.f32 %v2242, %v2323
      %v2361 = vadd.f32 %v2243, %v2326
      %v2362 = vadd.f32 %v2244, %v2331
      %v2363 = vadd.f32 %v2245, %v2334
      %v2364 = vadd.f32 %v2246, %v2339
      %v2365 = vadd.f32 %v2247, %v2342
      %v2366 = vadd.f32 %v2248, %v2347
      %v2367 = vadd.f32 %v2249, %v2350
      %v2368 = vadd.f32 %v2250, %v2355
      %v2369 = vld [vmem:[%s183 + $0x10] sm:$0xf]
      %v2370 = vld [vmem:[%s183 + $0x14] sm:$0xf]
      %v2371 = vld [vmem:[%s183 + $0x18] sm:$0xf]
      %v2372 = vld [vmem:[%s183 + $0x1c] sm:$0xf]
      %v2373 = vld [vmem:[%s183 + $0x20] sm:$0xf]
      %v2374 = vld [vmem:[%s183 + $0x24] sm:$0xf]
      %v2375 = vld [vmem:[%s183 + $0x28] sm:$0xf]
      %v2376 = vld [vmem:[%s183 + $0x2c] sm:$0xf]
      %v2377 = vld [vmem:[%s183 + $0x30] sm:$0xf]
      %v2378 = vld [vmem:[%s183 + $0x34] sm:$0x1]
      %s2379 = scalar_lea.vmem %s1, 240
      %v2380 = vld [vmem:[%s2379] sm:$0xf]
      %v2381 = vld [vmem:[%s2379 + $0x4] sm:$0xf]
      %v2382 = vld [vmem:[%s2379 + $0x8] sm:$0xf]
      %v2383 = vld [vmem:[%s2379 + $0xc] sm:$0xf]
      %v2394 = vunpack.c.l.b16 %v2369
      %v2395 = vunpack.c.l.b16 %v2370
      %v2396 = vunpack.c.l.b16 %v2371
      %v2397 = vunpack.c.l.b16 %v2372
      %v2398 = vunpack.c.l.b16 %v2373
      %v2399 = vunpack.c.l.b16 %v2374
      %v2400 = vunpack.c.l.b16 %v2375
      %v2401 = vunpack.c.l.b16 %v2376
      %v2402 = vunpack.c.l.b16 %v2377
      %v2403 = vunpack.c.l.b16 %v2378
      %v2404 = vpack.c.b16 %v2395, %v2394
      %v2405 = vpack.c.b16 %v2397, %v2396
      %v2406 = vpack.c.b16 %v2399, %v2398
      %v2407 = vpack.c.b16 %v2401, %v2400
      %v2408 = vpack.c.b16 %v2403, %v2402
      %v2410 = vshrl.u32 %v2404, 16
      %v2412 = vshll.u32 %v2404, 16
      %v2414 = vrot.slane %v2412, 1
      %v2415 = vor.u32 %v2410, %v2414
      %v2417 = vshll.u32 %v2405, 16
      %v2419 = vrot.slane %v2417, 1
      %v2420 = vsel %vm239, %v2415, %v2419
      %v2421 = vshrl.u32 %v2405, 16
      %v2423 = vor.u32 %v2421, %v2419
      %v2425 = vshll.u32 %v2406, 16
      %v2427 = vrot.slane %v2425, 1
      %v2428 = vsel %vm239, %v2423, %v2427
      %v2429 = vshrl.u32 %v2406, 16
      %v2431 = vor.u32 %v2429, %v2427
      %v2433 = vshll.u32 %v2407, 16
      %v2435 = vrot.slane %v2433, 1
      %v2436 = vsel %vm239, %v2431, %v2435
      %v2437 = vshrl.u32 %v2407, 16
      %v2439 = vor.u32 %v2437, %v2435
      %v2441 = vshll.u32 %v2408, 16
      %v2443 = vrot.slane %v2441, 1
      %v2444 = vsel %vm239, %v2439, %v2443
      %v2445 = vshrl.u32 %v2408, 16
      %v2447 = vor.u32 %v2445, %v2443
      %v2452 = vunpack.c.l.b16 %v2380
      %v2453 = vunpack.c.l.b16 %v2381
      %v2454 = vunpack.c.l.b16 %v2382
      %v2455 = vunpack.c.l.b16 %v2383
      %v2456 = vpack.c.b16 %v2453, %v2452
      %v2457 = vpack.c.b16 %v2455, %v2454
      %v2461 = vsel %vm291, %v2420, 0
      %v2464 = vsel %vm291, %v2428, 0
      %v2467 = vsel %vm291, %v2436, 0
      %v2470 = vsel %vm291, %v2444, 0
      %v2473 = vsel %vm291, %v2447, 0
      %2475 = vmatprep.subr.bf16.mxu0 0
      %2476 = vmatpush1.bf16.msra.mxu0 %v2456
      %2477 = vmatprep.subr.bf16.mxu0 0
      %2478 = vmatpush1.bf16.msra.mxu0 %v2457
      %2479 = vmatprep.subr.bf16.mxu0 0
      %2480 = vmatpush1.bf16.msra.mxu0 0
      %2481 = vmatprep.subr.bf16.mxu0 0
      %2482 = vmatpush1.bf16.msra.mxu0 0
      %2483 = vmatprep.subr.bf16.mxu0 0
      %2484 = vmatpush1.bf16.msra.mxu0 0
      %2485 = vmatprep.subr.bf16.mxu0 0
      %2486 = vmatpush1.bf16.msra.mxu0 0
      %2487 = vmatprep.subr.bf16.mxu0 0
      %2488 = vmatpush1.bf16.msra.mxu0 0
      %2489 = vmatprep.subr.bf16.mxu0 0
      %2490 = vmatpush1.bf16.msra.mxu0 0
      %2491 = vmatprep.subr.bf16.mxu0 0
      %2492 = vmatpush1.bf16.msra.mxu0 0
      %2493 = vmatprep.subr.bf16.mxu0 0
      %2494 = vmatpush1.bf16.msra.mxu0 0
      %2495 = vmatprep.subr.bf16.mxu0 0
      %2496 = vmatpush1.bf16.msra.mxu0 0
      %2497 = vmatprep.subr.bf16.mxu0 0
      %2498 = vmatpush1.bf16.msra.mxu0 0
      %2499 = vmatprep.subr.bf16.mxu0 0
      %2500 = vmatpush1.bf16.msra.mxu0 0
      %2501 = vmatprep.subr.bf16.mxu0 0
      %2502 = vmatpush1.bf16.msra.mxu0 0
      %2503 = vmatprep.subr.bf16.mxu0 0
      %2504 = vmatpush1.bf16.msra.mxu0 0
      %2505 = vmatprep.subr.bf16.mxu0 0
      %2506 = vmatpush1.bf16.msra.mxu0 0
      %2507 = vmatprep.mubr.bf16.mxu0 0
      %2508 = vmatmul.mubr.bf16.gmra.mrb[0].mxu0 %v2461
      %v2509 = vpop.f32.mrb[0].mxu0
      %v2510 = vadd.f32 0.0, %v2509
      %v2511 = vpop.f32.mrb[0].mxu0
      %v2512 = vpop.f32.mrb[0].mxu0
      %v2513 = vadd.f32 0.0, %v2512
      %v2514 = vpop.f32.mrb[0].mxu0
      %2515 = vmatprep.mubr.bf16.mxu0 0
      %2516 = vmatmul.mubr.bf16.gmra.mrb[0].mxu0 %v2464
      %v2517 = vpop.f32.mrb[0].mxu0
      %v2518 = vadd.f32 0.0, %v2517
      %v2519 = vpop.f32.mrb[0].mxu0
      %v2520 = vpop.f32.mrb[0].mxu0
      %v2521 = vadd.f32 0.0, %v2520
      %v2522 = vpop.f32.mrb[0].mxu0
      %2523 = vmatprep.mubr.bf16.mxu0 0
      %2524 = vmatmul.mubr.bf16.gmra.mrb[0].mxu0 %v2467
      %v2525 = vpop.f32.mrb[0].mxu0
      %v2526 = vadd.f32 0.0, %v2525
      %v2527 = vpop.f32.mrb[0].mxu0
      %v2528 = vpop.f32.mrb[0].mxu0
      %v2529 = vadd.f32 0.0, %v2528
      %v2530 = vpop.f32.mrb[0].mxu0
      %2531 = vmatprep.mubr.bf16.mxu0 0
      %2532 = vmatmul.mubr.bf16.gmra.mrb[0].mxu0 %v2470
      %v2533 = vpop.f32.mrb[0].mxu0
      %v2534 = vadd.f32 0.0, %v2533
      %v2535 = vpop.f32.mrb[0].mxu0
      %v2536 = vpop.f32.mrb[0].mxu0
      %v2537 = vadd.f32 0.0, %v2536
      %v2538 = vpop.f32.mrb[0].mxu0
      %2539 = vmatprep.mubr.bf16.mxu0 0
      %2540 = vmatmul.mubr.bf16.gmra.mrb[0].mxu0 %v2473
      %v2541 = vpop.f32.mrb[0].mxu0
      %v2542 = vadd.f32 0.0, %v2541
      %v2543 = vpop.f32.mrb[0].mxu0
      %v2544 = vpop.f32.mrb[0].mxu0
      %v2545 = vpop.f32.mrb[0].mxu0
      %2546 = vdwg.mxu0
      %v2547 = vadd.f32 %v2360, %v2510
      %v2548 = vadd.f32 %v2361, %v2513
      %v2549 = vadd.f32 %v2362, %v2518
      %v2550 = vadd.f32 %v2363, %v2521
      %v2551 = vadd.f32 %v2364, %v2526
      %v2552 = vadd.f32 %v2365, %v2529
      %v2553 = vadd.f32 %v2366, %v2534
      %v2554 = vadd.f32 %v2367, %v2537
      %v2555 = vadd.f32 %v2368, %v2542
      %v2556 = vld [vmem:[%s2] sm:$0x1]
      %v2558 = vlaneseq
      %v2559 = vshrl.u32 %v2558, 7
      %v2560 = vsub.s32 0, %v2559
      %v2561 = vrot.slane %v2556, %v2560
      %v2563 = vadd.f32 %v2547, %v2561
      %v2564 = vadd.f32 %v2548, %v2561
      %v2565 = vadd.f32 %v2549, %v2561
      %v2566 = vadd.f32 %v2550, %v2561
      %v2567 = vadd.f32 %v2551, %v2561
      %v2568 = vadd.f32 %v2552, %v2561
      %v2569 = vadd.f32 %v2553, %v2561
      %v2570 = vadd.f32 %v2554, %v2561
      %v2571 = vadd.f32 %v2555, %v2561
      %v2572 = vpack.c.bf16 %v2564, %v2563
      %v2573 = vpack.c.bf16 %v2566, %v2565
      %v2574 = vpack.c.bf16 %v2568, %v2567
      %v2575 = vpack.c.bf16 %v2570, %v2569
      %v2576 = vpack.c.bf16 %v2571, %v2571
      %v2582 = vunpack.c.l.b16 %v2572
      %v2583 = vunpack.c.h.b16 %v2572
      %v2584 = vunpack.c.l.b16 %v2573
      %v2585 = vunpack.c.h.b16 %v2573
      %v2586 = vunpack.c.l.b16 %v2574
      %v2587 = vunpack.c.h.b16 %v2574
      %v2588 = vunpack.c.l.b16 %v2575
      %v2589 = vunpack.c.h.b16 %v2575
      %v2590 = vunpack.c.l.b16 %v2576
      %v2591 = vpack.c.b16 %v2582, %v2582
      %v2592 = vpack.c.b16 %v2583, %v2583
      %v2593 = vpack.c.b16 %v2584, %v2584
      %v2594 = vpack.c.b16 %v2585, %v2585
      %v2595 = vpack.c.b16 %v2586, %v2586
      %v2596 = vpack.c.b16 %v2587, %v2587
      %v2597 = vpack.c.b16 %v2588, %v2588
      %v2598 = vpack.c.b16 %v2589, %v2589
      %v2599 = vpack.c.b16 %v2590, %v2590
      %2609 = vst [vmem:[%s192] sm:$0xf] %v2591
      %2610 = vst [vmem:[%s192 + $0x4] sm:$0xf] %v2592
      %2611 = vst [vmem:[%s192 + $0x8] sm:$0xf] %v2593
      %2612 = vst [vmem:[%s192 + $0xc] sm:$0xf] %v2594
      %2613 = vst [vmem:[%s192 + $0x10] sm:$0xf] %v2595
      %2614 = vst [vmem:[%s192 + $0x14] sm:$0xf] %v2596
      %2615 = vst [vmem:[%s192 + $0x18] sm:$0xf] %v2597
      %2616 = vst [vmem:[%s192 + $0x1c] sm:$0xf] %v2598
      %2617 = vst [vmem:[%s192 + $0x20] sm:$0xf] %v2599
      %s2618 = smul.u32 9, %s19
      %p2619 = scmp.lt.s32.totalorder %s18, 1
      %s2620 = scalar_select %p2619, %s18, 1
      %p2621 = scmp.lt.s32.totalorder %s2618, 8
      %s2622 = scalar_select %p2621, %s2618, 8
      %s2623 = smul.addr %s2620, 9
      %s2624 = sadd.s32 %s2622, %s2623
      %s2625 = smul.addr %s2624, 4
      %s2626 = scalar_lea.vmem %s3, %s2625
      // Predicated region
      $region33: #{_lambda_.11} parent=31 // pred_check
        %p2627 = pneg %p114
      $region34: #{_lambda_.11} parent=31 // pred_check_branch
        %2629 = sbr.rel (%p2627) target = $region36
      $region35: #{_lambda_.11} parent=31 // pred_region
        %s2630 = smul.u32 9, %s19
      $region36: #{_lambda_.11} parent=31 // pred_fallthru
        _
    $region32: #{_lambda_.11} parent=5 // pred_fallthru
      _
    %p2631 = scmp.le.s32.totalorder 2, %s9
    // Predicated region
    $region37: #{_lambda_.11} parent=5 // pred_check
      %p2632 = pneg %p2631
    $region38: #{_lambda_.11} parent=5 // pred_check_branch
      %2634 = sbr.rel (%p2632) target = $region40
    $region39: #{_lambda_.11} parent=5 // pred_region
      %s2635 = ssub.s32 %s9, 2
      // Predicated region
      $region41: #{_lambda_.11} parent=39 // pred_check
        %p2636 = pneg %p120
      $region42: #{_lambda_.11} parent=39 // pred_check_branch
        %2638 = sbr.rel (%p2636) target = $region44
      $region43: #{_lambda_.11} parent=39 // pred_region
        %s2639 = smul.u32 9, %s21
        %p2640 = scmp.lt.s32.totalorder %s20, 1
        %s2641 = scalar_select %p2640, %s20, 1
        %p2642 = scmp.lt.s32.totalorder %s2639, 8
        %s2643 = scalar_select %p2642, %s2639, 8
        %s2644 = smul.addr %s2641, 9
        %s2645 = sadd.s32 %s2643, %s2644
        %s2646 = smul.addr %s2645, 4
        %s2647 = scalar_lea.vmem %s3, %s2646
      $region44: #{_lambda_.11} parent=39 // pred_fallthru
        _
    $region40: #{_lambda_.11} parent=5 // pred_fallthru
      _
  $region6: #{_lambda_.11} parent=0 // loop_footer
    %s13 = sadd.s32 1, %s9
  $region7: #{_lambda_.11} parent=0 // loop_footer_branch
    %8 = sbr.rel target = $region3
  $region8: #{_lambda_.11} parent=0 // loop_exit
    _

</llo_original>
